<compile_context>
chip_gen: v7x
topology: tpu7x:2x2x1
jax: 0.10.0
libtpu: 0.0.40
codegen_flags: <defaults>
</compile_context>

<pallas_src>
import functools

import jax
import jax.numpy as jnp
from jax.experimental import pallas as pl
from jax.experimental.pallas import tpu as pltpu

LANE = 128  # TPU lane width; channel tiles are sized in multiples of this.


def _round_up(n: int, m: int) -> int:
    return ((n + m - 1) // m) * m


# ---------------------------------------------------------------------------
# Fused kernel:  [BN affine] -> 3x3 conv (padding=1) -> bias -> PReLU chain
# ---------------------------------------------------------------------------
def _conv3x3_bn_prelu_kernel(x_ref, w_ref, b_ref, s_ref, t_ref, a_ref, o_ref,
                             stg_ref, acc_ref, *, H, W, num_prelu, apply_bn):
    """One (batch, Cout-tile, Cin-tile) grid step.

    x_ref : (1, H, W, tci)          input tile (f32 or bf16)
    w_ref : (1, 3, 3*tci, tco)      conv weights with (kx, cin) packed on lanes
    b_ref : (1, tco)                conv bias (f32)
    s_ref, t_ref : (1, tci)         fused BatchNorm scale / shift (f32)
    a_ref : (num_prelu, tco)        per-channel PReLU slopes, applied in order
    o_ref : (1, H, W, tco)          output tile
    stg_ref: VMEM (H+2, W, 3*tci) bf16  staged input (3 column-shifted copies)
    acc_ref: VMEM (H*W, tco) f32        accumulator (lives across Cin tiles)
    """
    ci = pl.program_id(2)
    n_ci = pl.num_programs(2)
    HW = H * W
    tci = x_ref.shape[-1]
    lanes = stg_ref.shape[-1]  # 3 * tci

    # Once per (batch, cout-tile): zero the accumulator and the staging
    # buffer's halo rows (conv padding).  Rows 1..H are fully rewritten every
    # ci step; rows 0 and H+1 are never written, so this is sufficient.
    @pl.when(ci == 0)
    def _init():
        acc_ref[...] = jnp.zeros_like(acc_ref)
        halo = jnp.zeros((1, W, lanes), jnp.bfloat16)
        stg_ref[0:1, :, :] = halo
        stg_ref[H + 1:H + 2, :, :] = halo

    # Stage this Cin tile: BN affine in f32, build the three column-shifted
    # copies as values (guaranteed semantics, aligned full-width stores), cast
    # to bf16 once per copy.
    xv = x_ref[0].astype(jnp.float32)                              # (H, W, tci)
    if apply_bn:  # inference-mode BatchNorm folded to a per-channel affine
        xv = xv * s_ref[...].reshape(1, 1, tci) + t_ref[...].reshape(1, 1, tci)
    zcol = jnp.zeros((H, 1, tci), jnp.float32)
    x_m1 = jnp.concatenate([zcol, xv[:, :W - 1, :]], axis=1)      # x[h, w-1]
    x_p1 = jnp.concatenate([xv[:, 1:, :], zcol], axis=1)          # x[h, w+1]
    stg_ref[1:H + 1, :, 0:tci] = x_m1.astype(jnp.bfloat16)        # kx = 0 tap
    stg_ref[1:H + 1, :, tci:2 * tci] = xv.astype(jnp.bfloat16)    # kx = 1 tap
    stg_ref[1:H + 1, :, 2 * tci:3 * tci] = x_p1.astype(jnp.bfloat16)  # kx = 2

    # 3 lane-dense MXU matmuls (K = 3*tci), one per kernel row ky.  Reads are
    # slices along the (H+2) leading axis -> always aligned; the (H, W, 3tci)
    # -> (H*W, 3tci) reshape is layout preserving because W % 8 == 0.
    for ky in range(3):
        xs = stg_ref[ky:ky + H, :, :].reshape(HW, lanes)
        acc_ref[...] += jnp.dot(xs, w_ref[0, ky],
                                preferred_element_type=jnp.float32)

    # Epilogue exactly once per output tile: bias + PReLU chain, lane-dense store.
    @pl.when(ci == n_ci - 1)
    def _finalize():
        y = acc_ref[...] + b_ref[...]                              # (HW, tco)
        for i in range(num_prelu):
            a = a_ref[i:i + 1, :]                                  # (1, tco)
            y = jnp.where(y >= 0.0, y, y * a)
        o_ref[0] = y.reshape(H, W, -1).astype(o_ref.dtype)


def conv3x3_bn_prelu(x, w, b, alphas, bn_scale=None, bn_shift=None,
                     out_dtype=jnp.float32, tile_pref=256):
    """Fused [BN affine] -> Conv2d(3x3, padding=1) -> bias -> PReLU chain.

    x      : (B, H, W, Cin_x) NHWC.  Cin_x may already carry zero-padded
             trailing channels beyond the conv's logical in-channels.
    w      : (3, 3, Cin_logical, Cout) conv weights (HWIO).
    b      : (Cout,) bias.
    alphas : (num_prelu, Cout) PReLU slopes, applied in order.
    bn_scale / bn_shift : optional (Cin_logical,) per-channel affine applied to
             x before the conv (inference-mode BatchNorm).
    Returns (B, H, W, Cout_padded); Cout is padded to a lane multiple and the
    extra channels are exactly zero.
    """
    B, H, W, cin_x = x.shape
    kh, kw, cin_w, cout = w.shape
    assert (kh, kw) == (3, 3)
    assert W % 8 == 0, "W must be a multiple of 8 (sublane tile) for this kernel"
    assert cin_x >= cin_w

    cin_p = _round_up(cin_x, LANE)
    cout_p = _round_up(cout, LANE)
    tile_ci = tile_pref if cin_p % tile_pref == 0 else LANE
    tile_co = tile_pref if cout_p % tile_pref == 0 else LANE
    n_ci = cin_p // tile_ci
    n_co = cout_p // tile_co
    num_prelu = alphas.shape[0]

    # Channel padding only (lane-dense operands); NO spatial pad in HBM.
    if cin_p != cin_x:
        x = jnp.pad(x, ((0, 0), (0, 0), (0, 0), (0, cin_p - cin_x)))
    w_p = jnp.pad(w, ((0, 0), (0, 0), (0, cin_p - cin_w),
                      (0, cout_p - cout))).astype(jnp.bfloat16)
    # Pack (kx, cin-within-tile) onto one lane axis per Cin tile so the kernel
    # runs one K = 3*tile_ci matmul per kernel row ky.
    w_r = w_p.reshape(3, 3, n_ci, tile_ci, cout_p)
    w_r = jnp.transpose(w_r, (2, 0, 1, 3, 4)).reshape(n_ci, 3, 3 * tile_ci, cout_p)

    b_p = jnp.pad(b, (0, cout_p - cout)).reshape(1, cout_p).astype(jnp.float32)
    a_p = jnp.pad(alphas, ((0, 0), (0, cout_p - cout))).astype(jnp.float32)

    apply_bn = bn_scale is not None
    if apply_bn:
        s_p = jnp.pad(bn_scale, (0, cin_p - cin_w)).reshape(1, cin_p)
        t_p = jnp.pad(bn_shift, (0, cin_p - cin_w)).reshape(1, cin_p)
    else:
        s_p = jnp.ones((1, cin_p), jnp.float32)
        t_p = jnp.zeros((1, cin_p), jnp.float32)
    s_p = s_p.astype(jnp.float32)
    t_p = t_p.astype(jnp.float32)

    grid = (B, n_co, n_ci)
    kernel = functools.partial(_conv3x3_bn_prelu_kernel, H=H, W=W,
                               num_prelu=num_prelu, apply_bn=apply_bn)

    out_isz = jnp.dtype(out_dtype).itemsize
    # Rough per-core VMEM working set (double-buffered blocks + scratch).
    vmem_need = (2 * H * W * tile_ci * x.dtype.itemsize
                 + 2 * 3 * 3 * tile_ci * tile_co * 2
                 + 2 * H * W * tile_co * out_isz
                 + (H + 2) * W * 3 * tile_ci * 2
                 + H * W * tile_co * 4)
    vmem_limit = int(min(max(2 * vmem_need, 32 * 1024 * 1024), 64 * 1024 * 1024))

    flops = 2 * B * H * W * 9 * cin_p * cout_p
    x_reads = 1 if n_ci == 1 else n_co   # Pallas skips refetch of a repeated block index
    w_reads = 1 if (n_ci == 1 and n_co == 1) else B
    bytes_accessed = int(x.size * x.dtype.itemsize * x_reads
                         + w_r.size * 2 * w_reads
                         + B * H * W * cout_p * out_isz)

    # TODO(synk): add an H-row grid axis (1-row halo via manual DMA from a
    # pl.ANY input) so large resolutions fit v7x's 64 MiB VMEM and both v7x
    # TensorCores get work even when B == 1 and Cout fits one tile.
    # TODO(synk): when n_ci > 1 and n_co > 1, cache the staged bf16 input per
    # Cin tile in a persistent VMEM scratch to avoid re-staging per Cout tile.
    return pl.pallas_call(
        kernel,
        out_shape=jax.ShapeDtypeStruct((B, H, W, cout_p), out_dtype),
        grid_spec=pltpu.PrefetchScalarGridSpec(
            num_scalar_prefetch=0,
            grid=grid,
            in_specs=[
                pl.BlockSpec((1, H, W, tile_ci),
                             lambda bi, co, ci: (bi, 0, 0, ci)),
                pl.BlockSpec((1, 3, 3 * tile_ci, tile_co),
                             lambda bi, co, ci: (ci, 0, 0, co)),
                pl.BlockSpec((1, tile_co), lambda bi, co, ci: (0, co)),
                pl.BlockSpec((1, tile_ci), lambda bi, co, ci: (0, ci)),
                pl.BlockSpec((1, tile_ci), lambda bi, co, ci: (0, ci)),
                pl.BlockSpec((num_prelu, tile_co), lambda bi, co, ci: (0, co)),
            ],
            out_specs=pl.BlockSpec((1, H, W, tile_co),
                                   lambda bi, co, ci: (bi, 0, 0, co)),
            scratch_shapes=[
                pltpu.VMEM((H + 2, W, 3 * tile_ci), jnp.bfloat16),
                pltpu.VMEM((H * W, tile_co), jnp.float32),
            ],
        ),
        compiler_params=pltpu.CompilerParams(
            dimension_semantics=("parallel", "parallel", "arbitrary"),
            vmem_limit_bytes=vmem_limit),
        cost_estimate=pl.CostEstimate(flops=flops, transcendentals=0,
                                      bytes_accessed=bytes_accessed),
    )(x, w_r, b_p, s_p, t_p, a_p)


# ---------------------------------------------------------------------------
# DoubleConv forward (matches PyTorch DoubleConv.forward semantics, NCHW I/O)
# ---------------------------------------------------------------------------
def _bn_scale_shift(params, eps):
    s = params["bn_gamma"] / jnp.sqrt(params["bn_var"] + eps)
    t = params["bn_beta"] - params["bn_mean"] * s
    return s, t


def double_conv_forward(x_nchw, params, eps=1e-5):
    """BN -> Conv3x3 -> PReLU -> Conv3x3 -> PReLU -> PReLU.  x: (B, Cin, H, W)."""
    # TODO(synk): BatchNorm2d runs in inference mode (running stats); a
    # training-mode forward would compute batch statistics with a cheap jnp
    # reduction and feed them through the same scale/shift inputs.
    # TODO(synk): for bandwidth-bound chips (v5e) fuse both convs into one
    # kernel (intermediate kept in VMEM with a recompute halo) to remove the
    # inter-conv HBM round trip; kept as two calls here with a bf16,
    # lane-padded intermediate.
    cout = params["w1"].shape[-1]
    x = jnp.transpose(x_nchw, (0, 2, 3, 1))                    # NCHW -> NHWC
    s, t = _bn_scale_shift(params, eps)
    # conv1: BN + conv + bias + PReLU fused; intermediate kept bf16, lane-padded.
    h = conv3x3_bn_prelu(x, params["w1"], params["b1"],
                         alphas=params["a1"][None, :],
                         bn_scale=s, bn_shift=t,
                         out_dtype=jnp.bfloat16)
    # conv2: conv + bias + PReLU + PReLU fused.
    y = conv3x3_bn_prelu(h, params["w2"], params["b2"],
                         alphas=jnp.stack([params["a2"], params["a3"]], axis=0),
                         out_dtype=jnp.float32)
    y = y[..., :cout]                                          # drop lane padding
    return jnp.transpose(y, (0, 3, 1, 2))                      # NHWC -> NCHW


def init_params(key, in_channels, out_channels):
    ks = jax.random.split(key, 11)
    std1 = (2.0 / (9 * in_channels)) ** 0.5
    std2 = (2.0 / (9 * out_channels)) ** 0.5
    return {
        "bn_gamma": 1.0 + 0.1 * jax.random.normal(ks[0], (in_channels,), jnp.float32),
        "bn_beta": 0.1 * jax.random.normal(ks[1], (in_channels,), jnp.float32),
        "bn_mean": 0.1 * jax.random.normal(ks[2], (in_channels,), jnp.float32),
        "bn_var": 0.9 + 0.2 * jax.random.uniform(ks[3], (in_channels,), jnp.float32),
        "w1": std1 * jax.random.normal(ks[4], (3, 3, in_channels, out_channels), jnp.float32),
        "b1": 0.1 * jax.random.normal(ks[5], (out_channels,), jnp.float32),
        "a1": 0.25 + 0.05 * jax.random.normal(ks[6], (out_channels,), jnp.float32),
        "w2": std2 * jax.random.normal(ks[7], (3, 3, out_channels, out_channels), jnp.float32),
        "b2": 0.1 * jax.random.normal(ks[8], (out_channels,), jnp.float32),
        "a2": 0.25 + 0.05 * jax.random.normal(ks[9], (out_channels,), jnp.float32),
        "a3": 0.25 + 0.05 * jax.random.normal(ks[10], (out_channels,), jnp.float32),
    }


# ---------------------------------------------------------------------------
# Pure-JAX reference (mirrors the kernel's bf16-operand / f32-accum numerics)
# ---------------------------------------------------------------------------
def _prelu(x, a):
    return jnp.where(x >= 0, x, x * a)


def _conv3x3_ref(x, w, b):
    B, H, W, _ = x.shape
    xr = x.astype(jnp.bfloat16).astype(jnp.float32)
    wr = w.astype(jnp.bfloat16).astype(jnp.float32)
    xp = jnp.pad(xr, ((0, 0), (1, 1), (1, 1), (0, 0)))
    acc = jnp.zeros((B, H, W, w.shape[-1]), jnp.float32)
    for ky in range(3):
        for kx in range(3):
            acc = acc + jnp.einsum("bhwc,co->bhwo",
                                   xp[:, ky:ky + H, kx:kx + W, :], wr[ky, kx])
    return acc + b.astype(jnp.float32)


def double_conv_ref(x_nchw, params, eps=1e-5):
    x = jnp.transpose(x_nchw, (0, 2, 3, 1)).astype(jnp.float32)
    s, t = _bn_scale_shift(params, eps)
    h = x * s + t
    h = _prelu(_conv3x3_ref(h, params["w1"], params["b1"]), params["a1"])
    h = h.astype(jnp.bfloat16).astype(jnp.float32)  # kernel stores intermediate as bf16
    y = _conv3x3_ref(h, params["w2"], params["b2"])
    y = _prelu(_prelu(y, params["a2"]), params["a3"])
    return jnp.transpose(y, (0, 3, 1, 2))


if __name__ == "__main__":
    key = jax.random.PRNGKey(0)
    kx, kp = jax.random.split(key)

    B, in_channels, H, W = 2, 4, 16, 16
    out_channels = 8

    x = jax.random.normal(kx, (B, in_channels, H, W), jnp.float32)
    params = init_params(kp, in_channels, out_channels)

    fwd = jax.jit(double_conv_forward)
    y = jax.block_until_ready(fwd(x, params))

    y_ref = double_conv_ref(x, params)
    assert y.shape == (B, out_channels, H, W)
    max_err = float(jnp.max(jnp.abs(y - y_ref)))
    assert bool(jnp.allclose(y, y_ref, atol=1e-2, rtol=1e-2)), (
        f"mismatch vs reference, max abs err = {max_err}")

    print("KERNEL_OK")
</pallas_src>

<mosaic_0001>
module attributes {stable_mosaic.version = 11 : i64} {
  func.func @_conv3x3_bn_prelu_kernel(%arg0: i32, %arg1: i32, %arg2: i32, %arg3: memref<1x16x16x128xbf16, #tpu.memory_space<vmem>>, %arg4: memref<1x3x384x128xbf16, #tpu.memory_space<vmem>>, %arg5: memref<1x128xf32, #tpu.memory_space<vmem>>, %arg6: memref<1x128xf32, #tpu.memory_space<vmem>>, %arg7: memref<1x128xf32, #tpu.memory_space<vmem>>, %arg8: memref<2x128xf32, #tpu.memory_space<vmem>>, %arg9: memref<1x16x16x128xf32, #tpu.memory_space<vmem>>, %arg10: memref<18x16x384xbf16, #tpu.memory_space<vmem>>, %arg11: memref<256x128xf32, #tpu.memory_space<vmem>>) attributes {dimension_semantics = [#tpu.dimension_semantics<parallel>, #tpu.dimension_semantics<parallel>, #tpu.dimension_semantics<arbitrary>], iteration_bounds = array<i64: 2, 1, 1>, scalar_prefetch = 0 : i64, scratch_operands = 2 : i64, tpu.core_type = #tpu.core_type<tc>, window_params = [{transform_indices = @transform_0, window_bounds = array<i64: 1, 16, 16, 128>}, {transform_indices = @transform_1, window_bounds = array<i64: 1, 3, 384, 128>}, {transform_indices = @transform_2, window_bounds = array<i64: 1, 128>}, {transform_indices = @transform_3, window_bounds = array<i64: 1, 128>}, {transform_indices = @transform_4, window_bounds = array<i64: 1, 128>}, {transform_indices = @transform_5, window_bounds = array<i64: 2, 128>}, {transform_indices = @transform_6, window_bounds = array<i64: 1, 16, 16, 128>}]} {
    %c0_i32 = arith.constant 0 : i32
    %0 = arith.cmpi eq, %arg2, %c0_i32 : i32
    %1 = arith.extui %0 : i1 to i32
    %c0_i32_0 = arith.constant 0 : i32
    %2 = arith.cmpi ne, %1, %c0_i32_0 : i32
    scf.if %2 {
      %cst_47 = arith.constant 0.000000e+00 : f32
      %44 = vector.broadcast %cst_47 : f32 to vector<256x128xf32>
      %c0_48 = arith.constant 0 : index
      %c0_49 = arith.constant 0 : index
      %45 = vector.load %arg11[%c0_48, %c0_49] : memref<256x128xf32, #tpu.memory_space<vmem>>, vector<256x128xf32>
      tpu.vector_store %arg11[%c0_48, %c0_49], %44 {strides = array<i32>} : memref<256x128xf32, #tpu.memory_space<vmem>>, vector<256x128xf32>,
      %cst_50 = arith.constant 0.000000e+00 : bf16
      %46 = vector.broadcast %cst_50 : bf16 to vector<1x16x384xbf16>
      %c0_51 = arith.constant 0 : index
      %c0_52 = arith.constant 0 : index
      %c0_53 = arith.constant 0 : index
      %47 = vector.load %arg10[%c0_51, %c0_52, %c0_53] : memref<18x16x384xbf16, #tpu.memory_space<vmem>>, vector<1x16x384xbf16>
      tpu.vector_store %arg10[%c0_51, %c0_52, %c0_53], %46 {strides = array<i32>} : memref<18x16x384xbf16, #tpu.memory_space<vmem>>, vector<1x16x384xbf16>,
      %c17 = arith.constant 17 : index
      %c0_54 = arith.constant 0 : index
      %c0_55 = arith.constant 0 : index
      %48 = vector.load %arg10[%c17, %c0_54, %c0_55] : memref<18x16x384xbf16, #tpu.memory_space<vmem>>, vector<1x16x384xbf16>
      tpu.vector_store %arg10[%c17, %c0_54, %c0_55], %46 {strides = array<i32>} : memref<18x16x384xbf16, #tpu.memory_space<vmem>>, vector<1x16x384xbf16>,
    } else {
    }
    %c0 = arith.constant 0 : index
    %c0_1 = arith.constant 0 : index
    %c0_2 = arith.constant 0 : index
    %c0_3 = arith.constant 0 : index
    %3 = vector.load %arg3[%c0, %c0_1, %c0_2, %c0_3] : memref<1x16x16x128xbf16, #tpu.memory_space<vmem>>, vector<1x16x16x128xbf16>
    %4 = vector.shape_cast %3 : vector<1x16x16x128xbf16> to vector<16x16x128xbf16>
    %5 = arith.extf %4 : vector<16x16x128xbf16> to vector<16x16x128xf32>
    %cst = arith.constant 0.000000e+00 : f32
    %6 = vector.broadcast %cst : f32 to vector<16x1x128xf32>
    %7 = vector.extract_strided_slice %5 {offsets = [0, 0, 0], sizes = [16, 15, 128], strides = [1, 1, 1]} : vector<16x16x128xf32> to vector<16x15x128xf32>
    %8 = tpu.concatenate %6, %7 in 1 : vector<16x1x128xf32>, vector<16x15x128xf32> -> vector<16x16x128xf32>
    %9 = vector.extract_strided_slice %5 {offsets = [0, 1, 0], sizes = [16, 15, 128], strides = [1, 1, 1]} : vector<16x16x128xf32> to vector<16x15x128xf32>
    %10 = tpu.concatenate %9, %6 in 1 : vector<16x15x128xf32>, vector<16x1x128xf32> -> vector<16x16x128xf32>
    %11 = arith.truncf %8 : vector<16x16x128xf32> to vector<16x16x128xbf16>
    %c1 = arith.constant 1 : index
    %c0_4 = arith.constant 0 : index
    %c0_5 = arith.constant 0 : index
    %12 = vector.load %arg10[%c1, %c0_4, %c0_5] : memref<18x16x384xbf16, #tpu.memory_space<vmem>>, vector<16x16x128xbf16>
    tpu.vector_store %arg10[%c1, %c0_4, %c0_5], %11 {strides = array<i32>} : memref<18x16x384xbf16, #tpu.memory_space<vmem>>, vector<16x16x128xbf16>,
    %13 = arith.truncf %5 : vector<16x16x128xf32> to vector<16x16x128xbf16>
    %c1_6 = arith.constant 1 : index
    %c0_7 = arith.constant 0 : index
    %c128 = arith.constant 128 : index
    %14 = vector.load %arg10[%c1_6, %c0_7, %c128] : memref<18x16x384xbf16, #tpu.memory_space<vmem>>, vector<16x16x128xbf16>
    tpu.vector_store %arg10[%c1_6, %c0_7, %c128], %13 {strides = array<i32>} : memref<18x16x384xbf16, #tpu.memory_space<vmem>>, vector<16x16x128xbf16>,
    %15 = arith.truncf %10 : vector<16x16x128xf32> to vector<16x16x128xbf16>
    %c1_8 = arith.constant 1 : index
    %c0_9 = arith.constant 0 : index
    %c256 = arith.constant 256 : index
    %16 = vector.load %arg10[%c1_8, %c0_9, %c256] : memref<18x16x384xbf16, #tpu.memory_space<vmem>>, vector<16x16x128xbf16>
    tpu.vector_store %arg10[%c1_8, %c0_9, %c256], %15 {strides = array<i32>} : memref<18x16x384xbf16, #tpu.memory_space<vmem>>, vector<16x16x128xbf16>,
    %c0_10 = arith.constant 0 : index
    %c0_11 = arith.constant 0 : index
    %c0_12 = arith.constant 0 : index
    %17 = vector.load %arg10[%c0_10, %c0_11, %c0_12] : memref<18x16x384xbf16, #tpu.memory_space<vmem>>, vector<16x16x384xbf16>
    %18 = vector.shape_cast %17 : vector<16x16x384xbf16> to vector<256x384xbf16>
    %c0_13 = arith.constant 0 : index
    %c0_14 = arith.constant 0 : index
    %19 = vector.load %arg11[%c0_13, %c0_14] : memref<256x128xf32, #tpu.memory_space<vmem>>, vector<256x128xf32>
    %c0_15 = arith.constant 0 : index
    %c0_16 = arith.constant 0 : index
    %c0_17 = arith.constant 0 : index
    %c0_18 = arith.constant 0 : index
    %20 = vector.load %arg4[%c0_15, %c0_16, %c0_17, %c0_18] : memref<1x3x384x128xbf16, #tpu.memory_space<vmem>>, vector<1x1x384x128xbf16>
    %21 = vector.shape_cast %20 : vector<1x1x384x128xbf16> to vector<384x128xbf16>
    %cst_19 = arith.constant dense<0.000000e+00> : vector<256x128xf32>
    %22 = tpu.matmul %18, %21, %cst_19 {dimension_numbers = #tpu.dot_dimension_numbers<[1], [0], [0], [1], [0, 0, 1, 1], [], []>} : vector<256x384xbf16>, vector<384x128xbf16>, vector<256x128xf32> -> vector<256x128xf32>
    %23 = arith.addf %19, %22 : vector<256x128xf32>
    %c0_20 = arith.constant 0 : index
    %c0_21 = arith.constant 0 : index
    %24 = vector.load %arg11[%c0_20, %c0_21] : memref<256x128xf32, #tpu.memory_space<vmem>>, vector<256x128xf32>
    tpu.vector_store %arg11[%c0_20, %c0_21], %23 {strides = array<i32>} : memref<256x128xf32, #tpu.memory_space<vmem>>, vector<256x128xf32>,
    %c1_22 = arith.constant 1 : index
    %c0_23 = arith.constant 0 : index
    %c0_24 = arith.constant 0 : index
    %25 = vector.load %arg10[%c1_22, %c0_23, %c0_24] : memref<18x16x384xbf16, #tpu.memory_space<vmem>>, vector<16x16x384xbf16>
    %26 = vector.shape_cast %25 : vector<16x16x384xbf16> to vector<256x384xbf16>
    %c0_25 = arith.constant 0 : index
    %c0_26 = arith.constant 0 : index
    %27 = vector.load %arg11[%c0_25, %c0_26] : memref<256x128xf32, #tpu.memory_space<vmem>>, vector<256x128xf32>
    %c0_27 = arith.constant 0 : index
    %c1_28 = arith.constant 1 : index
    %c0_29 = arith.constant 0 : index
    %c0_30 = arith.constant 0 : index
    %28 = vector.load %arg4[%c0_27, %c1_28, %c0_29, %c0_30] : memref<1x3x384x128xbf16, #tpu.memory_space<vmem>>, vector<1x1x384x128xbf16>
    %29 = vector.shape_cast %28 : vector<1x1x384x128xbf16> to vector<384x128xbf16>
    %cst_31 = arith.constant dense<0.000000e+00> : vector<256x128xf32>
    %30 = tpu.matmul %26, %29, %cst_31 {dimension_numbers = #tpu.dot_dimension_numbers<[1], [0], [0], [1], [0, 0, 1, 1], [], []>} : vector<256x384xbf16>, vector<384x128xbf16>, vector<256x128xf32> -> vector<256x128xf32>
    %31 = arith.addf %27, %30 : vector<256x128xf32>
    %c0_32 = arith.constant 0 : index
    %c0_33 = arith.constant 0 : index
    %32 = vector.load %arg11[%c0_32, %c0_33] : memref<256x128xf32, #tpu.memory_space<vmem>>, vector<256x128xf32>
    tpu.vector_store %arg11[%c0_32, %c0_33], %31 {strides = array<i32>} : memref<256x128xf32, #tpu.memory_space<vmem>>, vector<256x128xf32>,
    %c2 = arith.constant 2 : index
    %c0_34 = arith.constant 0 : index
    %c0_35 = arith.constant 0 : index
    %33 = vector.load %arg10[%c2, %c0_34, %c0_35] : memref<18x16x384xbf16, #tpu.memory_space<vmem>>, vector<16x16x384xbf16>
    %34 = vector.shape_cast %33 : vector<16x16x384xbf16> to vector<256x384xbf16>
    %c0_36 = arith.constant 0 : index
    %c0_37 = arith.constant 0 : index
    %35 = vector.load %arg11[%c0_36, %c0_37] : memref<256x128xf32, #tpu.memory_space<vmem>>, vector<256x128xf32>
    %c0_38 = arith.constant 0 : index
    %c2_39 = arith.constant 2 : index
    %c0_40 = arith.constant 0 : index
    %c0_41 = arith.constant 0 : index
    %36 = vector.load %arg4[%c0_38, %c2_39, %c0_40, %c0_41] : memref<1x3x384x128xbf16, #tpu.memory_space<vmem>>, vector<1x1x384x128xbf16>
    %37 = vector.shape_cast %36 : vector<1x1x384x128xbf16> to vector<384x128xbf16>
    %cst_42 = arith.constant dense<0.000000e+00> : vector<256x128xf32>
    %38 = tpu.matmul %34, %37, %cst_42 {dimension_numbers = #tpu.dot_dimension_numbers<[1], [0], [0], [1], [0, 0, 1, 1], [], []>} : vector<256x384xbf16>, vector<384x128xbf16>, vector<256x128xf32> -> vector<256x128xf32>
    %39 = arith.addf %35, %38 : vector<256x128xf32>
    %c0_43 = arith.constant 0 : index
    %c0_44 = arith.constant 0 : index
    %40 = vector.load %arg11[%c0_43, %c0_44] : memref<256x128xf32, #tpu.memory_space<vmem>>, vector<256x128xf32>
    tpu.vector_store %arg11[%c0_43, %c0_44], %39 {strides = array<i32>} : memref<256x128xf32, #tpu.memory_space<vmem>>, vector<256x128xf32>,
    %c0_i32_45 = arith.constant 0 : i32
    %41 = arith.cmpi eq, %arg2, %c0_i32_45 : i32
    %42 = arith.extui %41 : i1 to i32
    %c0_i32_46 = arith.constant 0 : i32
    %43 = arith.cmpi ne, %42, %c0_i32_46 : i32
    scf.if %43 {
      %c0_47 = arith.constant 0 : index
      %c0_48 = arith.constant 0 : index
      %44 = vector.load %arg11[%c0_47, %c0_48] : memref<256x128xf32, #tpu.memory_space<vmem>>, vector<256x128xf32>
      %c0_49 = arith.constant 0 : index
      %c0_50 = arith.constant 0 : index
      %45 = vector.load %arg5[%c0_49, %c0_50] : memref<1x128xf32, #tpu.memory_space<vmem>>, vector<1x128xf32>
      %46 = vector.broadcast %45 : vector<1x128xf32> to vector<256x128xf32>
      %47 = arith.addf %44, %46 : vector<256x128xf32>
      %c0_51 = arith.constant 0 : index
      %c0_52 = arith.constant 0 : index
      %48 = vector.load %arg8[%c0_51, %c0_52] : memref<2x128xf32, #tpu.memory_space<vmem>>, vector<1x128xf32>
      %cst_53 = arith.constant 0.000000e+00 : f32
      %49 = vector.broadcast %cst_53 : f32 to vector<256x128xf32>
      %50 = arith.cmpf oge, %47, %49 : vector<256x128xf32>
      %51 = vector.broadcast %48 : vector<1x128xf32> to vector<256x128xf32>
      %52 = arith.mulf %47, %51 : vector<256x128xf32>
      %53 = arith.select %50, %47, %52 : vector<256x128xi1>, vector<256x128xf32>
      %c1_54 = arith.constant 1 : index
      %c0_55 = arith.constant 0 : index
      %54 = vector.load %arg8[%c1_54, %c0_55] : memref<2x128xf32, #tpu.memory_space<vmem>>, vector<1x128xf32>
      %cst_56 = arith.constant 0.000000e+00 : f32
      %55 = vector.broadcast %cst_56 : f32 to vector<256x128xf32>
      %56 = arith.cmpf oge, %53, %55 : vector<256x128xf32>
      %57 = vector.broadcast %54 : vector<1x128xf32> to vector<256x128xf32>
      %58 = arith.mulf %53, %57 : vector<256x128xf32>
      %59 = arith.select %56, %53, %58 : vector<256x128xi1>, vector<256x128xf32>
      %60 = vector.shape_cast %59 : vector<256x128xf32> to vector<16x16x128xf32>
      %c0_57 = arith.constant 0 : index
      %c0_58 = arith.constant 0 : index
      %c0_59 = arith.constant 0 : index
      %c0_60 = arith.constant 0 : index
      %61 = vector.load %arg9[%c0_57, %c0_58, %c0_59, %c0_60] : memref<1x16x16x128xf32, #tpu.memory_space<vmem>>, vector<1x16x16x128xf32>
      %62 = vector.shape_cast %61 : vector<1x16x16x128xf32> to vector<16x16x128xf32>
      %63 = vector.shape_cast %60 : vector<16x16x128xf32> to vector<1x16x16x128xf32>
      tpu.vector_store %arg9[%c0_57, %c0_58, %c0_59, %c0_60], %63 {strides = array<i32>} : memref<1x16x16x128xf32, #tpu.memory_space<vmem>>, vector<1x16x16x128xf32>,
    } else {
    }
    return
  }
  func.func @transform_0(%arg0: i32, %arg1: i32, %arg2: i32) -> (i32, i32, i32, i32) {
    %c0_i32 = arith.constant 0 : i32
    %c0_i32_0 = arith.constant 0 : i32
    %c0_i32_1 = arith.constant 0 : i32
    return %arg0, %c0_i32, %c0_i32_0, %arg2 : i32, i32, i32, i32
  }
  func.func @transform_1(%arg0: i32, %arg1: i32, %arg2: i32) -> (i32, i32, i32, i32) {
    %c0_i32 = arith.constant 0 : i32
    %c0_i32_0 = arith.constant 0 : i32
    %c0_i32_1 = arith.constant 0 : i32
    return %arg2, %c0_i32, %c0_i32_0, %arg1 : i32, i32, i32, i32
  }
  func.func @transform_2(%arg0: i32, %arg1: i32, %arg2: i32) -> (i32, i32) {
    %c0_i32 = arith.constant 0 : i32
    %c0_i32_0 = arith.constant 0 : i32
    return %c0_i32, %arg1 : i32, i32
  }
  func.func @transform_3(%arg0: i32, %arg1: i32, %arg2: i32) -> (i32, i32) {
    %c0_i32 = arith.constant 0 : i32
    %c0_i32_0 = arith.constant 0 : i32
    return %c0_i32, %arg2 : i32, i32
  }
  func.func @transform_4(%arg0: i32, %arg1: i32, %arg2: i32) -> (i32, i32) {
    %c0_i32 = arith.constant 0 : i32
    %c0_i32_0 = arith.constant 0 : i32
    return %c0_i32, %arg2 : i32, i32
  }
  func.func @transform_5(%arg0: i32, %arg1: i32, %arg2: i32) -> (i32, i32) {
    %c0_i32 = arith.constant 0 : i32
    %c0_i32_0 = arith.constant 0 : i32
    return %c0_i32, %arg1 : i32, i32
  }
  func.func @transform_6(%arg0: i32, %arg1: i32, %arg2: i32) -> (i32, i32, i32, i32) {
    %c0_i32 = arith.constant 0 : i32
    %c0_i32_0 = arith.constant 0 : i32
    %c0_i32_1 = arith.constant 0 : i32
    return %arg0, %c0_i32, %c0_i32_0, %arg1 : i32, i32, i32, i32
  }
}

module attributes {stable_mosaic.version = 11 : i64} {
  func.func @_conv3x3_bn_prelu_kernel(%arg0: i32, %arg1: i32, %arg2: i32, %arg3: memref<1x16x16x128xf32, #tpu.memory_space<vmem>>, %arg4: memref<1x3x384x128xbf16, #tpu.memory_space<vmem>>, %arg5: memref<1x128xf32, #tpu.memory_space<vmem>>, %arg6: memref<1x128xf32, #tpu.memory_space<vmem>>, %arg7: memref<1x128xf32, #tpu.memory_space<vmem>>, %arg8: memref<1x128xf32, #tpu.memory_space<vmem>>, %arg9: memref<1x16x16x128xbf16, #tpu.memory_space<vmem>>, %arg10: memref<18x16x384xbf16, #tpu.memory_space<vmem>>, %arg11: memref<256x128xf32, #tpu.memory_space<vmem>>) attributes {dimension_semantics = [#tpu.dimension_semantics<parallel>, #tpu.dimension_semantics<parallel>, #tpu.dimension_semantics<arbitrary>], iteration_bounds = array<i64: 2, 1, 1>, scalar_prefetch = 0 : i64, scratch_operands = 2 : i64, tpu.core_type = #tpu.core_type<tc>, window_params = [{transform_indices = @transform_0, window_bounds = array<i64: 1, 16, 16, 128>}, {transform_indices = @transform_1, window_bounds = array<i64: 1, 3, 384, 128>}, {transform_indices = @transform_2, window_bounds = array<i64: 1, 128>}, {transform_indices = @transform_3, window_bounds = array<i64: 1, 128>}, {transform_indices = @transform_4, window_bounds = array<i64: 1, 128>}, {transform_indices = @transform_5, window_bounds = array<i64: 1, 128>}, {transform_indices = @transform_6, window_bounds = array<i64: 1, 16, 16, 128>}]} {
    %c0_i32 = arith.constant 0 : i32
    %0 = arith.cmpi eq, %arg2, %c0_i32 : i32
    %1 = arith.extui %0 : i1 to i32
    %c0_i32_0 = arith.constant 0 : i32
    %2 = arith.cmpi ne, %1, %c0_i32_0 : i32
    scf.if %2 {
      %cst_51 = arith.constant 0.000000e+00 : f32
      %51 = vector.broadcast %cst_51 : f32 to vector<256x128xf32>
      %c0_52 = arith.constant 0 : index
      %c0_53 = arith.constant 0 : index
      %52 = vector.load %arg11[%c0_52, %c0_53] : memref<256x128xf32, #tpu.memory_space<vmem>>, vector<256x128xf32>
      tpu.vector_store %arg11[%c0_52, %c0_53], %51 {strides = array<i32>} : memref<256x128xf32, #tpu.memory_space<vmem>>, vector<256x128xf32>,
      %cst_54 = arith.constant 0.000000e+00 : bf16
      %53 = vector.broadcast %cst_54 : bf16 to vector<1x16x384xbf16>
      %c0_55 = arith.constant 0 : index
      %c0_56 = arith.constant 0 : index
      %c0_57 = arith.constant 0 : index
      %54 = vector.load %arg10[%c0_55, %c0_56, %c0_57] : memref<18x16x384xbf16, #tpu.memory_space<vmem>>, vector<1x16x384xbf16>
      tpu.vector_store %arg10[%c0_55, %c0_56, %c0_57], %53 {strides = array<i32>} : memref<18x16x384xbf16, #tpu.memory_space<vmem>>, vector<1x16x384xbf16>,
      %c17 = arith.constant 17 : index
      %c0_58 = arith.constant 0 : index
      %c0_59 = arith.constant 0 : index
      %55 = vector.load %arg10[%c17, %c0_58, %c0_59] : memref<18x16x384xbf16, #tpu.memory_space<vmem>>, vector<1x16x384xbf16>
      tpu.vector_store %arg10[%c17, %c0_58, %c0_59], %53 {strides = array<i32>} : memref<18x16x384xbf16, #tpu.memory_space<vmem>>, vector<1x16x384xbf16>,
    } else {
    }
    %c0 = arith.constant 0 : index
    %c0_1 = arith.constant 0 : index
    %c0_2 = arith.constant 0 : index
    %c0_3 = arith.constant 0 : index
    %3 = vector.load %arg3[%c0, %c0_1, %c0_2, %c0_3] : memref<1x16x16x128xf32, #tpu.memory_space<vmem>>, vector<1x16x16x128xf32>
    %4 = vector.shape_cast %3 : vector<1x16x16x128xf32> to vector<16x16x128xf32>
    %c0_4 = arith.constant 0 : index
    %c0_5 = arith.constant 0 : index
    %5 = vector.load %arg6[%c0_4, %c0_5] : memref<1x128xf32, #tpu.memory_space<vmem>>, vector<1x128xf32>
    %6 = vector.shape_cast %5 : vector<1x128xf32> to vector<1x1x128xf32>
    %7 = vector.broadcast %6 : vector<1x1x128xf32> to vector<16x16x128xf32>
    %8 = arith.mulf %4, %7 : vector<16x16x128xf32>
    %c0_6 = arith.constant 0 : index
    %c0_7 = arith.constant 0 : index
    %9 = vector.load %arg7[%c0_6, %c0_7] : memref<1x128xf32, #tpu.memory_space<vmem>>, vector<1x128xf32>
    %10 = vector.shape_cast %9 : vector<1x128xf32> to vector<1x1x128xf32>
    %11 = vector.broadcast %10 : vector<1x1x128xf32> to vector<16x16x128xf32>
    %12 = arith.addf %8, %11 : vector<16x16x128xf32>
    %cst = arith.constant 0.000000e+00 : f32
    %13 = vector.broadcast %cst : f32 to vector<16x1x128xf32>
    %14 = vector.extract_strided_slice %12 {offsets = [0, 0, 0], sizes = [16, 15, 128], strides = [1, 1, 1]} : vector<16x16x128xf32> to vector<16x15x128xf32>
    %15 = tpu.concatenate %13, %14 in 1 : vector<16x1x128xf32>, vector<16x15x128xf32> -> vector<16x16x128xf32>
    %16 = vector.extract_strided_slice %12 {offsets = [0, 1, 0], sizes = [16, 15, 128], strides = [1, 1, 1]} : vector<16x16x128xf32> to vector<16x15x128xf32>
    %17 = tpu.concatenate %16, %13 in 1 : vector<16x15x128xf32>, vector<16x1x128xf32> -> vector<16x16x128xf32>
    %18 = arith.truncf %15 : vector<16x16x128xf32> to vector<16x16x128xbf16>
    %c1 = arith.constant 1 : index
    %c0_8 = arith.constant 0 : index
    %c0_9 = arith.constant 0 : index
    %19 = vector.load %arg10[%c1, %c0_8, %c0_9] : memref<18x16x384xbf16, #tpu.memory_space<vmem>>, vector<16x16x128xbf16>
    tpu.vector_store %arg10[%c1, %c0_8, %c0_9], %18 {strides = array<i32>} : memref<18x16x384xbf16, #tpu.memory_space<vmem>>, vector<16x16x128xbf16>,
    %20 = arith.truncf %12 : vector<16x16x128xf32> to vector<16x16x128xbf16>
    %c1_10 = arith.constant 1 : index
    %c0_11 = arith.constant 0 : index
    %c128 = arith.constant 128 : index
    %21 = vector.load %arg10[%c1_10, %c0_11, %c128] : memref<18x16x384xbf16, #tpu.memory_space<vmem>>, vector<16x16x128xbf16>
    tpu.vector_store %arg10[%c1_10, %c0_11, %c128], %20 {strides = array<i32>} : memref<18x16x384xbf16, #tpu.memory_space<vmem>>, vector<16x16x128xbf16>,
    %22 = arith.truncf %17 : vector<16x16x128xf32> to vector<16x16x128xbf16>
    %c1_12 = arith.constant 1 : index
    %c0_13 = arith.constant 0 : index
    %c256 = arith.constant 256 : index
    %23 = vector.load %arg10[%c1_12, %c0_13, %c256] : memref<18x16x384xbf16, #tpu.memory_space<vmem>>, vector<16x16x128xbf16>
    tpu.vector_store %arg10[%c1_12, %c0_13, %c256], %22 {strides = array<i32>} : memref<18x16x384xbf16, #tpu.memory_space<vmem>>, vector<16x16x128xbf16>,
    %c0_14 = arith.constant 0 : index
    %c0_15 = arith.constant 0 : index
    %c0_16 = arith.constant 0 : index
    %24 = vector.load %arg10[%c0_14, %c0_15, %c0_16] : memref<18x16x384xbf16, #tpu.memory_space<vmem>>, vector<16x16x384xbf16>
    %25 = vector.shape_cast %24 : vector<16x16x384xbf16> to vector<256x384xbf16>
    %c0_17 = arith.constant 0 : index
    %c0_18 = arith.constant 0 : index
    %26 = vector.load %arg11[%c0_17, %c0_18] : memref<256x128xf32, #tpu.memory_space<vmem>>, vector<256x128xf32>
    %c0_19 = arith.constant 0 : index
    %c0_20 = arith.constant 0 : index
    %c0_21 = arith.constant 0 : index
    %c0_22 = arith.constant 0 : index
    %27 = vector.load %arg4[%c0_19, %c0_20, %c0_21, %c0_22] : memref<1x3x384x128xbf16, #tpu.memory_space<vmem>>, vector<1x1x384x128xbf16>
    %28 = vector.shape_cast %27 : vector<1x1x384x128xbf16> to vector<384x128xbf16>
    %cst_23 = arith.constant dense<0.000000e+00> : vector<256x128xf32>
    %29 = tpu.matmul %25, %28, %cst_23 {dimension_numbers = #tpu.dot_dimension_numbers<[1], [0], [0], [1], [0, 0, 1, 1], [], []>} : vector<256x384xbf16>, vector<384x128xbf16>, vector<256x128xf32> -> vector<256x128xf32>
    %30 = arith.addf %26, %29 : vector<256x128xf32>
    %c0_24 = arith.constant 0 : index
    %c0_25 = arith.constant 0 : index
    %31 = vector.load %arg11[%c0_24, %c0_25] : memref<256x128xf32, #tpu.memory_space<vmem>>, vector<256x128xf32>
    tpu.vector_store %arg11[%c0_24, %c0_25], %30 {strides = array<i32>} : memref<256x128xf32, #tpu.memory_space<vmem>>, vector<256x128xf32>,
    %c1_26 = arith.constant 1 : index
    %c0_27 = arith.constant 0 : index
    %c0_28 = arith.constant 0 : index
    %32 = vector.load %arg10[%c1_26, %c0_27, %c0_28] : memref<18x16x384xbf16, #tpu.memory_space<vmem>>, vector<16x16x384xbf16>
    %33 = vector.shape_cast %32 : vector<16x16x384xbf16> to vector<256x384xbf16>
    %c0_29 = arith.constant 0 : index
    %c0_30 = arith.constant 0 : index
    %34 = vector.load %arg11[%c0_29, %c0_30] : memref<256x128xf32, #tpu.memory_space<vmem>>, vector<256x128xf32>
    %c0_31 = arith.constant 0 : index
    %c1_32 = arith.constant 1 : index
    %c0_33 = arith.constant 0 : index
    %c0_34 = arith.constant 0 : index
    %35 = vector.load %arg4[%c0_31, %c1_32, %c0_33, %c0_34] : memref<1x3x384x128xbf16, #tpu.memory_space<vmem>>, vector<1x1x384x128xbf16>
    %36 = vector.shape_cast %35 : vector<1x1x384x128xbf16> to vector<384x128xbf16>
    %cst_35 = arith.constant dense<0.000000e+00> : vector<256x128xf32>
    %37 = tpu.matmul %33, %36, %cst_35 {dimension_numbers = #tpu.dot_dimension_numbers<[1], [0], [0], [1], [0, 0, 1, 1], [], []>} : vector<256x384xbf16>, vector<384x128xbf16>, vector<256x128xf32> -> vector<256x128xf32>
    %38 = arith.addf %34, %37 : vector<256x128xf32>
    %c0_36 = arith.constant 0 : index
    %c0_37 = arith.constant 0 : index
    %39 = vector.load %arg11[%c0_36, %c0_37] : memref<256x128xf32, #tpu.memory_space<vmem>>, vector<256x128xf32>
    tpu.vector_store %arg11[%c0_36, %c0_37], %38 {strides = array<i32>} : memref<256x128xf32, #tpu.memory_space<vmem>>, vector<256x128xf32>,
    %c2 = arith.constant 2 : index
    %c0_38 = arith.constant 0 : index
    %c0_39 = arith.constant 0 : index
    %40 = vector.load %arg10[%c2, %c0_38, %c0_39] : memref<18x16x384xbf16, #tpu.memory_space<vmem>>, vector<16x16x384xbf16>
    %41 = vector.shape_cast %40 : vector<16x16x384xbf16> to vector<256x384xbf16>
    %c0_40 = arith.constant 0 : index
    %c0_41 = arith.constant 0 : index
    %42 = vector.load %arg11[%c0_40, %c0_41] : memref<256x128xf32, #tpu.memory_space<vmem>>, vector<256x128xf32>
    %c0_42 = arith.constant 0 : index
    %c2_43 = arith.constant 2 : index
    %c0_44 = arith.constant 0 : index
    %c0_45 = arith.constant 0 : index
    %43 = vector.load %arg4[%c0_42, %c2_43, %c0_44, %c0_45] : memref<1x3x384x128xbf16, #tpu.memory_space<vmem>>, vector<1x1x384x128xbf16>
    %44 = vector.shape_cast %43 : vector<1x1x384x128xbf16> to vector<384x128xbf16>
    %cst_46 = arith.constant dense<0.000000e+00> : vector<256x128xf32>
    %45 = tpu.matmul %41, %44, %cst_46 {dimension_numbers = #tpu.dot_dimension_numbers<[1], [0], [0], [1], [0, 0, 1, 1], [], []>} : vector<256x384xbf16>, vector<384x128xbf16>, vector<256x128xf32> -> vector<256x128xf32>
    %46 = arith.addf %42, %45 : vector<256x128xf32>
    %c0_47 = arith.constant 0 : index
    %c0_48 = arith.constant 0 : index
    %47 = vector.load %arg11[%c0_47, %c0_48] : memref<256x128xf32, #tpu.memory_space<vmem>>, vector<256x128xf32>
    tpu.vector_store %arg11[%c0_47, %c0_48], %46 {strides = array<i32>} : memref<256x128xf32, #tpu.memory_space<vmem>>, vector<256x128xf32>,
    %c0_i32_49 = arith.constant 0 : i32
    %48 = arith.cmpi eq, %arg2, %c0_i32_49 : i32
    %49 = arith.extui %48 : i1 to i32
    %c0_i32_50 = arith.constant 0 : i32
    %50 = arith.cmpi ne, %49, %c0_i32_50 : i32
    scf.if %50 {
      %c0_51 = arith.constant 0 : index
      %c0_52 = arith.constant 0 : index
      %51 = vector.load %arg11[%c0_51, %c0_52] : memref<256x128xf32, #tpu.memory_space<vmem>>, vector<256x128xf32>
      %c0_53 = arith.constant 0 : index
      %c0_54 = arith.constant 0 : index
      %52 = vector.load %arg5[%c0_53, %c0_54] : memref<1x128xf32, #tpu.memory_space<vmem>>, vector<1x128xf32>
      %53 = vector.broadcast %52 : vector<1x128xf32> to vector<256x128xf32>
      %54 = arith.addf %51, %53 : vector<256x128xf32>
      %c0_55 = arith.constant 0 : index
      %c0_56 = arith.constant 0 : index
      %55 = vector.load %arg8[%c0_55, %c0_56] : memref<1x128xf32, #tpu.memory_space<vmem>>, vector<1x128xf32>
      %cst_57 = arith.constant 0.000000e+00 : f32
      %56 = vector.broadcast %cst_57 : f32 to vector<256x128xf32>
      %57 = arith.cmpf oge, %54, %56 : vector<256x128xf32>
      %58 = vector.broadcast %55 : vector<1x128xf32> to vector<256x128xf32>
      %59 = arith.mulf %54, %58 : vector<256x128xf32>
      %60 = arith.select %57, %54, %59 : vector<256x128xi1>, vector<256x128xf32>
      %61 = vector.shape_cast %60 : vector<256x128xf32> to vector<16x16x128xf32>
      %62 = arith.truncf %61 : vector<16x16x128xf32> to vector<16x16x128xbf16>
      %c0_58 = arith.constant 0 : index
      %c0_59 = arith.constant 0 : index
      %c0_60 = arith.constant 0 : index
      %c0_61 = arith.constant 0 : index
      %63 = vector.load %arg9[%c0_58, %c0_59, %c0_60, %c0_61] : memref<1x16x16x128xbf16, #tpu.memory_space<vmem>>, vector<1x16x16x128xbf16>
      %64 = vector.shape_cast %63 : vector<1x16x16x128xbf16> to vector<16x16x128xbf16>
      %65 = vector.shape_cast %62 : vector<16x16x128xbf16> to vector<1x16x16x128xbf16>
      tpu.vector_store %arg9[%c0_58, %c0_59, %c0_60, %c0_61], %65 {strides = array<i32>} : memref<1x16x16x128xbf16, #tpu.memory_space<vmem>>, vector<1x16x16x128xbf16>,
    } else {
    }
    return
  }
  func.func @transform_0(%arg0: i32, %arg1: i32, %arg2: i32) -> (i32, i32, i32, i32) {
    %c0_i32 = arith.constant 0 : i32
    %c0_i32_0 = arith.constant 0 : i32
    %c0_i32_1 = arith.constant 0 : i32
    return %arg0, %c0_i32, %c0_i32_0, %arg2 : i32, i32, i32, i32
  }
  func.func @transform_1(%arg0: i32, %arg1: i32, %arg2: i32) -> (i32, i32, i32, i32) {
    %c0_i32 = arith.constant 0 : i32
    %c0_i32_0 = arith.constant 0 : i32
    %c0_i32_1 = arith.constant 0 : i32
    return %arg2, %c0_i32, %c0_i32_0, %arg1 : i32, i32, i32, i32
  }
  func.func @transform_2(%arg0: i32, %arg1: i32, %arg2: i32) -> (i32, i32) {
    %c0_i32 = arith.constant 0 : i32
    %c0_i32_0 = arith.constant 0 : i32
    return %c0_i32, %arg1 : i32, i32
  }
  func.func @transform_3(%arg0: i32, %arg1: i32, %arg2: i32) -> (i32, i32) {
    %c0_i32 = arith.constant 0 : i32
    %c0_i32_0 = arith.constant 0 : i32
    return %c0_i32, %arg2 : i32, i32
  }
  func.func @transform_4(%arg0: i32, %arg1: i32, %arg2: i32) -> (i32, i32) {
    %c0_i32 = arith.constant 0 : i32
    %c0_i32_0 = arith.constant 0 : i32
    return %c0_i32, %arg2 : i32, i32
  }
  func.func @transform_5(%arg0: i32, %arg1: i32, %arg2: i32) -> (i32, i32) {
    %c0_i32 = arith.constant 0 : i32
    %c0_i32_0 = arith.constant 0 : i32
    return %c0_i32, %arg1 : i32, i32
  }
  func.func @transform_6(%arg0: i32, %arg1: i32, %arg2: i32) -> (i32, i32, i32, i32) {
    %c0_i32 = arith.constant 0 : i32
    %c0_i32_0 = arith.constant 0 : i32
    %c0_i32_1 = arith.constant 0 : i32
    return %arg0, %c0_i32, %c0_i32_0, %arg1 : i32, i32, i32, i32
  }
}

</mosaic_0001>

<llo_original>
// kernel: double_conv_forward.3
$region0: #{double_conv_forward.3}
  #allocation0 [shape = 'u32[]', space=smem, size = 0x4, offset = 0x4, fixed_abs, tag = 'smem constant byte address 0x4 - core index']
  #allocation1 [shape = 'u32[144,128]{1,0:T(1,128)}', space=vmem, size = 0x12000, scoped, tag = 'internal scratch']
  #allocation2 [shape = 'bf16[18,16,384]{2,1,0:T(16,128)(2,1)}', space=vmem, size = 0x36000, scoped, tag = 'scratch operand']
  #allocation3 [shape = 'f32[256,128]{1,0:T(8,128)}', space=vmem, size = 0x20000, scoped, tag = 'scratch operand']
  %s0 = inlined_call_operand.vmem [shape: bf16[2,16,16,128], index: 0, kind: input, shape index: {}]
  %s1 = inlined_call_operand.vmem [shape: bf16[1,3,384,128], index: 1, kind: input, shape index: {}]
  %s2 = inlined_call_operand.vmem [shape: f32[1,128], index: 2, kind: input, shape index: {}]
  %s3 = inlined_call_operand.vmem [shape: f32[1,128], index: 3, kind: input, shape index: {}]
  %s4 = inlined_call_operand.vmem [shape: f32[1,128], index: 4, kind: input, shape index: {}]
  %s5 = inlined_call_operand.vmem [shape: f32[2,128], index: 5, kind: input, shape index: {}]
  %s6 = inlined_call_operand.vmem [shape: f32[2,16,16,128], index: 6, kind: output, shape index: {}]
  %s7 = sld [smem:[#allocation0]]
  $region65: #{double_conv_forward.3} parent=0
    _
  %s9 = ssub.s32 1, %s7
  %s10 = scalar_select 0, %s9, %s7
  loop: start=0, step=1, limit=4
  $region2: #{double_conv_forward.3} parent=0 // loop_pre_header
    _
  $region3: #{double_conv_forward.3} parent=0 // loop_header
    %s12 = sphi 0, %s16
    %p13 = scmp.ge.s32.totalorder %s12, 4
    %s19 = sphi 0, %s38
    %s20 = sphi 0, %s34
    %s21 = sphi 0, %s30
    %s22 = sphi 0, %s19
    %s23 = sphi 0, %s20
    %s24 = sphi 0, %s21
    %s25 = sphi 0, %s22
    %s26 = sphi 0, %s23
    %s27 = sphi 0, %s24
    %s43 = sphi 0, %s45
    %s46 = sphi 0, %s43
    %s47 = sphi 0, %s46
    %s63 = sphi 0, %s47
    %s71 = sphi 0, %s73
    %s74 = sphi 0, %s71
    %s75 = sphi 0, %s74
    %s91 = sphi 0, %s75
    %s97 = sphi 0, %s99
    %s100 = sphi 0, %s97
    %s101 = sphi 0, %s100
    %s117 = sphi 0, %s101
    %s123 = sphi 0, %s125
    %s126 = sphi 0, %s123
    %s127 = sphi 0, %s126
    %s143 = sphi 0, %s127
    %s149 = sphi 0, %s151
    %s152 = sphi 0, %s149
    %s153 = sphi 0, %s152
    %s169 = sphi 0, %s153
    %s175 = sphi 0, %s177
    %s178 = sphi 0, %s175
    %s179 = sphi 0, %s178
    %s195 = sphi 0, %s179
    %s203 = sphi 0, %s205
    %s206 = sphi 0, %s203
    %s207 = sphi 0, %s206
    %s223 = sphi 0, %s207
  $region4: #{double_conv_forward.3} parent=0 // loop_header_branch
    %15 = sbr.rel (%p13) target = $region8
  $region5: #{double_conv_forward.3} parent=0 // loop_body
    %s17 = ssub.s32 %s12, 1
    %s18 = ssub.s32 %s12, 2
    %s28 = sadd.s32 1, %s21
    %p29 = scmp.ge.s32.totalorder %s28, 1
    %s30 = scalar_select %p29, 0, %s28
    %s31 = sadd.s32 1, %s20
    %s32 = scalar_select %p29, %s31, %s20
    %p33 = scmp.ge.s32.totalorder %s32, 1
    %s34 = scalar_select %p33, 0, %s32
    %s35 = sadd.s32 1, %s19
    %s36 = scalar_select %p33, %s35, %s19
    %p37 = scmp.ge.s32.totalorder %s36, 2
    %s38 = scalar_select %p37, 0, %s36
    %s39 = ssub.s32 %s19, %s38
    %s40 = ssub.s32 %s21, %s30
    %s41 = sor.u32 %s39, %s40
    %p42 = scmp.eq.s32.totalorder %s41, 0
    %s44 = sadd.s32 %s43, 1
    %s45 = scalar_select %p42, %s43, %s44
    %p48 = pneg %p42
    %p49 = scmp.eq.s32.totalorder %s12, 1
    %p50 = por %p48, %p49
    %p51 = scmp.ne.s32.totalorder %s43, %s46
    %p52 = scmp.eq.s32.totalorder %s12, 0
    %p53 = por %p51, %p52
    %p54 = scmp.ne.s32.totalorder %s43, %s46
    %p55 = scmp.eq.s32.totalorder %s17, 1
    %p56 = por %p54, %p55
    %p57 = scmp.ne.s32.totalorder %s46, %s47
    %p58 = scmp.eq.s32.totalorder %s17, 0
    %p59 = por %p57, %p58
    %p60 = scmp.ne.s32.totalorder %s46, %s47
    %p61 = scmp.eq.s32.totalorder %s18, 1
    %p62 = por %p60, %p61
    %p64 = scmp.ne.s32.totalorder %s47, %s63
    %p65 = scmp.eq.s32.totalorder %s18, 0
    %p66 = por %p64, %p65
    %s67 = ssub.s32 %s21, %s30
    %s68 = ssub.s32 %s20, %s34
    %s69 = sor.u32 %s67, %s68
    %p70 = scmp.eq.s32.totalorder %s69, 0
    %s72 = sadd.s32 %s71, 1
    %s73 = scalar_select %p70, %s71, %s72
    %p76 = pneg %p70
    %p77 = scmp.eq.s32.totalorder %s12, 1
    %p78 = por %p76, %p77
    %p79 = scmp.ne.s32.totalorder %s71, %s74
    %p80 = scmp.eq.s32.totalorder %s12, 0
    %p81 = por %p79, %p80
    %p82 = scmp.ne.s32.totalorder %s71, %s74
    %p83 = scmp.eq.s32.totalorder %s17, 1
    %p84 = por %p82, %p83
    %p85 = scmp.ne.s32.totalorder %s74, %s75
    %p86 = scmp.eq.s32.totalorder %s17, 0
    %p87 = por %p85, %p86
    %p88 = scmp.ne.s32.totalorder %s74, %s75
    %p89 = scmp.eq.s32.totalorder %s18, 1
    %p90 = por %p88, %p89
    %p92 = scmp.ne.s32.totalorder %s75, %s91
    %p93 = scmp.eq.s32.totalorder %s18, 0
    %p94 = por %p92, %p93
    %s95 = ssub.s32 %s20, %s34
    %p96 = scmp.eq.s32.totalorder %s95, 0
    %s98 = sadd.s32 %s97, 1
    %s99 = scalar_select %p96, %s97, %s98
    %p102 = pneg %p96
    %p103 = scmp.eq.s32.totalorder %s12, 1
    %p104 = por %p102, %p103
    %p105 = scmp.ne.s32.totalorder %s97, %s100
    %p106 = scmp.eq.s32.totalorder %s12, 0
    %p107 = por %p105, %p106
    %p108 = scmp.ne.s32.totalorder %s97, %s100
    %p109 = scmp.eq.s32.totalorder %s17, 1
    %p110 = por %p108, %p109
    %p111 = scmp.ne.s32.totalorder %s100, %s101
    %p112 = scmp.eq.s32.totalorder %s17, 0
    %p113 = por %p111, %p112
    %p114 = scmp.ne.s32.totalorder %s100, %s101
    %p115 = scmp.eq.s32.totalorder %s18, 1
    %p116 = por %p114, %p115
    %p118 = scmp.ne.s32.totalorder %s101, %s117
    %p119 = scmp.eq.s32.totalorder %s18, 0
    %p120 = por %p118, %p119
    %s121 = ssub.s32 %s21, %s30
    %p122 = scmp.eq.s32.totalorder %s121, 0
    %s124 = sadd.s32 %s123, 1
    %s125 = scalar_select %p122, %s123, %s124
    %p128 = pneg %p122
    %p129 = scmp.eq.s32.totalorder %s12, 1
    %p130 = por %p128, %p129
    %p131 = scmp.ne.s32.totalorder %s123, %s126
    %p132 = scmp.eq.s32.totalorder %s12, 0
    %p133 = por %p131, %p132
    %p134 = scmp.ne.s32.totalorder %s123, %s126
    %p135 = scmp.eq.s32.totalorder %s17, 1
    %p136 = por %p134, %p135
    %p137 = scmp.ne.s32.totalorder %s126, %s127
    %p138 = scmp.eq.s32.totalorder %s17, 0
    %p139 = por %p137, %p138
    %p140 = scmp.ne.s32.totalorder %s126, %s127
    %p141 = scmp.eq.s32.totalorder %s18, 1
    %p142 = por %p140, %p141
    %p144 = scmp.ne.s32.totalorder %s127, %s143
    %p145 = scmp.eq.s32.totalorder %s18, 0
    %p146 = por %p144, %p145
    %s147 = ssub.s32 %s21, %s30
    %p148 = scmp.eq.s32.totalorder %s147, 0
    %s150 = sadd.s32 %s149, 1
    %s151 = scalar_select %p148, %s149, %s150
    %p154 = pneg %p148
    %p155 = scmp.eq.s32.totalorder %s12, 1
    %p156 = por %p154, %p155
    %p157 = scmp.ne.s32.totalorder %s149, %s152
    %p158 = scmp.eq.s32.totalorder %s12, 0
    %p159 = por %p157, %p158
    %p160 = scmp.ne.s32.totalorder %s149, %s152
    %p161 = scmp.eq.s32.totalorder %s17, 1
    %p162 = por %p160, %p161
    %p163 = scmp.ne.s32.totalorder %s152, %s153
    %p164 = scmp.eq.s32.totalorder %s17, 0
    %p165 = por %p163, %p164
    %p166 = scmp.ne.s32.totalorder %s152, %s153
    %p167 = scmp.eq.s32.totalorder %s18, 1
    %p168 = por %p166, %p167
    %p170 = scmp.ne.s32.totalorder %s153, %s169
    %p171 = scmp.eq.s32.totalorder %s18, 0
    %p172 = por %p170, %p171
    %s173 = ssub.s32 %s20, %s34
    %p174 = scmp.eq.s32.totalorder %s173, 0
    %s176 = sadd.s32 %s175, 1
    %s177 = scalar_select %p174, %s175, %s176
    %p180 = pneg %p174
    %p181 = scmp.eq.s32.totalorder %s12, 1
    %p182 = por %p180, %p181
    %p183 = scmp.ne.s32.totalorder %s175, %s178
    %p184 = scmp.eq.s32.totalorder %s12, 0
    %p185 = por %p183, %p184
    %p186 = scmp.ne.s32.totalorder %s175, %s178
    %p187 = scmp.eq.s32.totalorder %s17, 1
    %p188 = por %p186, %p187
    %p189 = scmp.ne.s32.totalorder %s178, %s179
    %p190 = scmp.eq.s32.totalorder %s17, 0
    %p191 = por %p189, %p190
    %p192 = scmp.ne.s32.totalorder %s178, %s179
    %p193 = scmp.eq.s32.totalorder %s18, 1
    %p194 = por %p192, %p193
    %p196 = scmp.ne.s32.totalorder %s179, %s195
    %p197 = scmp.eq.s32.totalorder %s18, 0
    %p198 = por %p196, %p197
    %s199 = ssub.s32 %s19, %s38
    %s200 = ssub.s32 %s20, %s34
    %s201 = sor.u32 %s199, %s200
    %p202 = scmp.eq.s32.totalorder %s201, 0
    %s204 = sadd.s32 %s203, 1
    %s205 = scalar_select %p202, %s203, %s204
    %p208 = pneg %p202
    %p209 = scmp.eq.s32.totalorder %s12, 1
    %p210 = por %p208, %p209
    %p211 = scmp.ne.s32.totalorder %s203, %s206
    %p212 = scmp.eq.s32.totalorder %s12, 0
    %p213 = por %p211, %p212
    %p214 = scmp.ne.s32.totalorder %s203, %s206
    %p215 = scmp.eq.s32.totalorder %s17, 1
    %p216 = por %p214, %p215
    %p217 = scmp.ne.s32.totalorder %s206, %s207
    %p218 = scmp.eq.s32.totalorder %s17, 0
    %p219 = por %p217, %p218
    %p220 = scmp.ne.s32.totalorder %s206, %s207
    %p221 = scmp.eq.s32.totalorder %s18, 1
    %p222 = por %p220, %p221
    %p224 = scmp.ne.s32.totalorder %s207, %s223
    %p225 = scmp.eq.s32.totalorder %s18, 0
    %p226 = por %p224, %p225
    %p227 = scmp.le.s32.totalorder 1, %s12
    %p228 = scmp.lt.s32.totalorder %s12, 3
    %p229 = pnand %p227, %p228
    %p230 = pneg %p229
    // Predicated region
    $region9: #{double_conv_forward.3} parent=5 // pred_check
      _
    $region10: #{double_conv_forward.3} parent=5 // pred_check_branch
      %232 = sbr.rel (%p229) target = $region12
    $region11: #{double_conv_forward.3} parent=5 // pred_region
      %s233 = ssub.s32 %s12, 1
      // Predicated region
      $region13: #{double_conv_forward.3} parent=11 // pred_check
        %p234 = pneg %p87
      $region14: #{double_conv_forward.3} parent=11 // pred_check_branch
        %236 = sbr.rel (%p234) target = $region16
      $region15: #{double_conv_forward.3} parent=11 // pred_region
        %p237 = scmp.lt.s32.totalorder %s24, 0
        %s238 = scalar_select %p237, %s24, 0
        %p239 = scmp.lt.s32.totalorder %s23, 0
        %s240 = scalar_select %p239, %s23, 0
        %s241 = smul.addr %s238, 144
        %s242 = sadd.s32 %s240, %s241
        %s243 = smul.addr %s242, 4
        %s244 = scalar_lea.vmem %s1, %s243
      $region16: #{double_conv_forward.3} parent=11 // pred_fallthru
        _
      // Predicated region
      $region17: #{double_conv_forward.3} parent=11 // pred_check
        %p245 = pneg %p113
      $region18: #{double_conv_forward.3} parent=11 // pred_check_branch
        %247 = sbr.rel (%p245) target = $region20
      $region19: #{double_conv_forward.3} parent=11 // pred_region
        %p248 = scmp.lt.s32.totalorder %s23, 0
        %s249 = scalar_select %p248, %s23, 0
        %s250 = scalar_lea.vmem %s2, %s249
      $region20: #{double_conv_forward.3} parent=11 // pred_fallthru
        _
      // Predicated region
      $region21: #{double_conv_forward.3} parent=11 // pred_check
        %p251 = pneg %p139
      $region22: #{double_conv_forward.3} parent=11 // pred_check_branch
        %253 = sbr.rel (%p251) target = $region24
      $region23: #{double_conv_forward.3} parent=11 // pred_region
        %p254 = scmp.lt.s32.totalorder %s24, 0
        %s255 = scalar_select %p254, %s24, 0
        %s256 = scalar_lea.vmem %s3, %s255
      $region24: #{double_conv_forward.3} parent=11 // pred_fallthru
        _
      // Predicated region
      $region25: #{double_conv_forward.3} parent=11 // pred_check
        %p257 = pneg %p165
      $region26: #{double_conv_forward.3} parent=11 // pred_check_branch
        %259 = sbr.rel (%p257) target = $region28
      $region27: #{double_conv_forward.3} parent=11 // pred_region
        %p260 = scmp.lt.s32.totalorder %s24, 0
        %s261 = scalar_select %p260, %s24, 0
        %s262 = scalar_lea.vmem %s4, %s261
      $region28: #{double_conv_forward.3} parent=11 // pred_fallthru
        _
      // Predicated region
      $region29: #{double_conv_forward.3} parent=11 // pred_check
        %p263 = pneg %p191
      $region30: #{double_conv_forward.3} parent=11 // pred_check_branch
        %265 = sbr.rel (%p263) target = $region32
      $region31: #{double_conv_forward.3} parent=11 // pred_region
        %p266 = scmp.lt.s32.totalorder %s23, 0
        %s267 = scalar_select %p266, %s23, 0
        %s268 = smul.addr %s267, 2
        %s269 = scalar_lea.vmem %s5, %s268
      $region32: #{double_conv_forward.3} parent=11 // pred_fallthru
        _
    $region12: #{double_conv_forward.3} parent=5 // pred_fallthru
      _
    %p270 = scmp.lt.s32.totalorder %s12, 2
    // Predicated region
    $region33: #{double_conv_forward.3} parent=5 // pred_check
      %p271 = pneg %p270
    $region34: #{double_conv_forward.3} parent=5 // pred_check_branch
      %273 = sbr.rel (%p271) target = $region36
    $region35: #{double_conv_forward.3} parent=5 // pred_region
      // Predicated region
      $region37: #{double_conv_forward.3} parent=35 // pred_check
        %p274 = pneg %p53
      $region38: #{double_conv_forward.3} parent=35 // pred_check_branch
        %276 = sbr.rel (%p274) target = $region40
      $region39: #{double_conv_forward.3} parent=35 // pred_region
        %p277 = scmp.lt.s32.totalorder %s19, 1
        %s278 = scalar_select %p277, %s19, 1
        %p279 = scmp.lt.s32.totalorder %s21, 0
        %s280 = scalar_select %p279, %s21, 0
        %s281 = smul.addr %s278, 32
        %s282 = sadd.s32 %s280, %s281
        %s283 = smul.addr %s282, 4
        %s284 = scalar_lea.vmem %s0, %s283
      $region40: #{double_conv_forward.3} parent=35 // pred_fallthru
        _
    $region36: #{double_conv_forward.3} parent=5 // pred_fallthru
      _
    %p285 = scmp.le.s32.totalorder 1, %s12
    %p286 = scmp.lt.s32.totalorder %s12, 3
    %p287 = pnand %p285, %p286
    %p288 = pneg %p287
    // Predicated region
    $region41: #{double_conv_forward.3} parent=5 // pred_check
      _
    $region42: #{double_conv_forward.3} parent=5 // pred_check_branch
      %290 = sbr.rel (%p287) target = $region44
    $region43: #{double_conv_forward.3} parent=5 // pred_region
      %s291 = ssub.s32 %s12, 1
      %p292 = scmp.lt.s32.totalorder %s22, 1
      %s293 = scalar_select %p292, %s22, 1
      %p294 = scmp.lt.s32.totalorder %s24, 0
      %s295 = scalar_select %p294, %s24, 0
      %s296 = smul.addr %s293, 32
      %s297 = sadd.s32 %s295, %s296
      %s298 = smul.addr %s297, 4
      %s299 = scalar_lea.vmem %s0, %s298
      %p300 = pneg %p59
      %p301 = pneg %p56
      %p302 = scmp.lt.s32.totalorder %s24, 0
      %s303 = scalar_select %p302, %s24, 0
      %p304 = scmp.lt.s32.totalorder %s23, 0
      %s305 = scalar_select %p304, %s23, 0
      %s306 = smul.addr %s303, 144
      %s307 = sadd.s32 %s305, %s306
      %s308 = smul.addr %s307, 4
      %s309 = scalar_lea.vmem %s1, %s308
      %p310 = pneg %p87
      %p311 = pneg %p84
      %p312 = scmp.lt.s32.totalorder %s23, 0
      %s313 = scalar_select %p312, %s23, 0
      %s314 = scalar_lea.vmem %s2, %s313
      %p315 = pneg %p113
      %p316 = pneg %p110
      %p317 = scmp.lt.s32.totalorder %s24, 0
      %s318 = scalar_select %p317, %s24, 0
      %s319 = scalar_lea.vmem %s3, %s318
      %p320 = pneg %p139
      %p321 = pneg %p136
      %p322 = scmp.lt.s32.totalorder %s24, 0
      %s323 = scalar_select %p322, %s24, 0
      %s324 = scalar_lea.vmem %s4, %s323
      %p325 = pneg %p165
      %p326 = pneg %p162
      %p327 = scmp.lt.s32.totalorder %s23, 0
      %s328 = scalar_select %p327, %s23, 0
      %s329 = smul.addr %s328, 2
      %s330 = scalar_lea.vmem %s5, %s329
      %p331 = pneg %p191
      %p332 = pneg %p188
      %p333 = pneg %p219
      %p334 = pneg %p216
      %p335 = scmp.lt.s32.totalorder %s22, 1
      %s336 = scalar_select %p335, %s22, 1
      %p337 = scmp.lt.s32.totalorder %s23, 0
      %s338 = scalar_select %p337, %s23, 0
      %s339 = smul.addr %s336, 32
      %s340 = sadd.s32 %s338, %s339
      %s341 = smul.addr %s340, 8
      %s342 = scalar_lea.vmem %s6, %s341
      %p343 = scmp.lt.s32.totalorder %s22, 1
      %s344 = scalar_select %p343, %s22, 1
      %p345 = scmp.lt.s32.totalorder %s24, 0
      %s346 = scalar_select %p345, %s24, 0
      %s347 = smul.addr %s344, 32
      %s348 = sadd.s32 %s346, %s347
      %s349 = smul.addr %s348, 4
      %s350 = scalar_lea.vmem %s0, %s349
      %p351 = scmp.lt.s32.totalorder %s24, 0
      %s352 = scalar_select %p351, %s24, 0
      %p353 = scmp.lt.s32.totalorder %s23, 0
      %s354 = scalar_select %p353, %s23, 0
      %s355 = smul.addr %s352, 144
      %s356 = sadd.s32 %s354, %s355
      %s357 = smul.addr %s356, 4
      %s358 = scalar_lea.vmem %s1, %s357
      %p359 = scmp.lt.s32.totalorder %s23, 0
      %s360 = scalar_select %p359, %s23, 0
      %s361 = scalar_lea.vmem %s2, %s360
      %p362 = scmp.lt.s32.totalorder %s24, 0
      %s363 = scalar_select %p362, %s24, 0
      %s364 = scalar_lea.vmem %s3, %s363
      %p365 = scmp.lt.s32.totalorder %s24, 0
      %s366 = scalar_select %p365, %s24, 0
      %s367 = scalar_lea.vmem %s4, %s366
      %p368 = scmp.lt.s32.totalorder %s23, 0
      %s369 = scalar_select %p368, %s23, 0
      %s370 = smul.addr %s369, 2
      %s371 = scalar_lea.vmem %s5, %s370
      %p372 = scmp.lt.s32.totalorder %s22, 1
      %s373 = scalar_select %p372, %s22, 1
      %p374 = scmp.lt.s32.totalorder %s23, 0
      %s375 = scalar_select %p374, %s23, 0
      %s376 = smul.addr %s373, 32
      %s377 = sadd.s32 %s375, %s376
      %s378 = smul.addr %s377, 8
      %s379 = scalar_lea.vmem %s6, %s378
      %p381 = scmp.eq.s32.totalorder %s24, 0
      // Predicated region
      $region45: #{double_conv_forward.3} parent=43 // pred_check
        %p382 = pneg %p381
      $region46: #{double_conv_forward.3} parent=43 // pred_check_branch
        %384 = sbr.rel (%p382) target = $region48
      $region47: #{double_conv_forward.3} parent=43 // pred_region
        %385 = vst [vmem:[#allocation3] sm:$0xff] 0.0
        %386 = vst [vmem:[#allocation3 + $0x8] sm:$0xff] 0.0
        %387 = vst [vmem:[#allocation3 + $0x10] sm:$0xff] 0.0
        %388 = vst [vmem:[#allocation3 + $0x18] sm:$0xff] 0.0
        %389 = vst [vmem:[#allocation3 + $0x20] sm:$0xff] 0.0
        %390 = vst [vmem:[#allocation3 + $0x28] sm:$0xff] 0.0
        %391 = vst [vmem:[#allocation3 + $0x30] sm:$0xff] 0.0
        %392 = vst [vmem:[#allocation3 + $0x38] sm:$0xff] 0.0
        %393 = vst [vmem:[#allocation3 + $0x40] sm:$0xff] 0.0
        %394 = vst [vmem:[#allocation3 + $0x48] sm:$0xff] 0.0
        %395 = vst [vmem:[#allocation3 + $0x50] sm:$0xff] 0.0
        %396 = vst [vmem:[#allocation3 + $0x58] sm:$0xff] 0.0
        %397 = vst [vmem:[#allocation3 + $0x60] sm:$0xff] 0.0
        %398 = vst [vmem:[#allocation3 + $0x68] sm:$0xff] 0.0
        %399 = vst [vmem:[#allocation3 + $0x70] sm:$0xff] 0.0
        %400 = vst [vmem:[#allocation3 + $0x78] sm:$0xff] 0.0
        %401 = vst [vmem:[#allocation3 + $0x80] sm:$0xff] 0.0
        %402 = vst [vmem:[#allocation3 + $0x88] sm:$0xff] 0.0
        %403 = vst [vmem:[#allocation3 + $0x90] sm:$0xff] 0.0
        %404 = vst [vmem:[#allocation3 + $0x98] sm:$0xff] 0.0
        %405 = vst [vmem:[#allocation3 + $0xa0] sm:$0xff] 0.0
        %406 = vst [vmem:[#allocation3 + $0xa8] sm:$0xff] 0.0
        %407 = vst [vmem:[#allocation3 + $0xb0] sm:$0xff] 0.0
        %408 = vst [vmem:[#allocation3 + $0xb8] sm:$0xff] 0.0
        %409 = vst [vmem:[#allocation3 + $0xc0] sm:$0xff] 0.0
        %410 = vst [vmem:[#allocation3 + $0xc8] sm:$0xff] 0.0
        %411 = vst [vmem:[#allocation3 + $0xd0] sm:$0xff] 0.0
        %412 = vst [vmem:[#allocation3 + $0xd8] sm:$0xff] 0.0
        %413 = vst [vmem:[#allocation3 + $0xe0] sm:$0xff] 0.0
        %414 = vst [vmem:[#allocation3 + $0xe8] sm:$0xff] 0.0
        %415 = vst [vmem:[#allocation3 + $0xf0] sm:$0xff] 0.0
        %416 = vst [vmem:[#allocation3 + $0xf8] sm:$0xff] 0.0
        %417 = vst [vmem:[#allocation2] sm:$0xff] 0
        %418 = vst [vmem:[#allocation2 + $0x8] sm:$0xff] 0
        %419 = vst [vmem:[#allocation2 + $0x10] sm:$0xff] 0
        %s420 = scalar_lea.vmem [#allocation2], 408
        %421 = vst [vmem:[%s420] sm:$0xff] 0
        %422 = vst [vmem:[%s420 + $0x8] sm:$0xff] 0
        %423 = vst [vmem:[%s420 + $0x10] sm:$0xff] 0
      $region48: #{double_conv_forward.3} parent=43 // pred_fallthru
        _
      %v424 = vld [vmem:[%s350] sm:$0xf]
      %v425 = vld [vmem:[%s350 + $0x4] sm:$0xf]
      %v426 = vld [vmem:[%s350 + $0x8] sm:$0xf]
      %v427 = vld [vmem:[%s350 + $0xc] sm:$0xf]
      %v428 = vld [vmem:[%s350 + $0x10] sm:$0xf]
      %v429 = vld [vmem:[%s350 + $0x14] sm:$0xf]
      %v430 = vld [vmem:[%s350 + $0x18] sm:$0xf]
      %v431 = vld [vmem:[%s350 + $0x1c] sm:$0xf]
      %v432 = vld [vmem:[%s350 + $0x20] sm:$0xf]
      %v433 = vld [vmem:[%s350 + $0x24] sm:$0xf]
      %v434 = vld [vmem:[%s350 + $0x28] sm:$0xf]
      %v435 = vld [vmem:[%s350 + $0x2c] sm:$0xf]
      %v436 = vld [vmem:[%s350 + $0x30] sm:$0xf]
      %v437 = vld [vmem:[%s350 + $0x34] sm:$0xf]
      %v438 = vld [vmem:[%s350 + $0x38] sm:$0xf]
      %v439 = vld [vmem:[%s350 + $0x3c] sm:$0xf]
      %v440 = vld [vmem:[%s350 + $0x40] sm:$0xf]
      %v441 = vld [vmem:[%s350 + $0x44] sm:$0xf]
      %v442 = vld [vmem:[%s350 + $0x48] sm:$0xf]
      %v443 = vld [vmem:[%s350 + $0x4c] sm:$0xf]
      %v444 = vld [vmem:[%s350 + $0x50] sm:$0xf]
      %v445 = vld [vmem:[%s350 + $0x54] sm:$0xf]
      %v446 = vld [vmem:[%s350 + $0x58] sm:$0xf]
      %v447 = vld [vmem:[%s350 + $0x5c] sm:$0xf]
      %v448 = vld [vmem:[%s350 + $0x60] sm:$0xf]
      %v449 = vld [vmem:[%s350 + $0x64] sm:$0xf]
      %v450 = vld [vmem:[%s350 + $0x68] sm:$0xf]
      %v451 = vld [vmem:[%s350 + $0x6c] sm:$0xf]
      %v452 = vld [vmem:[%s350 + $0x70] sm:$0xf]
      %v453 = vld [vmem:[%s350 + $0x74] sm:$0xf]
      %v454 = vld [vmem:[%s350 + $0x78] sm:$0xf]
      %v455 = vld [vmem:[%s350 + $0x7c] sm:$0xf]
      %v456 = vunpack.c.l.bf16 %v424
      %v457 = vunpack.c.l.bf16 %v425
      %v458 = vunpack.c.l.bf16 %v426
      %v459 = vunpack.c.l.bf16 %v427
      %v460 = vunpack.c.l.bf16 %v428
      %v461 = vunpack.c.l.bf16 %v429
      %v462 = vunpack.c.l.bf16 %v430
      %v463 = vunpack.c.l.bf16 %v431
      %v464 = vunpack.c.l.bf16 %v432
      %v465 = vunpack.c.l.bf16 %v433
      %v466 = vunpack.c.l.bf16 %v434
      %v467 = vunpack.c.l.bf16 %v435
      %v468 = vunpack.c.l.bf16 %v436
      %v469 = vunpack.c.l.bf16 %v437
      %v470 = vunpack.c.l.bf16 %v438
      %v471 = vunpack.c.l.bf16 %v439
      %v472 = vunpack.c.l.bf16 %v440
      %v473 = vunpack.c.l.bf16 %v441
      %v474 = vunpack.c.l.bf16 %v442
      %v475 = vunpack.c.l.bf16 %v443
      %v476 = vunpack.c.l.bf16 %v444
      %v477 = vunpack.c.l.bf16 %v445
      %v478 = vunpack.c.l.bf16 %v446
      %v479 = vunpack.c.l.bf16 %v447
      %v480 = vunpack.c.l.bf16 %v448
      %v481 = vunpack.c.l.bf16 %v449
      %v482 = vunpack.c.l.bf16 %v450
      %v483 = vunpack.c.l.bf16 %v451
      %v484 = vunpack.c.l.bf16 %v452
      %v485 = vunpack.c.l.bf16 %v453
      %v486 = vunpack.c.l.bf16 %v454
      %v487 = vunpack.c.l.bf16 %v455
      %vm520 = vcmask 1040384
      %v521 = vrot.slane %v456, 7
      %v522 = vrot.slane %v457, 7
      %v523 = vsel %vm520, %v521, %v522
      %v524 = vrot.slane %v458, 7
      %v525 = vrot.slane %v459, 7
      %v526 = vsel %vm520, %v524, %v525
      %v527 = vrot.slane %v460, 7
      %v528 = vrot.slane %v461, 7
      %v529 = vsel %vm520, %v527, %v528
      %v530 = vrot.slane %v462, 7
      %v531 = vrot.slane %v463, 7
      %v532 = vsel %vm520, %v530, %v531
      %v533 = vrot.slane %v464, 7
      %v534 = vrot.slane %v465, 7
      %v535 = vsel %vm520, %v533, %v534
      %v536 = vrot.slane %v466, 7
      %v537 = vrot.slane %v467, 7
      %v538 = vsel %vm520, %v536, %v537
      %v539 = vrot.slane %v468, 7
      %v540 = vrot.slane %v469, 7
      %v541 = vsel %vm520, %v539, %v540
      %v542 = vrot.slane %v470, 7
      %v543 = vrot.slane %v471, 7
      %v544 = vsel %vm520, %v542, %v543
      %v545 = vrot.slane %v472, 7
      %v546 = vrot.slane %v473, 7
      %v547 = vsel %vm520, %v545, %v546
      %v548 = vrot.slane %v474, 7
      %v549 = vrot.slane %v475, 7
      %v550 = vsel %vm520, %v548, %v549
      %v551 = vrot.slane %v476, 7
      %v552 = vrot.slane %v477, 7
      %v553 = vsel %vm520, %v551, %v552
      %v554 = vrot.slane %v478, 7
      %v555 = vrot.slane %v479, 7
      %v556 = vsel %vm520, %v554, %v555
      %v557 = vrot.slane %v480, 7
      %v558 = vrot.slane %v481, 7
      %v559 = vsel %vm520, %v557, %v558
      %v560 = vrot.slane %v482, 7
      %v561 = vrot.slane %v483, 7
      %v562 = vsel %vm520, %v560, %v561
      %v563 = vrot.slane %v484, 7
      %v564 = vrot.slane %v485, 7
      %v565 = vsel %vm520, %v563, %v564
      %v566 = vrot.slane %v486, 7
      %v567 = vrot.slane %v487, 7
      %v568 = vsel %vm520, %v566, %v567
      %v601 = vsel %vm520, 0.0, %v521
      %v602 = vsel %vm520, 0.0, %v524
      %v603 = vsel %vm520, 0.0, %v527
      %v604 = vsel %vm520, 0.0, %v530
      %v605 = vsel %vm520, 0.0, %v533
      %v606 = vsel %vm520, 0.0, %v536
      %v607 = vsel %vm520, 0.0, %v539
      %v608 = vsel %vm520, 0.0, %v542
      %v609 = vsel %vm520, 0.0, %v545
      %v610 = vsel %vm520, 0.0, %v548
      %v611 = vsel %vm520, 0.0, %v551
      %v612 = vsel %vm520, 0.0, %v554
      %v613 = vsel %vm520, 0.0, %v557
      %v614 = vsel %vm520, 0.0, %v560
      %v615 = vsel %vm520, 0.0, %v563
      %v616 = vsel %vm520, 0.0, %v566
      %vm617 = vcmask 1046528
      %v618 = vrot.slane %v456, 1
      %v619 = vrot.slane %v457, 1
      %v620 = vsel %vm617, %v618, %v619
      %v621 = vrot.slane %v458, 1
      %v622 = vrot.slane %v459, 1
      %v623 = vsel %vm617, %v621, %v622
      %v624 = vrot.slane %v460, 1
      %v625 = vrot.slane %v461, 1
      %v626 = vsel %vm617, %v624, %v625
      %v627 = vrot.slane %v462, 1
      %v628 = vrot.slane %v463, 1
      %v629 = vsel %vm617, %v627, %v628
      %v630 = vrot.slane %v464, 1
      %v631 = vrot.slane %v465, 1
      %v632 = vsel %vm617, %v630, %v631
      %v633 = vrot.slane %v466, 1
      %v634 = vrot.slane %v467, 1
      %v635 = vsel %vm617, %v633, %v634
      %v636 = vrot.slane %v468, 1
      %v637 = vrot.slane %v469, 1
      %v638 = vsel %vm617, %v636, %v637
      %v639 = vrot.slane %v470, 1
      %v640 = vrot.slane %v471, 1
      %v641 = vsel %vm617, %v639, %v640
      %v642 = vrot.slane %v472, 1
      %v643 = vrot.slane %v473, 1
      %v644 = vsel %vm617, %v642, %v643
      %v645 = vrot.slane %v474, 1
      %v646 = vrot.slane %v475, 1
      %v647 = vsel %vm617, %v645, %v646
      %v648 = vrot.slane %v476, 1
      %v649 = vrot.slane %v477, 1
      %v650 = vsel %vm617, %v648, %v649
      %v651 = vrot.slane %v478, 1
      %v652 = vrot.slane %v479, 1
      %v653 = vsel %vm617, %v651, %v652
      %v654 = vrot.slane %v480, 1
      %v655 = vrot.slane %v481, 1
      %v656 = vsel %vm617, %v654, %v655
      %v657 = vrot.slane %v482, 1
      %v658 = vrot.slane %v483, 1
      %v659 = vsel %vm617, %v657, %v658
      %v660 = vrot.slane %v484, 1
      %v661 = vrot.slane %v485, 1
      %v662 = vsel %vm617, %v660, %v661
      %v663 = vrot.slane %v486, 1
      %v664 = vrot.slane %v487, 1
      %v665 = vsel %vm617, %v663, %v664
      %v698 = vsel %vm617, %v619, 0.0
      %v699 = vsel %vm617, %v622, 0.0
      %v700 = vsel %vm617, %v625, 0.0
      %v701 = vsel %vm617, %v628, 0.0
      %v702 = vsel %vm617, %v631, 0.0
      %v703 = vsel %vm617, %v634, 0.0
      %v704 = vsel %vm617, %v637, 0.0
      %v705 = vsel %vm617, %v640, 0.0
      %v706 = vsel %vm617, %v643, 0.0
      %v707 = vsel %vm617, %v646, 0.0
      %v708 = vsel %vm617, %v649, 0.0
      %v709 = vsel %vm617, %v652, 0.0
      %v710 = vsel %vm617, %v655, 0.0
      %v711 = vsel %vm617, %v658, 0.0
      %v712 = vsel %vm617, %v661, 0.0
      %v713 = vsel %vm617, %v664, 0.0
      %v714 = vpack.c.bf16 %v523, %v601
      %v715 = vpack.c.bf16 %v526, %v602
      %v716 = vpack.c.bf16 %v529, %v603
      %v717 = vpack.c.bf16 %v532, %v604
      %v718 = vpack.c.bf16 %v535, %v605
      %v719 = vpack.c.bf16 %v538, %v606
      %v720 = vpack.c.bf16 %v541, %v607
      %v721 = vpack.c.bf16 %v544, %v608
      %v722 = vpack.c.bf16 %v547, %v609
      %v723 = vpack.c.bf16 %v550, %v610
      %v724 = vpack.c.bf16 %v553, %v611
      %v725 = vpack.c.bf16 %v556, %v612
      %v726 = vpack.c.bf16 %v559, %v613
      %v727 = vpack.c.bf16 %v562, %v614
      %v728 = vpack.c.bf16 %v565, %v615
      %v729 = vpack.c.bf16 %v568, %v616
      %s730 = scalar_lea.vmem [#allocation2], 24
      %731 = vst [vmem:[%s730] sm:$0xff] %v714
      %732 = vst [vmem:[%s730 + $0x18] sm:$0xff] %v715
      %733 = vst [vmem:[%s730 + $0x30] sm:$0xff] %v716
      %734 = vst [vmem:[%s730 + $0x48] sm:$0xff] %v717
      %735 = vst [vmem:[%s730 + $0x60] sm:$0xff] %v718
      %736 = vst [vmem:[%s730 + $0x78] sm:$0xff] %v719
      %737 = vst [vmem:[%s730 + $0x90] sm:$0xff] %v720
      %738 = vst [vmem:[%s730 + $0xa8] sm:$0xff] %v721
      %739 = vst [vmem:[%s730 + $0xc0] sm:$0xff] %v722
      %740 = vst [vmem:[%s730 + $0xd8] sm:$0xff] %v723
      %741 = vst [vmem:[%s730 + $0xf0] sm:$0xff] %v724
      %742 = vst [vmem:[%s730 + $0x108] sm:$0xff] %v725
      %743 = vst [vmem:[%s730 + $0x120] sm:$0xff] %v726
      %744 = vst [vmem:[%s730 + $0x138] sm:$0xff] %v727
      %745 = vst [vmem:[%s730 + $0x150] sm:$0xff] %v728
      %746 = vst [vmem:[%s730 + $0x168] sm:$0xff] %v729
      %v779 = vunpack.c.l.b16 %v424
      %v780 = vunpack.c.l.b16 %v425
      %v781 = vunpack.c.l.b16 %v426
      %v782 = vunpack.c.l.b16 %v427
      %v783 = vunpack.c.l.b16 %v428
      %v784 = vunpack.c.l.b16 %v429
      %v785 = vunpack.c.l.b16 %v430
      %v786 = vunpack.c.l.b16 %v431
      %v787 = vunpack.c.l.b16 %v432
      %v788 = vunpack.c.l.b16 %v433
      %v789 = vunpack.c.l.b16 %v434
      %v790 = vunpack.c.l.b16 %v435
      %v791 = vunpack.c.l.b16 %v436
      %v792 = vunpack.c.l.b16 %v437
      %v793 = vunpack.c.l.b16 %v438
      %v794 = vunpack.c.l.b16 %v439
      %v795 = vunpack.c.l.b16 %v440
      %v796 = vunpack.c.l.b16 %v441
      %v797 = vunpack.c.l.b16 %v442
      %v798 = vunpack.c.l.b16 %v443
      %v799 = vunpack.c.l.b16 %v444
      %v800 = vunpack.c.l.b16 %v445
      %v801 = vunpack.c.l.b16 %v446
      %v802 = vunpack.c.l.b16 %v447
      %v803 = vunpack.c.l.b16 %v448
      %v804 = vunpack.c.l.b16 %v449
      %v805 = vunpack.c.l.b16 %v450
      %v806 = vunpack.c.l.b16 %v451
      %v807 = vunpack.c.l.b16 %v452
      %v808 = vunpack.c.l.b16 %v453
      %v809 = vunpack.c.l.b16 %v454
      %v810 = vunpack.c.l.b16 %v455
      %v811 = vpack.c.b16 %v780, %v779
      %v812 = vpack.c.b16 %v782, %v781
      %v813 = vpack.c.b16 %v784, %v783
      %v814 = vpack.c.b16 %v786, %v785
      %v815 = vpack.c.b16 %v788, %v787
      %v816 = vpack.c.b16 %v790, %v789
      %v817 = vpack.c.b16 %v792, %v791
      %v818 = vpack.c.b16 %v794, %v793
      %v819 = vpack.c.b16 %v796, %v795
      %v820 = vpack.c.b16 %v798, %v797
      %v821 = vpack.c.b16 %v800, %v799
      %v822 = vpack.c.b16 %v802, %v801
      %v823 = vpack.c.b16 %v804, %v803
      %v824 = vpack.c.b16 %v806, %v805
      %v825 = vpack.c.b16 %v808, %v807
      %v826 = vpack.c.b16 %v810, %v809
      %843 = vst [vmem:[%s730 + $0x8] sm:$0xff] %v811
      %844 = vst [vmem:[%s730 + $0x20] sm:$0xff] %v812
      %845 = vst [vmem:[%s730 + $0x38] sm:$0xff] %v813
      %846 = vst [vmem:[%s730 + $0x50] sm:$0xff] %v814
      %847 = vst [vmem:[%s730 + $0x68] sm:$0xff] %v815
      %848 = vst [vmem:[%s730 + $0x80] sm:$0xff] %v816
      %849 = vst [vmem:[%s730 + $0x98] sm:$0xff] %v817
      %850 = vst [vmem:[%s730 + $0xb0] sm:$0xff] %v818
      %851 = vst [vmem:[%s730 + $0xc8] sm:$0xff] %v819
      %852 = vst [vmem:[%s730 + $0xe0] sm:$0xff] %v820
      %853 = vst [vmem:[%s730 + $0xf8] sm:$0xff] %v821
      %854 = vst [vmem:[%s730 + $0x110] sm:$0xff] %v822
      %855 = vst [vmem:[%s730 + $0x128] sm:$0xff] %v823
      %856 = vst [vmem:[%s730 + $0x140] sm:$0xff] %v824
      %857 = vst [vmem:[%s730 + $0x158] sm:$0xff] %v825
      %858 = vst [vmem:[%s730 + $0x170] sm:$0xff] %v826
      %v859 = vpack.c.bf16 %v698, %v620
      %v860 = vpack.c.bf16 %v699, %v623
      %v861 = vpack.c.bf16 %v700, %v626
      %v862 = vpack.c.bf16 %v701, %v629
      %v863 = vpack.c.bf16 %v702, %v632
      %v864 = vpack.c.bf16 %v703, %v635
      %v865 = vpack.c.bf16 %v704, %v638
      %v866 = vpack.c.bf16 %v705, %v641
      %v867 = vpack.c.bf16 %v706, %v644
      %v868 = vpack.c.bf16 %v707, %v647
      %v869 = vpack.c.bf16 %v708, %v650
      %v870 = vpack.c.bf16 %v709, %v653
      %v871 = vpack.c.bf16 %v710, %v656
      %v872 = vpack.c.bf16 %v711, %v659
      %v873 = vpack.c.bf16 %v712, %v662
      %v874 = vpack.c.bf16 %v713, %v665
      %875 = vst [vmem:[%s730 + $0x10] sm:$0xff] %v859
      %876 = vst [vmem:[%s730 + $0x28] sm:$0xff] %v860
      %877 = vst [vmem:[%s730 + $0x40] sm:$0xff] %v861
      %878 = vst [vmem:[%s730 + $0x58] sm:$0xff] %v862
      %879 = vst [vmem:[%s730 + $0x70] sm:$0xff] %v863
      %880 = vst [vmem:[%s730 + $0x88] sm:$0xff] %v864
      %881 = vst [vmem:[%s730 + $0xa0] sm:$0xff] %v865
      %882 = vst [vmem:[%s730 + $0xb8] sm:$0xff] %v866
      %883 = vst [vmem:[%s730 + $0xd0] sm:$0xff] %v867
      %884 = vst [vmem:[%s730 + $0xe8] sm:$0xff] %v868
      %885 = vst [vmem:[%s730 + $0x100] sm:$0xff] %v869
      %886 = vst [vmem:[%s730 + $0x118] sm:$0xff] %v870
      %887 = vst [vmem:[%s730 + $0x130] sm:$0xff] %v871
      %888 = vst [vmem:[%s730 + $0x148] sm:$0xff] %v872
      %889 = vst [vmem:[%s730 + $0x160] sm:$0xff] %v873
      %890 = vst [vmem:[%s730 + $0x178] sm:$0xff] %v874
      %v891 = vld [vmem:[#allocation2] sm:$0xff]
      %v892 = vld [vmem:[#allocation2 + $0x8] sm:$0xff]
      %v893 = vld [vmem:[#allocation2 + $0x10] sm:$0xff]
      %v894 = vld [vmem:[#allocation2 + $0x18] sm:$0xff]
      %v895 = vld [vmem:[#allocation2 + $0x20] sm:$0xff]
      %v896 = vld [vmem:[#allocation2 + $0x28] sm:$0xff]
      %v897 = vld [vmem:[#allocation2 + $0x30] sm:$0xff]
      %v898 = vld [vmem:[#allocation2 + $0x38] sm:$0xff]
      %v899 = vld [vmem:[#allocation2 + $0x40] sm:$0xff]
      %v900 = vld [vmem:[#allocation2 + $0x48] sm:$0xff]
      %v901 = vld [vmem:[#allocation2 + $0x50] sm:$0xff]
      %v902 = vld [vmem:[#allocation2 + $0x58] sm:$0xff]
      %v903 = vld [vmem:[#allocation2 + $0x60] sm:$0xff]
      %v904 = vld [vmem:[#allocation2 + $0x68] sm:$0xff]
      %v905 = vld [vmem:[#allocation2 + $0x70] sm:$0xff]
      %v906 = vld [vmem:[#allocation2 + $0x78] sm:$0xff]
      %v907 = vld [vmem:[#allocation2 + $0x80] sm:$0xff]
      %v908 = vld [vmem:[#allocation2 + $0x88] sm:$0xff]
      %v909 = vld [vmem:[#allocation2 + $0x90] sm:$0xff]
      %v910 = vld [vmem:[#allocation2 + $0x98] sm:$0xff]
      %v911 = vld [vmem:[#allocation2 + $0xa0] sm:$0xff]
      %v912 = vld [vmem:[#allocation2 + $0xa8] sm:$0xff]
      %v913 = vld [vmem:[#allocation2 + $0xb0] sm:$0xff]
      %v914 = vld [vmem:[#allocation2 + $0xb8] sm:$0xff]
      %v915 = vld [vmem:[#allocation2 + $0xc0] sm:$0xff]
      %v916 = vld [vmem:[#allocation2 + $0xc8] sm:$0xff]
      %v917 = vld [vmem:[#allocation2 + $0xd0] sm:$0xff]
      %v918 = vld [vmem:[#allocation2 + $0xd8] sm:$0xff]
      %v919 = vld [vmem:[#allocation2 + $0xe0] sm:$0xff]
      %v920 = vld [vmem:[#allocation2 + $0xe8] sm:$0xff]
      %v921 = vld [vmem:[#allocation2 + $0xf0] sm:$0xff]
      %v922 = vld [vmem:[#allocation2 + $0xf8] sm:$0xff]
      %v923 = vld [vmem:[#allocation2 + $0x100] sm:$0xff]
      %v924 = vld [vmem:[#allocation2 + $0x108] sm:$0xff]
      %v925 = vld [vmem:[#allocation2 + $0x110] sm:$0xff]
      %v926 = vld [vmem:[#allocation2 + $0x118] sm:$0xff]
      %v927 = vld [vmem:[#allocation2 + $0x120] sm:$0xff]
      %v928 = vld [vmem:[#allocation2 + $0x128] sm:$0xff]
      %v929 = vld [vmem:[#allocation2 + $0x130] sm:$0xff]
      %v930 = vld [vmem:[#allocation2 + $0x138] sm:$0xff]
      %v931 = vld [vmem:[#allocation2 + $0x140] sm:$0xff]
      %v932 = vld [vmem:[#allocation2 + $0x148] sm:$0xff]
      %v933 = vld [vmem:[#allocation2 + $0x150] sm:$0xff]
      %v934 = vld [vmem:[#allocation2 + $0x158] sm:$0xff]
      %v935 = vld [vmem:[#allocation2 + $0x160] sm:$0xff]
      %v936 = vld [vmem:[#allocation2 + $0x168] sm:$0xff]
      %v937 = vld [vmem:[#allocation2 + $0x170] sm:$0xff]
      %v938 = vld [vmem:[#allocation2 + $0x178] sm:$0xff]
      %v939 = vld [vmem:[#allocation3] sm:$0xff]
      %v940 = vld [vmem:[#allocation3 + $0x8] sm:$0xff]
      %v941 = vld [vmem:[#allocation3 + $0x10] sm:$0xff]
      %v942 = vld [vmem:[#allocation3 + $0x18] sm:$0xff]
      %v943 = vld [vmem:[#allocation3 + $0x20] sm:$0xff]
      %v944 = vld [vmem:[#allocation3 + $0x28] sm:$0xff]
      %v945 = vld [vmem:[#allocation3 + $0x30] sm:$0xff]
      %v946 = vld [vmem:[#allocation3 + $0x38] sm:$0xff]
      %v947 = vld [vmem:[#allocation3 + $0x40] sm:$0xff]
      %v948 = vld [vmem:[#allocation3 + $0x48] sm:$0xff]
      %v949 = vld [vmem:[#allocation3 + $0x50] sm:$0xff]
      %v950 = vld [vmem:[#allocation3 + $0x58] sm:$0xff]
      %v951 = vld [vmem:[#allocation3 + $0x60] sm:$0xff]
      %v952 = vld [vmem:[#allocation3 + $0x68] sm:$0xff]
      %v953 = vld [vmem:[#allocation3 + $0x70] sm:$0xff]
      %v954 = vld [vmem:[#allocation3 + $0x78] sm:$0xff]
      %v955 = vld [vmem:[#allocation3 + $0x80] sm:$0xff]
      %v956 = vld [vmem:[#allocation3 + $0x88] sm:$0xff]
      %v957 = vld [vmem:[#allocation3 + $0x90] sm:$0xff]
      %v958 = vld [vmem:[#allocation3 + $0x98] sm:$0xff]
      %v959 = vld [vmem:[#allocation3 + $0xa0] sm:$0xff]
      %v960 = vld [vmem:[#allocation3 + $0xa8] sm:$0xff]
      %v961 = vld [vmem:[#allocation3 + $0xb0] sm:$0xff]
      %v962 = vld [vmem:[#allocation3 + $0xb8] sm:$0xff]
      %v963 = vld [vmem:[#allocation3 + $0xc0] sm:$0xff]
      %v964 = vld [vmem:[#allocation3 + $0xc8] sm:$0xff]
      %v965 = vld [vmem:[#allocation3 + $0xd0] sm:$0xff]
      %v966 = vld [vmem:[#allocation3 + $0xd8] sm:$0xff]
      %v967 = vld [vmem:[#allocation3 + $0xe0] sm:$0xff]
      %v968 = vld [vmem:[#allocation3 + $0xe8] sm:$0xff]
      %v969 = vld [vmem:[#allocation3 + $0xf0] sm:$0xff]
      %v970 = vld [vmem:[#allocation3 + $0xf8] sm:$0xff]
      %v971 = vld [vmem:[%s358] sm:$0xf]
      %v972 = vld [vmem:[%s358 + $0x4] sm:$0xf]
      %v973 = vld [vmem:[%s358 + $0x8] sm:$0xf]
      %v974 = vld [vmem:[%s358 + $0xc] sm:$0xf]
      %v975 = vld [vmem:[%s358 + $0x10] sm:$0xf]
      %v976 = vld [vmem:[%s358 + $0x14] sm:$0xf]
      %v977 = vld [vmem:[%s358 + $0x18] sm:$0xf]
      %v978 = vld [vmem:[%s358 + $0x1c] sm:$0xf]
      %v979 = vld [vmem:[%s358 + $0x20] sm:$0xf]
      %v980 = vld [vmem:[%s358 + $0x24] sm:$0xf]
      %v981 = vld [vmem:[%s358 + $0x28] sm:$0xf]
      %v982 = vld [vmem:[%s358 + $0x2c] sm:$0xf]
      %v983 = vld [vmem:[%s358 + $0x30] sm:$0xf]
      %v984 = vld [vmem:[%s358 + $0x34] sm:$0xf]
      %v985 = vld [vmem:[%s358 + $0x38] sm:$0xf]
      %v986 = vld [vmem:[%s358 + $0x3c] sm:$0xf]
      %v987 = vld [vmem:[%s358 + $0x40] sm:$0xf]
      %v988 = vld [vmem:[%s358 + $0x44] sm:$0xf]
      %v989 = vld [vmem:[%s358 + $0x48] sm:$0xf]
      %v990 = vld [vmem:[%s358 + $0x4c] sm:$0xf]
      %v991 = vld [vmem:[%s358 + $0x50] sm:$0xf]
      %v992 = vld [vmem:[%s358 + $0x54] sm:$0xf]
      %v993 = vld [vmem:[%s358 + $0x58] sm:$0xf]
      %v994 = vld [vmem:[%s358 + $0x5c] sm:$0xf]
      %v995 = vld [vmem:[%s358 + $0x60] sm:$0xf]
      %v996 = vld [vmem:[%s358 + $0x64] sm:$0xf]
      %v997 = vld [vmem:[%s358 + $0x68] sm:$0xf]
      %v998 = vld [vmem:[%s358 + $0x6c] sm:$0xf]
      %v999 = vld [vmem:[%s358 + $0x70] sm:$0xf]
      %v1000 = vld [vmem:[%s358 + $0x74] sm:$0xf]
      %v1001 = vld [vmem:[%s358 + $0x78] sm:$0xf]
      %v1002 = vld [vmem:[%s358 + $0x7c] sm:$0xf]
      %v1003 = vld [vmem:[%s358 + $0x80] sm:$0xf]
      %v1004 = vld [vmem:[%s358 + $0x84] sm:$0xf]
      %v1005 = vld [vmem:[%s358 + $0x88] sm:$0xf]
      %v1006 = vld [vmem:[%s358 + $0x8c] sm:$0xf]
      %v1007 = vld [vmem:[%s358 + $0x90] sm:$0xf]
      %v1008 = vld [vmem:[%s358 + $0x94] sm:$0xf]
      %v1009 = vld [vmem:[%s358 + $0x98] sm:$0xf]
      %v1010 = vld [vmem:[%s358 + $0x9c] sm:$0xf]
      %v1011 = vld [vmem:[%s358 + $0xa0] sm:$0xf]
      %v1012 = vld [vmem:[%s358 + $0xa4] sm:$0xf]
      %v1013 = vld [vmem:[%s358 + $0xa8] sm:$0xf]
      %v1014 = vld [vmem:[%s358 + $0xac] sm:$0xf]
      %v1015 = vld [vmem:[%s358 + $0xb0] sm:$0xf]
      %v1016 = vld [vmem:[%s358 + $0xb4] sm:$0xf]
      %v1017 = vld [vmem:[%s358 + $0xb8] sm:$0xf]
      %v1018 = vld [vmem:[%s358 + $0xbc] sm:$0xf]
      %v1067 = vunpack.c.l.b16 %v971
      %v1068 = vunpack.c.l.b16 %v972
      %v1069 = vunpack.c.l.b16 %v973
      %v1070 = vunpack.c.l.b16 %v974
      %v1071 = vunpack.c.l.b16 %v975
      %v1072 = vunpack.c.l.b16 %v976
      %v1073 = vunpack.c.l.b16 %v977
      %v1074 = vunpack.c.l.b16 %v978
      %v1075 = vunpack.c.l.b16 %v979
      %v1076 = vunpack.c.l.b16 %v980
      %v1077 = vunpack.c.l.b16 %v981
      %v1078 = vunpack.c.l.b16 %v982
      %v1079 = vunpack.c.l.b16 %v983
      %v1080 = vunpack.c.l.b16 %v984
      %v1081 = vunpack.c.l.b16 %v985
      %v1082 = vunpack.c.l.b16 %v986
      %v1083 = vunpack.c.l.b16 %v987
      %v1084 = vunpack.c.l.b16 %v988
      %v1085 = vunpack.c.l.b16 %v989
      %v1086 = vunpack.c.l.b16 %v990
      %v1087 = vunpack.c.l.b16 %v991
      %v1088 = vunpack.c.l.b16 %v992
      %v1089 = vunpack.c.l.b16 %v993
      %v1090 = vunpack.c.l.b16 %v994
      %v1091 = vunpack.c.l.b16 %v995
      %v1092 = vunpack.c.l.b16 %v996
      %v1093 = vunpack.c.l.b16 %v997
      %v1094 = vunpack.c.l.b16 %v998
      %v1095 = vunpack.c.l.b16 %v999
      %v1096 = vunpack.c.l.b16 %v1000
      %v1097 = vunpack.c.l.b16 %v1001
      %v1098 = vunpack.c.l.b16 %v1002
      %v1099 = vunpack.c.l.b16 %v1003
      %v1100 = vunpack.c.l.b16 %v1004
      %v1101 = vunpack.c.l.b16 %v1005
      %v1102 = vunpack.c.l.b16 %v1006
      %v1103 = vunpack.c.l.b16 %v1007
      %v1104 = vunpack.c.l.b16 %v1008
      %v1105 = vunpack.c.l.b16 %v1009
      %v1106 = vunpack.c.l.b16 %v1010
      %v1107 = vunpack.c.l.b16 %v1011
      %v1108 = vunpack.c.l.b16 %v1012
      %v1109 = vunpack.c.l.b16 %v1013
      %v1110 = vunpack.c.l.b16 %v1014
      %v1111 = vunpack.c.l.b16 %v1015
      %v1112 = vunpack.c.l.b16 %v1016
      %v1113 = vunpack.c.l.b16 %v1017
      %v1114 = vunpack.c.l.b16 %v1018
      %v1115 = vpack.c.b16 %v1068, %v1067
      %v1116 = vpack.c.b16 %v1070, %v1069
      %v1117 = vpack.c.b16 %v1072, %v1071
      %v1118 = vpack.c.b16 %v1074, %v1073
      %v1119 = vpack.c.b16 %v1076, %v1075
      %v1120 = vpack.c.b16 %v1078, %v1077
      %v1121 = vpack.c.b16 %v1080, %v1079
      %v1122 = vpack.c.b16 %v1082, %v1081
      %v1123 = vpack.c.b16 %v1084, %v1083
      %v1124 = vpack.c.b16 %v1086, %v1085
      %v1125 = vpack.c.b16 %v1088, %v1087
      %v1126 = vpack.c.b16 %v1090, %v1089
      %v1127 = vpack.c.b16 %v1092, %v1091
      %v1128 = vpack.c.b16 %v1094, %v1093
      %v1129 = vpack.c.b16 %v1096, %v1095
      %v1130 = vpack.c.b16 %v1098, %v1097
      %v1131 = vpack.c.b16 %v1100, %v1099
      %v1132 = vpack.c.b16 %v1102, %v1101
      %v1133 = vpack.c.b16 %v1104, %v1103
      %v1134 = vpack.c.b16 %v1106, %v1105
      %v1135 = vpack.c.b16 %v1108, %v1107
      %v1136 = vpack.c.b16 %v1110, %v1109
      %v1137 = vpack.c.b16 %v1112, %v1111
      %v1138 = vpack.c.b16 %v1114, %v1113
      %1163 = vmatprep.subr.bf16.mxu0 0
      %1164 = vmatpush1.bf16.msra.mxu0 %v1115
      %1165 = vmatprep.subr.bf16.mxu0 0
      %1166 = vmatpush1.bf16.msra.mxu0 %v1116
      %1167 = vmatprep.subr.bf16.mxu0 0
      %1168 = vmatpush1.bf16.msra.mxu0 %v1117
      %1169 = vmatprep.subr.bf16.mxu0 0
      %1170 = vmatpush1.bf16.msra.mxu0 %v1118
      %1171 = vmatprep.subr.bf16.mxu0 0
      %1172 = vmatpush1.bf16.msra.mxu0 %v1119
      %1173 = vmatprep.subr.bf16.mxu0 0
      %1174 = vmatpush1.bf16.msra.mxu0 %v1120
      %1175 = vmatprep.subr.bf16.mxu0 0
      %1176 = vmatpush1.bf16.msra.mxu0 %v1121
      %1177 = vmatprep.subr.bf16.mxu0 0
      %1178 = vmatpush1.bf16.msra.mxu0 %v1122
      %1179 = vmatprep.subr.bf16.mxu0 0
      %1180 = vmatpush1.bf16.msra.mxu0 %v1123
      %1181 = vmatprep.subr.bf16.mxu0 0
      %1182 = vmatpush1.bf16.msra.mxu0 %v1124
      %1183 = vmatprep.subr.bf16.mxu0 0
      %1184 = vmatpush1.bf16.msra.mxu0 %v1125
      %1185 = vmatprep.subr.bf16.mxu0 0
      %1186 = vmatpush1.bf16.msra.mxu0 %v1126
      %1187 = vmatprep.subr.bf16.mxu0 0
      %1188 = vmatpush1.bf16.msra.mxu0 %v1127
      %1189 = vmatprep.subr.bf16.mxu0 0
      %1190 = vmatpush1.bf16.msra.mxu0 %v1128
      %1191 = vmatprep.subr.bf16.mxu0 0
      %1192 = vmatpush1.bf16.msra.mxu0 %v1129
      %1193 = vmatprep.subr.bf16.mxu0 0
      %1194 = vmatpush1.bf16.msra.mxu0 %v1130
      %1195 = vmatprep.mubr.bf16.mxu0 %v892
      %1196 = vmatmul.mubr.bf16.gmra.mrb[0].mxu0 %v891
      %v1197 = vpop.f32.mrb[0].mxu0
      %v1198 = vadd.f32 0.0, %v1197
      %v1199 = vpop.f32.mrb[0].mxu0
      %v1200 = vpop.f32.mrb[0].mxu0
      %v1201 = vadd.f32 0.0, %v1200
      %v1202 = vpop.f32.mrb[0].mxu0
      %1203 = vmatprep.mubr.bf16.mxu0 %v895
      %1204 = vmatmul.mubr.bf16.gmra.mrb[0].mxu0 %v894
      %v1205 = vpop.f32.mrb[0].mxu0
      %v1206 = vadd.f32 0.0, %v1205
      %v1207 = vpop.f32.mrb[0].mxu0
      %v1208 = vpop.f32.mrb[0].mxu0
      %v1209 = vadd.f32 0.0, %v1208
      %v1210 = vpop.f32.mrb[0].mxu0
      %1211 = vmatprep.mubr.bf16.mxu0 %v898
      %1212 = vmatmul.mubr.bf16.gmra.mrb[0].mxu0 %v897
      %v1213 = vpop.f32.mrb[0].mxu0
      %v1214 = vadd.f32 0.0, %v1213
      %v1215 = vpop.f32.mrb[0].mxu0
      %v1216 = vpop.f32.mrb[0].mxu0
      %v1217 = vadd.f32 0.0, %v1216
      %v1218 = vpop.f32.mrb[0].mxu0
      %1219 = vmatprep.mubr.bf16.mxu0 %v901
      %1220 = vmatmul.mubr.bf16.gmra.mrb[0].mxu0 %v900
      %v1221 = vpop.f32.mrb[0].mxu0
      %v1222 = vadd.f32 0.0, %v1221
      %v1223 = vpop.f32.mrb[0].mxu0
      %v1224 = vpop.f32.mrb[0].mxu0
      %v1225 = vadd.f32 0.0, %v1224
      %v1226 = vpop.f32.mrb[0].mxu0
      %1227 = vmatprep.mubr.bf16.mxu0 %v904
      %1228 = vmatmul.mubr.bf16.gmra.mrb[0].mxu0 %v903
      %v1229 = vpop.f32.mrb[0].mxu0
      %v1230 = vadd.f32 0.0, %v1229
      %v1231 = vpop.f32.mrb[0].mxu0
      %v1232 = vpop.f32.mrb[0].mxu0
      %v1233 = vadd.f32 0.0, %v1232
      %v1234 = vpop.f32.mrb[0].mxu0
      %1235 = vmatprep.mubr.bf16.mxu0 %v907
      %1236 = vmatmul.mubr.bf16.gmra.mrb[0].mxu0 %v906
      %v1237 = vpop.f32.mrb[0].mxu0
      %v1238 = vadd.f32 0.0, %v1237
      %v1239 = vpop.f32.mrb[0].mxu0
      %v1240 = vpop.f32.mrb[0].mxu0
      %v1241 = vadd.f32 0.0, %v1240
      %v1242 = vpop.f32.mrb[0].mxu0
      %1243 = vmatprep.mubr.bf16.mxu0 %v910
      %1244 = vmatmul.mubr.bf16.gmra.mrb[0].mxu0 %v909
      %v1245 = vpop.f32.mrb[0].mxu0
      %v1246 = vadd.f32 0.0, %v1245
      %v1247 = vpop.f32.mrb[0].mxu0
      %v1248 = vpop.f32.mrb[0].mxu0
      %v1249 = vadd.f32 0.0, %v1248
      %v1250 = vpop.f32.mrb[0].mxu0
      %1251 = vmatprep.mubr.bf16.mxu0 %v913
      %1252 = vmatmul.mubr.bf16.gmra.mrb[0].mxu0 %v912
      %v1253 = vpop.f32.mrb[0].mxu0
      %v1254 = vadd.f32 0.0, %v1253
      %v1255 = vpop.f32.mrb[0].mxu0
      %v1256 = vpop.f32.mrb[0].mxu0
      %v1257 = vadd.f32 0.0, %v1256
      %v1258 = vpop.f32.mrb[0].mxu0
      %1259 = vmatprep.mubr.bf16.mxu0 %v916
      %1260 = vmatmul.mubr.bf16.gmra.mrb[0].mxu0 %v915
      %v1261 = vpop.f32.mrb[0].mxu0
      %v1262 = vadd.f32 0.0, %v1261
      %v1263 = vpop.f32.mrb[0].mxu0
      %v1264 = vpop.f32.mrb[0].mxu0
      %v1265 = vadd.f32 0.0, %v1264
      %v1266 = vpop.f32.mrb[0].mxu0
      %1267 = vmatprep.mubr.bf16.mxu0 %v919
      %1268 = vmatmul.mubr.bf16.gmra.mrb[0].mxu0 %v918
      %v1269 = vpop.f32.mrb[0].mxu0
      %v1270 = vadd.f32 0.0, %v1269
      %v1271 = vpop.f32.mrb[0].mxu0
      %v1272 = vpop.f32.mrb[0].mxu0
      %v1273 = vadd.f32 0.0, %v1272
      %v1274 = vpop.f32.mrb[0].mxu0
      %1275 = vmatprep.mubr.bf16.mxu0 %v922
      %1276 = vmatmul.mubr.bf16.gmra.mrb[0].mxu0 %v921
      %v1277 = vpop.f32.mrb[0].mxu0
      %v1278 = vadd.f32 0.0, %v1277
      %v1279 = vpop.f32.mrb[0].mxu0
      %v1280 = vpop.f32.mrb[0].mxu0
      %v1281 = vadd.f32 0.0, %v1280
      %v1282 = vpop.f32.mrb[0].mxu0
      %1283 = vmatprep.mubr.bf16.mxu0 %v925
      %1284 = vmatmul.mubr.bf16.gmra.mrb[0].mxu0 %v924
      %v1285 = vpop.f32.mrb[0].mxu0
      %v1286 = vadd.f32 0.0, %v1285
      %v1287 = vpop.f32.mrb[0].mxu0
      %v1288 = vpop.f32.mrb[0].mxu0
      %v1289 = vadd.f32 0.0, %v1288
      %v1290 = vpop.f32.mrb[0].mxu0
      %1291 = vmatprep.mubr.bf16.mxu0 %v928
      %1292 = vmatmul.mubr.bf16.gmra.mrb[0].mxu0 %v927
      %v1293 = vpop.f32.mrb[0].mxu0
      %v1294 = vadd.f32 0.0, %v1293
      %v1295 = vpop.f32.mrb[0].mxu0
      %v1296 = vpop.f32.mrb[0].mxu0
      %v1297 = vadd.f32 0.0, %v1296
      %v1298 = vpop.f32.mrb[0].mxu0
      %1299 = vmatprep.mubr.bf16.mxu0 %v931
      %1300 = vmatmul.mubr.bf16.gmra.mrb[0].mxu0 %v930
      %v1301 = vpop.f32.mrb[0].mxu0
      %v1302 = vadd.f32 0.0, %v1301
      %v1303 = vpop.f32.mrb[0].mxu0
      %v1304 = vpop.f32.mrb[0].mxu0
      %v1305 = vadd.f32 0.0, %v1304
      %v1306 = vpop.f32.mrb[0].mxu0
      %1307 = vmatprep.mubr.bf16.mxu0 %v934
      %1308 = vmatmul.mubr.bf16.gmra.mrb[0].mxu0 %v933
      %v1309 = vpop.f32.mrb[0].mxu0
      %v1310 = vadd.f32 0.0, %v1309
      %v1311 = vpop.f32.mrb[0].mxu0
      %v1312 = vpop.f32.mrb[0].mxu0
      %v1313 = vadd.f32 0.0, %v1312
      %v1314 = vpop.f32.mrb[0].mxu0
      %1315 = vmatprep.mubr.bf16.mxu0 %v937
      %1316 = vmatmul.mubr.bf16.gmra.mrb[0].mxu0 %v936
      %v1317 = vpop.f32.mrb[0].mxu0
      %v1318 = vadd.f32 0.0, %v1317
      %v1319 = vpop.f32.mrb[0].mxu0
      %v1320 = vpop.f32.mrb[0].mxu0
      %v1321 = vadd.f32 0.0, %v1320
      %v1322 = vpop.f32.mrb[0].mxu0
      %1323 = vdwg.mxu0
      %1324 = vmatprep.subr.bf16.mxu0 0
      %1325 = vmatpush1.bf16.msra.mxu0 %v1131
      %1326 = vmatprep.subr.bf16.mxu0 0
      %1327 = vmatpush1.bf16.msra.mxu0 %v1132
      %1328 = vmatprep.subr.bf16.mxu0 0
      %1329 = vmatpush1.bf16.msra.mxu0 %v1133
      %1330 = vmatprep.subr.bf16.mxu0 0
      %1331 = vmatpush1.bf16.msra.mxu0 %v1134
      %1332 = vmatprep.subr.bf16.mxu0 0
      %1333 = vmatpush1.bf16.msra.mxu0 %v1135
      %1334 = vmatprep.subr.bf16.mxu0 0
      %1335 = vmatpush1.bf16.msra.mxu0 %v1136
      %1336 = vmatprep.subr.bf16.mxu0 0
      %1337 = vmatpush1.bf16.msra.mxu0 %v1137
      %1338 = vmatprep.subr.bf16.mxu0 0
      %1339 = vmatpush1.bf16.msra.mxu0 %v1138
      %1340 = vmatprep.subr.bf16.mxu0 0
      %1341 = vmatpush1.bf16.msra.mxu0 0
      %1342 = vmatprep.subr.bf16.mxu0 0
      %1343 = vmatpush1.bf16.msra.mxu0 0
      %1344 = vmatprep.subr.bf16.mxu0 0
      %1345 = vmatpush1.bf16.msra.mxu0 0
      %1346 = vmatprep.subr.bf16.mxu0 0
      %1347 = vmatpush1.bf16.msra.mxu0 0
      %1348 = vmatprep.subr.bf16.mxu0 0
      %1349 = vmatpush1.bf16.msra.mxu0 0
      %1350 = vmatprep.subr.bf16.mxu0 0
      %1351 = vmatpush1.bf16.msra.mxu0 0
      %1352 = vmatprep.subr.bf16.mxu0 0
      %1353 = vmatpush1.bf16.msra.mxu0 0
      %1354 = vmatprep.subr.bf16.mxu0 0
      %1355 = vmatpush1.bf16.msra.mxu0 0
      %1356 = vmatprep.mubr.bf16.mxu0 0
      %1357 = vmatmul.mubr.bf16.gmra.mrb[0].mxu0 %v893
      %v1358 = vpop.f32.mrb[0].mxu0
      %v1359 = vadd.f32 %v1198, %v1358
      %v1360 = vpop.f32.mrb[0].mxu0
      %v1361 = vpop.f32.mrb[0].mxu0
      %v1362 = vadd.f32 %v1201, %v1361
      %v1363 = vpop.f32.mrb[0].mxu0
      %1364 = vmatprep.mubr.bf16.mxu0 0
      %1365 = vmatmul.mubr.bf16.gmra.mrb[0].mxu0 %v896
      %v1366 = vpop.f32.mrb[0].mxu0
      %v1367 = vadd.f32 %v1206, %v1366
      %v1368 = vpop.f32.mrb[0].mxu0
      %v1369 = vpop.f32.mrb[0].mxu0
      %v1370 = vadd.f32 %v1209, %v1369
      %v1371 = vpop.f32.mrb[0].mxu0
      %1372 = vmatprep.mubr.bf16.mxu0 0
      %1373 = vmatmul.mubr.bf16.gmra.mrb[0].mxu0 %v899
      %v1374 = vpop.f32.mrb[0].mxu0
      %v1375 = vadd.f32 %v1214, %v1374
      %v1376 = vpop.f32.mrb[0].mxu0
      %v1377 = vpop.f32.mrb[0].mxu0
      %v1378 = vadd.f32 %v1217, %v1377
      %v1379 = vpop.f32.mrb[0].mxu0
      %1380 = vmatprep.mubr.bf16.mxu0 0
      %1381 = vmatmul.mubr.bf16.gmra.mrb[0].mxu0 %v902
      %v1382 = vpop.f32.mrb[0].mxu0
      %v1383 = vadd.f32 %v1222, %v1382
      %v1384 = vpop.f32.mrb[0].mxu0
      %v1385 = vpop.f32.mrb[0].mxu0
      %v1386 = vadd.f32 %v1225, %v1385
      %v1387 = vpop.f32.mrb[0].mxu0
      %1388 = vmatprep.mubr.bf16.mxu0 0
      %1389 = vmatmul.mubr.bf16.gmra.mrb[0].mxu0 %v905
      %v1390 = vpop.f32.mrb[0].mxu0
      %v1391 = vadd.f32 %v1230, %v1390
      %v1392 = vpop.f32.mrb[0].mxu0
      %v1393 = vpop.f32.mrb[0].mxu0
      %v1394 = vadd.f32 %v1233, %v1393
      %v1395 = vpop.f32.mrb[0].mxu0
      %1396 = vmatprep.mubr.bf16.mxu0 0
      %1397 = vmatmul.mubr.bf16.gmra.mrb[0].mxu0 %v908
      %v1398 = vpop.f32.mrb[0].mxu0
      %v1399 = vadd.f32 %v1238, %v1398
      %v1400 = vpop.f32.mrb[0].mxu0
      %v1401 = vpop.f32.mrb[0].mxu0
      %v1402 = vadd.f32 %v1241, %v1401
      %v1403 = vpop.f32.mrb[0].mxu0
      %1404 = vmatprep.mubr.bf16.mxu0 0
      %1405 = vmatmul.mubr.bf16.gmra.mrb[0].mxu0 %v911
      %v1406 = vpop.f32.mrb[0].mxu0
      %v1407 = vadd.f32 %v1246, %v1406
      %v1408 = vpop.f32.mrb[0].mxu0
      %v1409 = vpop.f32.mrb[0].mxu0
      %v1410 = vadd.f32 %v1249, %v1409
      %v1411 = vpop.f32.mrb[0].mxu0
      %1412 = vmatprep.mubr.bf16.mxu0 0
      %1413 = vmatmul.mubr.bf16.gmra.mrb[0].mxu0 %v914
      %v1414 = vpop.f32.mrb[0].mxu0
      %v1415 = vadd.f32 %v1254, %v1414
      %v1416 = vpop.f32.mrb[0].mxu0
      %v1417 = vpop.f32.mrb[0].mxu0
      %v1418 = vadd.f32 %v1257, %v1417
      %v1419 = vpop.f32.mrb[0].mxu0
      %1420 = vmatprep.mubr.bf16.mxu0 0
      %1421 = vmatmul.mubr.bf16.gmra.mrb[0].mxu0 %v917
      %v1422 = vpop.f32.mrb[0].mxu0
      %v1423 = vadd.f32 %v1262, %v1422
      %v1424 = vpop.f32.mrb[0].mxu0
      %v1425 = vpop.f32.mrb[0].mxu0
      %v1426 = vadd.f32 %v1265, %v1425
      %v1427 = vpop.f32.mrb[0].mxu0
      %1428 = vmatprep.mubr.bf16.mxu0 0
      %1429 = vmatmul.mubr.bf16.gmra.mrb[0].mxu0 %v920
      %v1430 = vpop.f32.mrb[0].mxu0
      %v1431 = vadd.f32 %v1270, %v1430
      %v1432 = vpop.f32.mrb[0].mxu0
      %v1433 = vpop.f32.mrb[0].mxu0
      %v1434 = vadd.f32 %v1273, %v1433
      %v1435 = vpop.f32.mrb[0].mxu0
      %1436 = vmatprep.mubr.bf16.mxu0 0
      %1437 = vmatmul.mubr.bf16.gmra.mrb[0].mxu0 %v923
      %v1438 = vpop.f32.mrb[0].mxu0
      %v1439 = vadd.f32 %v1278, %v1438
      %v1440 = vpop.f32.mrb[0].mxu0
      %v1441 = vpop.f32.mrb[0].mxu0
      %v1442 = vadd.f32 %v1281, %v1441
      %v1443 = vpop.f32.mrb[0].mxu0
      %1444 = vmatprep.mubr.bf16.mxu0 0
      %1445 = vmatmul.mubr.bf16.gmra.mrb[0].mxu0 %v926
      %v1446 = vpop.f32.mrb[0].mxu0
      %v1447 = vadd.f32 %v1286, %v1446
      %v1448 = vpop.f32.mrb[0].mxu0
      %v1449 = vpop.f32.mrb[0].mxu0
      %v1450 = vadd.f32 %v1289, %v1449
      %v1451 = vpop.f32.mrb[0].mxu0
      %1452 = vmatprep.mubr.bf16.mxu0 0
      %1453 = vmatmul.mubr.bf16.gmra.mrb[0].mxu0 %v929
      %v1454 = vpop.f32.mrb[0].mxu0
      %v1455 = vadd.f32 %v1294, %v1454
      %v1456 = vpop.f32.mrb[0].mxu0
      %v1457 = vpop.f32.mrb[0].mxu0
      %v1458 = vadd.f32 %v1297, %v1457
      %v1459 = vpop.f32.mrb[0].mxu0
      %1460 = vmatprep.mubr.bf16.mxu0 0
      %1461 = vmatmul.mubr.bf16.gmra.mrb[0].mxu0 %v932
      %v1462 = vpop.f32.mrb[0].mxu0
      %v1463 = vadd.f32 %v1302, %v1462
      %v1464 = vpop.f32.mrb[0].mxu0
      %v1465 = vpop.f32.mrb[0].mxu0
      %v1466 = vadd.f32 %v1305, %v1465
      %v1467 = vpop.f32.mrb[0].mxu0
      %1468 = vmatprep.mubr.bf16.mxu0 0
      %1469 = vmatmul.mubr.bf16.gmra.mrb[0].mxu0 %v935
      %v1470 = vpop.f32.mrb[0].mxu0
      %v1471 = vadd.f32 %v1310, %v1470
      %v1472 = vpop.f32.mrb[0].mxu0
      %v1473 = vpop.f32.mrb[0].mxu0
      %v1474 = vadd.f32 %v1313, %v1473
      %v1475 = vpop.f32.mrb[0].mxu0
      %1476 = vmatprep.mubr.bf16.mxu0 0
      %1477 = vmatmul.mubr.bf16.gmra.mrb[0].mxu0 %v938
      %v1478 = vpop.f32.mrb[0].mxu0
      %v1479 = vadd.f32 %v1318, %v1478
      %v1480 = vpop.f32.mrb[0].mxu0
      %v1481 = vpop.f32.mrb[0].mxu0
      %v1482 = vadd.f32 %v1321, %v1481
      %v1483 = vpop.f32.mrb[0].mxu0
      %1484 = vdwg.mxu0
      %v1485 = vadd.f32 %v939, %v1359
      %v1486 = vadd.f32 %v940, %v1362
      %v1487 = vadd.f32 %v941, %v1367
      %v1488 = vadd.f32 %v942, %v1370
      %v1489 = vadd.f32 %v943, %v1375
      %v1490 = vadd.f32 %v944, %v1378
      %v1491 = vadd.f32 %v945, %v1383
      %v1492 = vadd.f32 %v946, %v1386
      %v1493 = vadd.f32 %v947, %v1391
      %v1494 = vadd.f32 %v948, %v1394
      %v1495 = vadd.f32 %v949, %v1399
      %v1496 = vadd.f32 %v950, %v1402
      %v1497 = vadd.f32 %v951, %v1407
      %v1498 = vadd.f32 %v952, %v1410
      %v1499 = vadd.f32 %v953, %v1415
      %v1500 = vadd.f32 %v954, %v1418
      %v1501 = vadd.f32 %v955, %v1423
      %v1502 = vadd.f32 %v956, %v1426
      %v1503 = vadd.f32 %v957, %v1431
      %v1504 = vadd.f32 %v958, %v1434
      %v1505 = vadd.f32 %v959, %v1439
      %v1506 = vadd.f32 %v960, %v1442
      %v1507 = vadd.f32 %v961, %v1447
      %v1508 = vadd.f32 %v962, %v1450
      %v1509 = vadd.f32 %v963, %v1455
      %v1510 = vadd.f32 %v964, %v1458
      %v1511 = vadd.f32 %v965, %v1463
      %v1512 = vadd.f32 %v966, %v1466
      %v1513 = vadd.f32 %v967, %v1471
      %v1514 = vadd.f32 %v968, %v1474
      %v1515 = vadd.f32 %v969, %v1479
      %v1516 = vadd.f32 %v970, %v1482
      %1517 = vst [vmem:[#allocation3] sm:$0xff] %v1485
      %1518 = vst [vmem:[#allocation3 + $0x8] sm:$0xff] %v1486
      %1519 = vst [vmem:[#allocation3 + $0x10] sm:$0xff] %v1487
      %1520 = vst [vmem:[#allocation3 + $0x18] sm:$0xff] %v1488
      %1521 = vst [vmem:[#allocation3 + $0x20] sm:$0xff] %v1489
      %1522 = vst [vmem:[#allocation3 + $0x28] sm:$0xff] %v1490
      %1523 = vst [vmem:[#allocation3 + $0x30] sm:$0xff] %v1491
      %1524 = vst [vmem:[#allocation3 + $0x38] sm:$0xff] %v1492
      %1525 = vst [vmem:[#allocation3 + $0x40] sm:$0xff] %v1493
      %1526 = vst [vmem:[#allocation3 + $0x48] sm:$0xff] %v1494
      %1527 = vst [vmem:[#allocation3 + $0x50] sm:$0xff] %v1495
      %1528 = vst [vmem:[#allocation3 + $0x58] sm:$0xff] %v1496
      %1529 = vst [vmem:[#allocation3 + $0x60] sm:$0xff] %v1497
      %1530 = vst [vmem:[#allocation3 + $0x68] sm:$0xff] %v1498
      %1531 = vst [vmem:[#allocation3 + $0x70] sm:$0xff] %v1499
      %1532 = vst [vmem:[#allocation3 + $0x78] sm:$0xff] %v1500
      %1533 = vst [vmem:[#allocation3 + $0x80] sm:$0xff] %v1501
      %1534 = vst [vmem:[#allocation3 + $0x88] sm:$0xff] %v1502
      %1535 = vst [vmem:[#allocation3 + $0x90] sm:$0xff] %v1503
      %1536 = vst [vmem:[#allocation3 + $0x98] sm:$0xff] %v1504
      %1537 = vst [vmem:[#allocation3 + $0xa0] sm:$0xff] %v1505
      %1538 = vst [vmem:[#allocation3 + $0xa8] sm:$0xff] %v1506
      %1539 = vst [vmem:[#allocation3 + $0xb0] sm:$0xff] %v1507
      %1540 = vst [vmem:[#allocation3 + $0xb8] sm:$0xff] %v1508
      %1541 = vst [vmem:[#allocation3 + $0xc0] sm:$0xff] %v1509
      %1542 = vst [vmem:[#allocation3 + $0xc8] sm:$0xff] %v1510
      %1543 = vst [vmem:[#allocation3 + $0xd0] sm:$0xff] %v1511
      %1544 = vst [vmem:[#allocation3 + $0xd8] sm:$0xff] %v1512
      %1545 = vst [vmem:[#allocation3 + $0xe0] sm:$0xff] %v1513
      %1546 = vst [vmem:[#allocation3 + $0xe8] sm:$0xff] %v1514
      %1547 = vst [vmem:[#allocation3 + $0xf0] sm:$0xff] %v1515
      %1548 = vst [vmem:[#allocation3 + $0xf8] sm:$0xff] %v1516
      %v1549 = vld [vmem:[%s730] sm:$0xff]
      %v1550 = vld [vmem:[%s730 + $0x8] sm:$0xff]
      %v1551 = vld [vmem:[%s730 + $0x10] sm:$0xff]
      %v1552 = vld [vmem:[%s730 + $0x18] sm:$0xff]
      %v1553 = vld [vmem:[%s730 + $0x20] sm:$0xff]
      %v1554 = vld [vmem:[%s730 + $0x28] sm:$0xff]
      %v1555 = vld [vmem:[%s730 + $0x30] sm:$0xff]
      %v1556 = vld [vmem:[%s730 + $0x38] sm:$0xff]
      %v1557 = vld [vmem:[%s730 + $0x40] sm:$0xff]
      %v1558 = vld [vmem:[%s730 + $0x48] sm:$0xff]
      %v1559 = vld [vmem:[%s730 + $0x50] sm:$0xff]
      %v1560 = vld [vmem:[%s730 + $0x58] sm:$0xff]
      %v1561 = vld [vmem:[%s730 + $0x60] sm:$0xff]
      %v1562 = vld [vmem:[%s730 + $0x68] sm:$0xff]
      %v1563 = vld [vmem:[%s730 + $0x70] sm:$0xff]
      %v1564 = vld [vmem:[%s730 + $0x78] sm:$0xff]
      %v1565 = vld [vmem:[%s730 + $0x80] sm:$0xff]
      %v1566 = vld [vmem:[%s730 + $0x88] sm:$0xff]
      %v1567 = vld [vmem:[%s730 + $0x90] sm:$0xff]
      %v1568 = vld [vmem:[%s730 + $0x98] sm:$0xff]
      %v1569 = vld [vmem:[%s730 + $0xa0] sm:$0xff]
      %v1570 = vld [vmem:[%s730 + $0xa8] sm:$0xff]
      %v1571 = vld [vmem:[%s730 + $0xb0] sm:$0xff]
      %v1572 = vld [vmem:[%s730 + $0xb8] sm:$0xff]
      %v1573 = vld [vmem:[%s730 + $0xc0] sm:$0xff]
      %v1574 = vld [vmem:[%s730 + $0xc8] sm:$0xff]
      %v1575 = vld [vmem:[%s730 + $0xd0] sm:$0xff]
      %v1576 = vld [vmem:[%s730 + $0xd8] sm:$0xff]
      %v1577 = vld [vmem:[%s730 + $0xe0] sm:$0xff]
      %v1578 = vld [vmem:[%s730 + $0xe8] sm:$0xff]
      %v1579 = vld [vmem:[%s730 + $0xf0] sm:$0xff]
      %v1580 = vld [vmem:[%s730 + $0xf8] sm:$0xff]
      %v1581 = vld [vmem:[%s730 + $0x100] sm:$0xff]
      %v1582 = vld [vmem:[%s730 + $0x108] sm:$0xff]
      %v1583 = vld [vmem:[%s730 + $0x110] sm:$0xff]
      %v1584 = vld [vmem:[%s730 + $0x118] sm:$0xff]
      %v1585 = vld [vmem:[%s730 + $0x120] sm:$0xff]
      %v1586 = vld [vmem:[%s730 + $0x128] sm:$0xff]
      %v1587 = vld [vmem:[%s730 + $0x130] sm:$0xff]
      %v1588 = vld [vmem:[%s730 + $0x138] sm:$0xff]
      %v1589 = vld [vmem:[%s730 + $0x140] sm:$0xff]
      %v1590 = vld [vmem:[%s730 + $0x148] sm:$0xff]
      %v1591 = vld [vmem:[%s730 + $0x150] sm:$0xff]
      %v1592 = vld [vmem:[%s730 + $0x158] sm:$0xff]
      %v1593 = vld [vmem:[%s730 + $0x160] sm:$0xff]
      %v1594 = vld [vmem:[%s730 + $0x168] sm:$0xff]
      %v1595 = vld [vmem:[%s730 + $0x170] sm:$0xff]
      %v1596 = vld [vmem:[%s730 + $0x178] sm:$0xff]
      %v1597 = vld [vmem:[#allocation3] sm:$0xff]
      %v1598 = vld [vmem:[#allocation3 + $0x8] sm:$0xff]
      %v1599 = vld [vmem:[#allocation3 + $0x10] sm:$0xff]
      %v1600 = vld [vmem:[#allocation3 + $0x18] sm:$0xff]
      %v1601 = vld [vmem:[#allocation3 + $0x20] sm:$0xff]
      %v1602 = vld [vmem:[#allocation3 + $0x28] sm:$0xff]
      %v1603 = vld [vmem:[#allocation3 + $0x30] sm:$0xff]
      %v1604 = vld [vmem:[#allocation3 + $0x38] sm:$0xff]
      %v1605 = vld [vmem:[#allocation3 + $0x40] sm:$0xff]
      %v1606 = vld [vmem:[#allocation3 + $0x48] sm:$0xff]
      %v1607 = vld [vmem:[#allocation3 + $0x50] sm:$0xff]
      %v1608 = vld [vmem:[#allocation3 + $0x58] sm:$0xff]
      %v1609 = vld [vmem:[#allocation3 + $0x60] sm:$0xff]
      %v1610 = vld [vmem:[#allocation3 + $0x68] sm:$0xff]
      %v1611 = vld [vmem:[#allocation3 + $0x70] sm:$0xff]
      %v1612 = vld [vmem:[#allocation3 + $0x78] sm:$0xff]
      %v1613 = vld [vmem:[#allocation3 + $0x80] sm:$0xff]
      %v1614 = vld [vmem:[#allocation3 + $0x88] sm:$0xff]
      %v1615 = vld [vmem:[#allocation3 + $0x90] sm:$0xff]
      %v1616 = vld [vmem:[#allocation3 + $0x98] sm:$0xff]
      %v1617 = vld [vmem:[#allocation3 + $0xa0] sm:$0xff]
      %v1618 = vld [vmem:[#allocation3 + $0xa8] sm:$0xff]
      %v1619 = vld [vmem:[#allocation3 + $0xb0] sm:$0xff]
      %v1620 = vld [vmem:[#allocation3 + $0xb8] sm:$0xff]
      %v1621 = vld [vmem:[#allocation3 + $0xc0] sm:$0xff]
      %v1622 = vld [vmem:[#allocation3 + $0xc8] sm:$0xff]
      %v1623 = vld [vmem:[#allocation3 + $0xd0] sm:$0xff]
      %v1624 = vld [vmem:[#allocation3 + $0xd8] sm:$0xff]
      %v1625 = vld [vmem:[#allocation3 + $0xe0] sm:$0xff]
      %v1626 = vld [vmem:[#allocation3 + $0xe8] sm:$0xff]
      %v1627 = vld [vmem:[#allocation3 + $0xf0] sm:$0xff]
      %v1628 = vld [vmem:[#allocation3 + $0xf8] sm:$0xff]
      %s1629 = scalar_lea.vmem %s358, 192
      %v1630 = vld [vmem:[%s1629] sm:$0xf]
      %v1631 = vld [vmem:[%s1629 + $0x4] sm:$0xf]
      %v1632 = vld [vmem:[%s1629 + $0x8] sm:$0xf]
      %v1633 = vld [vmem:[%s1629 + $0xc] sm:$0xf]
      %v1634 = vld [vmem:[%s1629 + $0x10] sm:$0xf]
      %v1635 = vld [vmem:[%s1629 + $0x14] sm:$0xf]
      %v1636 = vld [vmem:[%s1629 + $0x18] sm:$0xf]
      %v1637 = vld [vmem:[%s1629 + $0x1c] sm:$0xf]
      %v1638 = vld [vmem:[%s1629 + $0x20] sm:$0xf]
      %v1639 = vld [vmem:[%s1629 + $0x24] sm:$0xf]
      %v1640 = vld [vmem:[%s1629 + $0x28] sm:$0xf]
      %v1641 = vld [vmem:[%s1629 + $0x2c] sm:$0xf]
      %v1642 = vld [vmem:[%s1629 + $0x30] sm:$0xf]
      %v1643 = vld [vmem:[%s1629 + $0x34] sm:$0xf]
      %v1644 = vld [vmem:[%s1629 + $0x38] sm:$0xf]
      %v1645 = vld [vmem:[%s1629 + $0x3c] sm:$0xf]
      %v1646 = vld [vmem:[%s1629 + $0x40] sm:$0xf]
      %v1647 = vld [vmem:[%s1629 + $0x44] sm:$0xf]
      %v1648 = vld [vmem:[%s1629 + $0x48] sm:$0xf]
      %v1649 = vld [vmem:[%s1629 + $0x4c] sm:$0xf]
      %v1650 = vld [vmem:[%s1629 + $0x50] sm:$0xf]
      %v1651 = vld [vmem:[%s1629 + $0x54] sm:$0xf]
      %v1652 = vld [vmem:[%s1629 + $0x58] sm:$0xf]
      %v1653 = vld [vmem:[%s1629 + $0x5c] sm:$0xf]
      %v1654 = vld [vmem:[%s1629 + $0x60] sm:$0xf]
      %v1655 = vld [vmem:[%s1629 + $0x64] sm:$0xf]
      %v1656 = vld [vmem:[%s1629 + $0x68] sm:$0xf]
      %v1657 = vld [vmem:[%s1629 + $0x6c] sm:$0xf]
      %v1658 = vld [vmem:[%s1629 + $0x70] sm:$0xf]
      %v1659 = vld [vmem:[%s1629 + $0x74] sm:$0xf]
      %v1660 = vld [vmem:[%s1629 + $0x78] sm:$0xf]
      %v1661 = vld [vmem:[%s1629 + $0x7c] sm:$0xf]
      %v1662 = vld [vmem:[%s1629 + $0x80] sm:$0xf]
      %v1663 = vld [vmem:[%s1629 + $0x84] sm:$0xf]
      %v1664 = vld [vmem:[%s1629 + $0x88] sm:$0xf]
      %v1665 = vld [vmem:[%s1629 + $0x8c] sm:$0xf]
      %v1666 = vld [vmem:[%s1629 + $0x90] sm:$0xf]
      %v1667 = vld [vmem:[%s1629 + $0x94] sm:$0xf]
      %v1668 = vld [vmem:[%s1629 + $0x98] sm:$0xf]
      %v1669 = vld [vmem:[%s1629 + $0x9c] sm:$0xf]
      %v1670 = vld [vmem:[%s1629 + $0xa0] sm:$0xf]
      %v1671 = vld [vmem:[%s1629 + $0xa4] sm:$0xf]
      %v1672 = vld [vmem:[%s1629 + $0xa8] sm:$0xf]
      %v1673 = vld [vmem:[%s1629 + $0xac] sm:$0xf]
      %v1674 = vld [vmem:[%s1629 + $0xb0] sm:$0xf]
      %v1675 = vld [vmem:[%s1629 + $0xb4] sm:$0xf]
      %v1676 = vld [vmem:[%s1629 + $0xb8] sm:$0xf]
      %v1677 = vld [vmem:[%s1629 + $0xbc] sm:$0xf]
      %v1726 = vunpack.c.l.b16 %v1630
      %v1727 = vunpack.c.l.b16 %v1631
      %v1728 = vunpack.c.l.b16 %v1632
      %v1729 = vunpack.c.l.b16 %v1633
      %v1730 = vunpack.c.l.b16 %v1634
      %v1731 = vunpack.c.l.b16 %v1635
      %v1732 = vunpack.c.l.b16 %v1636
      %v1733 = vunpack.c.l.b16 %v1637
      %v1734 = vunpack.c.l.b16 %v1638
      %v1735 = vunpack.c.l.b16 %v1639
      %v1736 = vunpack.c.l.b16 %v1640
      %v1737 = vunpack.c.l.b16 %v1641
      %v1738 = vunpack.c.l.b16 %v1642
      %v1739 = vunpack.c.l.b16 %v1643
      %v1740 = vunpack.c.l.b16 %v1644
      %v1741 = vunpack.c.l.b16 %v1645
      %v1742 = vunpack.c.l.b16 %v1646
      %v1743 = vunpack.c.l.b16 %v1647
      %v1744 = vunpack.c.l.b16 %v1648
      %v1745 = vunpack.c.l.b16 %v1649
      %v1746 = vunpack.c.l.b16 %v1650
      %v1747 = vunpack.c.l.b16 %v1651
      %v1748 = vunpack.c.l.b16 %v1652
      %v1749 = vunpack.c.l.b16 %v1653
      %v1750 = vunpack.c.l.b16 %v1654
      %v1751 = vunpack.c.l.b16 %v1655
      %v1752 = vunpack.c.l.b16 %v1656
      %v1753 = vunpack.c.l.b16 %v1657
      %v1754 = vunpack.c.l.b16 %v1658
      %v1755 = vunpack.c.l.b16 %v1659
      %v1756 = vunpack.c.l.b16 %v1660
      %v1757 = vunpack.c.l.b16 %v1661
      %v1758 = vunpack.c.l.b16 %v1662
      %v1759 = vunpack.c.l.b16 %v1663
      %v1760 = vunpack.c.l.b16 %v1664
      %v1761 = vunpack.c.l.b16 %v1665
      %v1762 = vunpack.c.l.b16 %v1666
      %v1763 = vunpack.c.l.b16 %v1667
      %v1764 = vunpack.c.l.b16 %v1668
      %v1765 = vunpack.c.l.b16 %v1669
      %v1766 = vunpack.c.l.b16 %v1670
      %v1767 = vunpack.c.l.b16 %v1671
      %v1768 = vunpack.c.l.b16 %v1672
      %v1769 = vunpack.c.l.b16 %v1673
      %v1770 = vunpack.c.l.b16 %v1674
      %v1771 = vunpack.c.l.b16 %v1675
      %v1772 = vunpack.c.l.b16 %v1676
      %v1773 = vunpack.c.l.b16 %v1677
      %v1774 = vpack.c.b16 %v1727, %v1726
      %v1775 = vpack.c.b16 %v1729, %v1728
      %v1776 = vpack.c.b16 %v1731, %v1730
      %v1777 = vpack.c.b16 %v1733, %v1732
      %v1778 = vpack.c.b16 %v1735, %v1734
      %v1779 = vpack.c.b16 %v1737, %v1736
      %v1780 = vpack.c.b16 %v1739, %v1738
      %v1781 = vpack.c.b16 %v1741, %v1740
      %v1782 = vpack.c.b16 %v1743, %v1742
      %v1783 = vpack.c.b16 %v1745, %v1744
      %v1784 = vpack.c.b16 %v1747, %v1746
      %v1785 = vpack.c.b16 %v1749, %v1748
      %v1786 = vpack.c.b16 %v1751, %v1750
      %v1787 = vpack.c.b16 %v1753, %v1752
      %v1788 = vpack.c.b16 %v1755, %v1754
      %v1789 = vpack.c.b16 %v1757, %v1756
      %v1790 = vpack.c.b16 %v1759, %v1758
      %v1791 = vpack.c.b16 %v1761, %v1760
      %v1792 = vpack.c.b16 %v1763, %v1762
      %v1793 = vpack.c.b16 %v1765, %v1764
      %v1794 = vpack.c.b16 %v1767, %v1766
      %v1795 = vpack.c.b16 %v1769, %v1768
      %v1796 = vpack.c.b16 %v1771, %v1770
      %v1797 = vpack.c.b16 %v1773, %v1772
      %1822 = vmatprep.subr.bf16.mxu0 0
      %1823 = vmatpush1.bf16.msra.mxu0 %v1774
      %1824 = vmatprep.subr.bf16.mxu0 0
      %1825 = vmatpush1.bf16.msra.mxu0 %v1775
      %1826 = vmatprep.subr.bf16.mxu0 0
      %1827 = vmatpush1.bf16.msra.mxu0 %v1776
      %1828 = vmatprep.subr.bf16.mxu0 0
      %1829 = vmatpush1.bf16.msra.mxu0 %v1777
      %1830 = vmatprep.subr.bf16.mxu0 0
      %1831 = vmatpush1.bf16.msra.mxu0 %v1778
      %1832 = vmatprep.subr.bf16.mxu0 0
      %1833 = vmatpush1.bf16.msra.mxu0 %v1779
      %1834 = vmatprep.subr.bf16.mxu0 0
      %1835 = vmatpush1.bf16.msra.mxu0 %v1780
      %1836 = vmatprep.subr.bf16.mxu0 0
      %1837 = vmatpush1.bf16.msra.mxu0 %v1781
      %1838 = vmatprep.subr.bf16.mxu0 0
      %1839 = vmatpush1.bf16.msra.mxu0 %v1782
      %1840 = vmatprep.subr.bf16.mxu0 0
      %1841 = vmatpush1.bf16.msra.mxu0 %v1783
      %1842 = vmatprep.subr.bf16.mxu0 0
      %1843 = vmatpush1.bf16.msra.mxu0 %v1784
      %1844 = vmatprep.subr.bf16.mxu0 0
      %1845 = vmatpush1.bf16.msra.mxu0 %v1785
      %1846 = vmatprep.subr.bf16.mxu0 0
      %1847 = vmatpush1.bf16.msra.mxu0 %v1786
      %1848 = vmatprep.subr.bf16.mxu0 0
      %1849 = vmatpush1.bf16.msra.mxu0 %v1787
      %1850 = vmatprep.subr.bf16.mxu0 0
      %1851 = vmatpush1.bf16.msra.mxu0 %v1788
      %1852 = vmatprep.subr.bf16.mxu0 0
      %1853 = vmatpush1.bf16.msra.mxu0 %v1789
      %1854 = vmatprep.mubr.bf16.mxu0 %v1550
      %1855 = vmatmul.mubr.bf16.gmra.mrb[0].mxu0 %v1549
      %v1856 = vpop.f32.mrb[0].mxu0
      %v1857 = vadd.f32 0.0, %v1856
      %v1858 = vpop.f32.mrb[0].mxu0
      %v1859 = vpop.f32.mrb[0].mxu0
      %v1860 = vadd.f32 0.0, %v1859
      %v1861 = vpop.f32.mrb[0].mxu0
      %1862 = vmatprep.mubr.bf16.mxu0 %v1553
      %1863 = vmatmul.mubr.bf16.gmra.mrb[0].mxu0 %v1552
      %v1864 = vpop.f32.mrb[0].mxu0
      %v1865 = vadd.f32 0.0, %v1864
      %v1866 = vpop.f32.mrb[0].mxu0
      %v1867 = vpop.f32.mrb[0].mxu0
      %v1868 = vadd.f32 0.0, %v1867
      %v1869 = vpop.f32.mrb[0].mxu0
      %1870 = vmatprep.mubr.bf16.mxu0 %v1556
      %1871 = vmatmul.mubr.bf16.gmra.mrb[0].mxu0 %v1555
      %v1872 = vpop.f32.mrb[0].mxu0
      %v1873 = vadd.f32 0.0, %v1872
      %v1874 = vpop.f32.mrb[0].mxu0
      %v1875 = vpop.f32.mrb[0].mxu0
      %v1876 = vadd.f32 0.0, %v1875
      %v1877 = vpop.f32.mrb[0].mxu0
      %1878 = vmatprep.mubr.bf16.mxu0 %v1559
      %1879 = vmatmul.mubr.bf16.gmra.mrb[0].mxu0 %v1558
      %v1880 = vpop.f32.mrb[0].mxu0
      %v1881 = vadd.f32 0.0, %v1880
      %v1882 = vpop.f32.mrb[0].mxu0
      %v1883 = vpop.f32.mrb[0].mxu0
      %v1884 = vadd.f32 0.0, %v1883
      %v1885 = vpop.f32.mrb[0].mxu0
      %1886 = vmatprep.mubr.bf16.mxu0 %v1562
      %1887 = vmatmul.mubr.bf16.gmra.mrb[0].mxu0 %v1561
      %v1888 = vpop.f32.mrb[0].mxu0
      %v1889 = vadd.f32 0.0, %v1888
      %v1890 = vpop.f32.mrb[0].mxu0
      %v1891 = vpop.f32.mrb[0].mxu0
      %v1892 = vadd.f32 0.0, %v1891
      %v1893 = vpop.f32.mrb[0].mxu0
      %1894 = vmatprep.mubr.bf16.mxu0 %v1565
      %1895 = vmatmul.mubr.bf16.gmra.mrb[0].mxu0 %v1564
      %v1896 = vpop.f32.mrb[0].mxu0
      %v1897 = vadd.f32 0.0, %v1896
      %v1898 = vpop.f32.mrb[0].mxu0
      %v1899 = vpop.f32.mrb[0].mxu0
      %v1900 = vadd.f32 0.0, %v1899
      %v1901 = vpop.f32.mrb[0].mxu0
      %1902 = vmatprep.mubr.bf16.mxu0 %v1568
      %1903 = vmatmul.mubr.bf16.gmra.mrb[0].mxu0 %v1567
      %v1904 = vpop.f32.mrb[0].mxu0
      %v1905 = vadd.f32 0.0, %v1904
      %v1906 = vpop.f32.mrb[0].mxu0
      %v1907 = vpop.f32.mrb[0].mxu0
      %v1908 = vadd.f32 0.0, %v1907
      %v1909 = vpop.f32.mrb[0].mxu0
      %1910 = vmatprep.mubr.bf16.mxu0 %v1571
      %1911 = vmatmul.mubr.bf16.gmra.mrb[0].mxu0 %v1570
      %v1912 = vpop.f32.mrb[0].mxu0
      %v1913 = vadd.f32 0.0, %v1912
      %v1914 = vpop.f32.mrb[0].mxu0
      %v1915 = vpop.f32.mrb[0].mxu0
      %v1916 = vadd.f32 0.0, %v1915
      %v1917 = vpop.f32.mrb[0].mxu0
      %1918 = vmatprep.mubr.bf16.mxu0 %v1574
      %1919 = vmatmul.mubr.bf16.gmra.mrb[0].mxu0 %v1573
      %v1920 = vpop.f32.mrb[0].mxu0
      %v1921 = vadd.f32 0.0, %v1920
      %v1922 = vpop.f32.mrb[0].mxu0
      %v1923 = vpop.f32.mrb[0].mxu0
      %v1924 = vadd.f32 0.0, %v1923
      %v1925 = vpop.f32.mrb[0].mxu0
      %1926 = vmatprep.mubr.bf16.mxu0 %v1577
      %1927 = vmatmul.mubr.bf16.gmra.mrb[0].mxu0 %v1576
      %v1928 = vpop.f32.mrb[0].mxu0
      %v1929 = vadd.f32 0.0, %v1928
      %v1930 = vpop.f32.mrb[0].mxu0
      %v1931 = vpop.f32.mrb[0].mxu0
      %v1932 = vadd.f32 0.0, %v1931
      %v1933 = vpop.f32.mrb[0].mxu0
      %1934 = vmatprep.mubr.bf16.mxu0 %v1580
      %1935 = vmatmul.mubr.bf16.gmra.mrb[0].mxu0 %v1579
      %v1936 = vpop.f32.mrb[0].mxu0
      %v1937 = vadd.f32 0.0, %v1936
      %v1938 = vpop.f32.mrb[0].mxu0
      %v1939 = vpop.f32.mrb[0].mxu0
      %v1940 = vadd.f32 0.0, %v1939
      %v1941 = vpop.f32.mrb[0].mxu0
      %1942 = vmatprep.mubr.bf16.mxu0 %v1583
      %1943 = vmatmul.mubr.bf16.gmra.mrb[0].mxu0 %v1582
      %v1944 = vpop.f32.mrb[0].mxu0
      %v1945 = vadd.f32 0.0, %v1944
      %v1946 = vpop.f32.mrb[0].mxu0
      %v1947 = vpop.f32.mrb[0].mxu0
      %v1948 = vadd.f32 0.0, %v1947
      %v1949 = vpop.f32.mrb[0].mxu0
      %1950 = vmatprep.mubr.bf16.mxu0 %v1586
      %1951 = vmatmul.mubr.bf16.gmra.mrb[0].mxu0 %v1585
      %v1952 = vpop.f32.mrb[0].mxu0
      %v1953 = vadd.f32 0.0, %v1952
      %v1954 = vpop.f32.mrb[0].mxu0
      %v1955 = vpop.f32.mrb[0].mxu0
      %v1956 = vadd.f32 0.0, %v1955
      %v1957 = vpop.f32.mrb[0].mxu0
      %1958 = vmatprep.mubr.bf16.mxu0 %v1589
      %1959 = vmatmul.mubr.bf16.gmra.mrb[0].mxu0 %v1588
      %v1960 = vpop.f32.mrb[0].mxu0
      %v1961 = vadd.f32 0.0, %v1960
      %v1962 = vpop.f32.mrb[0].mxu0
      %v1963 = vpop.f32.mrb[0].mxu0
      %v1964 = vadd.f32 0.0, %v1963
      %v1965 = vpop.f32.mrb[0].mxu0
      %1966 = vmatprep.mubr.bf16.mxu0 %v1592
      %1967 = vmatmul.mubr.bf16.gmra.mrb[0].mxu0 %v1591
      %v1968 = vpop.f32.mrb[0].mxu0
      %v1969 = vadd.f32 0.0, %v1968
      %v1970 = vpop.f32.mrb[0].mxu0
      %v1971 = vpop.f32.mrb[0].mxu0
      %v1972 = vadd.f32 0.0, %v1971
      %v1973 = vpop.f32.mrb[0].mxu0
      %1974 = vmatprep.mubr.bf16.mxu0 %v1595
      %1975 = vmatmul.mubr.bf16.gmra.mrb[0].mxu0 %v1594
      %v1976 = vpop.f32.mrb[0].mxu0
      %v1977 = vadd.f32 0.0, %v1976
      %v1978 = vpop.f32.mrb[0].mxu0
      %v1979 = vpop.f32.mrb[0].mxu0
      %v1980 = vadd.f32 0.0, %v1979
      %v1981 = vpop.f32.mrb[0].mxu0
      %1982 = vdwg.mxu0
      %1983 = vmatprep.subr.bf16.mxu0 0
      %1984 = vmatpush1.bf16.msra.mxu0 %v1790
      %1985 = vmatprep.subr.bf16.mxu0 0
      %1986 = vmatpush1.bf16.msra.mxu0 %v1791
      %1987 = vmatprep.subr.bf16.mxu0 0
      %1988 = vmatpush1.bf16.msra.mxu0 %v1792
      %1989 = vmatprep.subr.bf16.mxu0 0
      %1990 = vmatpush1.bf16.msra.mxu0 %v1793
      %1991 = vmatprep.subr.bf16.mxu0 0
      %1992 = vmatpush1.bf16.msra.mxu0 %v1794
      %1993 = vmatprep.subr.bf16.mxu0 0
      %1994 = vmatpush1.bf16.msra.mxu0 %v1795
      %1995 = vmatprep.subr.bf16.mxu0 0
      %1996 = vmatpush1.bf16.msra.mxu0 %v1796
      %1997 = vmatprep.subr.bf16.mxu0 0
      %1998 = vmatpush1.bf16.msra.mxu0 %v1797
      %1999 = vmatprep.subr.bf16.mxu0 0
      %2000 = vmatpush1.bf16.msra.mxu0 0
      %2001 = vmatprep.subr.bf16.mxu0 0
      %2002 = vmatpush1.bf16.msra.mxu0 0
      %2003 = vmatprep.subr.bf16.mxu0 0
      %2004 = vmatpush1.bf16.msra.mxu0 0
      %2005 = vmatprep.subr.bf16.mxu0 0
      %2006 = vmatpush1.bf16.msra.mxu0 0
      %2007 = vmatprep.subr.bf16.mxu0 0
      %2008 = vmatpush1.bf16.msra.mxu0 0
      %2009 = vmatprep.subr.bf16.mxu0 0
      %2010 = vmatpush1.bf16.msra.mxu0 0
      %2011 = vmatprep.subr.bf16.mxu0 0
      %2012 = vmatpush1.bf16.msra.mxu0 0
      %2013 = vmatprep.subr.bf16.mxu0 0
      %2014 = vmatpush1.bf16.msra.mxu0 0
      %2015 = vmatprep.mubr.bf16.mxu0 0
      %2016 = vmatmul.mubr.bf16.gmra.mrb[0].mxu0 %v1551
      %v2017 = vpop.f32.mrb[0].mxu0
      %v2018 = vadd.f32 %v1857, %v2017
      %v2019 = vpop.f32.mrb[0].mxu0
      %v2020 = vpop.f32.mrb[0].mxu0
      %v2021 = vadd.f32 %v1860, %v2020
      %v2022 = vpop.f32.mrb[0].mxu0
      %2023 = vmatprep.mubr.bf16.mxu0 0
      %2024 = vmatmul.mubr.bf16.gmra.mrb[0].mxu0 %v1554
      %v2025 = vpop.f32.mrb[0].mxu0
      %v2026 = vadd.f32 %v1865, %v2025
      %v2027 = vpop.f32.mrb[0].mxu0
      %v2028 = vpop.f32.mrb[0].mxu0
      %v2029 = vadd.f32 %v1868, %v2028
      %v2030 = vpop.f32.mrb[0].mxu0
      %2031 = vmatprep.mubr.bf16.mxu0 0
      %2032 = vmatmul.mubr.bf16.gmra.mrb[0].mxu0 %v1557
      %v2033 = vpop.f32.mrb[0].mxu0
      %v2034 = vadd.f32 %v1873, %v2033
      %v2035 = vpop.f32.mrb[0].mxu0
      %v2036 = vpop.f32.mrb[0].mxu0
      %v2037 = vadd.f32 %v1876, %v2036
      %v2038 = vpop.f32.mrb[0].mxu0
      %2039 = vmatprep.mubr.bf16.mxu0 0
      %2040 = vmatmul.mubr.bf16.gmra.mrb[0].mxu0 %v1560
      %v2041 = vpop.f32.mrb[0].mxu0
      %v2042 = vadd.f32 %v1881, %v2041
      %v2043 = vpop.f32.mrb[0].mxu0
      %v2044 = vpop.f32.mrb[0].mxu0
      %v2045 = vadd.f32 %v1884, %v2044
      %v2046 = vpop.f32.mrb[0].mxu0
      %2047 = vmatprep.mubr.bf16.mxu0 0
      %2048 = vmatmul.mubr.bf16.gmra.mrb[0].mxu0 %v1563
      %v2049 = vpop.f32.mrb[0].mxu0
      %v2050 = vadd.f32 %v1889, %v2049
      %v2051 = vpop.f32.mrb[0].mxu0
      %v2052 = vpop.f32.mrb[0].mxu0
      %v2053 = vadd.f32 %v1892, %v2052
      %v2054 = vpop.f32.mrb[0].mxu0
      %2055 = vmatprep.mubr.bf16.mxu0 0
      %2056 = vmatmul.mubr.bf16.gmra.mrb[0].mxu0 %v1566
      %v2057 = vpop.f32.mrb[0].mxu0
      %v2058 = vadd.f32 %v1897, %v2057
      %v2059 = vpop.f32.mrb[0].mxu0
      %v2060 = vpop.f32.mrb[0].mxu0
      %v2061 = vadd.f32 %v1900, %v2060
      %v2062 = vpop.f32.mrb[0].mxu0
      %2063 = vmatprep.mubr.bf16.mxu0 0
      %2064 = vmatmul.mubr.bf16.gmra.mrb[0].mxu0 %v1569
      %v2065 = vpop.f32.mrb[0].mxu0
      %v2066 = vadd.f32 %v1905, %v2065
      %v2067 = vpop.f32.mrb[0].mxu0
      %v2068 = vpop.f32.mrb[0].mxu0
      %v2069 = vadd.f32 %v1908, %v2068
      %v2070 = vpop.f32.mrb[0].mxu0
      %2071 = vmatprep.mubr.bf16.mxu0 0
      %2072 = vmatmul.mubr.bf16.gmra.mrb[0].mxu0 %v1572
      %v2073 = vpop.f32.mrb[0].mxu0
      %v2074 = vadd.f32 %v1913, %v2073
      %v2075 = vpop.f32.mrb[0].mxu0
      %v2076 = vpop.f32.mrb[0].mxu0
      %v2077 = vadd.f32 %v1916, %v2076
      %v2078 = vpop.f32.mrb[0].mxu0
      %2079 = vmatprep.mubr.bf16.mxu0 0
      %2080 = vmatmul.mubr.bf16.gmra.mrb[0].mxu0 %v1575
      %v2081 = vpop.f32.mrb[0].mxu0
      %v2082 = vadd.f32 %v1921, %v2081
      %v2083 = vpop.f32.mrb[0].mxu0
      %v2084 = vpop.f32.mrb[0].mxu0
      %v2085 = vadd.f32 %v1924, %v2084
      %v2086 = vpop.f32.mrb[0].mxu0
      %2087 = vmatprep.mubr.bf16.mxu0 0
      %2088 = vmatmul.mubr.bf16.gmra.mrb[0].mxu0 %v1578
      %v2089 = vpop.f32.mrb[0].mxu0
      %v2090 = vadd.f32 %v1929, %v2089
      %v2091 = vpop.f32.mrb[0].mxu0
      %v2092 = vpop.f32.mrb[0].mxu0
      %v2093 = vadd.f32 %v1932, %v2092
      %v2094 = vpop.f32.mrb[0].mxu0
      %2095 = vmatprep.mubr.bf16.mxu0 0
      %2096 = vmatmul.mubr.bf16.gmra.mrb[0].mxu0 %v1581
      %v2097 = vpop.f32.mrb[0].mxu0
      %v2098 = vadd.f32 %v1937, %v2097
      %v2099 = vpop.f32.mrb[0].mxu0
      %v2100 = vpop.f32.mrb[0].mxu0
      %v2101 = vadd.f32 %v1940, %v2100
      %v2102 = vpop.f32.mrb[0].mxu0
      %2103 = vmatprep.mubr.bf16.mxu0 0
      %2104 = vmatmul.mubr.bf16.gmra.mrb[0].mxu0 %v1584
      %v2105 = vpop.f32.mrb[0].mxu0
      %v2106 = vadd.f32 %v1945, %v2105
      %v2107 = vpop.f32.mrb[0].mxu0
      %v2108 = vpop.f32.mrb[0].mxu0
      %v2109 = vadd.f32 %v1948, %v2108
      %v2110 = vpop.f32.mrb[0].mxu0
      %2111 = vmatprep.mubr.bf16.mxu0 0
      %2112 = vmatmul.mubr.bf16.gmra.mrb[0].mxu0 %v1587
      %v2113 = vpop.f32.mrb[0].mxu0
      %v2114 = vadd.f32 %v1953, %v2113
      %v2115 = vpop.f32.mrb[0].mxu0
      %v2116 = vpop.f32.mrb[0].mxu0
      %v2117 = vadd.f32 %v1956, %v2116
      %v2118 = vpop.f32.mrb[0].mxu0
      %2119 = vmatprep.mubr.bf16.mxu0 0
      %2120 = vmatmul.mubr.bf16.gmra.mrb[0].mxu0 %v1590
      %v2121 = vpop.f32.mrb[0].mxu0
      %v2122 = vadd.f32 %v1961, %v2121
      %v2123 = vpop.f32.mrb[0].mxu0
      %v2124 = vpop.f32.mrb[0].mxu0
      %v2125 = vadd.f32 %v1964, %v2124
      %v2126 = vpop.f32.mrb[0].mxu0
      %2127 = vmatprep.mubr.bf16.mxu0 0
      %2128 = vmatmul.mubr.bf16.gmra.mrb[0].mxu0 %v1593
      %v2129 = vpop.f32.mrb[0].mxu0
      %v2130 = vadd.f32 %v1969, %v2129
      %v2131 = vpop.f32.mrb[0].mxu0
      %v2132 = vpop.f32.mrb[0].mxu0
      %v2133 = vadd.f32 %v1972, %v2132
      %v2134 = vpop.f32.mrb[0].mxu0
      %2135 = vmatprep.mubr.bf16.mxu0 0
      %2136 = vmatmul.mubr.bf16.gmra.mrb[0].mxu0 %v1596
      %v2137 = vpop.f32.mrb[0].mxu0
      %v2138 = vadd.f32 %v1977, %v2137
      %v2139 = vpop.f32.mrb[0].mxu0
      %v2140 = vpop.f32.mrb[0].mxu0
      %v2141 = vadd.f32 %v1980, %v2140
      %v2142 = vpop.f32.mrb[0].mxu0
      %2143 = vdwg.mxu0
      %v2144 = vadd.f32 %v1597, %v2018
      %v2145 = vadd.f32 %v1598, %v2021
      %v2146 = vadd.f32 %v1599, %v2026
      %v2147 = vadd.f32 %v1600, %v2029
      %v2148 = vadd.f32 %v1601, %v2034
      %v2149 = vadd.f32 %v1602, %v2037
      %v2150 = vadd.f32 %v1603, %v2042
      %v2151 = vadd.f32 %v1604, %v2045
      %v2152 = vadd.f32 %v1605, %v2050
      %v2153 = vadd.f32 %v1606, %v2053
      %v2154 = vadd.f32 %v1607, %v2058
      %v2155 = vadd.f32 %v1608, %v2061
      %v2156 = vadd.f32 %v1609, %v2066
      %v2157 = vadd.f32 %v1610, %v2069
      %v2158 = vadd.f32 %v1611, %v2074
      %v2159 = vadd.f32 %v1612, %v2077
      %v2160 = vadd.f32 %v1613, %v2082
      %v2161 = vadd.f32 %v1614, %v2085
      %v2162 = vadd.f32 %v1615, %v2090
      %v2163 = vadd.f32 %v1616, %v2093
      %v2164 = vadd.f32 %v1617, %v2098
      %v2165 = vadd.f32 %v1618, %v2101
      %v2166 = vadd.f32 %v1619, %v2106
      %v2167 = vadd.f32 %v1620, %v2109
      %v2168 = vadd.f32 %v1621, %v2114
      %v2169 = vadd.f32 %v1622, %v2117
      %v2170 = vadd.f32 %v1623, %v2122
      %v2171 = vadd.f32 %v1624, %v2125
      %v2172 = vadd.f32 %v1625, %v2130
      %v2173 = vadd.f32 %v1626, %v2133
      %v2174 = vadd.f32 %v1627, %v2138
      %v2175 = vadd.f32 %v1628, %v2141
      %2176 = vst [vmem:[#allocation3] sm:$0xff] %v2144
      %2177 = vst [vmem:[#allocation3 + $0x8] sm:$0xff] %v2145
      %2178 = vst [vmem:[#allocation3 + $0x10] sm:$0xff] %v2146
      %2179 = vst [vmem:[#allocation3 + $0x18] sm:$0xff] %v2147
      %2180 = vst [vmem:[#allocation3 + $0x20] sm:$0xff] %v2148
      %2181 = vst [vmem:[#allocation3 + $0x28] sm:$0xff] %v2149
      %2182 = vst [vmem:[#allocation3 + $0x30] sm:$0xff] %v2150
      %2183 = vst [vmem:[#allocation3 + $0x38] sm:$0xff] %v2151
      %2184 = vst [vmem:[#allocation3 + $0x40] sm:$0xff] %v2152
      %2185 = vst [vmem:[#allocation3 + $0x48] sm:$0xff] %v2153
      %2186 = vst [vmem:[#allocation3 + $0x50] sm:$0xff] %v2154
      %2187 = vst [vmem:[#allocation3 + $0x58] sm:$0xff] %v2155
      %2188 = vst [vmem:[#allocation3 + $0x60] sm:$0xff] %v2156
      %2189 = vst [vmem:[#allocation3 + $0x68] sm:$0xff] %v2157
      %2190 = vst [vmem:[#allocation3 + $0x70] sm:$0xff] %v2158
      %2191 = vst [vmem:[#allocation3 + $0x78] sm:$0xff] %v2159
      %2192 = vst [vmem:[#allocation3 + $0x80] sm:$0xff] %v2160
      %2193 = vst [vmem:[#allocation3 + $0x88] sm:$0xff] %v2161
      %2194 = vst [vmem:[#allocation3 + $0x90] sm:$0xff] %v2162
      %2195 = vst [vmem:[#allocation3 + $0x98] sm:$0xff] %v2163
      %2196 = vst [vmem:[#allocation3 + $0xa0] sm:$0xff] %v2164
      %2197 = vst [vmem:[#allocation3 + $0xa8] sm:$0xff] %v2165
      %2198 = vst [vmem:[#allocation3 + $0xb0] sm:$0xff] %v2166
      %2199 = vst [vmem:[#allocation3 + $0xb8] sm:$0xff] %v2167
      %2200 = vst [vmem:[#allocation3 + $0xc0] sm:$0xff] %v2168
      %2201 = vst [vmem:[#allocation3 + $0xc8] sm:$0xff] %v2169
      %2202 = vst [vmem:[#allocation3 + $0xd0] sm:$0xff] %v2170
      %2203 = vst [vmem:[#allocation3 + $0xd8] sm:$0xff] %v2171
      %2204 = vst [vmem:[#allocation3 + $0xe0] sm:$0xff] %v2172
      %2205 = vst [vmem:[#allocation3 + $0xe8] sm:$0xff] %v2173
      %2206 = vst [vmem:[#allocation3 + $0xf0] sm:$0xff] %v2174
      %2207 = vst [vmem:[#allocation3 + $0xf8] sm:$0xff] %v2175
      %s2208 = scalar_lea.vmem [#allocation2], 48
      %v2209 = vld [vmem:[%s2208] sm:$0xff]
      %v2210 = vld [vmem:[%s2208 + $0x8] sm:$0xff]
      %v2211 = vld [vmem:[%s2208 + $0x10] sm:$0xff]
      %v2212 = vld [vmem:[%s2208 + $0x18] sm:$0xff]
      %v2213 = vld [vmem:[%s2208 + $0x20] sm:$0xff]
      %v2214 = vld [vmem:[%s2208 + $0x28] sm:$0xff]
      %v2215 = vld [vmem:[%s2208 + $0x30] sm:$0xff]
      %v2216 = vld [vmem:[%s2208 + $0x38] sm:$0xff]
      %v2217 = vld [vmem:[%s2208 + $0x40] sm:$0xff]
      %v2218 = vld [vmem:[%s2208 + $0x48] sm:$0xff]
      %v2219 = vld [vmem:[%s2208 + $0x50] sm:$0xff]
      %v2220 = vld [vmem:[%s2208 + $0x58] sm:$0xff]
      %v2221 = vld [vmem:[%s2208 + $0x60] sm:$0xff]
      %v2222 = vld [vmem:[%s2208 + $0x68] sm:$0xff]
      %v2223 = vld [vmem:[%s2208 + $0x70] sm:$0xff]
      %v2224 = vld [vmem:[%s2208 + $0x78] sm:$0xff]
      %v2225 = vld [vmem:[%s2208 + $0x80] sm:$0xff]
      %v2226 = vld [vmem:[%s2208 + $0x88] sm:$0xff]
      %v2227 = vld [vmem:[%s2208 + $0x90] sm:$0xff]
      %v2228 = vld [vmem:[%s2208 + $0x98] sm:$0xff]
      %v2229 = vld [vmem:[%s2208 + $0xa0] sm:$0xff]
      %v2230 = vld [vmem:[%s2208 + $0xa8] sm:$0xff]
      %v2231 = vld [vmem:[%s2208 + $0xb0] sm:$0xff]
      %v2232 = vld [vmem:[%s2208 + $0xb8] sm:$0xff]
      %v2233 = vld [vmem:[%s2208 + $0xc0] sm:$0xff]
      %v2234 = vld [vmem:[%s2208 + $0xc8] sm:$0xff]
      %v2235 = vld [vmem:[%s2208 + $0xd0] sm:$0xff]
      %v2236 = vld [vmem:[%s2208 + $0xd8] sm:$0xff]
      %v2237 = vld [vmem:[%s2208 + $0xe0] sm:$0xff]
      %v2238 = vld [vmem:[%s2208 + $0xe8] sm:$0xff]
      %v2239 = vld [vmem:[%s2208 + $0xf0] sm:$0xff]
      %v2240 = vld [vmem:[%s2208 + $0xf8] sm:$0xff]
      %v2241 = vld [vmem:[%s2208 + $0x100] sm:$0xff]
      %v2242 = vld [vmem:[%s2208 + $0x108] sm:$0xff]
      %v2243 = vld [vmem:[%s2208 + $0x110] sm:$0xff]
      %v2244 = vld [vmem:[%s2208 + $0x118] sm:$0xff]
      %v2245 = vld [vmem:[%s2208 + $0x120] sm:$0xff]
      %v2246 = vld [vmem:[%s2208 + $0x128] sm:$0xff]
      %v2247 = vld [vmem:[%s2208 + $0x130] sm:$0xff]
      %v2248 = vld [vmem:[%s2208 + $0x138] sm:$0xff]
      %v2249 = vld [vmem:[%s2208 + $0x140] sm:$0xff]
      %v2250 = vld [vmem:[%s2208 + $0x148] sm:$0xff]
      %v2251 = vld [vmem:[%s2208 + $0x150] sm:$0xff]
      %v2252 = vld [vmem:[%s2208 + $0x158] sm:$0xff]
      %v2253 = vld [vmem:[%s2208 + $0x160] sm:$0xff]
      %v2254 = vld [vmem:[%s2208 + $0x168] sm:$0xff]
      %v2255 = vld [vmem:[%s2208 + $0x170] sm:$0xff]
      %v2256 = vld [vmem:[%s2208 + $0x178] sm:$0xff]
      %v2257 = vld [vmem:[#allocation3] sm:$0xff]
      %v2258 = vld [vmem:[#allocation3 + $0x8] sm:$0xff]
      %v2259 = vld [vmem:[#allocation3 + $0x10] sm:$0xff]
      %v2260 = vld [vmem:[#allocation3 + $0x18] sm:$0xff]
      %v2261 = vld [vmem:[#allocation3 + $0x20] sm:$0xff]
      %v2262 = vld [vmem:[#allocation3 + $0x28] sm:$0xff]
      %v2263 = vld [vmem:[#allocation3 + $0x30] sm:$0xff]
      %v2264 = vld [vmem:[#allocation3 + $0x38] sm:$0xff]
      %v2265 = vld [vmem:[#allocation3 + $0x40] sm:$0xff]
      %v2266 = vld [vmem:[#allocation3 + $0x48] sm:$0xff]
      %v2267 = vld [vmem:[#allocation3 + $0x50] sm:$0xff]
      %v2268 = vld [vmem:[#allocation3 + $0x58] sm:$0xff]
      %v2269 = vld [vmem:[#allocation3 + $0x60] sm:$0xff]
      %v2270 = vld [vmem:[#allocation3 + $0x68] sm:$0xff]
      %v2271 = vld [vmem:[#allocation3 + $0x70] sm:$0xff]
      %v2272 = vld [vmem:[#allocation3 + $0x78] sm:$0xff]
      %v2273 = vld [vmem:[#allocation3 + $0x80] sm:$0xff]
      %v2274 = vld [vmem:[#allocation3 + $0x88] sm:$0xff]
      %v2275 = vld [vmem:[#allocation3 + $0x90] sm:$0xff]
      %v2276 = vld [vmem:[#allocation3 + $0x98] sm:$0xff]
      %v2277 = vld [vmem:[#allocation3 + $0xa0] sm:$0xff]
      %v2278 = vld [vmem:[#allocation3 + $0xa8] sm:$0xff]
      %v2279 = vld [vmem:[#allocation3 + $0xb0] sm:$0xff]
      %v2280 = vld [vmem:[#allocation3 + $0xb8] sm:$0xff]
      %v2281 = vld [vmem:[#allocation3 + $0xc0] sm:$0xff]
      %v2282 = vld [vmem:[#allocation3 + $0xc8] sm:$0xff]
      %v2283 = vld [vmem:[#allocation3 + $0xd0] sm:$0xff]
      %v2284 = vld [vmem:[#allocation3 + $0xd8] sm:$0xff]
      %v2285 = vld [vmem:[#allocation3 + $0xe0] sm:$0xff]
      %v2286 = vld [vmem:[#allocation3 + $0xe8] sm:$0xff]
      %v2287 = vld [vmem:[#allocation3 + $0xf0] sm:$0xff]
      %v2288 = vld [vmem:[#allocation3 + $0xf8] sm:$0xff]
      %s2289 = scalar_lea.vmem %s358, 384
      %v2290 = vld [vmem:[%s2289] sm:$0xf]
      %v2291 = vld [vmem:[%s2289 + $0x4] sm:$0xf]
      %v2292 = vld [vmem:[%s2289 + $0x8] sm:$0xf]
      %v2293 = vld [vmem:[%s2289 + $0xc] sm:$0xf]
      %v2294 = vld [vmem:[%s2289 + $0x10] sm:$0xf]
      %v2295 = vld [vmem:[%s2289 + $0x14] sm:$0xf]
      %v2296 = vld [vmem:[%s2289 + $0x18] sm:$0xf]
      %v2297 = vld [vmem:[%s2289 + $0x1c] sm:$0xf]
      %v2298 = vld [vmem:[%s2289 + $0x20] sm:$0xf]
      %v2299 = vld [vmem:[%s2289 + $0x24] sm:$0xf]
      %v2300 = vld [vmem:[%s2289 + $0x28] sm:$0xf]
      %v2301 = vld [vmem:[%s2289 + $0x2c] sm:$0xf]
      %v2302 = vld [vmem:[%s2289 + $0x30] sm:$0xf]
      %v2303 = vld [vmem:[%s2289 + $0x34] sm:$0xf]
      %v2304 = vld [vmem:[%s2289 + $0x38] sm:$0xf]
      %v2305 = vld [vmem:[%s2289 + $0x3c] sm:$0xf]
      %v2306 = vld [vmem:[%s2289 + $0x40] sm:$0xf]
      %v2307 = vld [vmem:[%s2289 + $0x44] sm:$0xf]
      %v2308 = vld [vmem:[%s2289 + $0x48] sm:$0xf]
      %v2309 = vld [vmem:[%s2289 + $0x4c] sm:$0xf]
      %v2310 = vld [vmem:[%s2289 + $0x50] sm:$0xf]
      %v2311 = vld [vmem:[%s2289 + $0x54] sm:$0xf]
      %v2312 = vld [vmem:[%s2289 + $0x58] sm:$0xf]
      %v2313 = vld [vmem:[%s2289 + $0x5c] sm:$0xf]
      %v2314 = vld [vmem:[%s2289 + $0x60] sm:$0xf]
      %v2315 = vld [vmem:[%s2289 + $0x64] sm:$0xf]
      %v2316 = vld [vmem:[%s2289 + $0x68] sm:$0xf]
      %v2317 = vld [vmem:[%s2289 + $0x6c] sm:$0xf]
      %v2318 = vld [vmem:[%s2289 + $0x70] sm:$0xf]
      %v2319 = vld [vmem:[%s2289 + $0x74] sm:$0xf]
      %v2320 = vld [vmem:[%s2289 + $0x78] sm:$0xf]
      %v2321 = vld [vmem:[%s2289 + $0x7c] sm:$0xf]
      %v2322 = vld [vmem:[%s2289 + $0x80] sm:$0xf]
      %v2323 = vld [vmem:[%s2289 + $0x84] sm:$0xf]
      %v2324 = vld [vmem:[%s2289 + $0x88] sm:$0xf]
      %v2325 = vld [vmem:[%s2289 + $0x8c] sm:$0xf]
      %v2326 = vld [vmem:[%s2289 + $0x90] sm:$0xf]
      %v2327 = vld [vmem:[%s2289 + $0x94] sm:$0xf]
      %v2328 = vld [vmem:[%s2289 + $0x98] sm:$0xf]
      %v2329 = vld [vmem:[%s2289 + $0x9c] sm:$0xf]
      %v2330 = vld [vmem:[%s2289 + $0xa0] sm:$0xf]
      %v2331 = vld [vmem:[%s2289 + $0xa4] sm:$0xf]
      %v2332 = vld [vmem:[%s2289 + $0xa8] sm:$0xf]
      %v2333 = vld [vmem:[%s2289 + $0xac] sm:$0xf]
      %v2334 = vld [vmem:[%s2289 + $0xb0] sm:$0xf]
      %v2335 = vld [vmem:[%s2289 + $0xb4] sm:$0xf]
      %v2336 = vld [vmem:[%s2289 + $0xb8] sm:$0xf]
      %v2337 = vld [vmem:[%s2289 + $0xbc] sm:$0xf]
      %v2386 = vunpack.c.l.b16 %v2290
      %v2387 = vunpack.c.l.b16 %v2291
      %v2388 = vunpack.c.l.b16 %v2292
      %v2389 = vunpack.c.l.b16 %v2293
      %v2390 = vunpack.c.l.b16 %v2294
      %v2391 = vunpack.c.l.b16 %v2295
      %v2392 = vunpack.c.l.b16 %v2296
      %v2393 = vunpack.c.l.b16 %v2297
      %v2394 = vunpack.c.l.b16 %v2298
      %v2395 = vunpack.c.l.b16 %v2299
      %v2396 = vunpack.c.l.b16 %v2300
      %v2397 = vunpack.c.l.b16 %v2301
      %v2398 = vunpack.c.l.b16 %v2302
      %v2399 = vunpack.c.l.b16 %v2303
      %v2400 = vunpack.c.l.b16 %v2304
      %v2401 = vunpack.c.l.b16 %v2305
      %v2402 = vunpack.c.l.b16 %v2306
      %v2403 = vunpack.c.l.b16 %v2307
      %v2404 = vunpack.c.l.b16 %v2308
      %v2405 = vunpack.c.l.b16 %v2309
      %v2406 = vunpack.c.l.b16 %v2310
      %v2407 = vunpack.c.l.b16 %v2311
      %v2408 = vunpack.c.l.b16 %v2312
      %v2409 = vunpack.c.l.b16 %v2313
      %v2410 = vunpack.c.l.b16 %v2314
      %v2411 = vunpack.c.l.b16 %v2315
      %v2412 = vunpack.c.l.b16 %v2316
      %v2413 = vunpack.c.l.b16 %v2317
      %v2414 = vunpack.c.l.b16 %v2318
      %v2415 = vunpack.c.l.b16 %v2319
      %v2416 = vunpack.c.l.b16 %v2320
      %v2417 = vunpack.c.l.b16 %v2321
      %v2418 = vunpack.c.l.b16 %v2322
      %v2419 = vunpack.c.l.b16 %v2323
      %v2420 = vunpack.c.l.b16 %v2324
      %v2421 = vunpack.c.l.b16 %v2325
      %v2422 = vunpack.c.l.b16 %v2326
      %v2423 = vunpack.c.l.b16 %v2327
      %v2424 = vunpack.c.l.b16 %v2328
      %v2425 = vunpack.c.l.b16 %v2329
      %v2426 = vunpack.c.l.b16 %v2330
      %v2427 = vunpack.c.l.b16 %v2331
      %v2428 = vunpack.c.l.b16 %v2332
      %v2429 = vunpack.c.l.b16 %v2333
      %v2430 = vunpack.c.l.b16 %v2334
      %v2431 = vunpack.c.l.b16 %v2335
      %v2432 = vunpack.c.l.b16 %v2336
      %v2433 = vunpack.c.l.b16 %v2337
      %v2434 = vpack.c.b16 %v2387, %v2386
      %v2435 = vpack.c.b16 %v2389, %v2388
      %v2436 = vpack.c.b16 %v2391, %v2390
      %v2437 = vpack.c.b16 %v2393, %v2392
      %v2438 = vpack.c.b16 %v2395, %v2394
      %v2439 = vpack.c.b16 %v2397, %v2396
      %v2440 = vpack.c.b16 %v2399, %v2398
      %v2441 = vpack.c.b16 %v2401, %v2400
      %v2442 = vpack.c.b16 %v2403, %v2402
      %v2443 = vpack.c.b16 %v2405, %v2404
      %v2444 = vpack.c.b16 %v2407, %v2406
      %v2445 = vpack.c.b16 %v2409, %v2408
      %v2446 = vpack.c.b16 %v2411, %v2410
      %v2447 = vpack.c.b16 %v2413, %v2412
      %v2448 = vpack.c.b16 %v2415, %v2414
      %v2449 = vpack.c.b16 %v2417, %v2416
      %v2450 = vpack.c.b16 %v2419, %v2418
      %v2451 = vpack.c.b16 %v2421, %v2420
      %v2452 = vpack.c.b16 %v2423, %v2422
      %v2453 = vpack.c.b16 %v2425, %v2424
      %v2454 = vpack.c.b16 %v2427, %v2426
      %v2455 = vpack.c.b16 %v2429, %v2428
      %v2456 = vpack.c.b16 %v2431, %v2430
      %v2457 = vpack.c.b16 %v2433, %v2432
      %2482 = vmatprep.subr.bf16.mxu0 0
      %2483 = vmatpush1.bf16.msra.mxu0 %v2434
      %2484 = vmatprep.subr.bf16.mxu0 0
      %2485 = vmatpush1.bf16.msra.mxu0 %v2435
      %2486 = vmatprep.subr.bf16.mxu0 0
      %2487 = vmatpush1.bf16.msra.mxu0 %v2436
      %2488 = vmatprep.subr.bf16.mxu0 0
      %2489 = vmatpush1.bf16.msra.mxu0 %v2437
      %2490 = vmatprep.subr.bf16.mxu0 0
      %2491 = vmatpush1.bf16.msra.mxu0 %v2438
      %2492 = vmatprep.subr.bf16.mxu0 0
      %2493 = vmatpush1.bf16.msra.mxu0 %v2439
      %2494 = vmatprep.subr.bf16.mxu0 0
      %2495 = vmatpush1.bf16.msra.mxu0 %v2440
      %2496 = vmatprep.subr.bf16.mxu0 0
      %2497 = vmatpush1.bf16.msra.mxu0 %v2441
      %2498 = vmatprep.subr.bf16.mxu0 0
      %2499 = vmatpush1.bf16.msra.mxu0 %v2442
      %2500 = vmatprep.subr.bf16.mxu0 0
      %2501 = vmatpush1.bf16.msra.mxu0 %v2443
      %2502 = vmatprep.subr.bf16.mxu0 0
      %2503 = vmatpush1.bf16.msra.mxu0 %v2444
      %2504 = vmatprep.subr.bf16.mxu0 0
      %2505 = vmatpush1.bf16.msra.mxu0 %v2445
      %2506 = vmatprep.subr.bf16.mxu0 0
      %2507 = vmatpush1.bf16.msra.mxu0 %v2446
      %2508 = vmatprep.subr.bf16.mxu0 0
      %2509 = vmatpush1.bf16.msra.mxu0 %v2447
      %2510 = vmatprep.subr.bf16.mxu0 0
      %2511 = vmatpush1.bf16.msra.mxu0 %v2448
      %2512 = vmatprep.subr.bf16.mxu0 0
      %2513 = vmatpush1.bf16.msra.mxu0 %v2449
      %2514 = vmatprep.mubr.bf16.mxu0 %v2210
      %2515 = vmatmul.mubr.bf16.gmra.mrb[0].mxu0 %v2209
      %v2516 = vpop.f32.mrb[0].mxu0
      %v2517 = vadd.f32 0.0, %v2516
      %v2518 = vpop.f32.mrb[0].mxu0
      %v2519 = vpop.f32.mrb[0].mxu0
      %v2520 = vadd.f32 0.0, %v2519
      %v2521 = vpop.f32.mrb[0].mxu0
      %2522 = vmatprep.mubr.bf16.mxu0 %v2213
      %2523 = vmatmul.mubr.bf16.gmra.mrb[0].mxu0 %v2212
      %v2524 = vpop.f32.mrb[0].mxu0
      %v2525 = vadd.f32 0.0, %v2524
      %v2526 = vpop.f32.mrb[0].mxu0
      %v2527 = vpop.f32.mrb[0].mxu0
      %v2528 = vadd.f32 0.0, %v2527
      %v2529 = vpop.f32.mrb[0].mxu0
      %2530 = vmatprep.mubr.bf16.mxu0 %v2216
      %2531 = vmatmul.mubr.bf16.gmra.mrb[0].mxu0 %v2215
      %v2532 = vpop.f32.mrb[0].mxu0
      %v2533 = vadd.f32 0.0, %v2532
      %v2534 = vpop.f32.mrb[0].mxu0
      %v2535 = vpop.f32.mrb[0].mxu0
      %v2536 = vadd.f32 0.0, %v2535
      %v2537 = vpop.f32.mrb[0].mxu0
      %2538 = vmatprep.mubr.bf16.mxu0 %v2219
      %2539 = vmatmul.mubr.bf16.gmra.mrb[0].mxu0 %v2218
      %v2540 = vpop.f32.mrb[0].mxu0
      %v2541 = vadd.f32 0.0, %v2540
      %v2542 = vpop.f32.mrb[0].mxu0
      %v2543 = vpop.f32.mrb[0].mxu0
      %v2544 = vadd.f32 0.0, %v2543
      %v2545 = vpop.f32.mrb[0].mxu0
      %2546 = vmatprep.mubr.bf16.mxu0 %v2222
      %2547 = vmatmul.mubr.bf16.gmra.mrb[0].mxu0 %v2221
      %v2548 = vpop.f32.mrb[0].mxu0
      %v2549 = vadd.f32 0.0, %v2548
      %v2550 = vpop.f32.mrb[0].mxu0
      %v2551 = vpop.f32.mrb[0].mxu0
      %v2552 = vadd.f32 0.0, %v2551
      %v2553 = vpop.f32.mrb[0].mxu0
      %2554 = vmatprep.mubr.bf16.mxu0 %v2225
      %2555 = vmatmul.mubr.bf16.gmra.mrb[0].mxu0 %v2224
      %v2556 = vpop.f32.mrb[0].mxu0
      %v2557 = vadd.f32 0.0, %v2556
      %v2558 = vpop.f32.mrb[0].mxu0
      %v2559 = vpop.f32.mrb[0].mxu0
      %v2560 = vadd.f32 0.0, %v2559
      %v2561 = vpop.f32.mrb[0].mxu0
      %2562 = vmatprep.mubr.bf16.mxu0 %v2228
      %2563 = vmatmul.mubr.bf16.gmra.mrb[0].mxu0 %v2227
      %v2564 = vpop.f32.mrb[0].mxu0
      %v2565 = vadd.f32 0.0, %v2564
      %v2566 = vpop.f32.mrb[0].mxu0
      %v2567 = vpop.f32.mrb[0].mxu0
      %v2568 = vadd.f32 0.0, %v2567
      %v2569 = vpop.f32.mrb[0].mxu0
      %2570 = vmatprep.mubr.bf16.mxu0 %v2231
      %2571 = vmatmul.mubr.bf16.gmra.mrb[0].mxu0 %v2230
      %v2572 = vpop.f32.mrb[0].mxu0
      %v2573 = vadd.f32 0.0, %v2572
      %v2574 = vpop.f32.mrb[0].mxu0
      %v2575 = vpop.f32.mrb[0].mxu0
      %v2576 = vadd.f32 0.0, %v2575
      %v2577 = vpop.f32.mrb[0].mxu0
      %2578 = vmatprep.mubr.bf16.mxu0 %v2234
      %2579 = vmatmul.mubr.bf16.gmra.mrb[0].mxu0 %v2233
      %v2580 = vpop.f32.mrb[0].mxu0
      %v2581 = vadd.f32 0.0, %v2580
      %v2582 = vpop.f32.mrb[0].mxu0
      %v2583 = vpop.f32.mrb[0].mxu0
      %v2584 = vadd.f32 0.0, %v2583
      %v2585 = vpop.f32.mrb[0].mxu0
      %2586 = vmatprep.mubr.bf16.mxu0 %v2237
      %2587 = vmatmul.mubr.bf16.gmra.mrb[0].mxu0 %v2236
      %v2588 = vpop.f32.mrb[0].mxu0
      %v2589 = vadd.f32 0.0, %v2588
      %v2590 = vpop.f32.mrb[0].mxu0
      %v2591 = vpop.f32.mrb[0].mxu0
      %v2592 = vadd.f32 0.0, %v2591
      %v2593 = vpop.f32.mrb[0].mxu0
      %2594 = vmatprep.mubr.bf16.mxu0 %v2240
      %2595 = vmatmul.mubr.bf16.gmra.mrb[0].mxu0 %v2239
      %v2596 = vpop.f32.mrb[0].mxu0
      %v2597 = vadd.f32 0.0, %v2596
      %v2598 = vpop.f32.mrb[0].mxu0
      %v2599 = vpop.f32.mrb[0].mxu0
      %v2600 = vadd.f32 0.0, %v2599
      %v2601 = vpop.f32.mrb[0].mxu0
      %2602 = vmatprep.mubr.bf16.mxu0 %v2243
      %2603 = vmatmul.mubr.bf16.gmra.mrb[0].mxu0 %v2242
      %v2604 = vpop.f32.mrb[0].mxu0
      %v2605 = vadd.f32 0.0, %v2604
      %v2606 = vpop.f32.mrb[0].mxu0
      %v2607 = vpop.f32.mrb[0].mxu0
      %v2608 = vadd.f32 0.0, %v2607
      %v2609 = vpop.f32.mrb[0].mxu0
      %2610 = vmatprep.mubr.bf16.mxu0 %v2246
      %2611 = vmatmul.mubr.bf16.gmra.mrb[0].mxu0 %v2245
      %v2612 = vpop.f32.mrb[0].mxu0
      %v2613 = vadd.f32 0.0, %v2612
      %v2614 = vpop.f32.mrb[0].mxu0
      %v2615 = vpop.f32.mrb[0].mxu0
      %v2616 = vadd.f32 0.0, %v2615
      %v2617 = vpop.f32.mrb[0].mxu0
      %2618 = vmatprep.mubr.bf16.mxu0 %v2249
      %2619 = vmatmul.mubr.bf16.gmra.mrb[0].mxu0 %v2248
      %v2620 = vpop.f32.mrb[0].mxu0
      %v2621 = vadd.f32 0.0, %v2620
      %v2622 = vpop.f32.mrb[0].mxu0
      %v2623 = vpop.f32.mrb[0].mxu0
      %v2624 = vadd.f32 0.0, %v2623
      %v2625 = vpop.f32.mrb[0].mxu0
      %2626 = vmatprep.mubr.bf16.mxu0 %v2252
      %2627 = vmatmul.mubr.bf16.gmra.mrb[0].mxu0 %v2251
      %v2628 = vpop.f32.mrb[0].mxu0
      %v2629 = vadd.f32 0.0, %v2628
      %v2630 = vpop.f32.mrb[0].mxu0
      %v2631 = vpop.f32.mrb[0].mxu0
      %v2632 = vadd.f32 0.0, %v2631
      %v2633 = vpop.f32.mrb[0].mxu0
      %2634 = vmatprep.mubr.bf16.mxu0 %v2255
      %2635 = vmatmul.mubr.bf16.gmra.mrb[0].mxu0 %v2254
      %v2636 = vpop.f32.mrb[0].mxu0
      %v2637 = vadd.f32 0.0, %v2636
      %v2638 = vpop.f32.mrb[0].mxu0
      %v2639 = vpop.f32.mrb[0].mxu0
      %v2640 = vadd.f32 0.0, %v2639
      %v2641 = vpop.f32.mrb[0].mxu0
      %2642 = vdwg.mxu0
      %2643 = vmatprep.subr.bf16.mxu0 0
      %2644 = vmatpush1.bf16.msra.mxu0 %v2450
      %2645 = vmatprep.subr.bf16.mxu0 0
      %2646 = vmatpush1.bf16.msra.mxu0 %v2451
      %2647 = vmatprep.subr.bf16.mxu0 0
      %2648 = vmatpush1.bf16.msra.mxu0 %v2452
      %2649 = vmatprep.subr.bf16.mxu0 0
      %2650 = vmatpush1.bf16.msra.mxu0 %v2453
      %2651 = vmatprep.subr.bf16.mxu0 0
      %2652 = vmatpush1.bf16.msra.mxu0 %v2454
      %2653 = vmatprep.subr.bf16.mxu0 0
      %2654 = vmatpush1.bf16.msra.mxu0 %v2455
      %2655 = vmatprep.subr.bf16.mxu0 0
      %2656 = vmatpush1.bf16.msra.mxu0 %v2456
      %2657 = vmatprep.subr.bf16.mxu0 0
      %2658 = vmatpush1.bf16.msra.mxu0 %v2457
      %2659 = vmatprep.subr.bf16.mxu0 0
      %2660 = vmatpush1.bf16.msra.mxu0 0
      %2661 = vmatprep.subr.bf16.mxu0 0
      %2662 = vmatpush1.bf16.msra.mxu0 0
      %2663 = vmatprep.subr.bf16.mxu0 0
      %2664 = vmatpush1.bf16.msra.mxu0 0
      %2665 = vmatprep.subr.bf16.mxu0 0
      %2666 = vmatpush1.bf16.msra.mxu0 0
      %2667 = vmatprep.subr.bf16.mxu0 0
      %2668 = vmatpush1.bf16.msra.mxu0 0
      %2669 = vmatprep.subr.bf16.mxu0 0
      %2670 = vmatpush1.bf16.msra.mxu0 0
      %2671 = vmatprep.subr.bf16.mxu0 0
      %2672 = vmatpush1.bf16.msra.mxu0 0
      %2673 = vmatprep.subr.bf16.mxu0 0
      %2674 = vmatpush1.bf16.msra.mxu0 0
      %2675 = vmatprep.mubr.bf16.mxu0 0
      %2676 = vmatmul.mubr.bf16.gmra.mrb[0].mxu0 %v2211
      %v2677 = vpop.f32.mrb[0].mxu0
      %v2678 = vadd.f32 %v2517, %v2677
      %v2679 = vpop.f32.mrb[0].mxu0
      %v2680 = vpop.f32.mrb[0].mxu0
      %v2681 = vadd.f32 %v2520, %v2680
      %v2682 = vpop.f32.mrb[0].mxu0
      %2683 = vmatprep.mubr.bf16.mxu0 0
      %2684 = vmatmul.mubr.bf16.gmra.mrb[0].mxu0 %v2214
      %v2685 = vpop.f32.mrb[0].mxu0
      %v2686 = vadd.f32 %v2525, %v2685
      %v2687 = vpop.f32.mrb[0].mxu0
      %v2688 = vpop.f32.mrb[0].mxu0
      %v2689 = vadd.f32 %v2528, %v2688
      %v2690 = vpop.f32.mrb[0].mxu0
      %2691 = vmatprep.mubr.bf16.mxu0 0
      %2692 = vmatmul.mubr.bf16.gmra.mrb[0].mxu0 %v2217
      %v2693 = vpop.f32.mrb[0].mxu0
      %v2694 = vadd.f32 %v2533, %v2693
      %v2695 = vpop.f32.mrb[0].mxu0
      %v2696 = vpop.f32.mrb[0].mxu0
      %v2697 = vadd.f32 %v2536, %v2696
      %v2698 = vpop.f32.mrb[0].mxu0
      %2699 = vmatprep.mubr.bf16.mxu0 0
      %2700 = vmatmul.mubr.bf16.gmra.mrb[0].mxu0 %v2220
      %v2701 = vpop.f32.mrb[0].mxu0
      %v2702 = vadd.f32 %v2541, %v2701
      %v2703 = vpop.f32.mrb[0].mxu0
      %v2704 = vpop.f32.mrb[0].mxu0
      %v2705 = vadd.f32 %v2544, %v2704
      %v2706 = vpop.f32.mrb[0].mxu0
      %2707 = vmatprep.mubr.bf16.mxu0 0
      %2708 = vmatmul.mubr.bf16.gmra.mrb[0].mxu0 %v2223
      %v2709 = vpop.f32.mrb[0].mxu0
      %v2710 = vadd.f32 %v2549, %v2709
      %v2711 = vpop.f32.mrb[0].mxu0
      %v2712 = vpop.f32.mrb[0].mxu0
      %v2713 = vadd.f32 %v2552, %v2712
      %v2714 = vpop.f32.mrb[0].mxu0
      %2715 = vmatprep.mubr.bf16.mxu0 0
      %2716 = vmatmul.mubr.bf16.gmra.mrb[0].mxu0 %v2226
      %v2717 = vpop.f32.mrb[0].mxu0
      %v2718 = vadd.f32 %v2557, %v2717
      %v2719 = vpop.f32.mrb[0].mxu0
      %v2720 = vpop.f32.mrb[0].mxu0
      %v2721 = vadd.f32 %v2560, %v2720
      %v2722 = vpop.f32.mrb[0].mxu0
      %2723 = vmatprep.mubr.bf16.mxu0 0
      %2724 = vmatmul.mubr.bf16.gmra.mrb[0].mxu0 %v2229
      %v2725 = vpop.f32.mrb[0].mxu0
      %v2726 = vadd.f32 %v2565, %v2725
      %v2727 = vpop.f32.mrb[0].mxu0
      %v2728 = vpop.f32.mrb[0].mxu0
      %v2729 = vadd.f32 %v2568, %v2728
      %v2730 = vpop.f32.mrb[0].mxu0
      %2731 = vmatprep.mubr.bf16.mxu0 0
      %2732 = vmatmul.mubr.bf16.gmra.mrb[0].mxu0 %v2232
      %v2733 = vpop.f32.mrb[0].mxu0
      %v2734 = vadd.f32 %v2573, %v2733
      %v2735 = vpop.f32.mrb[0].mxu0
      %v2736 = vpop.f32.mrb[0].mxu0
      %v2737 = vadd.f32 %v2576, %v2736
      %v2738 = vpop.f32.mrb[0].mxu0
      %2739 = vmatprep.mubr.bf16.mxu0 0
      %2740 = vmatmul.mubr.bf16.gmra.mrb[0].mxu0 %v2235
      %v2741 = vpop.f32.mrb[0].mxu0
      %v2742 = vadd.f32 %v2581, %v2741
      %v2743 = vpop.f32.mrb[0].mxu0
      %v2744 = vpop.f32.mrb[0].mxu0
      %v2745 = vadd.f32 %v2584, %v2744
      %v2746 = vpop.f32.mrb[0].mxu0
      %2747 = vmatprep.mubr.bf16.mxu0 0
      %2748 = vmatmul.mubr.bf16.gmra.mrb[0].mxu0 %v2238
      %v2749 = vpop.f32.mrb[0].mxu0
      %v2750 = vadd.f32 %v2589, %v2749
      %v2751 = vpop.f32.mrb[0].mxu0
      %v2752 = vpop.f32.mrb[0].mxu0
      %v2753 = vadd.f32 %v2592, %v2752
      %v2754 = vpop.f32.mrb[0].mxu0
      %2755 = vmatprep.mubr.bf16.mxu0 0
      %2756 = vmatmul.mubr.bf16.gmra.mrb[0].mxu0 %v2241
      %v2757 = vpop.f32.mrb[0].mxu0
      %v2758 = vadd.f32 %v2597, %v2757
      %v2759 = vpop.f32.mrb[0].mxu0
      %v2760 = vpop.f32.mrb[0].mxu0
      %v2761 = vadd.f32 %v2600, %v2760
      %v2762 = vpop.f32.mrb[0].mxu0
      %2763 = vmatprep.mubr.bf16.mxu0 0
      %2764 = vmatmul.mubr.bf16.gmra.mrb[0].mxu0 %v2244
      %v2765 = vpop.f32.mrb[0].mxu0
      %v2766 = vadd.f32 %v2605, %v2765
      %v2767 = vpop.f32.mrb[0].mxu0
      %v2768 = vpop.f32.mrb[0].mxu0
      %v2769 = vadd.f32 %v2608, %v2768
      %v2770 = vpop.f32.mrb[0].mxu0
      %2771 = vmatprep.mubr.bf16.mxu0 0
      %2772 = vmatmul.mubr.bf16.gmra.mrb[0].mxu0 %v2247
      %v2773 = vpop.f32.mrb[0].mxu0
      %v2774 = vadd.f32 %v2613, %v2773
      %v2775 = vpop.f32.mrb[0].mxu0
      %v2776 = vpop.f32.mrb[0].mxu0
      %v2777 = vadd.f32 %v2616, %v2776
      %v2778 = vpop.f32.mrb[0].mxu0
      %2779 = vmatprep.mubr.bf16.mxu0 0
      %2780 = vmatmul.mubr.bf16.gmra.mrb[0].mxu0 %v2250
      %v2781 = vpop.f32.mrb[0].mxu0
      %v2782 = vadd.f32 %v2621, %v2781
      %v2783 = vpop.f32.mrb[0].mxu0
      %v2784 = vpop.f32.mrb[0].mxu0
      %v2785 = vadd.f32 %v2624, %v2784
      %v2786 = vpop.f32.mrb[0].mxu0
      %2787 = vmatprep.mubr.bf16.mxu0 0
      %2788 = vmatmul.mubr.bf16.gmra.mrb[0].mxu0 %v2253
      %v2789 = vpop.f32.mrb[0].mxu0
      %v2790 = vadd.f32 %v2629, %v2789
      %v2791 = vpop.f32.mrb[0].mxu0
      %v2792 = vpop.f32.mrb[0].mxu0
      %v2793 = vadd.f32 %v2632, %v2792
      %v2794 = vpop.f32.mrb[0].mxu0
      %2795 = vmatprep.mubr.bf16.mxu0 0
      %2796 = vmatmul.mubr.bf16.gmra.mrb[0].mxu0 %v2256
      %v2797 = vpop.f32.mrb[0].mxu0
      %v2798 = vadd.f32 %v2637, %v2797
      %v2799 = vpop.f32.mrb[0].mxu0
      %v2800 = vpop.f32.mrb[0].mxu0
      %v2801 = vadd.f32 %v2640, %v2800
      %v2802 = vpop.f32.mrb[0].mxu0
      %2803 = vdwg.mxu0
      %v2804 = vadd.f32 %v2257, %v2678
      %v2805 = vadd.f32 %v2258, %v2681
      %v2806 = vadd.f32 %v2259, %v2686
      %v2807 = vadd.f32 %v2260, %v2689
      %v2808 = vadd.f32 %v2261, %v2694
      %v2809 = vadd.f32 %v2262, %v2697
      %v2810 = vadd.f32 %v2263, %v2702
      %v2811 = vadd.f32 %v2264, %v2705
      %v2812 = vadd.f32 %v2265, %v2710
      %v2813 = vadd.f32 %v2266, %v2713
      %v2814 = vadd.f32 %v2267, %v2718
      %v2815 = vadd.f32 %v2268, %v2721
      %v2816 = vadd.f32 %v2269, %v2726
      %v2817 = vadd.f32 %v2270, %v2729
      %v2818 = vadd.f32 %v2271, %v2734
      %v2819 = vadd.f32 %v2272, %v2737
      %v2820 = vadd.f32 %v2273, %v2742
      %v2821 = vadd.f32 %v2274, %v2745
      %v2822 = vadd.f32 %v2275, %v2750
      %v2823 = vadd.f32 %v2276, %v2753
      %v2824 = vadd.f32 %v2277, %v2758
      %v2825 = vadd.f32 %v2278, %v2761
      %v2826 = vadd.f32 %v2279, %v2766
      %v2827 = vadd.f32 %v2280, %v2769
      %v2828 = vadd.f32 %v2281, %v2774
      %v2829 = vadd.f32 %v2282, %v2777
      %v2830 = vadd.f32 %v2283, %v2782
      %v2831 = vadd.f32 %v2284, %v2785
      %v2832 = vadd.f32 %v2285, %v2790
      %v2833 = vadd.f32 %v2286, %v2793
      %v2834 = vadd.f32 %v2287, %v2798
      %v2835 = vadd.f32 %v2288, %v2801
      %2836 = vst [vmem:[#allocation3] sm:$0xff] %v2804
      %2837 = vst [vmem:[#allocation3 + $0x8] sm:$0xff] %v2805
      %2838 = vst [vmem:[#allocation3 + $0x10] sm:$0xff] %v2806
      %2839 = vst [vmem:[#allocation3 + $0x18] sm:$0xff] %v2807
      %2840 = vst [vmem:[#allocation3 + $0x20] sm:$0xff] %v2808
      %2841 = vst [vmem:[#allocation3 + $0x28] sm:$0xff] %v2809
      %2842 = vst [vmem:[#allocation3 + $0x30] sm:$0xff] %v2810
      %2843 = vst [vmem:[#allocation3 + $0x38] sm:$0xff] %v2811
      %2844 = vst [vmem:[#allocation3 + $0x40] sm:$0xff] %v2812
      %2845 = vst [vmem:[#allocation3 + $0x48] sm:$0xff] %v2813
      %2846 = vst [vmem:[#allocation3 + $0x50] sm:$0xff] %v2814
      %2847 = vst [vmem:[#allocation3 + $0x58] sm:$0xff] %v2815
      %2848 = vst [vmem:[#allocation3 + $0x60] sm:$0xff] %v2816
      %2849 = vst [vmem:[#allocation3 + $0x68] sm:$0xff] %v2817
      %2850 = vst [vmem:[#allocation3 + $0x70] sm:$0xff] %v2818
      %2851 = vst [vmem:[#allocation3 + $0x78] sm:$0xff] %v2819
      %2852 = vst [vmem:[#allocation3 + $0x80] sm:$0xff] %v2820
      %2853 = vst [vmem:[#allocation3 + $0x88] sm:$0xff] %v2821
      %2854 = vst [vmem:[#allocation3 + $0x90] sm:$0xff] %v2822
      %2855 = vst [vmem:[#allocation3 + $0x98] sm:$0xff] %v2823
      %2856 = vst [vmem:[#allocation3 + $0xa0] sm:$0xff] %v2824
      %2857 = vst [vmem:[#allocation3 + $0xa8] sm:$0xff] %v2825
      %2858 = vst [vmem:[#allocation3 + $0xb0] sm:$0xff] %v2826
      %2859 = vst [vmem:[#allocation3 + $0xb8] sm:$0xff] %v2827
      %2860 = vst [vmem:[#allocation3 + $0xc0] sm:$0xff] %v2828
      %2861 = vst [vmem:[#allocation3 + $0xc8] sm:$0xff] %v2829
      %2862 = vst [vmem:[#allocation3 + $0xd0] sm:$0xff] %v2830
      %2863 = vst [vmem:[#allocation3 + $0xd8] sm:$0xff] %v2831
      %2864 = vst [vmem:[#allocation3 + $0xe0] sm:$0xff] %v2832
      %2865 = vst [vmem:[#allocation3 + $0xe8] sm:$0xff] %v2833
      %2866 = vst [vmem:[#allocation3 + $0xf0] sm:$0xff] %v2834
      %2867 = vst [vmem:[#allocation3 + $0xf8] sm:$0xff] %v2835
      // Predicated region
      $region49: #{double_conv_forward.3} parent=43 // pred_check
        %p2868 = pneg %p381
      $region50: #{double_conv_forward.3} parent=43 // pred_check_branch
        %2870 = sbr.rel (%p2868) target = $region52
      $region51: #{double_conv_forward.3} parent=43 // pred_region
        %v2871 = vld [vmem:[#allocation3] sm:$0xff]
        %v2872 = vld [vmem:[#allocation3 + $0x8] sm:$0xff]
        %v2873 = vld [vmem:[#allocation3 + $0x10] sm:$0xff]
        %v2874 = vld [vmem:[#allocation3 + $0x18] sm:$0xff]
        %v2875 = vld [vmem:[#allocation3 + $0x20] sm:$0xff]
        %v2876 = vld [vmem:[#allocation3 + $0x28] sm:$0xff]
        %v2877 = vld [vmem:[#allocation3 + $0x30] sm:$0xff]
        %v2878 = vld [vmem:[#allocation3 + $0x38] sm:$0xff]
        %v2879 = vld [vmem:[#allocation3 + $0x40] sm:$0xff]
        %v2880 = vld [vmem:[#allocation3 + $0x48] sm:$0xff]
        %v2881 = vld [vmem:[#allocation3 + $0x50] sm:$0xff]
        %v2882 = vld [vmem:[#allocation3 + $0x58] sm:$0xff]
        %v2883 = vld [vmem:[#allocation3 + $0x60] sm:$0xff]
        %v2884 = vld [vmem:[#allocation3 + $0x68] sm:$0xff]
        %v2885 = vld [vmem:[#allocation3 + $0x70] sm:$0xff]
        %v2886 = vld [vmem:[#allocation3 + $0x78] sm:$0xff]
        %v2887 = vld [vmem:[#allocation3 + $0x80] sm:$0xff]
        %v2888 = vld [vmem:[#allocation3 + $0x88] sm:$0xff]
        %v2889 = vld [vmem:[#allocation3 + $0x90] sm:$0xff]
        %v2890 = vld [vmem:[#allocation3 + $0x98] sm:$0xff]
        %v2891 = vld [vmem:[#allocation3 + $0xa0] sm:$0xff]
        %v2892 = vld [vmem:[#allocation3 + $0xa8] sm:$0xff]
        %v2893 = vld [vmem:[#allocation3 + $0xb0] sm:$0xff]
        %v2894 = vld [vmem:[#allocation3 + $0xb8] sm:$0xff]
        %v2895 = vld [vmem:[#allocation3 + $0xc0] sm:$0xff]
        %v2896 = vld [vmem:[#allocation3 + $0xc8] sm:$0xff]
        %v2897 = vld [vmem:[#allocation3 + $0xd0] sm:$0xff]
        %v2898 = vld [vmem:[#allocation3 + $0xd8] sm:$0xff]
        %v2899 = vld [vmem:[#allocation3 + $0xe0] sm:$0xff]
        %v2900 = vld [vmem:[#allocation3 + $0xe8] sm:$0xff]
        %v2901 = vld [vmem:[#allocation3 + $0xf0] sm:$0xff]
        %v2902 = vld [vmem:[#allocation3 + $0xf8] sm:$0xff]
        %v2903 = vld [vmem:[%s361] sm:$0x1]
        %v2905 = vlaneseq
        %v2906 = vshrl.u32 %v2905, 7
        %v2907 = vsub.s32 0, %v2906
        %v2908 = vrot.slane %v2903, %v2907
        %v2910 = vadd.f32 %v2871, %v2908
        %v2911 = vadd.f32 %v2872, %v2908
        %v2912 = vadd.f32 %v2873, %v2908
        %v2913 = vadd.f32 %v2874, %v2908
        %v2914 = vadd.f32 %v2875, %v2908
        %v2915 = vadd.f32 %v2876, %v2908
        %v2916 = vadd.f32 %v2877, %v2908
        %v2917 = vadd.f32 %v2878, %v2908
        %v2918 = vadd.f32 %v2879, %v2908
        %v2919 = vadd.f32 %v2880, %v2908
        %v2920 = vadd.f32 %v2881, %v2908
        %v2921 = vadd.f32 %v2882, %v2908
        %v2922 = vadd.f32 %v2883, %v2908
        %v2923 = vadd.f32 %v2884, %v2908
        %v2924 = vadd.f32 %v2885, %v2908
        %v2925 = vadd.f32 %v2886, %v2908
        %v2926 = vadd.f32 %v2887, %v2908
        %v2927 = vadd.f32 %v2888, %v2908
        %v2928 = vadd.f32 %v2889, %v2908
        %v2929 = vadd.f32 %v2890, %v2908
        %v2930 = vadd.f32 %v2891, %v2908
        %v2931 = vadd.f32 %v2892, %v2908
        %v2932 = vadd.f32 %v2893, %v2908
        %v2933 = vadd.f32 %v2894, %v2908
        %v2934 = vadd.f32 %v2895, %v2908
        %v2935 = vadd.f32 %v2896, %v2908
        %v2936 = vadd.f32 %v2897, %v2908
        %v2937 = vadd.f32 %v2898, %v2908
        %v2938 = vadd.f32 %v2899, %v2908
        %v2939 = vadd.f32 %v2900, %v2908
        %v2940 = vadd.f32 %v2901, %v2908
        %v2941 = vadd.f32 %v2902, %v2908
        %v2942 = vld [vmem:[%s371] sm:$0x1]
        %vm2943 = vcmp.ge.f32.partialorder %v2910, 0.0
        %vm2944 = vcmp.ge.f32.partialorder %v2911, 0.0
        %vm2945 = vcmp.ge.f32.partialorder %v2912, 0.0
        %vm2946 = vcmp.ge.f32.partialorder %v2913, 0.0
        %vm2947 = vcmp.ge.f32.partialorder %v2914, 0.0
        %vm2948 = vcmp.ge.f32.partialorder %v2915, 0.0
        %vm2949 = vcmp.ge.f32.partialorder %v2916, 0.0
        %vm2950 = vcmp.ge.f32.partialorder %v2917, 0.0
        %vm2951 = vcmp.ge.f32.partialorder %v2918, 0.0
        %vm2952 = vcmp.ge.f32.partialorder %v2919, 0.0
        %vm2953 = vcmp.ge.f32.partialorder %v2920, 0.0
        %vm2954 = vcmp.ge.f32.partialorder %v2921, 0.0
        %vm2955 = vcmp.ge.f32.partialorder %v2922, 0.0
        %vm2956 = vcmp.ge.f32.partialorder %v2923, 0.0
        %vm2957 = vcmp.ge.f32.partialorder %v2924, 0.0
        %vm2958 = vcmp.ge.f32.partialorder %v2925, 0.0
        %vm2959 = vcmp.ge.f32.partialorder %v2926, 0.0
        %vm2960 = vcmp.ge.f32.partialorder %v2927, 0.0
        %vm2961 = vcmp.ge.f32.partialorder %v2928, 0.0
        %vm2962 = vcmp.ge.f32.partialorder %v2929, 0.0
        %vm2963 = vcmp.ge.f32.partialorder %v2930, 0.0
        %vm2964 = vcmp.ge.f32.partialorder %v2931, 0.0
        %vm2965 = vcmp.ge.f32.partialorder %v2932, 0.0
        %vm2966 = vcmp.ge.f32.partialorder %v2933, 0.0
        %vm2967 = vcmp.ge.f32.partialorder %v2934, 0.0
        %vm2968 = vcmp.ge.f32.partialorder %v2935, 0.0
        %vm2969 = vcmp.ge.f32.partialorder %v2936, 0.0
        %vm2970 = vcmp.ge.f32.partialorder %v2937, 0.0
        %vm2971 = vcmp.ge.f32.partialorder %v2938, 0.0
        %vm2972 = vcmp.ge.f32.partialorder %v2939, 0.0
        %vm2973 = vcmp.ge.f32.partialorder %v2940, 0.0
        %vm2974 = vcmp.ge.f32.partialorder %v2941, 0.0
        %v2975 = vlaneseq
        %v2976 = vshrl.u32 %v2975, 7
        %v2977 = vsub.s32 0, %v2976
        %v2978 = vrot.slane %v2942, %v2977
        %v2979 = vmul.f32 %v2910, %v2978
        %v2980 = vmul.f32 %v2911, %v2978
        %v2981 = vmul.f32 %v2912, %v2978
        %v2982 = vmul.f32 %v2913, %v2978
        %v2983 = vmul.f32 %v2914, %v2978
        %v2984 = vmul.f32 %v2915, %v2978
        %v2985 = vmul.f32 %v2916, %v2978
        %v2986 = vmul.f32 %v2917, %v2978
        %v2987 = vmul.f32 %v2918, %v2978
        %v2988 = vmul.f32 %v2919, %v2978
        %v2989 = vmul.f32 %v2920, %v2978
        %v2990 = vmul.f32 %v2921, %v2978
        %v2991 = vmul.f32 %v2922, %v2978
        %v2992 = vmul.f32 %v2923, %v2978
        %v2993 = vmul.f32 %v2924, %v2978
        %v2994 = vmul.f32 %v2925, %v2978
        %v2995 = vmul.f32 %v2926, %v2978
        %v2996 = vmul.f32 %v2927, %v2978
        %v2997 = vmul.f32 %v2928, %v2978
        %v2998 = vmul.f32 %v2929, %v2978
        %v2999 = vmul.f32 %v2930, %v2978
        %v3000 = vmul.f32 %v2931, %v2978
        %v3001 = vmul.f32 %v2932, %v2978
        %v3002 = vmul.f32 %v2933, %v2978
        %v3003 = vmul.f32 %v2934, %v2978
        %v3004 = vmul.f32 %v2935, %v2978
        %v3005 = vmul.f32 %v2936, %v2978
        %v3006 = vmul.f32 %v2937, %v2978
        %v3007 = vmul.f32 %v2938, %v2978
        %v3008 = vmul.f32 %v2939, %v2978
        %v3009 = vmul.f32 %v2940, %v2978
        %v3010 = vmul.f32 %v2941, %v2978
        %v3011 = vsel %vm2943, %v2910, %v2979
        %v3012 = vsel %vm2944, %v2911, %v2980
        %v3013 = vsel %vm2945, %v2912, %v2981
        %v3014 = vsel %vm2946, %v2913, %v2982
        %v3015 = vsel %vm2947, %v2914, %v2983
        %v3016 = vsel %vm2948, %v2915, %v2984
        %v3017 = vsel %vm2949, %v2916, %v2985
        %v3018 = vsel %vm2950, %v2917, %v2986
        %v3019 = vsel %vm2951, %v2918, %v2987
        %v3020 = vsel %vm2952, %v2919, %v2988
        %v3021 = vsel %vm2953, %v2920, %v2989
        %v3022 = vsel %vm2954, %v2921, %v2990
        %v3023 = vsel %vm2955, %v2922, %v2991
        %v3024 = vsel %vm2956, %v2923, %v2992
        %v3025 = vsel %vm2957, %v2924, %v2993
        %v3026 = vsel %vm2958, %v2925, %v2994
        %v3027 = vsel %vm2959, %v2926, %v2995
        %v3028 = vsel %vm2960, %v2927, %v2996
        %v3029 = vsel %vm2961, %v2928, %v2997
        %v3030 = vsel %vm2962, %v2929, %v2998
        %v3031 = vsel %vm2963, %v2930, %v2999
        %v3032 = vsel %vm2964, %v2931, %v3000
        %v3033 = vsel %vm2965, %v2932, %v3001
        %v3034 = vsel %vm2966, %v2933, %v3002
        %v3035 = vsel %vm2967, %v2934, %v3003
        %v3036 = vsel %vm2968, %v2935, %v3004
        %v3037 = vsel %vm2969, %v2936, %v3005
        %v3038 = vsel %vm2970, %v2937, %v3006
        %v3039 = vsel %vm2971, %v2938, %v3007
        %v3040 = vsel %vm2972, %v2939, %v3008
        %v3041 = vsel %vm2973, %v2940, %v3009
        %v3042 = vsel %vm2974, %v2941, %v3010
        %v3043 = vld [vmem:[%s371 + $0x1] sm:$0x1]
        %vm3044 = vcmp.ge.f32.partialorder %v3011, 0.0
        %vm3045 = vcmp.ge.f32.partialorder %v3012, 0.0
        %vm3046 = vcmp.ge.f32.partialorder %v3013, 0.0
        %vm3047 = vcmp.ge.f32.partialorder %v3014, 0.0
        %vm3048 = vcmp.ge.f32.partialorder %v3015, 0.0
        %vm3049 = vcmp.ge.f32.partialorder %v3016, 0.0
        %vm3050 = vcmp.ge.f32.partialorder %v3017, 0.0
        %vm3051 = vcmp.ge.f32.partialorder %v3018, 0.0
        %vm3052 = vcmp.ge.f32.partialorder %v3019, 0.0
        %vm3053 = vcmp.ge.f32.partialorder %v3020, 0.0
        %vm3054 = vcmp.ge.f32.partialorder %v3021, 0.0
        %vm3055 = vcmp.ge.f32.partialorder %v3022, 0.0
        %vm3056 = vcmp.ge.f32.partialorder %v3023, 0.0
        %vm3057 = vcmp.ge.f32.partialorder %v3024, 0.0
        %vm3058 = vcmp.ge.f32.partialorder %v3025, 0.0
        %vm3059 = vcmp.ge.f32.partialorder %v3026, 0.0
        %vm3060 = vcmp.ge.f32.partialorder %v3027, 0.0
        %vm3061 = vcmp.ge.f32.partialorder %v3028, 0.0
        %vm3062 = vcmp.ge.f32.partialorder %v3029, 0.0
        %vm3063 = vcmp.ge.f32.partialorder %v3030, 0.0
        %vm3064 = vcmp.ge.f32.partialorder %v3031, 0.0
        %vm3065 = vcmp.ge.f32.partialorder %v3032, 0.0
        %vm3066 = vcmp.ge.f32.partialorder %v3033, 0.0
        %vm3067 = vcmp.ge.f32.partialorder %v3034, 0.0
        %vm3068 = vcmp.ge.f32.partialorder %v3035, 0.0
        %vm3069 = vcmp.ge.f32.partialorder %v3036, 0.0
        %vm3070 = vcmp.ge.f32.partialorder %v3037, 0.0
        %vm3071 = vcmp.ge.f32.partialorder %v3038, 0.0
        %vm3072 = vcmp.ge.f32.partialorder %v3039, 0.0
        %vm3073 = vcmp.ge.f32.partialorder %v3040, 0.0
        %vm3074 = vcmp.ge.f32.partialorder %v3041, 0.0
        %vm3075 = vcmp.ge.f32.partialorder %v3042, 0.0
        %v3076 = vlaneseq
        %v3077 = vshrl.u32 %v3076, 7
        %v3078 = vsub.s32 0, %v3077
        %v3079 = vrot.slane %v3043, %v3078
        %v3080 = vmul.f32 %v3011, %v3079
        %v3081 = vmul.f32 %v3012, %v3079
        %v3082 = vmul.f32 %v3013, %v3079
        %v3083 = vmul.f32 %v3014, %v3079
        %v3084 = vmul.f32 %v3015, %v3079
        %v3085 = vmul.f32 %v3016, %v3079
        %v3086 = vmul.f32 %v3017, %v3079
        %v3087 = vmul.f32 %v3018, %v3079
        %v3088 = vmul.f32 %v3019, %v3079
        %v3089 = vmul.f32 %v3020, %v3079
        %v3090 = vmul.f32 %v3021, %v3079
        %v3091 = vmul.f32 %v3022, %v3079
        %v3092 = vmul.f32 %v3023, %v3079
        %v3093 = vmul.f32 %v3024, %v3079
        %v3094 = vmul.f32 %v3025, %v3079
        %v3095 = vmul.f32 %v3026, %v3079
        %v3096 = vmul.f32 %v3027, %v3079
        %v3097 = vmul.f32 %v3028, %v3079
        %v3098 = vmul.f32 %v3029, %v3079
        %v3099 = vmul.f32 %v3030, %v3079
        %v3100 = vmul.f32 %v3031, %v3079
        %v3101 = vmul.f32 %v3032, %v3079
        %v3102 = vmul.f32 %v3033, %v3079
        %v3103 = vmul.f32 %v3034, %v3079
        %v3104 = vmul.f32 %v3035, %v3079
        %v3105 = vmul.f32 %v3036, %v3079
        %v3106 = vmul.f32 %v3037, %v3079
        %v3107 = vmul.f32 %v3038, %v3079
        %v3108 = vmul.f32 %v3039, %v3079
        %v3109 = vmul.f32 %v3040, %v3079
        %v3110 = vmul.f32 %v3041, %v3079
        %v3111 = vmul.f32 %v3042, %v3079
        %v3112 = vsel %vm3044, %v3011, %v3080
        %v3113 = vsel %vm3045, %v3012, %v3081
        %v3114 = vsel %vm3046, %v3013, %v3082
        %v3115 = vsel %vm3047, %v3014, %v3083
        %v3116 = vsel %vm3048, %v3015, %v3084
        %v3117 = vsel %vm3049, %v3016, %v3085
        %v3118 = vsel %vm3050, %v3017, %v3086
        %v3119 = vsel %vm3051, %v3018, %v3087
        %v3120 = vsel %vm3052, %v3019, %v3088
        %v3121 = vsel %vm3053, %v3020, %v3089
        %v3122 = vsel %vm3054, %v3021, %v3090
        %v3123 = vsel %vm3055, %v3022, %v3091
        %v3124 = vsel %vm3056, %v3023, %v3092
        %v3125 = vsel %vm3057, %v3024, %v3093
        %v3126 = vsel %vm3058, %v3025, %v3094
        %v3127 = vsel %vm3059, %v3026, %v3095
        %v3128 = vsel %vm3060, %v3027, %v3096
        %v3129 = vsel %vm3061, %v3028, %v3097
        %v3130 = vsel %vm3062, %v3029, %v3098
        %v3131 = vsel %vm3063, %v3030, %v3099
        %v3132 = vsel %vm3064, %v3031, %v3100
        %v3133 = vsel %vm3065, %v3032, %v3101
        %v3134 = vsel %vm3066, %v3033, %v3102
        %v3135 = vsel %vm3067, %v3034, %v3103
        %v3136 = vsel %vm3068, %v3035, %v3104
        %v3137 = vsel %vm3069, %v3036, %v3105
        %v3138 = vsel %vm3070, %v3037, %v3106
        %v3139 = vsel %vm3071, %v3038, %v3107
        %v3140 = vsel %vm3072, %v3039, %v3108
        %v3141 = vsel %vm3073, %v3040, %v3109
        %v3142 = vsel %vm3074, %v3041, %v3110
        %v3143 = vsel %vm3075, %v3042, %v3111
        %3144 = vst [vmem:[%s379] sm:$0xff] %v3112
        %3145 = vst [vmem:[%s379 + $0x8] sm:$0xff] %v3113
        %3146 = vst [vmem:[%s379 + $0x10] sm:$0xff] %v3114
        %3147 = vst [vmem:[%s379 + $0x18] sm:$0xff] %v3115
        %3148 = vst [vmem:[%s379 + $0x20] sm:$0xff] %v3116
        %3149 = vst [vmem:[%s379 + $0x28] sm:$0xff] %v3117
        %3150 = vst [vmem:[%s379 + $0x30] sm:$0xff] %v3118
        %3151 = vst [vmem:[%s379 + $0x38] sm:$0xff] %v3119
        %3152 = vst [vmem:[%s379 + $0x40] sm:$0xff] %v3120
        %3153 = vst [vmem:[%s379 + $0x48] sm:$0xff] %v3121
        %3154 = vst [vmem:[%s379 + $0x50] sm:$0xff] %v3122
        %3155 = vst [vmem:[%s379 + $0x58] sm:$0xff] %v3123
        %3156 = vst [vmem:[%s379 + $0x60] sm:$0xff] %v3124
        %3157 = vst [vmem:[%s379 + $0x68] sm:$0xff] %v3125
        %3158 = vst [vmem:[%s379 + $0x70] sm:$0xff] %v3126
        %3159 = vst [vmem:[%s379 + $0x78] sm:$0xff] %v3127
        %3160 = vst [vmem:[%s379 + $0x80] sm:$0xff] %v3128
        %3161 = vst [vmem:[%s379 + $0x88] sm:$0xff] %v3129
        %3162 = vst [vmem:[%s379 + $0x90] sm:$0xff] %v3130
        %3163 = vst [vmem:[%s379 + $0x98] sm:$0xff] %v3131
        %3164 = vst [vmem:[%s379 + $0xa0] sm:$0xff] %v3132
        %3165 = vst [vmem:[%s379 + $0xa8] sm:$0xff] %v3133
        %3166 = vst [vmem:[%s379 + $0xb0] sm:$0xff] %v3134
        %3167 = vst [vmem:[%s379 + $0xb8] sm:$0xff] %v3135
        %3168 = vst [vmem:[%s379 + $0xc0] sm:$0xff] %v3136
        %3169 = vst [vmem:[%s379 + $0xc8] sm:$0xff] %v3137
        %3170 = vst [vmem:[%s379 + $0xd0] sm:$0xff] %v3138
        %3171 = vst [vmem:[%s379 + $0xd8] sm:$0xff] %v3139
        %3172 = vst [vmem:[%s379 + $0xe0] sm:$0xff] %v3140
        %3173 = vst [vmem:[%s379 + $0xe8] sm:$0xff] %v3141
        %3174 = vst [vmem:[%s379 + $0xf0] sm:$0xff] %v3142
        %3175 = vst [vmem:[%s379 + $0xf8] sm:$0xff] %v3143
      $region52: #{double_conv_forward.3} parent=43 // pred_fallthru
        _
      %p3176 = scmp.lt.s32.totalorder %s22, 1
      %s3177 = scalar_select %p3176, %s22, 1
      %p3178 = scmp.lt.s32.totalorder %s23, 0
      %s3179 = scalar_select %p3178, %s23, 0
      %s3180 = smul.addr %s3177, 32
      %s3181 = sadd.s32 %s3179, %s3180
      %s3182 = smul.addr %s3181, 8
      %s3183 = scalar_lea.vmem %s6, %s3182
      // Predicated region
      $region53: #{double_conv_forward.3} parent=43 // pred_check
        %p3184 = pneg %p216
      $region54: #{double_conv_forward.3} parent=43 // pred_check_branch
        %3186 = sbr.rel (%p3184) target = $region56
      $region55: #{double_conv_forward.3} parent=43 // pred_region
        _
      $region56: #{double_conv_forward.3} parent=43 // pred_fallthru
        _
    $region44: #{double_conv_forward.3} parent=5 // pred_fallthru
      _
    %p3187 = scmp.le.s32.totalorder 2, %s12
    // Predicated region
    $region57: #{double_conv_forward.3} parent=5 // pred_check
      %p3188 = pneg %p3187
    $region58: #{double_conv_forward.3} parent=5 // pred_check_branch
      %3190 = sbr.rel (%p3188) target = $region60
    $region59: #{double_conv_forward.3} parent=5 // pred_region
      %s3191 = ssub.s32 %s12, 2
      // Predicated region
      $region61: #{double_conv_forward.3} parent=59 // pred_check
        %p3192 = pneg %p222
      $region62: #{double_conv_forward.3} parent=59 // pred_check_branch
        %3194 = sbr.rel (%p3192) target = $region64
      $region63: #{double_conv_forward.3} parent=59 // pred_region
        %p3195 = scmp.lt.s32.totalorder %s25, 1
        %s3196 = scalar_select %p3195, %s25, 1
        %p3197 = scmp.lt.s32.totalorder %s26, 0
        %s3198 = scalar_select %p3197, %s26, 0
        %s3199 = smul.addr %s3196, 32
        %s3200 = sadd.s32 %s3198, %s3199
        %s3201 = smul.addr %s3200, 8
        %s3202 = scalar_lea.vmem %s6, %s3201
      $region64: #{double_conv_forward.3} parent=59 // pred_fallthru
        _
    $region60: #{double_conv_forward.3} parent=5 // pred_fallthru
      _
  $region6: #{double_conv_forward.3} parent=0 // loop_footer
    %s16 = sadd.s32 1, %s12
  $region7: #{double_conv_forward.3} parent=0 // loop_footer_branch
    %11 = sbr.rel target = $region3
  $region8: #{double_conv_forward.3} parent=0 // loop_exit
    _

// kernel: double_conv_forward.2
$region0: #{double_conv_forward.2}
  #allocation0 [shape = 'u32[]', space=smem, size = 0x4, offset = 0x4, fixed_abs, tag = 'smem constant byte address 0x4 - core index']
  #allocation1 [shape = 'u32[144,128]{1,0:T(1,128)}', space=vmem, size = 0x12000, scoped, tag = 'internal scratch']
  #allocation2 [shape = 'bf16[18,16,384]{2,1,0:T(16,128)(2,1)}', space=vmem, size = 0x36000, scoped, tag = 'scratch operand']
  #allocation3 [shape = 'f32[256,128]{1,0:T(8,128)}', space=vmem, size = 0x20000, scoped, tag = 'scratch operand']
  %s0 = inlined_call_operand.vmem [shape: f32[2,16,16,128], index: 0, kind: input, shape index: {}]
  %s1 = inlined_call_operand.vmem [shape: bf16[1,3,384,128], index: 1, kind: input, shape index: {}]
  %s2 = inlined_call_operand.vmem [shape: f32[1,128], index: 2, kind: input, shape index: {}]
  %s3 = inlined_call_operand.vmem [shape: f32[1,128], index: 3, kind: input, shape index: {}]
  %s4 = inlined_call_operand.vmem [shape: f32[1,128], index: 4, kind: input, shape index: {}]
  %s5 = inlined_call_operand.vmem [shape: f32[1,128], index: 5, kind: input, shape index: {}]
  %s6 = inlined_call_operand.vmem [shape: bf16[2,16,16,128], index: 6, kind: output, shape index: {}]
  %s7 = sld [smem:[#allocation0]]
  $region65: #{double_conv_forward.2} parent=0
    _
  %s9 = ssub.s32 1, %s7
  %s10 = scalar_select 0, %s9, %s7
  loop: start=0, step=1, limit=4
  $region2: #{double_conv_forward.2} parent=0 // loop_pre_header
    _
  $region3: #{double_conv_forward.2} parent=0 // loop_header
    %s12 = sphi 0, %s16
    %p13 = scmp.ge.s32.totalorder %s12, 4
    %s19 = sphi 0, %s38
    %s20 = sphi 0, %s34
    %s21 = sphi 0, %s30
    %s22 = sphi 0, %s19
    %s23 = sphi 0, %s20
    %s24 = sphi 0, %s21
    %s25 = sphi 0, %s22
    %s26 = sphi 0, %s23
    %s27 = sphi 0, %s24
    %s43 = sphi 0, %s45
    %s46 = sphi 0, %s43
    %s47 = sphi 0, %s46
    %s63 = sphi 0, %s47
    %s71 = sphi 0, %s73
    %s74 = sphi 0, %s71
    %s75 = sphi 0, %s74
    %s91 = sphi 0, %s75
    %s97 = sphi 0, %s99
    %s100 = sphi 0, %s97
    %s101 = sphi 0, %s100
    %s117 = sphi 0, %s101
    %s123 = sphi 0, %s125
    %s126 = sphi 0, %s123
    %s127 = sphi 0, %s126
    %s143 = sphi 0, %s127
    %s149 = sphi 0, %s151
    %s152 = sphi 0, %s149
    %s153 = sphi 0, %s152
    %s169 = sphi 0, %s153
    %s175 = sphi 0, %s177
    %s178 = sphi 0, %s175
    %s179 = sphi 0, %s178
    %s195 = sphi 0, %s179
    %s203 = sphi 0, %s205
    %s206 = sphi 0, %s203
    %s207 = sphi 0, %s206
    %s223 = sphi 0, %s207
  $region4: #{double_conv_forward.2} parent=0 // loop_header_branch
    %15 = sbr.rel (%p13) target = $region8
  $region5: #{double_conv_forward.2} parent=0 // loop_body
    %s17 = ssub.s32 %s12, 1
    %s18 = ssub.s32 %s12, 2
    %s28 = sadd.s32 1, %s21
    %p29 = scmp.ge.s32.totalorder %s28, 1
    %s30 = scalar_select %p29, 0, %s28
    %s31 = sadd.s32 1, %s20
    %s32 = scalar_select %p29, %s31, %s20
    %p33 = scmp.ge.s32.totalorder %s32, 1
    %s34 = scalar_select %p33, 0, %s32
    %s35 = sadd.s32 1, %s19
    %s36 = scalar_select %p33, %s35, %s19
    %p37 = scmp.ge.s32.totalorder %s36, 2
    %s38 = scalar_select %p37, 0, %s36
    %s39 = ssub.s32 %s19, %s38
    %s40 = ssub.s32 %s21, %s30
    %s41 = sor.u32 %s39, %s40
    %p42 = scmp.eq.s32.totalorder %s41, 0
    %s44 = sadd.s32 %s43, 1
    %s45 = scalar_select %p42, %s43, %s44
    %p48 = pneg %p42
    %p49 = scmp.eq.s32.totalorder %s12, 1
    %p50 = por %p48, %p49
    %p51 = scmp.ne.s32.totalorder %s43, %s46
    %p52 = scmp.eq.s32.totalorder %s12, 0
    %p53 = por %p51, %p52
    %p54 = scmp.ne.s32.totalorder %s43, %s46
    %p55 = scmp.eq.s32.totalorder %s17, 1
    %p56 = por %p54, %p55
    %p57 = scmp.ne.s32.totalorder %s46, %s47
    %p58 = scmp.eq.s32.totalorder %s17, 0
    %p59 = por %p57, %p58
    %p60 = scmp.ne.s32.totalorder %s46, %s47
    %p61 = scmp.eq.s32.totalorder %s18, 1
    %p62 = por %p60, %p61
    %p64 = scmp.ne.s32.totalorder %s47, %s63
    %p65 = scmp.eq.s32.totalorder %s18, 0
    %p66 = por %p64, %p65
    %s67 = ssub.s32 %s21, %s30
    %s68 = ssub.s32 %s20, %s34
    %s69 = sor.u32 %s67, %s68
    %p70 = scmp.eq.s32.totalorder %s69, 0
    %s72 = sadd.s32 %s71, 1
    %s73 = scalar_select %p70, %s71, %s72
    %p76 = pneg %p70
    %p77 = scmp.eq.s32.totalorder %s12, 1
    %p78 = por %p76, %p77
    %p79 = scmp.ne.s32.totalorder %s71, %s74
    %p80 = scmp.eq.s32.totalorder %s12, 0
    %p81 = por %p79, %p80
    %p82 = scmp.ne.s32.totalorder %s71, %s74
    %p83 = scmp.eq.s32.totalorder %s17, 1
    %p84 = por %p82, %p83
    %p85 = scmp.ne.s32.totalorder %s74, %s75
    %p86 = scmp.eq.s32.totalorder %s17, 0
    %p87 = por %p85, %p86
    %p88 = scmp.ne.s32.totalorder %s74, %s75
    %p89 = scmp.eq.s32.totalorder %s18, 1
    %p90 = por %p88, %p89
    %p92 = scmp.ne.s32.totalorder %s75, %s91
    %p93 = scmp.eq.s32.totalorder %s18, 0
    %p94 = por %p92, %p93
    %s95 = ssub.s32 %s20, %s34
    %p96 = scmp.eq.s32.totalorder %s95, 0
    %s98 = sadd.s32 %s97, 1
    %s99 = scalar_select %p96, %s97, %s98
    %p102 = pneg %p96
    %p103 = scmp.eq.s32.totalorder %s12, 1
    %p104 = por %p102, %p103
    %p105 = scmp.ne.s32.totalorder %s97, %s100
    %p106 = scmp.eq.s32.totalorder %s12, 0
    %p107 = por %p105, %p106
    %p108 = scmp.ne.s32.totalorder %s97, %s100
    %p109 = scmp.eq.s32.totalorder %s17, 1
    %p110 = por %p108, %p109
    %p111 = scmp.ne.s32.totalorder %s100, %s101
    %p112 = scmp.eq.s32.totalorder %s17, 0
    %p113 = por %p111, %p112
    %p114 = scmp.ne.s32.totalorder %s100, %s101
    %p115 = scmp.eq.s32.totalorder %s18, 1
    %p116 = por %p114, %p115
    %p118 = scmp.ne.s32.totalorder %s101, %s117
    %p119 = scmp.eq.s32.totalorder %s18, 0
    %p120 = por %p118, %p119
    %s121 = ssub.s32 %s21, %s30
    %p122 = scmp.eq.s32.totalorder %s121, 0
    %s124 = sadd.s32 %s123, 1
    %s125 = scalar_select %p122, %s123, %s124
    %p128 = pneg %p122
    %p129 = scmp.eq.s32.totalorder %s12, 1
    %p130 = por %p128, %p129
    %p131 = scmp.ne.s32.totalorder %s123, %s126
    %p132 = scmp.eq.s32.totalorder %s12, 0
    %p133 = por %p131, %p132
    %p134 = scmp.ne.s32.totalorder %s123, %s126
    %p135 = scmp.eq.s32.totalorder %s17, 1
    %p136 = por %p134, %p135
    %p137 = scmp.ne.s32.totalorder %s126, %s127
    %p138 = scmp.eq.s32.totalorder %s17, 0
    %p139 = por %p137, %p138
    %p140 = scmp.ne.s32.totalorder %s126, %s127
    %p141 = scmp.eq.s32.totalorder %s18, 1
    %p142 = por %p140, %p141
    %p144 = scmp.ne.s32.totalorder %s127, %s143
    %p145 = scmp.eq.s32.totalorder %s18, 0
    %p146 = por %p144, %p145
    %s147 = ssub.s32 %s21, %s30
    %p148 = scmp.eq.s32.totalorder %s147, 0
    %s150 = sadd.s32 %s149, 1
    %s151 = scalar_select %p148, %s149, %s150
    %p154 = pneg %p148
    %p155 = scmp.eq.s32.totalorder %s12, 1
    %p156 = por %p154, %p155
    %p157 = scmp.ne.s32.totalorder %s149, %s152
    %p158 = scmp.eq.s32.totalorder %s12, 0
    %p159 = por %p157, %p158
    %p160 = scmp.ne.s32.totalorder %s149, %s152
    %p161 = scmp.eq.s32.totalorder %s17, 1
    %p162 = por %p160, %p161
    %p163 = scmp.ne.s32.totalorder %s152, %s153
    %p164 = scmp.eq.s32.totalorder %s17, 0
    %p165 = por %p163, %p164
    %p166 = scmp.ne.s32.totalorder %s152, %s153
    %p167 = scmp.eq.s32.totalorder %s18, 1
    %p168 = por %p166, %p167
    %p170 = scmp.ne.s32.totalorder %s153, %s169
    %p171 = scmp.eq.s32.totalorder %s18, 0
    %p172 = por %p170, %p171
    %s173 = ssub.s32 %s20, %s34
    %p174 = scmp.eq.s32.totalorder %s173, 0
    %s176 = sadd.s32 %s175, 1
    %s177 = scalar_select %p174, %s175, %s176
    %p180 = pneg %p174
    %p181 = scmp.eq.s32.totalorder %s12, 1
    %p182 = por %p180, %p181
    %p183 = scmp.ne.s32.totalorder %s175, %s178
    %p184 = scmp.eq.s32.totalorder %s12, 0
    %p185 = por %p183, %p184
    %p186 = scmp.ne.s32.totalorder %s175, %s178
    %p187 = scmp.eq.s32.totalorder %s17, 1
    %p188 = por %p186, %p187
    %p189 = scmp.ne.s32.totalorder %s178, %s179
    %p190 = scmp.eq.s32.totalorder %s17, 0
    %p191 = por %p189, %p190
    %p192 = scmp.ne.s32.totalorder %s178, %s179
    %p193 = scmp.eq.s32.totalorder %s18, 1
    %p194 = por %p192, %p193
    %p196 = scmp.ne.s32.totalorder %s179, %s195
    %p197 = scmp.eq.s32.totalorder %s18, 0
    %p198 = por %p196, %p197
    %s199 = ssub.s32 %s19, %s38
    %s200 = ssub.s32 %s20, %s34
    %s201 = sor.u32 %s199, %s200
    %p202 = scmp.eq.s32.totalorder %s201, 0
    %s204 = sadd.s32 %s203, 1
    %s205 = scalar_select %p202, %s203, %s204
    %p208 = pneg %p202
    %p209 = scmp.eq.s32.totalorder %s12, 1
    %p210 = por %p208, %p209
    %p211 = scmp.ne.s32.totalorder %s203, %s206
    %p212 = scmp.eq.s32.totalorder %s12, 0
    %p213 = por %p211, %p212
    %p214 = scmp.ne.s32.totalorder %s203, %s206
    %p215 = scmp.eq.s32.totalorder %s17, 1
    %p216 = por %p214, %p215
    %p217 = scmp.ne.s32.totalorder %s206, %s207
    %p218 = scmp.eq.s32.totalorder %s17, 0
    %p219 = por %p217, %p218
    %p220 = scmp.ne.s32.totalorder %s206, %s207
    %p221 = scmp.eq.s32.totalorder %s18, 1
    %p222 = por %p220, %p221
    %p224 = scmp.ne.s32.totalorder %s207, %s223
    %p225 = scmp.eq.s32.totalorder %s18, 0
    %p226 = por %p224, %p225
    %p227 = scmp.le.s32.totalorder 1, %s12
    %p228 = scmp.lt.s32.totalorder %s12, 3
    %p229 = pnand %p227, %p228
    %p230 = pneg %p229
    // Predicated region
    $region9: #{double_conv_forward.2} parent=5 // pred_check
      _
    $region10: #{double_conv_forward.2} parent=5 // pred_check_branch
      %232 = sbr.rel (%p229) target = $region12
    $region11: #{double_conv_forward.2} parent=5 // pred_region
      %s233 = ssub.s32 %s12, 1
      // Predicated region
      $region13: #{double_conv_forward.2} parent=11 // pred_check
        %p234 = pneg %p87
      $region14: #{double_conv_forward.2} parent=11 // pred_check_branch
        %236 = sbr.rel (%p234) target = $region16
      $region15: #{double_conv_forward.2} parent=11 // pred_region
        %p237 = scmp.lt.s32.totalorder %s24, 0
        %s238 = scalar_select %p237, %s24, 0
        %p239 = scmp.lt.s32.totalorder %s23, 0
        %s240 = scalar_select %p239, %s23, 0
        %s241 = smul.addr %s238, 144
        %s242 = sadd.s32 %s240, %s241
        %s243 = smul.addr %s242, 4
        %s244 = scalar_lea.vmem %s1, %s243
      $region16: #{double_conv_forward.2} parent=11 // pred_fallthru
        _
      // Predicated region
      $region17: #{double_conv_forward.2} parent=11 // pred_check
        %p245 = pneg %p113
      $region18: #{double_conv_forward.2} parent=11 // pred_check_branch
        %247 = sbr.rel (%p245) target = $region20
      $region19: #{double_conv_forward.2} parent=11 // pred_region
        %p248 = scmp.lt.s32.totalorder %s23, 0
        %s249 = scalar_select %p248, %s23, 0
        %s250 = scalar_lea.vmem %s2, %s249
      $region20: #{double_conv_forward.2} parent=11 // pred_fallthru
        _
      // Predicated region
      $region21: #{double_conv_forward.2} parent=11 // pred_check
        %p251 = pneg %p139
      $region22: #{double_conv_forward.2} parent=11 // pred_check_branch
        %253 = sbr.rel (%p251) target = $region24
      $region23: #{double_conv_forward.2} parent=11 // pred_region
        %p254 = scmp.lt.s32.totalorder %s24, 0
        %s255 = scalar_select %p254, %s24, 0
        %s256 = scalar_lea.vmem %s3, %s255
      $region24: #{double_conv_forward.2} parent=11 // pred_fallthru
        _
      // Predicated region
      $region25: #{double_conv_forward.2} parent=11 // pred_check
        %p257 = pneg %p165
      $region26: #{double_conv_forward.2} parent=11 // pred_check_branch
        %259 = sbr.rel (%p257) target = $region28
      $region27: #{double_conv_forward.2} parent=11 // pred_region
        %p260 = scmp.lt.s32.totalorder %s24, 0
        %s261 = scalar_select %p260, %s24, 0
        %s262 = scalar_lea.vmem %s4, %s261
      $region28: #{double_conv_forward.2} parent=11 // pred_fallthru
        _
      // Predicated region
      $region29: #{double_conv_forward.2} parent=11 // pred_check
        %p263 = pneg %p191
      $region30: #{double_conv_forward.2} parent=11 // pred_check_branch
        %265 = sbr.rel (%p263) target = $region32
      $region31: #{double_conv_forward.2} parent=11 // pred_region
        %p266 = scmp.lt.s32.totalorder %s23, 0
        %s267 = scalar_select %p266, %s23, 0
        %s268 = scalar_lea.vmem %s5, %s267
      $region32: #{double_conv_forward.2} parent=11 // pred_fallthru
        _
    $region12: #{double_conv_forward.2} parent=5 // pred_fallthru
      _
    %p269 = scmp.lt.s32.totalorder %s12, 2
    // Predicated region
    $region33: #{double_conv_forward.2} parent=5 // pred_check
      %p270 = pneg %p269
    $region34: #{double_conv_forward.2} parent=5 // pred_check_branch
      %272 = sbr.rel (%p270) target = $region36
    $region35: #{double_conv_forward.2} parent=5 // pred_region
      // Predicated region
      $region37: #{double_conv_forward.2} parent=35 // pred_check
        %p273 = pneg %p53
      $region38: #{double_conv_forward.2} parent=35 // pred_check_branch
        %275 = sbr.rel (%p273) target = $region40
      $region39: #{double_conv_forward.2} parent=35 // pred_region
        %p276 = scmp.lt.s32.totalorder %s19, 1
        %s277 = scalar_select %p276, %s19, 1
        %p278 = scmp.lt.s32.totalorder %s21, 0
        %s279 = scalar_select %p278, %s21, 0
        %s280 = smul.addr %s277, 32
        %s281 = sadd.s32 %s279, %s280
        %s282 = smul.addr %s281, 8
        %s283 = scalar_lea.vmem %s0, %s282
      $region40: #{double_conv_forward.2} parent=35 // pred_fallthru
        _
    $region36: #{double_conv_forward.2} parent=5 // pred_fallthru
      _
    %p284 = scmp.le.s32.totalorder 1, %s12
    %p285 = scmp.lt.s32.totalorder %s12, 3
    %p286 = pnand %p284, %p285
    %p287 = pneg %p286
    // Predicated region
    $region41: #{double_conv_forward.2} parent=5 // pred_check
      _
    $region42: #{double_conv_forward.2} parent=5 // pred_check_branch
      %289 = sbr.rel (%p286) target = $region44
    $region43: #{double_conv_forward.2} parent=5 // pred_region
      %s290 = ssub.s32 %s12, 1
      %p291 = scmp.lt.s32.totalorder %s22, 1
      %s292 = scalar_select %p291, %s22, 1
      %p293 = scmp.lt.s32.totalorder %s24, 0
      %s294 = scalar_select %p293, %s24, 0
      %s295 = smul.addr %s292, 32
      %s296 = sadd.s32 %s294, %s295
      %s297 = smul.addr %s296, 8
      %s298 = scalar_lea.vmem %s0, %s297
      %p299 = pneg %p59
      %p300 = pneg %p56
      %p301 = scmp.lt.s32.totalorder %s24, 0
      %s302 = scalar_select %p301, %s24, 0
      %p303 = scmp.lt.s32.totalorder %s23, 0
      %s304 = scalar_select %p303, %s23, 0
      %s305 = smul.addr %s302, 144
      %s306 = sadd.s32 %s304, %s305
      %s307 = smul.addr %s306, 4
      %s308 = scalar_lea.vmem %s1, %s307
      %p309 = pneg %p87
      %p310 = pneg %p84
      %p311 = scmp.lt.s32.totalorder %s23, 0
      %s312 = scalar_select %p311, %s23, 0
      %s313 = scalar_lea.vmem %s2, %s312
      %p314 = pneg %p113
      %p315 = pneg %p110
      %p316 = scmp.lt.s32.totalorder %s24, 0
      %s317 = scalar_select %p316, %s24, 0
      %s318 = scalar_lea.vmem %s3, %s317
      %p319 = pneg %p139
      %p320 = pneg %p136
      %p321 = scmp.lt.s32.totalorder %s24, 0
      %s322 = scalar_select %p321, %s24, 0
      %s323 = scalar_lea.vmem %s4, %s322
      %p324 = pneg %p165
      %p325 = pneg %p162
      %p326 = scmp.lt.s32.totalorder %s23, 0
      %s327 = scalar_select %p326, %s23, 0
      %s328 = scalar_lea.vmem %s5, %s327
      %p329 = pneg %p191
      %p330 = pneg %p188
      %p331 = pneg %p219
      %p332 = pneg %p216
      %p333 = scmp.lt.s32.totalorder %s22, 1
      %s334 = scalar_select %p333, %s22, 1
      %p335 = scmp.lt.s32.totalorder %s23, 0
      %s336 = scalar_select %p335, %s23, 0
      %s337 = smul.addr %s334, 32
      %s338 = sadd.s32 %s336, %s337
      %s339 = smul.addr %s338, 4
      %s340 = scalar_lea.vmem %s6, %s339
      %p341 = scmp.lt.s32.totalorder %s22, 1
      %s342 = scalar_select %p341, %s22, 1
      %p343 = scmp.lt.s32.totalorder %s24, 0
      %s344 = scalar_select %p343, %s24, 0
      %s345 = smul.addr %s342, 32
      %s346 = sadd.s32 %s344, %s345
      %s347 = smul.addr %s346, 8
      %s348 = scalar_lea.vmem %s0, %s347
      %p349 = scmp.lt.s32.totalorder %s24, 0
      %s350 = scalar_select %p349, %s24, 0
      %p351 = scmp.lt.s32.totalorder %s23, 0
      %s352 = scalar_select %p351, %s23, 0
      %s353 = smul.addr %s350, 144
      %s354 = sadd.s32 %s352, %s353
      %s355 = smul.addr %s354, 4
      %s356 = scalar_lea.vmem %s1, %s355
      %p357 = scmp.lt.s32.totalorder %s23, 0
      %s358 = scalar_select %p357, %s23, 0
      %s359 = scalar_lea.vmem %s2, %s358
      %p360 = scmp.lt.s32.totalorder %s24, 0
      %s361 = scalar_select %p360, %s24, 0
      %s362 = scalar_lea.vmem %s3, %s361
      %p363 = scmp.lt.s32.totalorder %s24, 0
      %s364 = scalar_select %p363, %s24, 0
      %s365 = scalar_lea.vmem %s4, %s364
      %p366 = scmp.lt.s32.totalorder %s23, 0
      %s367 = scalar_select %p366, %s23, 0
      %s368 = scalar_lea.vmem %s5, %s367
      %p369 = scmp.lt.s32.totalorder %s22, 1
      %s370 = scalar_select %p369, %s22, 1
      %p371 = scmp.lt.s32.totalorder %s23, 0
      %s372 = scalar_select %p371, %s23, 0
      %s373 = smul.addr %s370, 32
      %s374 = sadd.s32 %s372, %s373
      %s375 = smul.addr %s374, 4
      %s376 = scalar_lea.vmem %s6, %s375
      %p378 = scmp.eq.s32.totalorder %s24, 0
      // Predicated region
      $region45: #{double_conv_forward.2} parent=43 // pred_check
        %p379 = pneg %p378
      $region46: #{double_conv_forward.2} parent=43 // pred_check_branch
        %381 = sbr.rel (%p379) target = $region48
      $region47: #{double_conv_forward.2} parent=43 // pred_region
        %382 = vst [vmem:[#allocation3] sm:$0xff] 0.0
        %383 = vst [vmem:[#allocation3 + $0x8] sm:$0xff] 0.0
        %384 = vst [vmem:[#allocation3 + $0x10] sm:$0xff] 0.0
        %385 = vst [vmem:[#allocation3 + $0x18] sm:$0xff] 0.0
        %386 = vst [vmem:[#allocation3 + $0x20] sm:$0xff] 0.0
        %387 = vst [vmem:[#allocation3 + $0x28] sm:$0xff] 0.0
        %388 = vst [vmem:[#allocation3 + $0x30] sm:$0xff] 0.0
        %389 = vst [vmem:[#allocation3 + $0x38] sm:$0xff] 0.0
        %390 = vst [vmem:[#allocation3 + $0x40] sm:$0xff] 0.0
        %391 = vst [vmem:[#allocation3 + $0x48] sm:$0xff] 0.0
        %392 = vst [vmem:[#allocation3 + $0x50] sm:$0xff] 0.0
        %393 = vst [vmem:[#allocation3 + $0x58] sm:$0xff] 0.0
        %394 = vst [vmem:[#allocation3 + $0x60] sm:$0xff] 0.0
        %395 = vst [vmem:[#allocation3 + $0x68] sm:$0xff] 0.0
        %396 = vst [vmem:[#allocation3 + $0x70] sm:$0xff] 0.0
        %397 = vst [vmem:[#allocation3 + $0x78] sm:$0xff] 0.0
        %398 = vst [vmem:[#allocation3 + $0x80] sm:$0xff] 0.0
        %399 = vst [vmem:[#allocation3 + $0x88] sm:$0xff] 0.0
        %400 = vst [vmem:[#allocation3 + $0x90] sm:$0xff] 0.0
        %401 = vst [vmem:[#allocation3 + $0x98] sm:$0xff] 0.0
        %402 = vst [vmem:[#allocation3 + $0xa0] sm:$0xff] 0.0
        %403 = vst [vmem:[#allocation3 + $0xa8] sm:$0xff] 0.0
        %404 = vst [vmem:[#allocation3 + $0xb0] sm:$0xff] 0.0
        %405 = vst [vmem:[#allocation3 + $0xb8] sm:$0xff] 0.0
        %406 = vst [vmem:[#allocation3 + $0xc0] sm:$0xff] 0.0
        %407 = vst [vmem:[#allocation3 + $0xc8] sm:$0xff] 0.0
        %408 = vst [vmem:[#allocation3 + $0xd0] sm:$0xff] 0.0
        %409 = vst [vmem:[#allocation3 + $0xd8] sm:$0xff] 0.0
        %410 = vst [vmem:[#allocation3 + $0xe0] sm:$0xff] 0.0
        %411 = vst [vmem:[#allocation3 + $0xe8] sm:$0xff] 0.0
        %412 = vst [vmem:[#allocation3 + $0xf0] sm:$0xff] 0.0
        %413 = vst [vmem:[#allocation3 + $0xf8] sm:$0xff] 0.0
        %414 = vst [vmem:[#allocation2] sm:$0xff] 0
        %415 = vst [vmem:[#allocation2 + $0x8] sm:$0xff] 0
        %416 = vst [vmem:[#allocation2 + $0x10] sm:$0xff] 0
        %s417 = scalar_lea.vmem [#allocation2], 408
        %418 = vst [vmem:[%s417] sm:$0xff] 0
        %419 = vst [vmem:[%s417 + $0x8] sm:$0xff] 0
        %420 = vst [vmem:[%s417 + $0x10] sm:$0xff] 0
      $region48: #{double_conv_forward.2} parent=43 // pred_fallthru
        _
      %v421 = vld [vmem:[%s348] sm:$0xff]
      %v422 = vld [vmem:[%s348 + $0x8] sm:$0xff]
      %v423 = vld [vmem:[%s348 + $0x10] sm:$0xff]
      %v424 = vld [vmem:[%s348 + $0x18] sm:$0xff]
      %v425 = vld [vmem:[%s348 + $0x20] sm:$0xff]
      %v426 = vld [vmem:[%s348 + $0x28] sm:$0xff]
      %v427 = vld [vmem:[%s348 + $0x30] sm:$0xff]
      %v428 = vld [vmem:[%s348 + $0x38] sm:$0xff]
      %v429 = vld [vmem:[%s348 + $0x40] sm:$0xff]
      %v430 = vld [vmem:[%s348 + $0x48] sm:$0xff]
      %v431 = vld [vmem:[%s348 + $0x50] sm:$0xff]
      %v432 = vld [vmem:[%s348 + $0x58] sm:$0xff]
      %v433 = vld [vmem:[%s348 + $0x60] sm:$0xff]
      %v434 = vld [vmem:[%s348 + $0x68] sm:$0xff]
      %v435 = vld [vmem:[%s348 + $0x70] sm:$0xff]
      %v436 = vld [vmem:[%s348 + $0x78] sm:$0xff]
      %v437 = vld [vmem:[%s348 + $0x80] sm:$0xff]
      %v438 = vld [vmem:[%s348 + $0x88] sm:$0xff]
      %v439 = vld [vmem:[%s348 + $0x90] sm:$0xff]
      %v440 = vld [vmem:[%s348 + $0x98] sm:$0xff]
      %v441 = vld [vmem:[%s348 + $0xa0] sm:$0xff]
      %v442 = vld [vmem:[%s348 + $0xa8] sm:$0xff]
      %v443 = vld [vmem:[%s348 + $0xb0] sm:$0xff]
      %v444 = vld [vmem:[%s348 + $0xb8] sm:$0xff]
      %v445 = vld [vmem:[%s348 + $0xc0] sm:$0xff]
      %v446 = vld [vmem:[%s348 + $0xc8] sm:$0xff]
      %v447 = vld [vmem:[%s348 + $0xd0] sm:$0xff]
      %v448 = vld [vmem:[%s348 + $0xd8] sm:$0xff]
      %v449 = vld [vmem:[%s348 + $0xe0] sm:$0xff]
      %v450 = vld [vmem:[%s348 + $0xe8] sm:$0xff]
      %v451 = vld [vmem:[%s348 + $0xf0] sm:$0xff]
      %v452 = vld [vmem:[%s348 + $0xf8] sm:$0xff]
      %v453 = vld [vmem:[%s362] sm:$0x1]
      %v455 = vlaneseq
      %v456 = vshrl.u32 %v455, 7
      %v457 = vsub.s32 0, %v456
      %v458 = vrot.slane %v453, %v457
      %v460 = vmul.f32 %v421, %v458
      %v461 = vmul.f32 %v422, %v458
      %v462 = vmul.f32 %v423, %v458
      %v463 = vmul.f32 %v424, %v458
      %v464 = vmul.f32 %v425, %v458
      %v465 = vmul.f32 %v426, %v458
      %v466 = vmul.f32 %v427, %v458
      %v467 = vmul.f32 %v428, %v458
      %v468 = vmul.f32 %v429, %v458
      %v469 = vmul.f32 %v430, %v458
      %v470 = vmul.f32 %v431, %v458
      %v471 = vmul.f32 %v432, %v458
      %v472 = vmul.f32 %v433, %v458
      %v473 = vmul.f32 %v434, %v458
      %v474 = vmul.f32 %v435, %v458
      %v475 = vmul.f32 %v436, %v458
      %v476 = vmul.f32 %v437, %v458
      %v477 = vmul.f32 %v438, %v458
      %v478 = vmul.f32 %v439, %v458
      %v479 = vmul.f32 %v440, %v458
      %v480 = vmul.f32 %v441, %v458
      %v481 = vmul.f32 %v442, %v458
      %v482 = vmul.f32 %v443, %v458
      %v483 = vmul.f32 %v444, %v458
      %v484 = vmul.f32 %v445, %v458
      %v485 = vmul.f32 %v446, %v458
      %v486 = vmul.f32 %v447, %v458
      %v487 = vmul.f32 %v448, %v458
      %v488 = vmul.f32 %v449, %v458
      %v489 = vmul.f32 %v450, %v458
      %v490 = vmul.f32 %v451, %v458
      %v491 = vmul.f32 %v452, %v458
      %v492 = vld [vmem:[%s365] sm:$0x1]
      %v494 = vlaneseq
      %v495 = vshrl.u32 %v494, 7
      %v496 = vsub.s32 0, %v495
      %v497 = vrot.slane %v492, %v496
      %v499 = vadd.f32 %v460, %v497
      %v500 = vadd.f32 %v461, %v497
      %v501 = vadd.f32 %v462, %v497
      %v502 = vadd.f32 %v463, %v497
      %v503 = vadd.f32 %v464, %v497
      %v504 = vadd.f32 %v465, %v497
      %v505 = vadd.f32 %v466, %v497
      %v506 = vadd.f32 %v467, %v497
      %v507 = vadd.f32 %v468, %v497
      %v508 = vadd.f32 %v469, %v497
      %v509 = vadd.f32 %v470, %v497
      %v510 = vadd.f32 %v471, %v497
      %v511 = vadd.f32 %v472, %v497
      %v512 = vadd.f32 %v473, %v497
      %v513 = vadd.f32 %v474, %v497
      %v514 = vadd.f32 %v475, %v497
      %v515 = vadd.f32 %v476, %v497
      %v516 = vadd.f32 %v477, %v497
      %v517 = vadd.f32 %v478, %v497
      %v518 = vadd.f32 %v479, %v497
      %v519 = vadd.f32 %v480, %v497
      %v520 = vadd.f32 %v481, %v497
      %v521 = vadd.f32 %v482, %v497
      %v522 = vadd.f32 %v483, %v497
      %v523 = vadd.f32 %v484, %v497
      %v524 = vadd.f32 %v485, %v497
      %v525 = vadd.f32 %v486, %v497
      %v526 = vadd.f32 %v487, %v497
      %v527 = vadd.f32 %v488, %v497
      %v528 = vadd.f32 %v489, %v497
      %v529 = vadd.f32 %v490, %v497
      %v530 = vadd.f32 %v491, %v497
      %vm563 = vcmask 1040384
      %v564 = vrot.slane %v499, 7
      %v565 = vrot.slane %v500, 7
      %v566 = vsel %vm563, %v564, %v565
      %v567 = vrot.slane %v501, 7
      %v568 = vrot.slane %v502, 7
      %v569 = vsel %vm563, %v567, %v568
      %v570 = vrot.slane %v503, 7
      %v571 = vrot.slane %v504, 7
      %v572 = vsel %vm563, %v570, %v571
      %v573 = vrot.slane %v505, 7
      %v574 = vrot.slane %v506, 7
      %v575 = vsel %vm563, %v573, %v574
      %v576 = vrot.slane %v507, 7
      %v577 = vrot.slane %v508, 7
      %v578 = vsel %vm563, %v576, %v577
      %v579 = vrot.slane %v509, 7
      %v580 = vrot.slane %v510, 7
      %v581 = vsel %vm563, %v579, %v580
      %v582 = vrot.slane %v511, 7
      %v583 = vrot.slane %v512, 7
      %v584 = vsel %vm563, %v582, %v583
      %v585 = vrot.slane %v513, 7
      %v586 = vrot.slane %v514, 7
      %v587 = vsel %vm563, %v585, %v586
      %v588 = vrot.slane %v515, 7
      %v589 = vrot.slane %v516, 7
      %v590 = vsel %vm563, %v588, %v589
      %v591 = vrot.slane %v517, 7
      %v592 = vrot.slane %v518, 7
      %v593 = vsel %vm563, %v591, %v592
      %v594 = vrot.slane %v519, 7
      %v595 = vrot.slane %v520, 7
      %v596 = vsel %vm563, %v594, %v595
      %v597 = vrot.slane %v521, 7
      %v598 = vrot.slane %v522, 7
      %v599 = vsel %vm563, %v597, %v598
      %v600 = vrot.slane %v523, 7
      %v601 = vrot.slane %v524, 7
      %v602 = vsel %vm563, %v600, %v601
      %v603 = vrot.slane %v525, 7
      %v604 = vrot.slane %v526, 7
      %v605 = vsel %vm563, %v603, %v604
      %v606 = vrot.slane %v527, 7
      %v607 = vrot.slane %v528, 7
      %v608 = vsel %vm563, %v606, %v607
      %v609 = vrot.slane %v529, 7
      %v610 = vrot.slane %v530, 7
      %v611 = vsel %vm563, %v609, %v610
      %v644 = vsel %vm563, 0.0, %v564
      %v645 = vsel %vm563, 0.0, %v567
      %v646 = vsel %vm563, 0.0, %v570
      %v647 = vsel %vm563, 0.0, %v573
      %v648 = vsel %vm563, 0.0, %v576
      %v649 = vsel %vm563, 0.0, %v579
      %v650 = vsel %vm563, 0.0, %v582
      %v651 = vsel %vm563, 0.0, %v585
      %v652 = vsel %vm563, 0.0, %v588
      %v653 = vsel %vm563, 0.0, %v591
      %v654 = vsel %vm563, 0.0, %v594
      %v655 = vsel %vm563, 0.0, %v597
      %v656 = vsel %vm563, 0.0, %v600
      %v657 = vsel %vm563, 0.0, %v603
      %v658 = vsel %vm563, 0.0, %v606
      %v659 = vsel %vm563, 0.0, %v609
      %vm660 = vcmask 1046528
      %v661 = vrot.slane %v499, 1
      %v662 = vrot.slane %v500, 1
      %v663 = vsel %vm660, %v661, %v662
      %v664 = vrot.slane %v501, 1
      %v665 = vrot.slane %v502, 1
      %v666 = vsel %vm660, %v664, %v665
      %v667 = vrot.slane %v503, 1
      %v668 = vrot.slane %v504, 1
      %v669 = vsel %vm660, %v667, %v668
      %v670 = vrot.slane %v505, 1
      %v671 = vrot.slane %v506, 1
      %v672 = vsel %vm660, %v670, %v671
      %v673 = vrot.slane %v507, 1
      %v674 = vrot.slane %v508, 1
      %v675 = vsel %vm660, %v673, %v674
      %v676 = vrot.slane %v509, 1
      %v677 = vrot.slane %v510, 1
      %v678 = vsel %vm660, %v676, %v677
      %v679 = vrot.slane %v511, 1
      %v680 = vrot.slane %v512, 1
      %v681 = vsel %vm660, %v679, %v680
      %v682 = vrot.slane %v513, 1
      %v683 = vrot.slane %v514, 1
      %v684 = vsel %vm660, %v682, %v683
      %v685 = vrot.slane %v515, 1
      %v686 = vrot.slane %v516, 1
      %v687 = vsel %vm660, %v685, %v686
      %v688 = vrot.slane %v517, 1
      %v689 = vrot.slane %v518, 1
      %v690 = vsel %vm660, %v688, %v689
      %v691 = vrot.slane %v519, 1
      %v692 = vrot.slane %v520, 1
      %v693 = vsel %vm660, %v691, %v692
      %v694 = vrot.slane %v521, 1
      %v695 = vrot.slane %v522, 1
      %v696 = vsel %vm660, %v694, %v695
      %v697 = vrot.slane %v523, 1
      %v698 = vrot.slane %v524, 1
      %v699 = vsel %vm660, %v697, %v698
      %v700 = vrot.slane %v525, 1
      %v701 = vrot.slane %v526, 1
      %v702 = vsel %vm660, %v700, %v701
      %v703 = vrot.slane %v527, 1
      %v704 = vrot.slane %v528, 1
      %v705 = vsel %vm660, %v703, %v704
      %v706 = vrot.slane %v529, 1
      %v707 = vrot.slane %v530, 1
      %v708 = vsel %vm660, %v706, %v707
      %v741 = vsel %vm660, %v662, 0.0
      %v742 = vsel %vm660, %v665, 0.0
      %v743 = vsel %vm660, %v668, 0.0
      %v744 = vsel %vm660, %v671, 0.0
      %v745 = vsel %vm660, %v674, 0.0
      %v746 = vsel %vm660, %v677, 0.0
      %v747 = vsel %vm660, %v680, 0.0
      %v748 = vsel %vm660, %v683, 0.0
      %v749 = vsel %vm660, %v686, 0.0
      %v750 = vsel %vm660, %v689, 0.0
      %v751 = vsel %vm660, %v692, 0.0
      %v752 = vsel %vm660, %v695, 0.0
      %v753 = vsel %vm660, %v698, 0.0
      %v754 = vsel %vm660, %v701, 0.0
      %v755 = vsel %vm660, %v704, 0.0
      %v756 = vsel %vm660, %v707, 0.0
      %v757 = vpack.c.bf16 %v566, %v644
      %v758 = vpack.c.bf16 %v569, %v645
      %v759 = vpack.c.bf16 %v572, %v646
      %v760 = vpack.c.bf16 %v575, %v647
      %v761 = vpack.c.bf16 %v578, %v648
      %v762 = vpack.c.bf16 %v581, %v649
      %v763 = vpack.c.bf16 %v584, %v650
      %v764 = vpack.c.bf16 %v587, %v651
      %v765 = vpack.c.bf16 %v590, %v652
      %v766 = vpack.c.bf16 %v593, %v653
      %v767 = vpack.c.bf16 %v596, %v654
      %v768 = vpack.c.bf16 %v599, %v655
      %v769 = vpack.c.bf16 %v602, %v656
      %v770 = vpack.c.bf16 %v605, %v657
      %v771 = vpack.c.bf16 %v608, %v658
      %v772 = vpack.c.bf16 %v611, %v659
      %s773 = scalar_lea.vmem [#allocation2], 24
      %774 = vst [vmem:[%s773] sm:$0xff] %v757
      %775 = vst [vmem:[%s773 + $0x18] sm:$0xff] %v758
      %776 = vst [vmem:[%s773 + $0x30] sm:$0xff] %v759
      %777 = vst [vmem:[%s773 + $0x48] sm:$0xff] %v760
      %778 = vst [vmem:[%s773 + $0x60] sm:$0xff] %v761
      %779 = vst [vmem:[%s773 + $0x78] sm:$0xff] %v762
      %780 = vst [vmem:[%s773 + $0x90] sm:$0xff] %v763
      %781 = vst [vmem:[%s773 + $0xa8] sm:$0xff] %v764
      %782 = vst [vmem:[%s773 + $0xc0] sm:$0xff] %v765
      %783 = vst [vmem:[%s773 + $0xd8] sm:$0xff] %v766
      %784 = vst [vmem:[%s773 + $0xf0] sm:$0xff] %v767
      %785 = vst [vmem:[%s773 + $0x108] sm:$0xff] %v768
      %786 = vst [vmem:[%s773 + $0x120] sm:$0xff] %v769
      %787 = vst [vmem:[%s773 + $0x138] sm:$0xff] %v770
      %788 = vst [vmem:[%s773 + $0x150] sm:$0xff] %v771
      %789 = vst [vmem:[%s773 + $0x168] sm:$0xff] %v772
      %v790 = vpack.c.bf16 %v500, %v499
      %v791 = vpack.c.bf16 %v502, %v501
      %v792 = vpack.c.bf16 %v504, %v503
      %v793 = vpack.c.bf16 %v506, %v505
      %v794 = vpack.c.bf16 %v508, %v507
      %v795 = vpack.c.bf16 %v510, %v509
      %v796 = vpack.c.bf16 %v512, %v511
      %v797 = vpack.c.bf16 %v514, %v513
      %v798 = vpack.c.bf16 %v516, %v515
      %v799 = vpack.c.bf16 %v518, %v517
      %v800 = vpack.c.bf16 %v520, %v519
      %v801 = vpack.c.bf16 %v522, %v521
      %v802 = vpack.c.bf16 %v524, %v523
      %v803 = vpack.c.bf16 %v526, %v525
      %v804 = vpack.c.bf16 %v528, %v527
      %v805 = vpack.c.bf16 %v530, %v529
      %806 = vst [vmem:[%s773 + $0x8] sm:$0xff] %v790
      %807 = vst [vmem:[%s773 + $0x20] sm:$0xff] %v791
      %808 = vst [vmem:[%s773 + $0x38] sm:$0xff] %v792
      %809 = vst [vmem:[%s773 + $0x50] sm:$0xff] %v793
      %810 = vst [vmem:[%s773 + $0x68] sm:$0xff] %v794
      %811 = vst [vmem:[%s773 + $0x80] sm:$0xff] %v795
      %812 = vst [vmem:[%s773 + $0x98] sm:$0xff] %v796
      %813 = vst [vmem:[%s773 + $0xb0] sm:$0xff] %v797
      %814 = vst [vmem:[%s773 + $0xc8] sm:$0xff] %v798
      %815 = vst [vmem:[%s773 + $0xe0] sm:$0xff] %v799
      %816 = vst [vmem:[%s773 + $0xf8] sm:$0xff] %v800
      %817 = vst [vmem:[%s773 + $0x110] sm:$0xff] %v801
      %818 = vst [vmem:[%s773 + $0x128] sm:$0xff] %v802
      %819 = vst [vmem:[%s773 + $0x140] sm:$0xff] %v803
      %820 = vst [vmem:[%s773 + $0x158] sm:$0xff] %v804
      %821 = vst [vmem:[%s773 + $0x170] sm:$0xff] %v805
      %v822 = vpack.c.bf16 %v741, %v663
      %v823 = vpack.c.bf16 %v742, %v666
      %v824 = vpack.c.bf16 %v743, %v669
      %v825 = vpack.c.bf16 %v744, %v672
      %v826 = vpack.c.bf16 %v745, %v675
      %v827 = vpack.c.bf16 %v746, %v678
      %v828 = vpack.c.bf16 %v747, %v681
      %v829 = vpack.c.bf16 %v748, %v684
      %v830 = vpack.c.bf16 %v749, %v687
      %v831 = vpack.c.bf16 %v750, %v690
      %v832 = vpack.c.bf16 %v751, %v693
      %v833 = vpack.c.bf16 %v752, %v696
      %v834 = vpack.c.bf16 %v753, %v699
      %v835 = vpack.c.bf16 %v754, %v702
      %v836 = vpack.c.bf16 %v755, %v705
      %v837 = vpack.c.bf16 %v756, %v708
      %838 = vst [vmem:[%s773 + $0x10] sm:$0xff] %v822
      %839 = vst [vmem:[%s773 + $0x28] sm:$0xff] %v823
      %840 = vst [vmem:[%s773 + $0x40] sm:$0xff] %v824
      %841 = vst [vmem:[%s773 + $0x58] sm:$0xff] %v825
      %842 = vst [vmem:[%s773 + $0x70] sm:$0xff] %v826
      %843 = vst [vmem:[%s773 + $0x88] sm:$0xff] %v827
      %844 = vst [vmem:[%s773 + $0xa0] sm:$0xff] %v828
      %845 = vst [vmem:[%s773 + $0xb8] sm:$0xff] %v829
      %846 = vst [vmem:[%s773 + $0xd0] sm:$0xff] %v830
      %847 = vst [vmem:[%s773 + $0xe8] sm:$0xff] %v831
      %848 = vst [vmem:[%s773 + $0x100] sm:$0xff] %v832
      %849 = vst [vmem:[%s773 + $0x118] sm:$0xff] %v833
      %850 = vst [vmem:[%s773 + $0x130] sm:$0xff] %v834
      %851 = vst [vmem:[%s773 + $0x148] sm:$0xff] %v835
      %852 = vst [vmem:[%s773 + $0x160] sm:$0xff] %v836
      %853 = vst [vmem:[%s773 + $0x178] sm:$0xff] %v837
      %v854 = vld [vmem:[#allocation2] sm:$0xff]
      %v855 = vld [vmem:[#allocation2 + $0x8] sm:$0xff]
      %v856 = vld [vmem:[#allocation2 + $0x10] sm:$0xff]
      %v857 = vld [vmem:[#allocation2 + $0x18] sm:$0xff]
      %v858 = vld [vmem:[#allocation2 + $0x20] sm:$0xff]
      %v859 = vld [vmem:[#allocation2 + $0x28] sm:$0xff]
      %v860 = vld [vmem:[#allocation2 + $0x30] sm:$0xff]
      %v861 = vld [vmem:[#allocation2 + $0x38] sm:$0xff]
      %v862 = vld [vmem:[#allocation2 + $0x40] sm:$0xff]
      %v863 = vld [vmem:[#allocation2 + $0x48] sm:$0xff]
      %v864 = vld [vmem:[#allocation2 + $0x50] sm:$0xff]
      %v865 = vld [vmem:[#allocation2 + $0x58] sm:$0xff]
      %v866 = vld [vmem:[#allocation2 + $0x60] sm:$0xff]
      %v867 = vld [vmem:[#allocation2 + $0x68] sm:$0xff]
      %v868 = vld [vmem:[#allocation2 + $0x70] sm:$0xff]
      %v869 = vld [vmem:[#allocation2 + $0x78] sm:$0xff]
      %v870 = vld [vmem:[#allocation2 + $0x80] sm:$0xff]
      %v871 = vld [vmem:[#allocation2 + $0x88] sm:$0xff]
      %v872 = vld [vmem:[#allocation2 + $0x90] sm:$0xff]
      %v873 = vld [vmem:[#allocation2 + $0x98] sm:$0xff]
      %v874 = vld [vmem:[#allocation2 + $0xa0] sm:$0xff]
      %v875 = vld [vmem:[#allocation2 + $0xa8] sm:$0xff]
      %v876 = vld [vmem:[#allocation2 + $0xb0] sm:$0xff]
      %v877 = vld [vmem:[#allocation2 + $0xb8] sm:$0xff]
      %v878 = vld [vmem:[#allocation2 + $0xc0] sm:$0xff]
      %v879 = vld [vmem:[#allocation2 + $0xc8] sm:$0xff]
      %v880 = vld [vmem:[#allocation2 + $0xd0] sm:$0xff]
      %v881 = vld [vmem:[#allocation2 + $0xd8] sm:$0xff]
      %v882 = vld [vmem:[#allocation2 + $0xe0] sm:$0xff]
      %v883 = vld [vmem:[#allocation2 + $0xe8] sm:$0xff]
      %v884 = vld [vmem:[#allocation2 + $0xf0] sm:$0xff]
      %v885 = vld [vmem:[#allocation2 + $0xf8] sm:$0xff]
      %v886 = vld [vmem:[#allocation2 + $0x100] sm:$0xff]
      %v887 = vld [vmem:[#allocation2 + $0x108] sm:$0xff]
      %v888 = vld [vmem:[#allocation2 + $0x110] sm:$0xff]
      %v889 = vld [vmem:[#allocation2 + $0x118] sm:$0xff]
      %v890 = vld [vmem:[#allocation2 + $0x120] sm:$0xff]
      %v891 = vld [vmem:[#allocation2 + $0x128] sm:$0xff]
      %v892 = vld [vmem:[#allocation2 + $0x130] sm:$0xff]
      %v893 = vld [vmem:[#allocation2 + $0x138] sm:$0xff]
      %v894 = vld [vmem:[#allocation2 + $0x140] sm:$0xff]
      %v895 = vld [vmem:[#allocation2 + $0x148] sm:$0xff]
      %v896 = vld [vmem:[#allocation2 + $0x150] sm:$0xff]
      %v897 = vld [vmem:[#allocation2 + $0x158] sm:$0xff]
      %v898 = vld [vmem:[#allocation2 + $0x160] sm:$0xff]
      %v899 = vld [vmem:[#allocation2 + $0x168] sm:$0xff]
      %v900 = vld [vmem:[#allocation2 + $0x170] sm:$0xff]
      %v901 = vld [vmem:[#allocation2 + $0x178] sm:$0xff]
      %v902 = vld [vmem:[#allocation3] sm:$0xff]
      %v903 = vld [vmem:[#allocation3 + $0x8] sm:$0xff]
      %v904 = vld [vmem:[#allocation3 + $0x10] sm:$0xff]
      %v905 = vld [vmem:[#allocation3 + $0x18] sm:$0xff]
      %v906 = vld [vmem:[#allocation3 + $0x20] sm:$0xff]
      %v907 = vld [vmem:[#allocation3 + $0x28] sm:$0xff]
      %v908 = vld [vmem:[#allocation3 + $0x30] sm:$0xff]
      %v909 = vld [vmem:[#allocation3 + $0x38] sm:$0xff]
      %v910 = vld [vmem:[#allocation3 + $0x40] sm:$0xff]
      %v911 = vld [vmem:[#allocation3 + $0x48] sm:$0xff]
      %v912 = vld [vmem:[#allocation3 + $0x50] sm:$0xff]
      %v913 = vld [vmem:[#allocation3 + $0x58] sm:$0xff]
      %v914 = vld [vmem:[#allocation3 + $0x60] sm:$0xff]
      %v915 = vld [vmem:[#allocation3 + $0x68] sm:$0xff]
      %v916 = vld [vmem:[#allocation3 + $0x70] sm:$0xff]
      %v917 = vld [vmem:[#allocation3 + $0x78] sm:$0xff]
      %v918 = vld [vmem:[#allocation3 + $0x80] sm:$0xff]
      %v919 = vld [vmem:[#allocation3 + $0x88] sm:$0xff]
      %v920 = vld [vmem:[#allocation3 + $0x90] sm:$0xff]
      %v921 = vld [vmem:[#allocation3 + $0x98] sm:$0xff]
      %v922 = vld [vmem:[#allocation3 + $0xa0] sm:$0xff]
      %v923 = vld [vmem:[#allocation3 + $0xa8] sm:$0xff]
      %v924 = vld [vmem:[#allocation3 + $0xb0] sm:$0xff]
      %v925 = vld [vmem:[#allocation3 + $0xb8] sm:$0xff]
      %v926 = vld [vmem:[#allocation3 + $0xc0] sm:$0xff]
      %v927 = vld [vmem:[#allocation3 + $0xc8] sm:$0xff]
      %v928 = vld [vmem:[#allocation3 + $0xd0] sm:$0xff]
      %v929 = vld [vmem:[#allocation3 + $0xd8] sm:$0xff]
      %v930 = vld [vmem:[#allocation3 + $0xe0] sm:$0xff]
      %v931 = vld [vmem:[#allocation3 + $0xe8] sm:$0xff]
      %v932 = vld [vmem:[#allocation3 + $0xf0] sm:$0xff]
      %v933 = vld [vmem:[#allocation3 + $0xf8] sm:$0xff]
      %v934 = vld [vmem:[%s356] sm:$0xf]
      %v935 = vld [vmem:[%s356 + $0x4] sm:$0xf]
      %v936 = vld [vmem:[%s356 + $0x8] sm:$0xf]
      %v937 = vld [vmem:[%s356 + $0xc] sm:$0xf]
      %v938 = vld [vmem:[%s356 + $0x10] sm:$0xf]
      %v939 = vld [vmem:[%s356 + $0x14] sm:$0xf]
      %v940 = vld [vmem:[%s356 + $0x18] sm:$0xf]
      %v941 = vld [vmem:[%s356 + $0x1c] sm:$0xf]
      %v942 = vld [vmem:[%s356 + $0x20] sm:$0xf]
      %v943 = vld [vmem:[%s356 + $0x24] sm:$0xf]
      %v944 = vld [vmem:[%s356 + $0x28] sm:$0xf]
      %v945 = vld [vmem:[%s356 + $0x2c] sm:$0xf]
      %v946 = vld [vmem:[%s356 + $0x30] sm:$0xf]
      %v947 = vld [vmem:[%s356 + $0x34] sm:$0xf]
      %v948 = vld [vmem:[%s356 + $0x38] sm:$0xf]
      %v949 = vld [vmem:[%s356 + $0x3c] sm:$0xf]
      %v950 = vld [vmem:[%s356 + $0x40] sm:$0xf]
      %v951 = vld [vmem:[%s356 + $0x44] sm:$0xf]
      %v952 = vld [vmem:[%s356 + $0x48] sm:$0xf]
      %v953 = vld [vmem:[%s356 + $0x4c] sm:$0xf]
      %v954 = vld [vmem:[%s356 + $0x50] sm:$0xf]
      %v955 = vld [vmem:[%s356 + $0x54] sm:$0xf]
      %v956 = vld [vmem:[%s356 + $0x58] sm:$0xf]
      %v957 = vld [vmem:[%s356 + $0x5c] sm:$0xf]
      %v958 = vld [vmem:[%s356 + $0x60] sm:$0xf]
      %v959 = vld [vmem:[%s356 + $0x64] sm:$0xf]
      %v960 = vld [vmem:[%s356 + $0x68] sm:$0xf]
      %v961 = vld [vmem:[%s356 + $0x6c] sm:$0xf]
      %v962 = vld [vmem:[%s356 + $0x70] sm:$0xf]
      %v963 = vld [vmem:[%s356 + $0x74] sm:$0xf]
      %v964 = vld [vmem:[%s356 + $0x78] sm:$0xf]
      %v965 = vld [vmem:[%s356 + $0x7c] sm:$0xf]
      %v966 = vld [vmem:[%s356 + $0x80] sm:$0xf]
      %v967 = vld [vmem:[%s356 + $0x84] sm:$0xf]
      %v968 = vld [vmem:[%s356 + $0x88] sm:$0xf]
      %v969 = vld [vmem:[%s356 + $0x8c] sm:$0xf]
      %v970 = vld [vmem:[%s356 + $0x90] sm:$0xf]
      %v971 = vld [vmem:[%s356 + $0x94] sm:$0xf]
      %v972 = vld [vmem:[%s356 + $0x98] sm:$0xf]
      %v973 = vld [vmem:[%s356 + $0x9c] sm:$0xf]
      %v974 = vld [vmem:[%s356 + $0xa0] sm:$0xf]
      %v975 = vld [vmem:[%s356 + $0xa4] sm:$0xf]
      %v976 = vld [vmem:[%s356 + $0xa8] sm:$0xf]
      %v977 = vld [vmem:[%s356 + $0xac] sm:$0xf]
      %v978 = vld [vmem:[%s356 + $0xb0] sm:$0xf]
      %v979 = vld [vmem:[%s356 + $0xb4] sm:$0xf]
      %v980 = vld [vmem:[%s356 + $0xb8] sm:$0xf]
      %v981 = vld [vmem:[%s356 + $0xbc] sm:$0xf]
      %v1030 = vunpack.c.l.b16 %v934
      %v1031 = vunpack.c.l.b16 %v935
      %v1032 = vunpack.c.l.b16 %v936
      %v1033 = vunpack.c.l.b16 %v937
      %v1034 = vunpack.c.l.b16 %v938
      %v1035 = vunpack.c.l.b16 %v939
      %v1036 = vunpack.c.l.b16 %v940
      %v1037 = vunpack.c.l.b16 %v941
      %v1038 = vunpack.c.l.b16 %v942
      %v1039 = vunpack.c.l.b16 %v943
      %v1040 = vunpack.c.l.b16 %v944
      %v1041 = vunpack.c.l.b16 %v945
      %v1042 = vunpack.c.l.b16 %v946
      %v1043 = vunpack.c.l.b16 %v947
      %v1044 = vunpack.c.l.b16 %v948
      %v1045 = vunpack.c.l.b16 %v949
      %v1046 = vunpack.c.l.b16 %v950
      %v1047 = vunpack.c.l.b16 %v951
      %v1048 = vunpack.c.l.b16 %v952
      %v1049 = vunpack.c.l.b16 %v953
      %v1050 = vunpack.c.l.b16 %v954
      %v1051 = vunpack.c.l.b16 %v955
      %v1052 = vunpack.c.l.b16 %v956
      %v1053 = vunpack.c.l.b16 %v957
      %v1054 = vunpack.c.l.b16 %v958
      %v1055 = vunpack.c.l.b16 %v959
      %v1056 = vunpack.c.l.b16 %v960
      %v1057 = vunpack.c.l.b16 %v961
      %v1058 = vunpack.c.l.b16 %v962
      %v1059 = vunpack.c.l.b16 %v963
      %v1060 = vunpack.c.l.b16 %v964
      %v1061 = vunpack.c.l.b16 %v965
      %v1062 = vunpack.c.l.b16 %v966
      %v1063 = vunpack.c.l.b16 %v967
      %v1064 = vunpack.c.l.b16 %v968
      %v1065 = vunpack.c.l.b16 %v969
      %v1066 = vunpack.c.l.b16 %v970
      %v1067 = vunpack.c.l.b16 %v971
      %v1068 = vunpack.c.l.b16 %v972
      %v1069 = vunpack.c.l.b16 %v973
      %v1070 = vunpack.c.l.b16 %v974
      %v1071 = vunpack.c.l.b16 %v975
      %v1072 = vunpack.c.l.b16 %v976
      %v1073 = vunpack.c.l.b16 %v977
      %v1074 = vunpack.c.l.b16 %v978
      %v1075 = vunpack.c.l.b16 %v979
      %v1076 = vunpack.c.l.b16 %v980
      %v1077 = vunpack.c.l.b16 %v981
      %v1078 = vpack.c.b16 %v1031, %v1030
      %v1079 = vpack.c.b16 %v1033, %v1032
      %v1080 = vpack.c.b16 %v1035, %v1034
      %v1081 = vpack.c.b16 %v1037, %v1036
      %v1082 = vpack.c.b16 %v1039, %v1038
      %v1083 = vpack.c.b16 %v1041, %v1040
      %v1084 = vpack.c.b16 %v1043, %v1042
      %v1085 = vpack.c.b16 %v1045, %v1044
      %v1086 = vpack.c.b16 %v1047, %v1046
      %v1087 = vpack.c.b16 %v1049, %v1048
      %v1088 = vpack.c.b16 %v1051, %v1050
      %v1089 = vpack.c.b16 %v1053, %v1052
      %v1090 = vpack.c.b16 %v1055, %v1054
      %v1091 = vpack.c.b16 %v1057, %v1056
      %v1092 = vpack.c.b16 %v1059, %v1058
      %v1093 = vpack.c.b16 %v1061, %v1060
      %v1094 = vpack.c.b16 %v1063, %v1062
      %v1095 = vpack.c.b16 %v1065, %v1064
      %v1096 = vpack.c.b16 %v1067, %v1066
      %v1097 = vpack.c.b16 %v1069, %v1068
      %v1098 = vpack.c.b16 %v1071, %v1070
      %v1099 = vpack.c.b16 %v1073, %v1072
      %v1100 = vpack.c.b16 %v1075, %v1074
      %v1101 = vpack.c.b16 %v1077, %v1076
      %1126 = vmatprep.subr.bf16.mxu0 0
      %1127 = vmatpush1.bf16.msra.mxu0 %v1078
      %1128 = vmatprep.subr.bf16.mxu0 0
      %1129 = vmatpush1.bf16.msra.mxu0 %v1079
      %1130 = vmatprep.subr.bf16.mxu0 0
      %1131 = vmatpush1.bf16.msra.mxu0 %v1080
      %1132 = vmatprep.subr.bf16.mxu0 0
      %1133 = vmatpush1.bf16.msra.mxu0 %v1081
      %1134 = vmatprep.subr.bf16.mxu0 0
      %1135 = vmatpush1.bf16.msra.mxu0 %v1082
      %1136 = vmatprep.subr.bf16.mxu0 0
      %1137 = vmatpush1.bf16.msra.mxu0 %v1083
      %1138 = vmatprep.subr.bf16.mxu0 0
      %1139 = vmatpush1.bf16.msra.mxu0 %v1084
      %1140 = vmatprep.subr.bf16.mxu0 0
      %1141 = vmatpush1.bf16.msra.mxu0 %v1085
      %1142 = vmatprep.subr.bf16.mxu0 0
      %1143 = vmatpush1.bf16.msra.mxu0 %v1086
      %1144 = vmatprep.subr.bf16.mxu0 0
      %1145 = vmatpush1.bf16.msra.mxu0 %v1087
      %1146 = vmatprep.subr.bf16.mxu0 0
      %1147 = vmatpush1.bf16.msra.mxu0 %v1088
      %1148 = vmatprep.subr.bf16.mxu0 0
      %1149 = vmatpush1.bf16.msra.mxu0 %v1089
      %1150 = vmatprep.subr.bf16.mxu0 0
      %1151 = vmatpush1.bf16.msra.mxu0 %v1090
      %1152 = vmatprep.subr.bf16.mxu0 0
      %1153 = vmatpush1.bf16.msra.mxu0 %v1091
      %1154 = vmatprep.subr.bf16.mxu0 0
      %1155 = vmatpush1.bf16.msra.mxu0 %v1092
      %1156 = vmatprep.subr.bf16.mxu0 0
      %1157 = vmatpush1.bf16.msra.mxu0 %v1093
      %1158 = vmatprep.mubr.bf16.mxu0 %v855
      %1159 = vmatmul.mubr.bf16.gmra.mrb[0].mxu0 %v854
      %v1160 = vpop.f32.mrb[0].mxu0
      %v1161 = vadd.f32 0.0, %v1160
      %v1162 = vpop.f32.mrb[0].mxu0
      %v1163 = vpop.f32.mrb[0].mxu0
      %v1164 = vadd.f32 0.0, %v1163
      %v1165 = vpop.f32.mrb[0].mxu0
      %1166 = vmatprep.mubr.bf16.mxu0 %v858
      %1167 = vmatmul.mubr.bf16.gmra.mrb[0].mxu0 %v857
      %v1168 = vpop.f32.mrb[0].mxu0
      %v1169 = vadd.f32 0.0, %v1168
      %v1170 = vpop.f32.mrb[0].mxu0
      %v1171 = vpop.f32.mrb[0].mxu0
      %v1172 = vadd.f32 0.0, %v1171
      %v1173 = vpop.f32.mrb[0].mxu0
      %1174 = vmatprep.mubr.bf16.mxu0 %v861
      %1175 = vmatmul.mubr.bf16.gmra.mrb[0].mxu0 %v860
      %v1176 = vpop.f32.mrb[0].mxu0
      %v1177 = vadd.f32 0.0, %v1176
      %v1178 = vpop.f32.mrb[0].mxu0
      %v1179 = vpop.f32.mrb[0].mxu0
      %v1180 = vadd.f32 0.0, %v1179
      %v1181 = vpop.f32.mrb[0].mxu0
      %1182 = vmatprep.mubr.bf16.mxu0 %v864
      %1183 = vmatmul.mubr.bf16.gmra.mrb[0].mxu0 %v863
      %v1184 = vpop.f32.mrb[0].mxu0
      %v1185 = vadd.f32 0.0, %v1184
      %v1186 = vpop.f32.mrb[0].mxu0
      %v1187 = vpop.f32.mrb[0].mxu0
      %v1188 = vadd.f32 0.0, %v1187
      %v1189 = vpop.f32.mrb[0].mxu0
      %1190 = vmatprep.mubr.bf16.mxu0 %v867
      %1191 = vmatmul.mubr.bf16.gmra.mrb[0].mxu0 %v866
      %v1192 = vpop.f32.mrb[0].mxu0
      %v1193 = vadd.f32 0.0, %v1192
      %v1194 = vpop.f32.mrb[0].mxu0
      %v1195 = vpop.f32.mrb[0].mxu0
      %v1196 = vadd.f32 0.0, %v1195
      %v1197 = vpop.f32.mrb[0].mxu0
      %1198 = vmatprep.mubr.bf16.mxu0 %v870
      %1199 = vmatmul.mubr.bf16.gmra.mrb[0].mxu0 %v869
      %v1200 = vpop.f32.mrb[0].mxu0
      %v1201 = vadd.f32 0.0, %v1200
      %v1202 = vpop.f32.mrb[0].mxu0
      %v1203 = vpop.f32.mrb[0].mxu0
      %v1204 = vadd.f32 0.0, %v1203
      %v1205 = vpop.f32.mrb[0].mxu0
      %1206 = vmatprep.mubr.bf16.mxu0 %v873
      %1207 = vmatmul.mubr.bf16.gmra.mrb[0].mxu0 %v872
      %v1208 = vpop.f32.mrb[0].mxu0
      %v1209 = vadd.f32 0.0, %v1208
      %v1210 = vpop.f32.mrb[0].mxu0
      %v1211 = vpop.f32.mrb[0].mxu0
      %v1212 = vadd.f32 0.0, %v1211
      %v1213 = vpop.f32.mrb[0].mxu0
      %1214 = vmatprep.mubr.bf16.mxu0 %v876
      %1215 = vmatmul.mubr.bf16.gmra.mrb[0].mxu0 %v875
      %v1216 = vpop.f32.mrb[0].mxu0
      %v1217 = vadd.f32 0.0, %v1216
      %v1218 = vpop.f32.mrb[0].mxu0
      %v1219 = vpop.f32.mrb[0].mxu0
      %v1220 = vadd.f32 0.0, %v1219
      %v1221 = vpop.f32.mrb[0].mxu0
      %1222 = vmatprep.mubr.bf16.mxu0 %v879
      %1223 = vmatmul.mubr.bf16.gmra.mrb[0].mxu0 %v878
      %v1224 = vpop.f32.mrb[0].mxu0
      %v1225 = vadd.f32 0.0, %v1224
      %v1226 = vpop.f32.mrb[0].mxu0
      %v1227 = vpop.f32.mrb[0].mxu0
      %v1228 = vadd.f32 0.0, %v1227
      %v1229 = vpop.f32.mrb[0].mxu0
      %1230 = vmatprep.mubr.bf16.mxu0 %v882
      %1231 = vmatmul.mubr.bf16.gmra.mrb[0].mxu0 %v881
      %v1232 = vpop.f32.mrb[0].mxu0
      %v1233 = vadd.f32 0.0, %v1232
      %v1234 = vpop.f32.mrb[0].mxu0
      %v1235 = vpop.f32.mrb[0].mxu0
      %v1236 = vadd.f32 0.0, %v1235
      %v1237 = vpop.f32.mrb[0].mxu0
      %1238 = vmatprep.mubr.bf16.mxu0 %v885
      %1239 = vmatmul.mubr.bf16.gmra.mrb[0].mxu0 %v884
      %v1240 = vpop.f32.mrb[0].mxu0
      %v1241 = vadd.f32 0.0, %v1240
      %v1242 = vpop.f32.mrb[0].mxu0
      %v1243 = vpop.f32.mrb[0].mxu0
      %v1244 = vadd.f32 0.0, %v1243
      %v1245 = vpop.f32.mrb[0].mxu0
      %1246 = vmatprep.mubr.bf16.mxu0 %v888
      %1247 = vmatmul.mubr.bf16.gmra.mrb[0].mxu0 %v887
      %v1248 = vpop.f32.mrb[0].mxu0
      %v1249 = vadd.f32 0.0, %v1248
      %v1250 = vpop.f32.mrb[0].mxu0
      %v1251 = vpop.f32.mrb[0].mxu0
      %v1252 = vadd.f32 0.0, %v1251
      %v1253 = vpop.f32.mrb[0].mxu0
      %1254 = vmatprep.mubr.bf16.mxu0 %v891
      %1255 = vmatmul.mubr.bf16.gmra.mrb[0].mxu0 %v890
      %v1256 = vpop.f32.mrb[0].mxu0
      %v1257 = vadd.f32 0.0, %v1256
      %v1258 = vpop.f32.mrb[0].mxu0
      %v1259 = vpop.f32.mrb[0].mxu0
      %v1260 = vadd.f32 0.0, %v1259
      %v1261 = vpop.f32.mrb[0].mxu0
      %1262 = vmatprep.mubr.bf16.mxu0 %v894
      %1263 = vmatmul.mubr.bf16.gmra.mrb[0].mxu0 %v893
      %v1264 = vpop.f32.mrb[0].mxu0
      %v1265 = vadd.f32 0.0, %v1264
      %v1266 = vpop.f32.mrb[0].mxu0
      %v1267 = vpop.f32.mrb[0].mxu0
      %v1268 = vadd.f32 0.0, %v1267
      %v1269 = vpop.f32.mrb[0].mxu0
      %1270 = vmatprep.mubr.bf16.mxu0 %v897
      %1271 = vmatmul.mubr.bf16.gmra.mrb[0].mxu0 %v896
      %v1272 = vpop.f32.mrb[0].mxu0
      %v1273 = vadd.f32 0.0, %v1272
      %v1274 = vpop.f32.mrb[0].mxu0
      %v1275 = vpop.f32.mrb[0].mxu0
      %v1276 = vadd.f32 0.0, %v1275
      %v1277 = vpop.f32.mrb[0].mxu0
      %1278 = vmatprep.mubr.bf16.mxu0 %v900
      %1279 = vmatmul.mubr.bf16.gmra.mrb[0].mxu0 %v899
      %v1280 = vpop.f32.mrb[0].mxu0
      %v1281 = vadd.f32 0.0, %v1280
      %v1282 = vpop.f32.mrb[0].mxu0
      %v1283 = vpop.f32.mrb[0].mxu0
      %v1284 = vadd.f32 0.0, %v1283
      %v1285 = vpop.f32.mrb[0].mxu0
      %1286 = vdwg.mxu0
      %1287 = vmatprep.subr.bf16.mxu0 0
      %1288 = vmatpush1.bf16.msra.mxu0 %v1094
      %1289 = vmatprep.subr.bf16.mxu0 0
      %1290 = vmatpush1.bf16.msra.mxu0 %v1095
      %1291 = vmatprep.subr.bf16.mxu0 0
      %1292 = vmatpush1.bf16.msra.mxu0 %v1096
      %1293 = vmatprep.subr.bf16.mxu0 0
      %1294 = vmatpush1.bf16.msra.mxu0 %v1097
      %1295 = vmatprep.subr.bf16.mxu0 0
      %1296 = vmatpush1.bf16.msra.mxu0 %v1098
      %1297 = vmatprep.subr.bf16.mxu0 0
      %1298 = vmatpush1.bf16.msra.mxu0 %v1099
      %1299 = vmatprep.subr.bf16.mxu0 0
      %1300 = vmatpush1.bf16.msra.mxu0 %v1100
      %1301 = vmatprep.subr.bf16.mxu0 0
      %1302 = vmatpush1.bf16.msra.mxu0 %v1101
      %1303 = vmatprep.subr.bf16.mxu0 0
      %1304 = vmatpush1.bf16.msra.mxu0 0
      %1305 = vmatprep.subr.bf16.mxu0 0
      %1306 = vmatpush1.bf16.msra.mxu0 0
      %1307 = vmatprep.subr.bf16.mxu0 0
      %1308 = vmatpush1.bf16.msra.mxu0 0
      %1309 = vmatprep.subr.bf16.mxu0 0
      %1310 = vmatpush1.bf16.msra.mxu0 0
      %1311 = vmatprep.subr.bf16.mxu0 0
      %1312 = vmatpush1.bf16.msra.mxu0 0
      %1313 = vmatprep.subr.bf16.mxu0 0
      %1314 = vmatpush1.bf16.msra.mxu0 0
      %1315 = vmatprep.subr.bf16.mxu0 0
      %1316 = vmatpush1.bf16.msra.mxu0 0
      %1317 = vmatprep.subr.bf16.mxu0 0
      %1318 = vmatpush1.bf16.msra.mxu0 0
      %1319 = vmatprep.mubr.bf16.mxu0 0
      %1320 = vmatmul.mubr.bf16.gmra.mrb[0].mxu0 %v856
      %v1321 = vpop.f32.mrb[0].mxu0
      %v1322 = vadd.f32 %v1161, %v1321
      %v1323 = vpop.f32.mrb[0].mxu0
      %v1324 = vpop.f32.mrb[0].mxu0
      %v1325 = vadd.f32 %v1164, %v1324
      %v1326 = vpop.f32.mrb[0].mxu0
      %1327 = vmatprep.mubr.bf16.mxu0 0
      %1328 = vmatmul.mubr.bf16.gmra.mrb[0].mxu0 %v859
      %v1329 = vpop.f32.mrb[0].mxu0
      %v1330 = vadd.f32 %v1169, %v1329
      %v1331 = vpop.f32.mrb[0].mxu0
      %v1332 = vpop.f32.mrb[0].mxu0
      %v1333 = vadd.f32 %v1172, %v1332
      %v1334 = vpop.f32.mrb[0].mxu0
      %1335 = vmatprep.mubr.bf16.mxu0 0
      %1336 = vmatmul.mubr.bf16.gmra.mrb[0].mxu0 %v862
      %v1337 = vpop.f32.mrb[0].mxu0
      %v1338 = vadd.f32 %v1177, %v1337
      %v1339 = vpop.f32.mrb[0].mxu0
      %v1340 = vpop.f32.mrb[0].mxu0
      %v1341 = vadd.f32 %v1180, %v1340
      %v1342 = vpop.f32.mrb[0].mxu0
      %1343 = vmatprep.mubr.bf16.mxu0 0
      %1344 = vmatmul.mubr.bf16.gmra.mrb[0].mxu0 %v865
      %v1345 = vpop.f32.mrb[0].mxu0
      %v1346 = vadd.f32 %v1185, %v1345
      %v1347 = vpop.f32.mrb[0].mxu0
      %v1348 = vpop.f32.mrb[0].mxu0
      %v1349 = vadd.f32 %v1188, %v1348
      %v1350 = vpop.f32.mrb[0].mxu0
      %1351 = vmatprep.mubr.bf16.mxu0 0
      %1352 = vmatmul.mubr.bf16.gmra.mrb[0].mxu0 %v868
      %v1353 = vpop.f32.mrb[0].mxu0
      %v1354 = vadd.f32 %v1193, %v1353
      %v1355 = vpop.f32.mrb[0].mxu0
      %v1356 = vpop.f32.mrb[0].mxu0
      %v1357 = vadd.f32 %v1196, %v1356
      %v1358 = vpop.f32.mrb[0].mxu0
      %1359 = vmatprep.mubr.bf16.mxu0 0
      %1360 = vmatmul.mubr.bf16.gmra.mrb[0].mxu0 %v871
      %v1361 = vpop.f32.mrb[0].mxu0
      %v1362 = vadd.f32 %v1201, %v1361
      %v1363 = vpop.f32.mrb[0].mxu0
      %v1364 = vpop.f32.mrb[0].mxu0
      %v1365 = vadd.f32 %v1204, %v1364
      %v1366 = vpop.f32.mrb[0].mxu0
      %1367 = vmatprep.mubr.bf16.mxu0 0
      %1368 = vmatmul.mubr.bf16.gmra.mrb[0].mxu0 %v874
      %v1369 = vpop.f32.mrb[0].mxu0
      %v1370 = vadd.f32 %v1209, %v1369
      %v1371 = vpop.f32.mrb[0].mxu0
      %v1372 = vpop.f32.mrb[0].mxu0
      %v1373 = vadd.f32 %v1212, %v1372
      %v1374 = vpop.f32.mrb[0].mxu0
      %1375 = vmatprep.mubr.bf16.mxu0 0
      %1376 = vmatmul.mubr.bf16.gmra.mrb[0].mxu0 %v877
      %v1377 = vpop.f32.mrb[0].mxu0
      %v1378 = vadd.f32 %v1217, %v1377
      %v1379 = vpop.f32.mrb[0].mxu0
      %v1380 = vpop.f32.mrb[0].mxu0
      %v1381 = vadd.f32 %v1220, %v1380
      %v1382 = vpop.f32.mrb[0].mxu0
      %1383 = vmatprep.mubr.bf16.mxu0 0
      %1384 = vmatmul.mubr.bf16.gmra.mrb[0].mxu0 %v880
      %v1385 = vpop.f32.mrb[0].mxu0
      %v1386 = vadd.f32 %v1225, %v1385
      %v1387 = vpop.f32.mrb[0].mxu0
      %v1388 = vpop.f32.mrb[0].mxu0
      %v1389 = vadd.f32 %v1228, %v1388
      %v1390 = vpop.f32.mrb[0].mxu0
      %1391 = vmatprep.mubr.bf16.mxu0 0
      %1392 = vmatmul.mubr.bf16.gmra.mrb[0].mxu0 %v883
      %v1393 = vpop.f32.mrb[0].mxu0
      %v1394 = vadd.f32 %v1233, %v1393
      %v1395 = vpop.f32.mrb[0].mxu0
      %v1396 = vpop.f32.mrb[0].mxu0
      %v1397 = vadd.f32 %v1236, %v1396
      %v1398 = vpop.f32.mrb[0].mxu0
      %1399 = vmatprep.mubr.bf16.mxu0 0
      %1400 = vmatmul.mubr.bf16.gmra.mrb[0].mxu0 %v886
      %v1401 = vpop.f32.mrb[0].mxu0
      %v1402 = vadd.f32 %v1241, %v1401
      %v1403 = vpop.f32.mrb[0].mxu0
      %v1404 = vpop.f32.mrb[0].mxu0
      %v1405 = vadd.f32 %v1244, %v1404
      %v1406 = vpop.f32.mrb[0].mxu0
      %1407 = vmatprep.mubr.bf16.mxu0 0
      %1408 = vmatmul.mubr.bf16.gmra.mrb[0].mxu0 %v889
      %v1409 = vpop.f32.mrb[0].mxu0
      %v1410 = vadd.f32 %v1249, %v1409
      %v1411 = vpop.f32.mrb[0].mxu0
      %v1412 = vpop.f32.mrb[0].mxu0
      %v1413 = vadd.f32 %v1252, %v1412
      %v1414 = vpop.f32.mrb[0].mxu0
      %1415 = vmatprep.mubr.bf16.mxu0 0
      %1416 = vmatmul.mubr.bf16.gmra.mrb[0].mxu0 %v892
      %v1417 = vpop.f32.mrb[0].mxu0
      %v1418 = vadd.f32 %v1257, %v1417
      %v1419 = vpop.f32.mrb[0].mxu0
      %v1420 = vpop.f32.mrb[0].mxu0
      %v1421 = vadd.f32 %v1260, %v1420
      %v1422 = vpop.f32.mrb[0].mxu0
      %1423 = vmatprep.mubr.bf16.mxu0 0
      %1424 = vmatmul.mubr.bf16.gmra.mrb[0].mxu0 %v895
      %v1425 = vpop.f32.mrb[0].mxu0
      %v1426 = vadd.f32 %v1265, %v1425
      %v1427 = vpop.f32.mrb[0].mxu0
      %v1428 = vpop.f32.mrb[0].mxu0
      %v1429 = vadd.f32 %v1268, %v1428
      %v1430 = vpop.f32.mrb[0].mxu0
      %1431 = vmatprep.mubr.bf16.mxu0 0
      %1432 = vmatmul.mubr.bf16.gmra.mrb[0].mxu0 %v898
      %v1433 = vpop.f32.mrb[0].mxu0
      %v1434 = vadd.f32 %v1273, %v1433
      %v1435 = vpop.f32.mrb[0].mxu0
      %v1436 = vpop.f32.mrb[0].mxu0
      %v1437 = vadd.f32 %v1276, %v1436
      %v1438 = vpop.f32.mrb[0].mxu0
      %1439 = vmatprep.mubr.bf16.mxu0 0
      %1440 = vmatmul.mubr.bf16.gmra.mrb[0].mxu0 %v901
      %v1441 = vpop.f32.mrb[0].mxu0
      %v1442 = vadd.f32 %v1281, %v1441
      %v1443 = vpop.f32.mrb[0].mxu0
      %v1444 = vpop.f32.mrb[0].mxu0
      %v1445 = vadd.f32 %v1284, %v1444
      %v1446 = vpop.f32.mrb[0].mxu0
      %1447 = vdwg.mxu0
      %v1448 = vadd.f32 %v902, %v1322
      %v1449 = vadd.f32 %v903, %v1325
      %v1450 = vadd.f32 %v904, %v1330
      %v1451 = vadd.f32 %v905, %v1333
      %v1452 = vadd.f32 %v906, %v1338
      %v1453 = vadd.f32 %v907, %v1341
      %v1454 = vadd.f32 %v908, %v1346
      %v1455 = vadd.f32 %v909, %v1349
      %v1456 = vadd.f32 %v910, %v1354
      %v1457 = vadd.f32 %v911, %v1357
      %v1458 = vadd.f32 %v912, %v1362
      %v1459 = vadd.f32 %v913, %v1365
      %v1460 = vadd.f32 %v914, %v1370
      %v1461 = vadd.f32 %v915, %v1373
      %v1462 = vadd.f32 %v916, %v1378
      %v1463 = vadd.f32 %v917, %v1381
      %v1464 = vadd.f32 %v918, %v1386
      %v1465 = vadd.f32 %v919, %v1389
      %v1466 = vadd.f32 %v920, %v1394
      %v1467 = vadd.f32 %v921, %v1397
      %v1468 = vadd.f32 %v922, %v1402
      %v1469 = vadd.f32 %v923, %v1405
      %v1470 = vadd.f32 %v924, %v1410
      %v1471 = vadd.f32 %v925, %v1413
      %v1472 = vadd.f32 %v926, %v1418
      %v1473 = vadd.f32 %v927, %v1421
      %v1474 = vadd.f32 %v928, %v1426
      %v1475 = vadd.f32 %v929, %v1429
      %v1476 = vadd.f32 %v930, %v1434
      %v1477 = vadd.f32 %v931, %v1437
      %v1478 = vadd.f32 %v932, %v1442
      %v1479 = vadd.f32 %v933, %v1445
      %1480 = vst [vmem:[#allocation3] sm:$0xff] %v1448
      %1481 = vst [vmem:[#allocation3 + $0x8] sm:$0xff] %v1449
      %1482 = vst [vmem:[#allocation3 + $0x10] sm:$0xff] %v1450
      %1483 = vst [vmem:[#allocation3 + $0x18] sm:$0xff] %v1451
      %1484 = vst [vmem:[#allocation3 + $0x20] sm:$0xff] %v1452
      %1485 = vst [vmem:[#allocation3 + $0x28] sm:$0xff] %v1453
      %1486 = vst [vmem:[#allocation3 + $0x30] sm:$0xff] %v1454
      %1487 = vst [vmem:[#allocation3 + $0x38] sm:$0xff] %v1455
      %1488 = vst [vmem:[#allocation3 + $0x40] sm:$0xff] %v1456
      %1489 = vst [vmem:[#allocation3 + $0x48] sm:$0xff] %v1457
      %1490 = vst [vmem:[#allocation3 + $0x50] sm:$0xff] %v1458
      %1491 = vst [vmem:[#allocation3 + $0x58] sm:$0xff] %v1459
      %1492 = vst [vmem:[#allocation3 + $0x60] sm:$0xff] %v1460
      %1493 = vst [vmem:[#allocation3 + $0x68] sm:$0xff] %v1461
      %1494 = vst [vmem:[#allocation3 + $0x70] sm:$0xff] %v1462
      %1495 = vst [vmem:[#allocation3 + $0x78] sm:$0xff] %v1463
      %1496 = vst [vmem:[#allocation3 + $0x80] sm:$0xff] %v1464
      %1497 = vst [vmem:[#allocation3 + $0x88] sm:$0xff] %v1465
      %1498 = vst [vmem:[#allocation3 + $0x90] sm:$0xff] %v1466
      %1499 = vst [vmem:[#allocation3 + $0x98] sm:$0xff] %v1467
      %1500 = vst [vmem:[#allocation3 + $0xa0] sm:$0xff] %v1468
      %1501 = vst [vmem:[#allocation3 + $0xa8] sm:$0xff] %v1469
      %1502 = vst [vmem:[#allocation3 + $0xb0] sm:$0xff] %v1470
      %1503 = vst [vmem:[#allocation3 + $0xb8] sm:$0xff] %v1471
      %1504 = vst [vmem:[#allocation3 + $0xc0] sm:$0xff] %v1472
      %1505 = vst [vmem:[#allocation3 + $0xc8] sm:$0xff] %v1473
      %1506 = vst [vmem:[#allocation3 + $0xd0] sm:$0xff] %v1474
      %1507 = vst [vmem:[#allocation3 + $0xd8] sm:$0xff] %v1475
      %1508 = vst [vmem:[#allocation3 + $0xe0] sm:$0xff] %v1476
      %1509 = vst [vmem:[#allocation3 + $0xe8] sm:$0xff] %v1477
      %1510 = vst [vmem:[#allocation3 + $0xf0] sm:$0xff] %v1478
      %1511 = vst [vmem:[#allocation3 + $0xf8] sm:$0xff] %v1479
      %v1512 = vld [vmem:[%s773] sm:$0xff]
      %v1513 = vld [vmem:[%s773 + $0x8] sm:$0xff]
      %v1514 = vld [vmem:[%s773 + $0x10] sm:$0xff]
      %v1515 = vld [vmem:[%s773 + $0x18] sm:$0xff]
      %v1516 = vld [vmem:[%s773 + $0x20] sm:$0xff]
      %v1517 = vld [vmem:[%s773 + $0x28] sm:$0xff]
      %v1518 = vld [vmem:[%s773 + $0x30] sm:$0xff]
      %v1519 = vld [vmem:[%s773 + $0x38] sm:$0xff]
      %v1520 = vld [vmem:[%s773 + $0x40] sm:$0xff]
      %v1521 = vld [vmem:[%s773 + $0x48] sm:$0xff]
      %v1522 = vld [vmem:[%s773 + $0x50] sm:$0xff]
      %v1523 = vld [vmem:[%s773 + $0x58] sm:$0xff]
      %v1524 = vld [vmem:[%s773 + $0x60] sm:$0xff]
      %v1525 = vld [vmem:[%s773 + $0x68] sm:$0xff]
      %v1526 = vld [vmem:[%s773 + $0x70] sm:$0xff]
      %v1527 = vld [vmem:[%s773 + $0x78] sm:$0xff]
      %v1528 = vld [vmem:[%s773 + $0x80] sm:$0xff]
      %v1529 = vld [vmem:[%s773 + $0x88] sm:$0xff]
      %v1530 = vld [vmem:[%s773 + $0x90] sm:$0xff]
      %v1531 = vld [vmem:[%s773 + $0x98] sm:$0xff]
      %v1532 = vld [vmem:[%s773 + $0xa0] sm:$0xff]
      %v1533 = vld [vmem:[%s773 + $0xa8] sm:$0xff]
      %v1534 = vld [vmem:[%s773 + $0xb0] sm:$0xff]
      %v1535 = vld [vmem:[%s773 + $0xb8] sm:$0xff]
      %v1536 = vld [vmem:[%s773 + $0xc0] sm:$0xff]
      %v1537 = vld [vmem:[%s773 + $0xc8] sm:$0xff]
      %v1538 = vld [vmem:[%s773 + $0xd0] sm:$0xff]
      %v1539 = vld [vmem:[%s773 + $0xd8] sm:$0xff]
      %v1540 = vld [vmem:[%s773 + $0xe0] sm:$0xff]
      %v1541 = vld [vmem:[%s773 + $0xe8] sm:$0xff]
      %v1542 = vld [vmem:[%s773 + $0xf0] sm:$0xff]
      %v1543 = vld [vmem:[%s773 + $0xf8] sm:$0xff]
      %v1544 = vld [vmem:[%s773 + $0x100] sm:$0xff]
      %v1545 = vld [vmem:[%s773 + $0x108] sm:$0xff]
      %v1546 = vld [vmem:[%s773 + $0x110] sm:$0xff]
      %v1547 = vld [vmem:[%s773 + $0x118] sm:$0xff]
      %v1548 = vld [vmem:[%s773 + $0x120] sm:$0xff]
      %v1549 = vld [vmem:[%s773 + $0x128] sm:$0xff]
      %v1550 = vld [vmem:[%s773 + $0x130] sm:$0xff]
      %v1551 = vld [vmem:[%s773 + $0x138] sm:$0xff]
      %v1552 = vld [vmem:[%s773 + $0x140] sm:$0xff]
      %v1553 = vld [vmem:[%s773 + $0x148] sm:$0xff]
      %v1554 = vld [vmem:[%s773 + $0x150] sm:$0xff]
      %v1555 = vld [vmem:[%s773 + $0x158] sm:$0xff]
      %v1556 = vld [vmem:[%s773 + $0x160] sm:$0xff]
      %v1557 = vld [vmem:[%s773 + $0x168] sm:$0xff]
      %v1558 = vld [vmem:[%s773 + $0x170] sm:$0xff]
      %v1559 = vld [vmem:[%s773 + $0x178] sm:$0xff]
      %v1560 = vld [vmem:[#allocation3] sm:$0xff]
      %v1561 = vld [vmem:[#allocation3 + $0x8] sm:$0xff]
      %v1562 = vld [vmem:[#allocation3 + $0x10] sm:$0xff]
      %v1563 = vld [vmem:[#allocation3 + $0x18] sm:$0xff]
      %v1564 = vld [vmem:[#allocation3 + $0x20] sm:$0xff]
      %v1565 = vld [vmem:[#allocation3 + $0x28] sm:$0xff]
      %v1566 = vld [vmem:[#allocation3 + $0x30] sm:$0xff]
      %v1567 = vld [vmem:[#allocation3 + $0x38] sm:$0xff]
      %v1568 = vld [vmem:[#allocation3 + $0x40] sm:$0xff]
      %v1569 = vld [vmem:[#allocation3 + $0x48] sm:$0xff]
      %v1570 = vld [vmem:[#allocation3 + $0x50] sm:$0xff]
      %v1571 = vld [vmem:[#allocation3 + $0x58] sm:$0xff]
      %v1572 = vld [vmem:[#allocation3 + $0x60] sm:$0xff]
      %v1573 = vld [vmem:[#allocation3 + $0x68] sm:$0xff]
      %v1574 = vld [vmem:[#allocation3 + $0x70] sm:$0xff]
      %v1575 = vld [vmem:[#allocation3 + $0x78] sm:$0xff]
      %v1576 = vld [vmem:[#allocation3 + $0x80] sm:$0xff]
      %v1577 = vld [vmem:[#allocation3 + $0x88] sm:$0xff]
      %v1578 = vld [vmem:[#allocation3 + $0x90] sm:$0xff]
      %v1579 = vld [vmem:[#allocation3 + $0x98] sm:$0xff]
      %v1580 = vld [vmem:[#allocation3 + $0xa0] sm:$0xff]
      %v1581 = vld [vmem:[#allocation3 + $0xa8] sm:$0xff]
      %v1582 = vld [vmem:[#allocation3 + $0xb0] sm:$0xff]
      %v1583 = vld [vmem:[#allocation3 + $0xb8] sm:$0xff]
      %v1584 = vld [vmem:[#allocation3 + $0xc0] sm:$0xff]
      %v1585 = vld [vmem:[#allocation3 + $0xc8] sm:$0xff]
      %v1586 = vld [vmem:[#allocation3 + $0xd0] sm:$0xff]
      %v1587 = vld [vmem:[#allocation3 + $0xd8] sm:$0xff]
      %v1588 = vld [vmem:[#allocation3 + $0xe0] sm:$0xff]
      %v1589 = vld [vmem:[#allocation3 + $0xe8] sm:$0xff]
      %v1590 = vld [vmem:[#allocation3 + $0xf0] sm:$0xff]
      %v1591 = vld [vmem:[#allocation3 + $0xf8] sm:$0xff]
      %s1592 = scalar_lea.vmem %s356, 192
      %v1593 = vld [vmem:[%s1592] sm:$0xf]
      %v1594 = vld [vmem:[%s1592 + $0x4] sm:$0xf]
      %v1595 = vld [vmem:[%s1592 + $0x8] sm:$0xf]
      %v1596 = vld [vmem:[%s1592 + $0xc] sm:$0xf]
      %v1597 = vld [vmem:[%s1592 + $0x10] sm:$0xf]
      %v1598 = vld [vmem:[%s1592 + $0x14] sm:$0xf]
      %v1599 = vld [vmem:[%s1592 + $0x18] sm:$0xf]
      %v1600 = vld [vmem:[%s1592 + $0x1c] sm:$0xf]
      %v1601 = vld [vmem:[%s1592 + $0x20] sm:$0xf]
      %v1602 = vld [vmem:[%s1592 + $0x24] sm:$0xf]
      %v1603 = vld [vmem:[%s1592 + $0x28] sm:$0xf]
      %v1604 = vld [vmem:[%s1592 + $0x2c] sm:$0xf]
      %v1605 = vld [vmem:[%s1592 + $0x30] sm:$0xf]
      %v1606 = vld [vmem:[%s1592 + $0x34] sm:$0xf]
      %v1607 = vld [vmem:[%s1592 + $0x38] sm:$0xf]
      %v1608 = vld [vmem:[%s1592 + $0x3c] sm:$0xf]
      %v1609 = vld [vmem:[%s1592 + $0x40] sm:$0xf]
      %v1610 = vld [vmem:[%s1592 + $0x44] sm:$0xf]
      %v1611 = vld [vmem:[%s1592 + $0x48] sm:$0xf]
      %v1612 = vld [vmem:[%s1592 + $0x4c] sm:$0xf]
      %v1613 = vld [vmem:[%s1592 + $0x50] sm:$0xf]
      %v1614 = vld [vmem:[%s1592 + $0x54] sm:$0xf]
      %v1615 = vld [vmem:[%s1592 + $0x58] sm:$0xf]
      %v1616 = vld [vmem:[%s1592 + $0x5c] sm:$0xf]
      %v1617 = vld [vmem:[%s1592 + $0x60] sm:$0xf]
      %v1618 = vld [vmem:[%s1592 + $0x64] sm:$0xf]
      %v1619 = vld [vmem:[%s1592 + $0x68] sm:$0xf]
      %v1620 = vld [vmem:[%s1592 + $0x6c] sm:$0xf]
      %v1621 = vld [vmem:[%s1592 + $0x70] sm:$0xf]
      %v1622 = vld [vmem:[%s1592 + $0x74] sm:$0xf]
      %v1623 = vld [vmem:[%s1592 + $0x78] sm:$0xf]
      %v1624 = vld [vmem:[%s1592 + $0x7c] sm:$0xf]
      %v1625 = vld [vmem:[%s1592 + $0x80] sm:$0xf]
      %v1626 = vld [vmem:[%s1592 + $0x84] sm:$0xf]
      %v1627 = vld [vmem:[%s1592 + $0x88] sm:$0xf]
      %v1628 = vld [vmem:[%s1592 + $0x8c] sm:$0xf]
      %v1629 = vld [vmem:[%s1592 + $0x90] sm:$0xf]
      %v1630 = vld [vmem:[%s1592 + $0x94] sm:$0xf]
      %v1631 = vld [vmem:[%s1592 + $0x98] sm:$0xf]
      %v1632 = vld [vmem:[%s1592 + $0x9c] sm:$0xf]
      %v1633 = vld [vmem:[%s1592 + $0xa0] sm:$0xf]
      %v1634 = vld [vmem:[%s1592 + $0xa4] sm:$0xf]
      %v1635 = vld [vmem:[%s1592 + $0xa8] sm:$0xf]
      %v1636 = vld [vmem:[%s1592 + $0xac] sm:$0xf]
      %v1637 = vld [vmem:[%s1592 + $0xb0] sm:$0xf]
      %v1638 = vld [vmem:[%s1592 + $0xb4] sm:$0xf]
      %v1639 = vld [vmem:[%s1592 + $0xb8] sm:$0xf]
      %v1640 = vld [vmem:[%s1592 + $0xbc] sm:$0xf]
      %v1689 = vunpack.c.l.b16 %v1593
      %v1690 = vunpack.c.l.b16 %v1594
      %v1691 = vunpack.c.l.b16 %v1595
      %v1692 = vunpack.c.l.b16 %v1596
      %v1693 = vunpack.c.l.b16 %v1597
      %v1694 = vunpack.c.l.b16 %v1598
      %v1695 = vunpack.c.l.b16 %v1599
      %v1696 = vunpack.c.l.b16 %v1600
      %v1697 = vunpack.c.l.b16 %v1601
      %v1698 = vunpack.c.l.b16 %v1602
      %v1699 = vunpack.c.l.b16 %v1603
      %v1700 = vunpack.c.l.b16 %v1604
      %v1701 = vunpack.c.l.b16 %v1605
      %v1702 = vunpack.c.l.b16 %v1606
      %v1703 = vunpack.c.l.b16 %v1607
      %v1704 = vunpack.c.l.b16 %v1608
      %v1705 = vunpack.c.l.b16 %v1609
      %v1706 = vunpack.c.l.b16 %v1610
      %v1707 = vunpack.c.l.b16 %v1611
      %v1708 = vunpack.c.l.b16 %v1612
      %v1709 = vunpack.c.l.b16 %v1613
      %v1710 = vunpack.c.l.b16 %v1614
      %v1711 = vunpack.c.l.b16 %v1615
      %v1712 = vunpack.c.l.b16 %v1616
      %v1713 = vunpack.c.l.b16 %v1617
      %v1714 = vunpack.c.l.b16 %v1618
      %v1715 = vunpack.c.l.b16 %v1619
      %v1716 = vunpack.c.l.b16 %v1620
      %v1717 = vunpack.c.l.b16 %v1621
      %v1718 = vunpack.c.l.b16 %v1622
      %v1719 = vunpack.c.l.b16 %v1623
      %v1720 = vunpack.c.l.b16 %v1624
      %v1721 = vunpack.c.l.b16 %v1625
      %v1722 = vunpack.c.l.b16 %v1626
      %v1723 = vunpack.c.l.b16 %v1627
      %v1724 = vunpack.c.l.b16 %v1628
      %v1725 = vunpack.c.l.b16 %v1629
      %v1726 = vunpack.c.l.b16 %v1630
      %v1727 = vunpack.c.l.b16 %v1631
      %v1728 = vunpack.c.l.b16 %v1632
      %v1729 = vunpack.c.l.b16 %v1633
      %v1730 = vunpack.c.l.b16 %v1634
      %v1731 = vunpack.c.l.b16 %v1635
      %v1732 = vunpack.c.l.b16 %v1636
      %v1733 = vunpack.c.l.b16 %v1637
      %v1734 = vunpack.c.l.b16 %v1638
      %v1735 = vunpack.c.l.b16 %v1639
      %v1736 = vunpack.c.l.b16 %v1640
      %v1737 = vpack.c.b16 %v1690, %v1689
      %v1738 = vpack.c.b16 %v1692, %v1691
      %v1739 = vpack.c.b16 %v1694, %v1693
      %v1740 = vpack.c.b16 %v1696, %v1695
      %v1741 = vpack.c.b16 %v1698, %v1697
      %v1742 = vpack.c.b16 %v1700, %v1699
      %v1743 = vpack.c.b16 %v1702, %v1701
      %v1744 = vpack.c.b16 %v1704, %v1703
      %v1745 = vpack.c.b16 %v1706, %v1705
      %v1746 = vpack.c.b16 %v1708, %v1707
      %v1747 = vpack.c.b16 %v1710, %v1709
      %v1748 = vpack.c.b16 %v1712, %v1711
      %v1749 = vpack.c.b16 %v1714, %v1713
      %v1750 = vpack.c.b16 %v1716, %v1715
      %v1751 = vpack.c.b16 %v1718, %v1717
      %v1752 = vpack.c.b16 %v1720, %v1719
      %v1753 = vpack.c.b16 %v1722, %v1721
      %v1754 = vpack.c.b16 %v1724, %v1723
      %v1755 = vpack.c.b16 %v1726, %v1725
      %v1756 = vpack.c.b16 %v1728, %v1727
      %v1757 = vpack.c.b16 %v1730, %v1729
      %v1758 = vpack.c.b16 %v1732, %v1731
      %v1759 = vpack.c.b16 %v1734, %v1733
      %v1760 = vpack.c.b16 %v1736, %v1735
      %1785 = vmatprep.subr.bf16.mxu0 0
      %1786 = vmatpush1.bf16.msra.mxu0 %v1737
      %1787 = vmatprep.subr.bf16.mxu0 0
      %1788 = vmatpush1.bf16.msra.mxu0 %v1738
      %1789 = vmatprep.subr.bf16.mxu0 0
      %1790 = vmatpush1.bf16.msra.mxu0 %v1739
      %1791 = vmatprep.subr.bf16.mxu0 0
      %1792 = vmatpush1.bf16.msra.mxu0 %v1740
      %1793 = vmatprep.subr.bf16.mxu0 0
      %1794 = vmatpush1.bf16.msra.mxu0 %v1741
      %1795 = vmatprep.subr.bf16.mxu0 0
      %1796 = vmatpush1.bf16.msra.mxu0 %v1742
      %1797 = vmatprep.subr.bf16.mxu0 0
      %1798 = vmatpush1.bf16.msra.mxu0 %v1743
      %1799 = vmatprep.subr.bf16.mxu0 0
      %1800 = vmatpush1.bf16.msra.mxu0 %v1744
      %1801 = vmatprep.subr.bf16.mxu0 0
      %1802 = vmatpush1.bf16.msra.mxu0 %v1745
      %1803 = vmatprep.subr.bf16.mxu0 0
      %1804 = vmatpush1.bf16.msra.mxu0 %v1746
      %1805 = vmatprep.subr.bf16.mxu0 0
      %1806 = vmatpush1.bf16.msra.mxu0 %v1747
      %1807 = vmatprep.subr.bf16.mxu0 0
      %1808 = vmatpush1.bf16.msra.mxu0 %v1748
      %1809 = vmatprep.subr.bf16.mxu0 0
      %1810 = vmatpush1.bf16.msra.mxu0 %v1749
      %1811 = vmatprep.subr.bf16.mxu0 0
      %1812 = vmatpush1.bf16.msra.mxu0 %v1750
      %1813 = vmatprep.subr.bf16.mxu0 0
      %1814 = vmatpush1.bf16.msra.mxu0 %v1751
      %1815 = vmatprep.subr.bf16.mxu0 0
      %1816 = vmatpush1.bf16.msra.mxu0 %v1752
      %1817 = vmatprep.mubr.bf16.mxu0 %v1513
      %1818 = vmatmul.mubr.bf16.gmra.mrb[0].mxu0 %v1512
      %v1819 = vpop.f32.mrb[0].mxu0
      %v1820 = vadd.f32 0.0, %v1819
      %v1821 = vpop.f32.mrb[0].mxu0
      %v1822 = vpop.f32.mrb[0].mxu0
      %v1823 = vadd.f32 0.0, %v1822
      %v1824 = vpop.f32.mrb[0].mxu0
      %1825 = vmatprep.mubr.bf16.mxu0 %v1516
      %1826 = vmatmul.mubr.bf16.gmra.mrb[0].mxu0 %v1515
      %v1827 = vpop.f32.mrb[0].mxu0
      %v1828 = vadd.f32 0.0, %v1827
      %v1829 = vpop.f32.mrb[0].mxu0
      %v1830 = vpop.f32.mrb[0].mxu0
      %v1831 = vadd.f32 0.0, %v1830
      %v1832 = vpop.f32.mrb[0].mxu0
      %1833 = vmatprep.mubr.bf16.mxu0 %v1519
      %1834 = vmatmul.mubr.bf16.gmra.mrb[0].mxu0 %v1518
      %v1835 = vpop.f32.mrb[0].mxu0
      %v1836 = vadd.f32 0.0, %v1835
      %v1837 = vpop.f32.mrb[0].mxu0
      %v1838 = vpop.f32.mrb[0].mxu0
      %v1839 = vadd.f32 0.0, %v1838
      %v1840 = vpop.f32.mrb[0].mxu0
      %1841 = vmatprep.mubr.bf16.mxu0 %v1522
      %1842 = vmatmul.mubr.bf16.gmra.mrb[0].mxu0 %v1521
      %v1843 = vpop.f32.mrb[0].mxu0
      %v1844 = vadd.f32 0.0, %v1843
      %v1845 = vpop.f32.mrb[0].mxu0
      %v1846 = vpop.f32.mrb[0].mxu0
      %v1847 = vadd.f32 0.0, %v1846
      %v1848 = vpop.f32.mrb[0].mxu0
      %1849 = vmatprep.mubr.bf16.mxu0 %v1525
      %1850 = vmatmul.mubr.bf16.gmra.mrb[0].mxu0 %v1524
      %v1851 = vpop.f32.mrb[0].mxu0
      %v1852 = vadd.f32 0.0, %v1851
      %v1853 = vpop.f32.mrb[0].mxu0
      %v1854 = vpop.f32.mrb[0].mxu0
      %v1855 = vadd.f32 0.0, %v1854
      %v1856 = vpop.f32.mrb[0].mxu0
      %1857 = vmatprep.mubr.bf16.mxu0 %v1528
      %1858 = vmatmul.mubr.bf16.gmra.mrb[0].mxu0 %v1527
      %v1859 = vpop.f32.mrb[0].mxu0
      %v1860 = vadd.f32 0.0, %v1859
      %v1861 = vpop.f32.mrb[0].mxu0
      %v1862 = vpop.f32.mrb[0].mxu0
      %v1863 = vadd.f32 0.0, %v1862
      %v1864 = vpop.f32.mrb[0].mxu0
      %1865 = vmatprep.mubr.bf16.mxu0 %v1531
      %1866 = vmatmul.mubr.bf16.gmra.mrb[0].mxu0 %v1530
      %v1867 = vpop.f32.mrb[0].mxu0
      %v1868 = vadd.f32 0.0, %v1867
      %v1869 = vpop.f32.mrb[0].mxu0
      %v1870 = vpop.f32.mrb[0].mxu0
      %v1871 = vadd.f32 0.0, %v1870
      %v1872 = vpop.f32.mrb[0].mxu0
      %1873 = vmatprep.mubr.bf16.mxu0 %v1534
      %1874 = vmatmul.mubr.bf16.gmra.mrb[0].mxu0 %v1533
      %v1875 = vpop.f32.mrb[0].mxu0
      %v1876 = vadd.f32 0.0, %v1875
      %v1877 = vpop.f32.mrb[0].mxu0
      %v1878 = vpop.f32.mrb[0].mxu0
      %v1879 = vadd.f32 0.0, %v1878
      %v1880 = vpop.f32.mrb[0].mxu0
      %1881 = vmatprep.mubr.bf16.mxu0 %v1537
      %1882 = vmatmul.mubr.bf16.gmra.mrb[0].mxu0 %v1536
      %v1883 = vpop.f32.mrb[0].mxu0
      %v1884 = vadd.f32 0.0, %v1883
      %v1885 = vpop.f32.mrb[0].mxu0
      %v1886 = vpop.f32.mrb[0].mxu0
      %v1887 = vadd.f32 0.0, %v1886
      %v1888 = vpop.f32.mrb[0].mxu0
      %1889 = vmatprep.mubr.bf16.mxu0 %v1540
      %1890 = vmatmul.mubr.bf16.gmra.mrb[0].mxu0 %v1539
      %v1891 = vpop.f32.mrb[0].mxu0
      %v1892 = vadd.f32 0.0, %v1891
      %v1893 = vpop.f32.mrb[0].mxu0
      %v1894 = vpop.f32.mrb[0].mxu0
      %v1895 = vadd.f32 0.0, %v1894
      %v1896 = vpop.f32.mrb[0].mxu0
      %1897 = vmatprep.mubr.bf16.mxu0 %v1543
      %1898 = vmatmul.mubr.bf16.gmra.mrb[0].mxu0 %v1542
      %v1899 = vpop.f32.mrb[0].mxu0
      %v1900 = vadd.f32 0.0, %v1899
      %v1901 = vpop.f32.mrb[0].mxu0
      %v1902 = vpop.f32.mrb[0].mxu0
      %v1903 = vadd.f32 0.0, %v1902
      %v1904 = vpop.f32.mrb[0].mxu0
      %1905 = vmatprep.mubr.bf16.mxu0 %v1546
      %1906 = vmatmul.mubr.bf16.gmra.mrb[0].mxu0 %v1545
      %v1907 = vpop.f32.mrb[0].mxu0
      %v1908 = vadd.f32 0.0, %v1907
      %v1909 = vpop.f32.mrb[0].mxu0
      %v1910 = vpop.f32.mrb[0].mxu0
      %v1911 = vadd.f32 0.0, %v1910
      %v1912 = vpop.f32.mrb[0].mxu0
      %1913 = vmatprep.mubr.bf16.mxu0 %v1549
      %1914 = vmatmul.mubr.bf16.gmra.mrb[0].mxu0 %v1548
      %v1915 = vpop.f32.mrb[0].mxu0
      %v1916 = vadd.f32 0.0, %v1915
      %v1917 = vpop.f32.mrb[0].mxu0
      %v1918 = vpop.f32.mrb[0].mxu0
      %v1919 = vadd.f32 0.0, %v1918
      %v1920 = vpop.f32.mrb[0].mxu0
      %1921 = vmatprep.mubr.bf16.mxu0 %v1552
      %1922 = vmatmul.mubr.bf16.gmra.mrb[0].mxu0 %v1551
      %v1923 = vpop.f32.mrb[0].mxu0
      %v1924 = vadd.f32 0.0, %v1923
      %v1925 = vpop.f32.mrb[0].mxu0
      %v1926 = vpop.f32.mrb[0].mxu0
      %v1927 = vadd.f32 0.0, %v1926
      %v1928 = vpop.f32.mrb[0].mxu0
      %1929 = vmatprep.mubr.bf16.mxu0 %v1555
      %1930 = vmatmul.mubr.bf16.gmra.mrb[0].mxu0 %v1554
      %v1931 = vpop.f32.mrb[0].mxu0
      %v1932 = vadd.f32 0.0, %v1931
      %v1933 = vpop.f32.mrb[0].mxu0
      %v1934 = vpop.f32.mrb[0].mxu0
      %v1935 = vadd.f32 0.0, %v1934
      %v1936 = vpop.f32.mrb[0].mxu0
      %1937 = vmatprep.mubr.bf16.mxu0 %v1558
      %1938 = vmatmul.mubr.bf16.gmra.mrb[0].mxu0 %v1557
      %v1939 = vpop.f32.mrb[0].mxu0
      %v1940 = vadd.f32 0.0, %v1939
      %v1941 = vpop.f32.mrb[0].mxu0
      %v1942 = vpop.f32.mrb[0].mxu0
      %v1943 = vadd.f32 0.0, %v1942
      %v1944 = vpop.f32.mrb[0].mxu0
      %1945 = vdwg.mxu0
      %1946 = vmatprep.subr.bf16.mxu0 0
      %1947 = vmatpush1.bf16.msra.mxu0 %v1753
      %1948 = vmatprep.subr.bf16.mxu0 0
      %1949 = vmatpush1.bf16.msra.mxu0 %v1754
      %1950 = vmatprep.subr.bf16.mxu0 0
      %1951 = vmatpush1.bf16.msra.mxu0 %v1755
      %1952 = vmatprep.subr.bf16.mxu0 0
      %1953 = vmatpush1.bf16.msra.mxu0 %v1756
      %1954 = vmatprep.subr.bf16.mxu0 0
      %1955 = vmatpush1.bf16.msra.mxu0 %v1757
      %1956 = vmatprep.subr.bf16.mxu0 0
      %1957 = vmatpush1.bf16.msra.mxu0 %v1758
      %1958 = vmatprep.subr.bf16.mxu0 0
      %1959 = vmatpush1.bf16.msra.mxu0 %v1759
      %1960 = vmatprep.subr.bf16.mxu0 0
      %1961 = vmatpush1.bf16.msra.mxu0 %v1760
      %1962 = vmatprep.subr.bf16.mxu0 0
      %1963 = vmatpush1.bf16.msra.mxu0 0
      %1964 = vmatprep.subr.bf16.mxu0 0
      %1965 = vmatpush1.bf16.msra.mxu0 0
      %1966 = vmatprep.subr.bf16.mxu0 0
      %1967 = vmatpush1.bf16.msra.mxu0 0
      %1968 = vmatprep.subr.bf16.mxu0 0
      %1969 = vmatpush1.bf16.msra.mxu0 0
      %1970 = vmatprep.subr.bf16.mxu0 0
      %1971 = vmatpush1.bf16.msra.mxu0 0
      %1972 = vmatprep.subr.bf16.mxu0 0
      %1973 = vmatpush1.bf16.msra.mxu0 0
      %1974 = vmatprep.subr.bf16.mxu0 0
      %1975 = vmatpush1.bf16.msra.mxu0 0
      %1976 = vmatprep.subr.bf16.mxu0 0
      %1977 = vmatpush1.bf16.msra.mxu0 0
      %1978 = vmatprep.mubr.bf16.mxu0 0
      %1979 = vmatmul.mubr.bf16.gmra.mrb[0].mxu0 %v1514
      %v1980 = vpop.f32.mrb[0].mxu0
      %v1981 = vadd.f32 %v1820, %v1980
      %v1982 = vpop.f32.mrb[0].mxu0
      %v1983 = vpop.f32.mrb[0].mxu0
      %v1984 = vadd.f32 %v1823, %v1983
      %v1985 = vpop.f32.mrb[0].mxu0
      %1986 = vmatprep.mubr.bf16.mxu0 0
      %1987 = vmatmul.mubr.bf16.gmra.mrb[0].mxu0 %v1517
      %v1988 = vpop.f32.mrb[0].mxu0
      %v1989 = vadd.f32 %v1828, %v1988
      %v1990 = vpop.f32.mrb[0].mxu0
      %v1991 = vpop.f32.mrb[0].mxu0
      %v1992 = vadd.f32 %v1831, %v1991
      %v1993 = vpop.f32.mrb[0].mxu0
      %1994 = vmatprep.mubr.bf16.mxu0 0
      %1995 = vmatmul.mubr.bf16.gmra.mrb[0].mxu0 %v1520
      %v1996 = vpop.f32.mrb[0].mxu0
      %v1997 = vadd.f32 %v1836, %v1996
      %v1998 = vpop.f32.mrb[0].mxu0
      %v1999 = vpop.f32.mrb[0].mxu0
      %v2000 = vadd.f32 %v1839, %v1999
      %v2001 = vpop.f32.mrb[0].mxu0
      %2002 = vmatprep.mubr.bf16.mxu0 0
      %2003 = vmatmul.mubr.bf16.gmra.mrb[0].mxu0 %v1523
      %v2004 = vpop.f32.mrb[0].mxu0
      %v2005 = vadd.f32 %v1844, %v2004
      %v2006 = vpop.f32.mrb[0].mxu0
      %v2007 = vpop.f32.mrb[0].mxu0
      %v2008 = vadd.f32 %v1847, %v2007
      %v2009 = vpop.f32.mrb[0].mxu0
      %2010 = vmatprep.mubr.bf16.mxu0 0
      %2011 = vmatmul.mubr.bf16.gmra.mrb[0].mxu0 %v1526
      %v2012 = vpop.f32.mrb[0].mxu0
      %v2013 = vadd.f32 %v1852, %v2012
      %v2014 = vpop.f32.mrb[0].mxu0
      %v2015 = vpop.f32.mrb[0].mxu0
      %v2016 = vadd.f32 %v1855, %v2015
      %v2017 = vpop.f32.mrb[0].mxu0
      %2018 = vmatprep.mubr.bf16.mxu0 0
      %2019 = vmatmul.mubr.bf16.gmra.mrb[0].mxu0 %v1529
      %v2020 = vpop.f32.mrb[0].mxu0
      %v2021 = vadd.f32 %v1860, %v2020
      %v2022 = vpop.f32.mrb[0].mxu0
      %v2023 = vpop.f32.mrb[0].mxu0
      %v2024 = vadd.f32 %v1863, %v2023
      %v2025 = vpop.f32.mrb[0].mxu0
      %2026 = vmatprep.mubr.bf16.mxu0 0
      %2027 = vmatmul.mubr.bf16.gmra.mrb[0].mxu0 %v1532
      %v2028 = vpop.f32.mrb[0].mxu0
      %v2029 = vadd.f32 %v1868, %v2028
      %v2030 = vpop.f32.mrb[0].mxu0
      %v2031 = vpop.f32.mrb[0].mxu0
      %v2032 = vadd.f32 %v1871, %v2031
      %v2033 = vpop.f32.mrb[0].mxu0
      %2034 = vmatprep.mubr.bf16.mxu0 0
      %2035 = vmatmul.mubr.bf16.gmra.mrb[0].mxu0 %v1535
      %v2036 = vpop.f32.mrb[0].mxu0
      %v2037 = vadd.f32 %v1876, %v2036
      %v2038 = vpop.f32.mrb[0].mxu0
      %v2039 = vpop.f32.mrb[0].mxu0
      %v2040 = vadd.f32 %v1879, %v2039
      %v2041 = vpop.f32.mrb[0].mxu0
      %2042 = vmatprep.mubr.bf16.mxu0 0
      %2043 = vmatmul.mubr.bf16.gmra.mrb[0].mxu0 %v1538
      %v2044 = vpop.f32.mrb[0].mxu0
      %v2045 = vadd.f32 %v1884, %v2044
      %v2046 = vpop.f32.mrb[0].mxu0
      %v2047 = vpop.f32.mrb[0].mxu0
      %v2048 = vadd.f32 %v1887, %v2047
      %v2049 = vpop.f32.mrb[0].mxu0
      %2050 = vmatprep.mubr.bf16.mxu0 0
      %2051 = vmatmul.mubr.bf16.gmra.mrb[0].mxu0 %v1541
      %v2052 = vpop.f32.mrb[0].mxu0
      %v2053 = vadd.f32 %v1892, %v2052
      %v2054 = vpop.f32.mrb[0].mxu0
      %v2055 = vpop.f32.mrb[0].mxu0
      %v2056 = vadd.f32 %v1895, %v2055
      %v2057 = vpop.f32.mrb[0].mxu0
      %2058 = vmatprep.mubr.bf16.mxu0 0
      %2059 = vmatmul.mubr.bf16.gmra.mrb[0].mxu0 %v1544
      %v2060 = vpop.f32.mrb[0].mxu0
      %v2061 = vadd.f32 %v1900, %v2060
      %v2062 = vpop.f32.mrb[0].mxu0
      %v2063 = vpop.f32.mrb[0].mxu0
      %v2064 = vadd.f32 %v1903, %v2063
      %v2065 = vpop.f32.mrb[0].mxu0
      %2066 = vmatprep.mubr.bf16.mxu0 0
      %2067 = vmatmul.mubr.bf16.gmra.mrb[0].mxu0 %v1547
      %v2068 = vpop.f32.mrb[0].mxu0
      %v2069 = vadd.f32 %v1908, %v2068
      %v2070 = vpop.f32.mrb[0].mxu0
      %v2071 = vpop.f32.mrb[0].mxu0
      %v2072 = vadd.f32 %v1911, %v2071
      %v2073 = vpop.f32.mrb[0].mxu0
      %2074 = vmatprep.mubr.bf16.mxu0 0
      %2075 = vmatmul.mubr.bf16.gmra.mrb[0].mxu0 %v1550
      %v2076 = vpop.f32.mrb[0].mxu0
      %v2077 = vadd.f32 %v1916, %v2076
      %v2078 = vpop.f32.mrb[0].mxu0
      %v2079 = vpop.f32.mrb[0].mxu0
      %v2080 = vadd.f32 %v1919, %v2079
      %v2081 = vpop.f32.mrb[0].mxu0
      %2082 = vmatprep.mubr.bf16.mxu0 0
      %2083 = vmatmul.mubr.bf16.gmra.mrb[0].mxu0 %v1553
      %v2084 = vpop.f32.mrb[0].mxu0
      %v2085 = vadd.f32 %v1924, %v2084
      %v2086 = vpop.f32.mrb[0].mxu0
      %v2087 = vpop.f32.mrb[0].mxu0
      %v2088 = vadd.f32 %v1927, %v2087
      %v2089 = vpop.f32.mrb[0].mxu0
      %2090 = vmatprep.mubr.bf16.mxu0 0
      %2091 = vmatmul.mubr.bf16.gmra.mrb[0].mxu0 %v1556
      %v2092 = vpop.f32.mrb[0].mxu0
      %v2093 = vadd.f32 %v1932, %v2092
      %v2094 = vpop.f32.mrb[0].mxu0
      %v2095 = vpop.f32.mrb[0].mxu0
      %v2096 = vadd.f32 %v1935, %v2095
      %v2097 = vpop.f32.mrb[0].mxu0
      %2098 = vmatprep.mubr.bf16.mxu0 0
      %2099 = vmatmul.mubr.bf16.gmra.mrb[0].mxu0 %v1559
      %v2100 = vpop.f32.mrb[0].mxu0
      %v2101 = vadd.f32 %v1940, %v2100
      %v2102 = vpop.f32.mrb[0].mxu0
      %v2103 = vpop.f32.mrb[0].mxu0
      %v2104 = vadd.f32 %v1943, %v2103
      %v2105 = vpop.f32.mrb[0].mxu0
      %2106 = vdwg.mxu0
      %v2107 = vadd.f32 %v1560, %v1981
      %v2108 = vadd.f32 %v1561, %v1984
      %v2109 = vadd.f32 %v1562, %v1989
      %v2110 = vadd.f32 %v1563, %v1992
      %v2111 = vadd.f32 %v1564, %v1997
      %v2112 = vadd.f32 %v1565, %v2000
      %v2113 = vadd.f32 %v1566, %v2005
      %v2114 = vadd.f32 %v1567, %v2008
      %v2115 = vadd.f32 %v1568, %v2013
      %v2116 = vadd.f32 %v1569, %v2016
      %v2117 = vadd.f32 %v1570, %v2021
      %v2118 = vadd.f32 %v1571, %v2024
      %v2119 = vadd.f32 %v1572, %v2029
      %v2120 = vadd.f32 %v1573, %v2032
      %v2121 = vadd.f32 %v1574, %v2037
      %v2122 = vadd.f32 %v1575, %v2040
      %v2123 = vadd.f32 %v1576, %v2045
      %v2124 = vadd.f32 %v1577, %v2048
      %v2125 = vadd.f32 %v1578, %v2053
      %v2126 = vadd.f32 %v1579, %v2056
      %v2127 = vadd.f32 %v1580, %v2061
      %v2128 = vadd.f32 %v1581, %v2064
      %v2129 = vadd.f32 %v1582, %v2069
      %v2130 = vadd.f32 %v1583, %v2072
      %v2131 = vadd.f32 %v1584, %v2077
      %v2132 = vadd.f32 %v1585, %v2080
      %v2133 = vadd.f32 %v1586, %v2085
      %v2134 = vadd.f32 %v1587, %v2088
      %v2135 = vadd.f32 %v1588, %v2093
      %v2136 = vadd.f32 %v1589, %v2096
      %v2137 = vadd.f32 %v1590, %v2101
      %v2138 = vadd.f32 %v1591, %v2104
      %2139 = vst [vmem:[#allocation3] sm:$0xff] %v2107
      %2140 = vst [vmem:[#allocation3 + $0x8] sm:$0xff] %v2108
      %2141 = vst [vmem:[#allocation3 + $0x10] sm:$0xff] %v2109
      %2142 = vst [vmem:[#allocation3 + $0x18] sm:$0xff] %v2110
      %2143 = vst [vmem:[#allocation3 + $0x20] sm:$0xff] %v2111
      %2144 = vst [vmem:[#allocation3 + $0x28] sm:$0xff] %v2112
      %2145 = vst [vmem:[#allocation3 + $0x30] sm:$0xff] %v2113
      %2146 = vst [vmem:[#allocation3 + $0x38] sm:$0xff] %v2114
      %2147 = vst [vmem:[#allocation3 + $0x40] sm:$0xff] %v2115
      %2148 = vst [vmem:[#allocation3 + $0x48] sm:$0xff] %v2116
      %2149 = vst [vmem:[#allocation3 + $0x50] sm:$0xff] %v2117
      %2150 = vst [vmem:[#allocation3 + $0x58] sm:$0xff] %v2118
      %2151 = vst [vmem:[#allocation3 + $0x60] sm:$0xff] %v2119
      %2152 = vst [vmem:[#allocation3 + $0x68] sm:$0xff] %v2120
      %2153 = vst [vmem:[#allocation3 + $0x70] sm:$0xff] %v2121
      %2154 = vst [vmem:[#allocation3 + $0x78] sm:$0xff] %v2122
      %2155 = vst [vmem:[#allocation3 + $0x80] sm:$0xff] %v2123
      %2156 = vst [vmem:[#allocation3 + $0x88] sm:$0xff] %v2124
      %2157 = vst [vmem:[#allocation3 + $0x90] sm:$0xff] %v2125
      %2158 = vst [vmem:[#allocation3 + $0x98] sm:$0xff] %v2126
      %2159 = vst [vmem:[#allocation3 + $0xa0] sm:$0xff] %v2127
      %2160 = vst [vmem:[#allocation3 + $0xa8] sm:$0xff] %v2128
      %2161 = vst [vmem:[#allocation3 + $0xb0] sm:$0xff] %v2129
      %2162 = vst [vmem:[#allocation3 + $0xb8] sm:$0xff] %v2130
      %2163 = vst [vmem:[#allocation3 + $0xc0] sm:$0xff] %v2131
      %2164 = vst [vmem:[#allocation3 + $0xc8] sm:$0xff] %v2132
      %2165 = vst [vmem:[#allocation3 + $0xd0] sm:$0xff] %v2133
      %2166 = vst [vmem:[#allocation3 + $0xd8] sm:$0xff] %v2134
      %2167 = vst [vmem:[#allocation3 + $0xe0] sm:$0xff] %v2135
      %2168 = vst [vmem:[#allocation3 + $0xe8] sm:$0xff] %v2136
      %2169 = vst [vmem:[#allocation3 + $0xf0] sm:$0xff] %v2137
      %2170 = vst [vmem:[#allocation3 + $0xf8] sm:$0xff] %v2138
      %s2171 = scalar_lea.vmem [#allocation2], 48
      %v2172 = vld [vmem:[%s2171] sm:$0xff]
      %v2173 = vld [vmem:[%s2171 + $0x8] sm:$0xff]
      %v2174 = vld [vmem:[%s2171 + $0x10] sm:$0xff]
      %v2175 = vld [vmem:[%s2171 + $0x18] sm:$0xff]
      %v2176 = vld [vmem:[%s2171 + $0x20] sm:$0xff]
      %v2177 = vld [vmem:[%s2171 + $0x28] sm:$0xff]
      %v2178 = vld [vmem:[%s2171 + $0x30] sm:$0xff]
      %v2179 = vld [vmem:[%s2171 + $0x38] sm:$0xff]
      %v2180 = vld [vmem:[%s2171 + $0x40] sm:$0xff]
      %v2181 = vld [vmem:[%s2171 + $0x48] sm:$0xff]
      %v2182 = vld [vmem:[%s2171 + $0x50] sm:$0xff]
      %v2183 = vld [vmem:[%s2171 + $0x58] sm:$0xff]
      %v2184 = vld [vmem:[%s2171 + $0x60] sm:$0xff]
      %v2185 = vld [vmem:[%s2171 + $0x68] sm:$0xff]
      %v2186 = vld [vmem:[%s2171 + $0x70] sm:$0xff]
      %v2187 = vld [vmem:[%s2171 + $0x78] sm:$0xff]
      %v2188 = vld [vmem:[%s2171 + $0x80] sm:$0xff]
      %v2189 = vld [vmem:[%s2171 + $0x88] sm:$0xff]
      %v2190 = vld [vmem:[%s2171 + $0x90] sm:$0xff]
      %v2191 = vld [vmem:[%s2171 + $0x98] sm:$0xff]
      %v2192 = vld [vmem:[%s2171 + $0xa0] sm:$0xff]
      %v2193 = vld [vmem:[%s2171 + $0xa8] sm:$0xff]
      %v2194 = vld [vmem:[%s2171 + $0xb0] sm:$0xff]
      %v2195 = vld [vmem:[%s2171 + $0xb8] sm:$0xff]
      %v2196 = vld [vmem:[%s2171 + $0xc0] sm:$0xff]
      %v2197 = vld [vmem:[%s2171 + $0xc8] sm:$0xff]
      %v2198 = vld [vmem:[%s2171 + $0xd0] sm:$0xff]
      %v2199 = vld [vmem:[%s2171 + $0xd8] sm:$0xff]
      %v2200 = vld [vmem:[%s2171 + $0xe0] sm:$0xff]
      %v2201 = vld [vmem:[%s2171 + $0xe8] sm:$0xff]
      %v2202 = vld [vmem:[%s2171 + $0xf0] sm:$0xff]
      %v2203 = vld [vmem:[%s2171 + $0xf8] sm:$0xff]
      %v2204 = vld [vmem:[%s2171 + $0x100] sm:$0xff]
      %v2205 = vld [vmem:[%s2171 + $0x108] sm:$0xff]
      %v2206 = vld [vmem:[%s2171 + $0x110] sm:$0xff]
      %v2207 = vld [vmem:[%s2171 + $0x118] sm:$0xff]
      %v2208 = vld [vmem:[%s2171 + $0x120] sm:$0xff]
      %v2209 = vld [vmem:[%s2171 + $0x128] sm:$0xff]
      %v2210 = vld [vmem:[%s2171 + $0x130] sm:$0xff]
      %v2211 = vld [vmem:[%s2171 + $0x138] sm:$0xff]
      %v2212 = vld [vmem:[%s2171 + $0x140] sm:$0xff]
      %v2213 = vld [vmem:[%s2171 + $0x148] sm:$0xff]
      %v2214 = vld [vmem:[%s2171 + $0x150] sm:$0xff]
      %v2215 = vld [vmem:[%s2171 + $0x158] sm:$0xff]
      %v2216 = vld [vmem:[%s2171 + $0x160] sm:$0xff]
      %v2217 = vld [vmem:[%s2171 + $0x168] sm:$0xff]
      %v2218 = vld [vmem:[%s2171 + $0x170] sm:$0xff]
      %v2219 = vld [vmem:[%s2171 + $0x178] sm:$0xff]
      %v2220 = vld [vmem:[#allocation3] sm:$0xff]
      %v2221 = vld [vmem:[#allocation3 + $0x8] sm:$0xff]
      %v2222 = vld [vmem:[#allocation3 + $0x10] sm:$0xff]
      %v2223 = vld [vmem:[#allocation3 + $0x18] sm:$0xff]
      %v2224 = vld [vmem:[#allocation3 + $0x20] sm:$0xff]
      %v2225 = vld [vmem:[#allocation3 + $0x28] sm:$0xff]
      %v2226 = vld [vmem:[#allocation3 + $0x30] sm:$0xff]
      %v2227 = vld [vmem:[#allocation3 + $0x38] sm:$0xff]
      %v2228 = vld [vmem:[#allocation3 + $0x40] sm:$0xff]
      %v2229 = vld [vmem:[#allocation3 + $0x48] sm:$0xff]
      %v2230 = vld [vmem:[#allocation3 + $0x50] sm:$0xff]
      %v2231 = vld [vmem:[#allocation3 + $0x58] sm:$0xff]
      %v2232 = vld [vmem:[#allocation3 + $0x60] sm:$0xff]
      %v2233 = vld [vmem:[#allocation3 + $0x68] sm:$0xff]
      %v2234 = vld [vmem:[#allocation3 + $0x70] sm:$0xff]
      %v2235 = vld [vmem:[#allocation3 + $0x78] sm:$0xff]
      %v2236 = vld [vmem:[#allocation3 + $0x80] sm:$0xff]
      %v2237 = vld [vmem:[#allocation3 + $0x88] sm:$0xff]
      %v2238 = vld [vmem:[#allocation3 + $0x90] sm:$0xff]
      %v2239 = vld [vmem:[#allocation3 + $0x98] sm:$0xff]
      %v2240 = vld [vmem:[#allocation3 + $0xa0] sm:$0xff]
      %v2241 = vld [vmem:[#allocation3 + $0xa8] sm:$0xff]
      %v2242 = vld [vmem:[#allocation3 + $0xb0] sm:$0xff]
      %v2243 = vld [vmem:[#allocation3 + $0xb8] sm:$0xff]
      %v2244 = vld [vmem:[#allocation3 + $0xc0] sm:$0xff]
      %v2245 = vld [vmem:[#allocation3 + $0xc8] sm:$0xff]
      %v2246 = vld [vmem:[#allocation3 + $0xd0] sm:$0xff]
      %v2247 = vld [vmem:[#allocation3 + $0xd8] sm:$0xff]
      %v2248 = vld [vmem:[#allocation3 + $0xe0] sm:$0xff]
      %v2249 = vld [vmem:[#allocation3 + $0xe8] sm:$0xff]
      %v2250 = vld [vmem:[#allocation3 + $0xf0] sm:$0xff]
      %v2251 = vld [vmem:[#allocation3 + $0xf8] sm:$0xff]
      %s2252 = scalar_lea.vmem %s356, 384
      %v2253 = vld [vmem:[%s2252] sm:$0xf]
      %v2254 = vld [vmem:[%s2252 + $0x4] sm:$0xf]
      %v2255 = vld [vmem:[%s2252 + $0x8] sm:$0xf]
      %v2256 = vld [vmem:[%s2252 + $0xc] sm:$0xf]
      %v2257 = vld [vmem:[%s2252 + $0x10] sm:$0xf]
      %v2258 = vld [vmem:[%s2252 + $0x14] sm:$0xf]
      %v2259 = vld [vmem:[%s2252 + $0x18] sm:$0xf]
      %v2260 = vld [vmem:[%s2252 + $0x1c] sm:$0xf]
      %v2261 = vld [vmem:[%s2252 + $0x20] sm:$0xf]
      %v2262 = vld [vmem:[%s2252 + $0x24] sm:$0xf]
      %v2263 = vld [vmem:[%s2252 + $0x28] sm:$0xf]
      %v2264 = vld [vmem:[%s2252 + $0x2c] sm:$0xf]
      %v2265 = vld [vmem:[%s2252 + $0x30] sm:$0xf]
      %v2266 = vld [vmem:[%s2252 + $0x34] sm:$0xf]
      %v2267 = vld [vmem:[%s2252 + $0x38] sm:$0xf]
      %v2268 = vld [vmem:[%s2252 + $0x3c] sm:$0xf]
      %v2269 = vld [vmem:[%s2252 + $0x40] sm:$0xf]
      %v2270 = vld [vmem:[%s2252 + $0x44] sm:$0xf]
      %v2271 = vld [vmem:[%s2252 + $0x48] sm:$0xf]
      %v2272 = vld [vmem:[%s2252 + $0x4c] sm:$0xf]
      %v2273 = vld [vmem:[%s2252 + $0x50] sm:$0xf]
      %v2274 = vld [vmem:[%s2252 + $0x54] sm:$0xf]
      %v2275 = vld [vmem:[%s2252 + $0x58] sm:$0xf]
      %v2276 = vld [vmem:[%s2252 + $0x5c] sm:$0xf]
      %v2277 = vld [vmem:[%s2252 + $0x60] sm:$0xf]
      %v2278 = vld [vmem:[%s2252 + $0x64] sm:$0xf]
      %v2279 = vld [vmem:[%s2252 + $0x68] sm:$0xf]
      %v2280 = vld [vmem:[%s2252 + $0x6c] sm:$0xf]
      %v2281 = vld [vmem:[%s2252 + $0x70] sm:$0xf]
      %v2282 = vld [vmem:[%s2252 + $0x74] sm:$0xf]
      %v2283 = vld [vmem:[%s2252 + $0x78] sm:$0xf]
      %v2284 = vld [vmem:[%s2252 + $0x7c] sm:$0xf]
      %v2285 = vld [vmem:[%s2252 + $0x80] sm:$0xf]
      %v2286 = vld [vmem:[%s2252 + $0x84] sm:$0xf]
      %v2287 = vld [vmem:[%s2252 + $0x88] sm:$0xf]
      %v2288 = vld [vmem:[%s2252 + $0x8c] sm:$0xf]
      %v2289 = vld [vmem:[%s2252 + $0x90] sm:$0xf]
      %v2290 = vld [vmem:[%s2252 + $0x94] sm:$0xf]
      %v2291 = vld [vmem:[%s2252 + $0x98] sm:$0xf]
      %v2292 = vld [vmem:[%s2252 + $0x9c] sm:$0xf]
      %v2293 = vld [vmem:[%s2252 + $0xa0] sm:$0xf]
      %v2294 = vld [vmem:[%s2252 + $0xa4] sm:$0xf]
      %v2295 = vld [vmem:[%s2252 + $0xa8] sm:$0xf]
      %v2296 = vld [vmem:[%s2252 + $0xac] sm:$0xf]
      %v2297 = vld [vmem:[%s2252 + $0xb0] sm:$0xf]
      %v2298 = vld [vmem:[%s2252 + $0xb4] sm:$0xf]
      %v2299 = vld [vmem:[%s2252 + $0xb8] sm:$0xf]
      %v2300 = vld [vmem:[%s2252 + $0xbc] sm:$0xf]
      %v2349 = vunpack.c.l.b16 %v2253
      %v2350 = vunpack.c.l.b16 %v2254
      %v2351 = vunpack.c.l.b16 %v2255
      %v2352 = vunpack.c.l.b16 %v2256
      %v2353 = vunpack.c.l.b16 %v2257
      %v2354 = vunpack.c.l.b16 %v2258
      %v2355 = vunpack.c.l.b16 %v2259
      %v2356 = vunpack.c.l.b16 %v2260
      %v2357 = vunpack.c.l.b16 %v2261
      %v2358 = vunpack.c.l.b16 %v2262
      %v2359 = vunpack.c.l.b16 %v2263
      %v2360 = vunpack.c.l.b16 %v2264
      %v2361 = vunpack.c.l.b16 %v2265
      %v2362 = vunpack.c.l.b16 %v2266
      %v2363 = vunpack.c.l.b16 %v2267
      %v2364 = vunpack.c.l.b16 %v2268
      %v2365 = vunpack.c.l.b16 %v2269
      %v2366 = vunpack.c.l.b16 %v2270
      %v2367 = vunpack.c.l.b16 %v2271
      %v2368 = vunpack.c.l.b16 %v2272
      %v2369 = vunpack.c.l.b16 %v2273
      %v2370 = vunpack.c.l.b16 %v2274
      %v2371 = vunpack.c.l.b16 %v2275
      %v2372 = vunpack.c.l.b16 %v2276
      %v2373 = vunpack.c.l.b16 %v2277
      %v2374 = vunpack.c.l.b16 %v2278
      %v2375 = vunpack.c.l.b16 %v2279
      %v2376 = vunpack.c.l.b16 %v2280
      %v2377 = vunpack.c.l.b16 %v2281
      %v2378 = vunpack.c.l.b16 %v2282
      %v2379 = vunpack.c.l.b16 %v2283
      %v2380 = vunpack.c.l.b16 %v2284
      %v2381 = vunpack.c.l.b16 %v2285
      %v2382 = vunpack.c.l.b16 %v2286
      %v2383 = vunpack.c.l.b16 %v2287
      %v2384 = vunpack.c.l.b16 %v2288
      %v2385 = vunpack.c.l.b16 %v2289
      %v2386 = vunpack.c.l.b16 %v2290
      %v2387 = vunpack.c.l.b16 %v2291
      %v2388 = vunpack.c.l.b16 %v2292
      %v2389 = vunpack.c.l.b16 %v2293
      %v2390 = vunpack.c.l.b16 %v2294
      %v2391 = vunpack.c.l.b16 %v2295
      %v2392 = vunpack.c.l.b16 %v2296
      %v2393 = vunpack.c.l.b16 %v2297
      %v2394 = vunpack.c.l.b16 %v2298
      %v2395 = vunpack.c.l.b16 %v2299
      %v2396 = vunpack.c.l.b16 %v2300
      %v2397 = vpack.c.b16 %v2350, %v2349
      %v2398 = vpack.c.b16 %v2352, %v2351
      %v2399 = vpack.c.b16 %v2354, %v2353
      %v2400 = vpack.c.b16 %v2356, %v2355
      %v2401 = vpack.c.b16 %v2358, %v2357
      %v2402 = vpack.c.b16 %v2360, %v2359
      %v2403 = vpack.c.b16 %v2362, %v2361
      %v2404 = vpack.c.b16 %v2364, %v2363
      %v2405 = vpack.c.b16 %v2366, %v2365
      %v2406 = vpack.c.b16 %v2368, %v2367
      %v2407 = vpack.c.b16 %v2370, %v2369
      %v2408 = vpack.c.b16 %v2372, %v2371
      %v2409 = vpack.c.b16 %v2374, %v2373
      %v2410 = vpack.c.b16 %v2376, %v2375
      %v2411 = vpack.c.b16 %v2378, %v2377
      %v2412 = vpack.c.b16 %v2380, %v2379
      %v2413 = vpack.c.b16 %v2382, %v2381
      %v2414 = vpack.c.b16 %v2384, %v2383
      %v2415 = vpack.c.b16 %v2386, %v2385
      %v2416 = vpack.c.b16 %v2388, %v2387
      %v2417 = vpack.c.b16 %v2390, %v2389
      %v2418 = vpack.c.b16 %v2392, %v2391
      %v2419 = vpack.c.b16 %v2394, %v2393
      %v2420 = vpack.c.b16 %v2396, %v2395
      %2445 = vmatprep.subr.bf16.mxu0 0
      %2446 = vmatpush1.bf16.msra.mxu0 %v2397
      %2447 = vmatprep.subr.bf16.mxu0 0
      %2448 = vmatpush1.bf16.msra.mxu0 %v2398
      %2449 = vmatprep.subr.bf16.mxu0 0
      %2450 = vmatpush1.bf16.msra.mxu0 %v2399
      %2451 = vmatprep.subr.bf16.mxu0 0
      %2452 = vmatpush1.bf16.msra.mxu0 %v2400
      %2453 = vmatprep.subr.bf16.mxu0 0
      %2454 = vmatpush1.bf16.msra.mxu0 %v2401
      %2455 = vmatprep.subr.bf16.mxu0 0
      %2456 = vmatpush1.bf16.msra.mxu0 %v2402
      %2457 = vmatprep.subr.bf16.mxu0 0
      %2458 = vmatpush1.bf16.msra.mxu0 %v2403
      %2459 = vmatprep.subr.bf16.mxu0 0
      %2460 = vmatpush1.bf16.msra.mxu0 %v2404
      %2461 = vmatprep.subr.bf16.mxu0 0
      %2462 = vmatpush1.bf16.msra.mxu0 %v2405
      %2463 = vmatprep.subr.bf16.mxu0 0
      %2464 = vmatpush1.bf16.msra.mxu0 %v2406
      %2465 = vmatprep.subr.bf16.mxu0 0
      %2466 = vmatpush1.bf16.msra.mxu0 %v2407
      %2467 = vmatprep.subr.bf16.mxu0 0
      %2468 = vmatpush1.bf16.msra.mxu0 %v2408
      %2469 = vmatprep.subr.bf16.mxu0 0
      %2470 = vmatpush1.bf16.msra.mxu0 %v2409
      %2471 = vmatprep.subr.bf16.mxu0 0
      %2472 = vmatpush1.bf16.msra.mxu0 %v2410
      %2473 = vmatprep.subr.bf16.mxu0 0
      %2474 = vmatpush1.bf16.msra.mxu0 %v2411
      %2475 = vmatprep.subr.bf16.mxu0 0
      %2476 = vmatpush1.bf16.msra.mxu0 %v2412
      %2477 = vmatprep.mubr.bf16.mxu0 %v2173
      %2478 = vmatmul.mubr.bf16.gmra.mrb[0].mxu0 %v2172
      %v2479 = vpop.f32.mrb[0].mxu0
      %v2480 = vadd.f32 0.0, %v2479
      %v2481 = vpop.f32.mrb[0].mxu0
      %v2482 = vpop.f32.mrb[0].mxu0
      %v2483 = vadd.f32 0.0, %v2482
      %v2484 = vpop.f32.mrb[0].mxu0
      %2485 = vmatprep.mubr.bf16.mxu0 %v2176
      %2486 = vmatmul.mubr.bf16.gmra.mrb[0].mxu0 %v2175
      %v2487 = vpop.f32.mrb[0].mxu0
      %v2488 = vadd.f32 0.0, %v2487
      %v2489 = vpop.f32.mrb[0].mxu0
      %v2490 = vpop.f32.mrb[0].mxu0
      %v2491 = vadd.f32 0.0, %v2490
      %v2492 = vpop.f32.mrb[0].mxu0
      %2493 = vmatprep.mubr.bf16.mxu0 %v2179
      %2494 = vmatmul.mubr.bf16.gmra.mrb[0].mxu0 %v2178
      %v2495 = vpop.f32.mrb[0].mxu0
      %v2496 = vadd.f32 0.0, %v2495
      %v2497 = vpop.f32.mrb[0].mxu0
      %v2498 = vpop.f32.mrb[0].mxu0
      %v2499 = vadd.f32 0.0, %v2498
      %v2500 = vpop.f32.mrb[0].mxu0
      %2501 = vmatprep.mubr.bf16.mxu0 %v2182
      %2502 = vmatmul.mubr.bf16.gmra.mrb[0].mxu0 %v2181
      %v2503 = vpop.f32.mrb[0].mxu0
      %v2504 = vadd.f32 0.0, %v2503
      %v2505 = vpop.f32.mrb[0].mxu0
      %v2506 = vpop.f32.mrb[0].mxu0
      %v2507 = vadd.f32 0.0, %v2506
      %v2508 = vpop.f32.mrb[0].mxu0
      %2509 = vmatprep.mubr.bf16.mxu0 %v2185
      %2510 = vmatmul.mubr.bf16.gmra.mrb[0].mxu0 %v2184
      %v2511 = vpop.f32.mrb[0].mxu0
      %v2512 = vadd.f32 0.0, %v2511
      %v2513 = vpop.f32.mrb[0].mxu0
      %v2514 = vpop.f32.mrb[0].mxu0
      %v2515 = vadd.f32 0.0, %v2514
      %v2516 = vpop.f32.mrb[0].mxu0
      %2517 = vmatprep.mubr.bf16.mxu0 %v2188
      %2518 = vmatmul.mubr.bf16.gmra.mrb[0].mxu0 %v2187
      %v2519 = vpop.f32.mrb[0].mxu0
      %v2520 = vadd.f32 0.0, %v2519
      %v2521 = vpop.f32.mrb[0].mxu0
      %v2522 = vpop.f32.mrb[0].mxu0
      %v2523 = vadd.f32 0.0, %v2522
      %v2524 = vpop.f32.mrb[0].mxu0
      %2525 = vmatprep.mubr.bf16.mxu0 %v2191
      %2526 = vmatmul.mubr.bf16.gmra.mrb[0].mxu0 %v2190
      %v2527 = vpop.f32.mrb[0].mxu0
      %v2528 = vadd.f32 0.0, %v2527
      %v2529 = vpop.f32.mrb[0].mxu0
      %v2530 = vpop.f32.mrb[0].mxu0
      %v2531 = vadd.f32 0.0, %v2530
      %v2532 = vpop.f32.mrb[0].mxu0
      %2533 = vmatprep.mubr.bf16.mxu0 %v2194
      %2534 = vmatmul.mubr.bf16.gmra.mrb[0].mxu0 %v2193
      %v2535 = vpop.f32.mrb[0].mxu0
      %v2536 = vadd.f32 0.0, %v2535
      %v2537 = vpop.f32.mrb[0].mxu0
      %v2538 = vpop.f32.mrb[0].mxu0
      %v2539 = vadd.f32 0.0, %v2538
      %v2540 = vpop.f32.mrb[0].mxu0
      %2541 = vmatprep.mubr.bf16.mxu0 %v2197
      %2542 = vmatmul.mubr.bf16.gmra.mrb[0].mxu0 %v2196
      %v2543 = vpop.f32.mrb[0].mxu0
      %v2544 = vadd.f32 0.0, %v2543
      %v2545 = vpop.f32.mrb[0].mxu0
      %v2546 = vpop.f32.mrb[0].mxu0
      %v2547 = vadd.f32 0.0, %v2546
      %v2548 = vpop.f32.mrb[0].mxu0
      %2549 = vmatprep.mubr.bf16.mxu0 %v2200
      %2550 = vmatmul.mubr.bf16.gmra.mrb[0].mxu0 %v2199
      %v2551 = vpop.f32.mrb[0].mxu0
      %v2552 = vadd.f32 0.0, %v2551
      %v2553 = vpop.f32.mrb[0].mxu0
      %v2554 = vpop.f32.mrb[0].mxu0
      %v2555 = vadd.f32 0.0, %v2554
      %v2556 = vpop.f32.mrb[0].mxu0
      %2557 = vmatprep.mubr.bf16.mxu0 %v2203
      %2558 = vmatmul.mubr.bf16.gmra.mrb[0].mxu0 %v2202
      %v2559 = vpop.f32.mrb[0].mxu0
      %v2560 = vadd.f32 0.0, %v2559
      %v2561 = vpop.f32.mrb[0].mxu0
      %v2562 = vpop.f32.mrb[0].mxu0
      %v2563 = vadd.f32 0.0, %v2562
      %v2564 = vpop.f32.mrb[0].mxu0
      %2565 = vmatprep.mubr.bf16.mxu0 %v2206
      %2566 = vmatmul.mubr.bf16.gmra.mrb[0].mxu0 %v2205
      %v2567 = vpop.f32.mrb[0].mxu0
      %v2568 = vadd.f32 0.0, %v2567
      %v2569 = vpop.f32.mrb[0].mxu0
      %v2570 = vpop.f32.mrb[0].mxu0
      %v2571 = vadd.f32 0.0, %v2570
      %v2572 = vpop.f32.mrb[0].mxu0
      %2573 = vmatprep.mubr.bf16.mxu0 %v2209
      %2574 = vmatmul.mubr.bf16.gmra.mrb[0].mxu0 %v2208
      %v2575 = vpop.f32.mrb[0].mxu0
      %v2576 = vadd.f32 0.0, %v2575
      %v2577 = vpop.f32.mrb[0].mxu0
      %v2578 = vpop.f32.mrb[0].mxu0
      %v2579 = vadd.f32 0.0, %v2578
      %v2580 = vpop.f32.mrb[0].mxu0
      %2581 = vmatprep.mubr.bf16.mxu0 %v2212
      %2582 = vmatmul.mubr.bf16.gmra.mrb[0].mxu0 %v2211
      %v2583 = vpop.f32.mrb[0].mxu0
      %v2584 = vadd.f32 0.0, %v2583
      %v2585 = vpop.f32.mrb[0].mxu0
      %v2586 = vpop.f32.mrb[0].mxu0
      %v2587 = vadd.f32 0.0, %v2586
      %v2588 = vpop.f32.mrb[0].mxu0
      %2589 = vmatprep.mubr.bf16.mxu0 %v2215
      %2590 = vmatmul.mubr.bf16.gmra.mrb[0].mxu0 %v2214
      %v2591 = vpop.f32.mrb[0].mxu0
      %v2592 = vadd.f32 0.0, %v2591
      %v2593 = vpop.f32.mrb[0].mxu0
      %v2594 = vpop.f32.mrb[0].mxu0
      %v2595 = vadd.f32 0.0, %v2594
      %v2596 = vpop.f32.mrb[0].mxu0
      %2597 = vmatprep.mubr.bf16.mxu0 %v2218
      %2598 = vmatmul.mubr.bf16.gmra.mrb[0].mxu0 %v2217
      %v2599 = vpop.f32.mrb[0].mxu0
      %v2600 = vadd.f32 0.0, %v2599
      %v2601 = vpop.f32.mrb[0].mxu0
      %v2602 = vpop.f32.mrb[0].mxu0
      %v2603 = vadd.f32 0.0, %v2602
      %v2604 = vpop.f32.mrb[0].mxu0
      %2605 = vdwg.mxu0
      %2606 = vmatprep.subr.bf16.mxu0 0
      %2607 = vmatpush1.bf16.msra.mxu0 %v2413
      %2608 = vmatprep.subr.bf16.mxu0 0
      %2609 = vmatpush1.bf16.msra.mxu0 %v2414
      %2610 = vmatprep.subr.bf16.mxu0 0
      %2611 = vmatpush1.bf16.msra.mxu0 %v2415
      %2612 = vmatprep.subr.bf16.mxu0 0
      %2613 = vmatpush1.bf16.msra.mxu0 %v2416
      %2614 = vmatprep.subr.bf16.mxu0 0
      %2615 = vmatpush1.bf16.msra.mxu0 %v2417
      %2616 = vmatprep.subr.bf16.mxu0 0
      %2617 = vmatpush1.bf16.msra.mxu0 %v2418
      %2618 = vmatprep.subr.bf16.mxu0 0
      %2619 = vmatpush1.bf16.msra.mxu0 %v2419
      %2620 = vmatprep.subr.bf16.mxu0 0
      %2621 = vmatpush1.bf16.msra.mxu0 %v2420
      %2622 = vmatprep.subr.bf16.mxu0 0
      %2623 = vmatpush1.bf16.msra.mxu0 0
      %2624 = vmatprep.subr.bf16.mxu0 0
      %2625 = vmatpush1.bf16.msra.mxu0 0
      %2626 = vmatprep.subr.bf16.mxu0 0
      %2627 = vmatpush1.bf16.msra.mxu0 0
      %2628 = vmatprep.subr.bf16.mxu0 0
      %2629 = vmatpush1.bf16.msra.mxu0 0
      %2630 = vmatprep.subr.bf16.mxu0 0
      %2631 = vmatpush1.bf16.msra.mxu0 0
      %2632 = vmatprep.subr.bf16.mxu0 0
      %2633 = vmatpush1.bf16.msra.mxu0 0
      %2634 = vmatprep.subr.bf16.mxu0 0
      %2635 = vmatpush1.bf16.msra.mxu0 0
      %2636 = vmatprep.subr.bf16.mxu0 0
      %2637 = vmatpush1.bf16.msra.mxu0 0
      %2638 = vmatprep.mubr.bf16.mxu0 0
      %2639 = vmatmul.mubr.bf16.gmra.mrb[0].mxu0 %v2174
      %v2640 = vpop.f32.mrb[0].mxu0
      %v2641 = vadd.f32 %v2480, %v2640
      %v2642 = vpop.f32.mrb[0].mxu0
      %v2643 = vpop.f32.mrb[0].mxu0
      %v2644 = vadd.f32 %v2483, %v2643
      %v2645 = vpop.f32.mrb[0].mxu0
      %2646 = vmatprep.mubr.bf16.mxu0 0
      %2647 = vmatmul.mubr.bf16.gmra.mrb[0].mxu0 %v2177
      %v2648 = vpop.f32.mrb[0].mxu0
      %v2649 = vadd.f32 %v2488, %v2648
      %v2650 = vpop.f32.mrb[0].mxu0
      %v2651 = vpop.f32.mrb[0].mxu0
      %v2652 = vadd.f32 %v2491, %v2651
      %v2653 = vpop.f32.mrb[0].mxu0
      %2654 = vmatprep.mubr.bf16.mxu0 0
      %2655 = vmatmul.mubr.bf16.gmra.mrb[0].mxu0 %v2180
      %v2656 = vpop.f32.mrb[0].mxu0
      %v2657 = vadd.f32 %v2496, %v2656
      %v2658 = vpop.f32.mrb[0].mxu0
      %v2659 = vpop.f32.mrb[0].mxu0
      %v2660 = vadd.f32 %v2499, %v2659
      %v2661 = vpop.f32.mrb[0].mxu0
      %2662 = vmatprep.mubr.bf16.mxu0 0
      %2663 = vmatmul.mubr.bf16.gmra.mrb[0].mxu0 %v2183
      %v2664 = vpop.f32.mrb[0].mxu0
      %v2665 = vadd.f32 %v2504, %v2664
      %v2666 = vpop.f32.mrb[0].mxu0
      %v2667 = vpop.f32.mrb[0].mxu0
      %v2668 = vadd.f32 %v2507, %v2667
      %v2669 = vpop.f32.mrb[0].mxu0
      %2670 = vmatprep.mubr.bf16.mxu0 0
      %2671 = vmatmul.mubr.bf16.gmra.mrb[0].mxu0 %v2186
      %v2672 = vpop.f32.mrb[0].mxu0
      %v2673 = vadd.f32 %v2512, %v2672
      %v2674 = vpop.f32.mrb[0].mxu0
      %v2675 = vpop.f32.mrb[0].mxu0
      %v2676 = vadd.f32 %v2515, %v2675
      %v2677 = vpop.f32.mrb[0].mxu0
      %2678 = vmatprep.mubr.bf16.mxu0 0
      %2679 = vmatmul.mubr.bf16.gmra.mrb[0].mxu0 %v2189
      %v2680 = vpop.f32.mrb[0].mxu0
      %v2681 = vadd.f32 %v2520, %v2680
      %v2682 = vpop.f32.mrb[0].mxu0
      %v2683 = vpop.f32.mrb[0].mxu0
      %v2684 = vadd.f32 %v2523, %v2683
      %v2685 = vpop.f32.mrb[0].mxu0
      %2686 = vmatprep.mubr.bf16.mxu0 0
      %2687 = vmatmul.mubr.bf16.gmra.mrb[0].mxu0 %v2192
      %v2688 = vpop.f32.mrb[0].mxu0
      %v2689 = vadd.f32 %v2528, %v2688
      %v2690 = vpop.f32.mrb[0].mxu0
      %v2691 = vpop.f32.mrb[0].mxu0
      %v2692 = vadd.f32 %v2531, %v2691
      %v2693 = vpop.f32.mrb[0].mxu0
      %2694 = vmatprep.mubr.bf16.mxu0 0
      %2695 = vmatmul.mubr.bf16.gmra.mrb[0].mxu0 %v2195
      %v2696 = vpop.f32.mrb[0].mxu0
      %v2697 = vadd.f32 %v2536, %v2696
      %v2698 = vpop.f32.mrb[0].mxu0
      %v2699 = vpop.f32.mrb[0].mxu0
      %v2700 = vadd.f32 %v2539, %v2699
      %v2701 = vpop.f32.mrb[0].mxu0
      %2702 = vmatprep.mubr.bf16.mxu0 0
      %2703 = vmatmul.mubr.bf16.gmra.mrb[0].mxu0 %v2198
      %v2704 = vpop.f32.mrb[0].mxu0
      %v2705 = vadd.f32 %v2544, %v2704
      %v2706 = vpop.f32.mrb[0].mxu0
      %v2707 = vpop.f32.mrb[0].mxu0
      %v2708 = vadd.f32 %v2547, %v2707
      %v2709 = vpop.f32.mrb[0].mxu0
      %2710 = vmatprep.mubr.bf16.mxu0 0
      %2711 = vmatmul.mubr.bf16.gmra.mrb[0].mxu0 %v2201
      %v2712 = vpop.f32.mrb[0].mxu0
      %v2713 = vadd.f32 %v2552, %v2712
      %v2714 = vpop.f32.mrb[0].mxu0
      %v2715 = vpop.f32.mrb[0].mxu0
      %v2716 = vadd.f32 %v2555, %v2715
      %v2717 = vpop.f32.mrb[0].mxu0
      %2718 = vmatprep.mubr.bf16.mxu0 0
      %2719 = vmatmul.mubr.bf16.gmra.mrb[0].mxu0 %v2204
      %v2720 = vpop.f32.mrb[0].mxu0
      %v2721 = vadd.f32 %v2560, %v2720
      %v2722 = vpop.f32.mrb[0].mxu0
      %v2723 = vpop.f32.mrb[0].mxu0
      %v2724 = vadd.f32 %v2563, %v2723
      %v2725 = vpop.f32.mrb[0].mxu0
      %2726 = vmatprep.mubr.bf16.mxu0 0
      %2727 = vmatmul.mubr.bf16.gmra.mrb[0].mxu0 %v2207
      %v2728 = vpop.f32.mrb[0].mxu0
      %v2729 = vadd.f32 %v2568, %v2728
      %v2730 = vpop.f32.mrb[0].mxu0
      %v2731 = vpop.f32.mrb[0].mxu0
      %v2732 = vadd.f32 %v2571, %v2731
      %v2733 = vpop.f32.mrb[0].mxu0
      %2734 = vmatprep.mubr.bf16.mxu0 0
      %2735 = vmatmul.mubr.bf16.gmra.mrb[0].mxu0 %v2210
      %v2736 = vpop.f32.mrb[0].mxu0
      %v2737 = vadd.f32 %v2576, %v2736
      %v2738 = vpop.f32.mrb[0].mxu0
      %v2739 = vpop.f32.mrb[0].mxu0
      %v2740 = vadd.f32 %v2579, %v2739
      %v2741 = vpop.f32.mrb[0].mxu0
      %2742 = vmatprep.mubr.bf16.mxu0 0
      %2743 = vmatmul.mubr.bf16.gmra.mrb[0].mxu0 %v2213
      %v2744 = vpop.f32.mrb[0].mxu0
      %v2745 = vadd.f32 %v2584, %v2744
      %v2746 = vpop.f32.mrb[0].mxu0
      %v2747 = vpop.f32.mrb[0].mxu0
      %v2748 = vadd.f32 %v2587, %v2747
      %v2749 = vpop.f32.mrb[0].mxu0
      %2750 = vmatprep.mubr.bf16.mxu0 0
      %2751 = vmatmul.mubr.bf16.gmra.mrb[0].mxu0 %v2216
      %v2752 = vpop.f32.mrb[0].mxu0
      %v2753 = vadd.f32 %v2592, %v2752
      %v2754 = vpop.f32.mrb[0].mxu0
      %v2755 = vpop.f32.mrb[0].mxu0
      %v2756 = vadd.f32 %v2595, %v2755
      %v2757 = vpop.f32.mrb[0].mxu0
      %2758 = vmatprep.mubr.bf16.mxu0 0
      %2759 = vmatmul.mubr.bf16.gmra.mrb[0].mxu0 %v2219
      %v2760 = vpop.f32.mrb[0].mxu0
      %v2761 = vadd.f32 %v2600, %v2760
      %v2762 = vpop.f32.mrb[0].mxu0
      %v2763 = vpop.f32.mrb[0].mxu0
      %v2764 = vadd.f32 %v2603, %v2763
      %v2765 = vpop.f32.mrb[0].mxu0
      %2766 = vdwg.mxu0
      %v2767 = vadd.f32 %v2220, %v2641
      %v2768 = vadd.f32 %v2221, %v2644
      %v2769 = vadd.f32 %v2222, %v2649
      %v2770 = vadd.f32 %v2223, %v2652
      %v2771 = vadd.f32 %v2224, %v2657
      %v2772 = vadd.f32 %v2225, %v2660
      %v2773 = vadd.f32 %v2226, %v2665
      %v2774 = vadd.f32 %v2227, %v2668
      %v2775 = vadd.f32 %v2228, %v2673
      %v2776 = vadd.f32 %v2229, %v2676
      %v2777 = vadd.f32 %v2230, %v2681
      %v2778 = vadd.f32 %v2231, %v2684
      %v2779 = vadd.f32 %v2232, %v2689
      %v2780 = vadd.f32 %v2233, %v2692
      %v2781 = vadd.f32 %v2234, %v2697
      %v2782 = vadd.f32 %v2235, %v2700
      %v2783 = vadd.f32 %v2236, %v2705
      %v2784 = vadd.f32 %v2237, %v2708
      %v2785 = vadd.f32 %v2238, %v2713
      %v2786 = vadd.f32 %v2239, %v2716
      %v2787 = vadd.f32 %v2240, %v2721
      %v2788 = vadd.f32 %v2241, %v2724
      %v2789 = vadd.f32 %v2242, %v2729
      %v2790 = vadd.f32 %v2243, %v2732
      %v2791 = vadd.f32 %v2244, %v2737
      %v2792 = vadd.f32 %v2245, %v2740
      %v2793 = vadd.f32 %v2246, %v2745
      %v2794 = vadd.f32 %v2247, %v2748
      %v2795 = vadd.f32 %v2248, %v2753
      %v2796 = vadd.f32 %v2249, %v2756
      %v2797 = vadd.f32 %v2250, %v2761
      %v2798 = vadd.f32 %v2251, %v2764
      %2799 = vst [vmem:[#allocation3] sm:$0xff] %v2767
      %2800 = vst [vmem:[#allocation3 + $0x8] sm:$0xff] %v2768
      %2801 = vst [vmem:[#allocation3 + $0x10] sm:$0xff] %v2769
      %2802 = vst [vmem:[#allocation3 + $0x18] sm:$0xff] %v2770
      %2803 = vst [vmem:[#allocation3 + $0x20] sm:$0xff] %v2771
      %2804 = vst [vmem:[#allocation3 + $0x28] sm:$0xff] %v2772
      %2805 = vst [vmem:[#allocation3 + $0x30] sm:$0xff] %v2773
      %2806 = vst [vmem:[#allocation3 + $0x38] sm:$0xff] %v2774
      %2807 = vst [vmem:[#allocation3 + $0x40] sm:$0xff] %v2775
      %2808 = vst [vmem:[#allocation3 + $0x48] sm:$0xff] %v2776
      %2809 = vst [vmem:[#allocation3 + $0x50] sm:$0xff] %v2777
      %2810 = vst [vmem:[#allocation3 + $0x58] sm:$0xff] %v2778
      %2811 = vst [vmem:[#allocation3 + $0x60] sm:$0xff] %v2779
      %2812 = vst [vmem:[#allocation3 + $0x68] sm:$0xff] %v2780
      %2813 = vst [vmem:[#allocation3 + $0x70] sm:$0xff] %v2781
      %2814 = vst [vmem:[#allocation3 + $0x78] sm:$0xff] %v2782
      %2815 = vst [vmem:[#allocation3 + $0x80] sm:$0xff] %v2783
      %2816 = vst [vmem:[#allocation3 + $0x88] sm:$0xff] %v2784
      %2817 = vst [vmem:[#allocation3 + $0x90] sm:$0xff] %v2785
      %2818 = vst [vmem:[#allocation3 + $0x98] sm:$0xff] %v2786
      %2819 = vst [vmem:[#allocation3 + $0xa0] sm:$0xff] %v2787
      %2820 = vst [vmem:[#allocation3 + $0xa8] sm:$0xff] %v2788
      %2821 = vst [vmem:[#allocation3 + $0xb0] sm:$0xff] %v2789
      %2822 = vst [vmem:[#allocation3 + $0xb8] sm:$0xff] %v2790
      %2823 = vst [vmem:[#allocation3 + $0xc0] sm:$0xff] %v2791
      %2824 = vst [vmem:[#allocation3 + $0xc8] sm:$0xff] %v2792
      %2825 = vst [vmem:[#allocation3 + $0xd0] sm:$0xff] %v2793
      %2826 = vst [vmem:[#allocation3 + $0xd8] sm:$0xff] %v2794
      %2827 = vst [vmem:[#allocation3 + $0xe0] sm:$0xff] %v2795
      %2828 = vst [vmem:[#allocation3 + $0xe8] sm:$0xff] %v2796
      %2829 = vst [vmem:[#allocation3 + $0xf0] sm:$0xff] %v2797
      %2830 = vst [vmem:[#allocation3 + $0xf8] sm:$0xff] %v2798
      // Predicated region
      $region49: #{double_conv_forward.2} parent=43 // pred_check
        %p2831 = pneg %p378
      $region50: #{double_conv_forward.2} parent=43 // pred_check_branch
        %2833 = sbr.rel (%p2831) target = $region52
      $region51: #{double_conv_forward.2} parent=43 // pred_region
        %v2834 = vld [vmem:[#allocation3] sm:$0xff]
        %v2835 = vld [vmem:[#allocation3 + $0x8] sm:$0xff]
        %v2836 = vld [vmem:[#allocation3 + $0x10] sm:$0xff]
        %v2837 = vld [vmem:[#allocation3 + $0x18] sm:$0xff]
        %v2838 = vld [vmem:[#allocation3 + $0x20] sm:$0xff]
        %v2839 = vld [vmem:[#allocation3 + $0x28] sm:$0xff]
        %v2840 = vld [vmem:[#allocation3 + $0x30] sm:$0xff]
        %v2841 = vld [vmem:[#allocation3 + $0x38] sm:$0xff]
        %v2842 = vld [vmem:[#allocation3 + $0x40] sm:$0xff]
        %v2843 = vld [vmem:[#allocation3 + $0x48] sm:$0xff]
        %v2844 = vld [vmem:[#allocation3 + $0x50] sm:$0xff]
        %v2845 = vld [vmem:[#allocation3 + $0x58] sm:$0xff]
        %v2846 = vld [vmem:[#allocation3 + $0x60] sm:$0xff]
        %v2847 = vld [vmem:[#allocation3 + $0x68] sm:$0xff]
        %v2848 = vld [vmem:[#allocation3 + $0x70] sm:$0xff]
        %v2849 = vld [vmem:[#allocation3 + $0x78] sm:$0xff]
        %v2850 = vld [vmem:[#allocation3 + $0x80] sm:$0xff]
        %v2851 = vld [vmem:[#allocation3 + $0x88] sm:$0xff]
        %v2852 = vld [vmem:[#allocation3 + $0x90] sm:$0xff]
        %v2853 = vld [vmem:[#allocation3 + $0x98] sm:$0xff]
        %v2854 = vld [vmem:[#allocation3 + $0xa0] sm:$0xff]
        %v2855 = vld [vmem:[#allocation3 + $0xa8] sm:$0xff]
        %v2856 = vld [vmem:[#allocation3 + $0xb0] sm:$0xff]
        %v2857 = vld [vmem:[#allocation3 + $0xb8] sm:$0xff]
        %v2858 = vld [vmem:[#allocation3 + $0xc0] sm:$0xff]
        %v2859 = vld [vmem:[#allocation3 + $0xc8] sm:$0xff]
        %v2860 = vld [vmem:[#allocation3 + $0xd0] sm:$0xff]
        %v2861 = vld [vmem:[#allocation3 + $0xd8] sm:$0xff]
        %v2862 = vld [vmem:[#allocation3 + $0xe0] sm:$0xff]
        %v2863 = vld [vmem:[#allocation3 + $0xe8] sm:$0xff]
        %v2864 = vld [vmem:[#allocation3 + $0xf0] sm:$0xff]
        %v2865 = vld [vmem:[#allocation3 + $0xf8] sm:$0xff]
        %v2866 = vld [vmem:[%s359] sm:$0x1]
        %v2868 = vlaneseq
        %v2869 = vshrl.u32 %v2868, 7
        %v2870 = vsub.s32 0, %v2869
        %v2871 = vrot.slane %v2866, %v2870
        %v2873 = vadd.f32 %v2834, %v2871
        %v2874 = vadd.f32 %v2835, %v2871
        %v2875 = vadd.f32 %v2836, %v2871
        %v2876 = vadd.f32 %v2837, %v2871
        %v2877 = vadd.f32 %v2838, %v2871
        %v2878 = vadd.f32 %v2839, %v2871
        %v2879 = vadd.f32 %v2840, %v2871
        %v2880 = vadd.f32 %v2841, %v2871
        %v2881 = vadd.f32 %v2842, %v2871
        %v2882 = vadd.f32 %v2843, %v2871
        %v2883 = vadd.f32 %v2844, %v2871
        %v2884 = vadd.f32 %v2845, %v2871
        %v2885 = vadd.f32 %v2846, %v2871
        %v2886 = vadd.f32 %v2847, %v2871
        %v2887 = vadd.f32 %v2848, %v2871
        %v2888 = vadd.f32 %v2849, %v2871
        %v2889 = vadd.f32 %v2850, %v2871
        %v2890 = vadd.f32 %v2851, %v2871
        %v2891 = vadd.f32 %v2852, %v2871
        %v2892 = vadd.f32 %v2853, %v2871
        %v2893 = vadd.f32 %v2854, %v2871
        %v2894 = vadd.f32 %v2855, %v2871
        %v2895 = vadd.f32 %v2856, %v2871
        %v2896 = vadd.f32 %v2857, %v2871
        %v2897 = vadd.f32 %v2858, %v2871
        %v2898 = vadd.f32 %v2859, %v2871
        %v2899 = vadd.f32 %v2860, %v2871
        %v2900 = vadd.f32 %v2861, %v2871
        %v2901 = vadd.f32 %v2862, %v2871
        %v2902 = vadd.f32 %v2863, %v2871
        %v2903 = vadd.f32 %v2864, %v2871
        %v2904 = vadd.f32 %v2865, %v2871
        %v2905 = vld [vmem:[%s368] sm:$0x1]
        %vm2906 = vcmp.ge.f32.partialorder %v2873, 0.0
        %vm2907 = vcmp.ge.f32.partialorder %v2874, 0.0
        %vm2908 = vcmp.ge.f32.partialorder %v2875, 0.0
        %vm2909 = vcmp.ge.f32.partialorder %v2876, 0.0
        %vm2910 = vcmp.ge.f32.partialorder %v2877, 0.0
        %vm2911 = vcmp.ge.f32.partialorder %v2878, 0.0
        %vm2912 = vcmp.ge.f32.partialorder %v2879, 0.0
        %vm2913 = vcmp.ge.f32.partialorder %v2880, 0.0
        %vm2914 = vcmp.ge.f32.partialorder %v2881, 0.0
        %vm2915 = vcmp.ge.f32.partialorder %v2882, 0.0
        %vm2916 = vcmp.ge.f32.partialorder %v2883, 0.0
        %vm2917 = vcmp.ge.f32.partialorder %v2884, 0.0
        %vm2918 = vcmp.ge.f32.partialorder %v2885, 0.0
        %vm2919 = vcmp.ge.f32.partialorder %v2886, 0.0
        %vm2920 = vcmp.ge.f32.partialorder %v2887, 0.0
        %vm2921 = vcmp.ge.f32.partialorder %v2888, 0.0
        %vm2922 = vcmp.ge.f32.partialorder %v2889, 0.0
        %vm2923 = vcmp.ge.f32.partialorder %v2890, 0.0
        %vm2924 = vcmp.ge.f32.partialorder %v2891, 0.0
        %vm2925 = vcmp.ge.f32.partialorder %v2892, 0.0
        %vm2926 = vcmp.ge.f32.partialorder %v2893, 0.0
        %vm2927 = vcmp.ge.f32.partialorder %v2894, 0.0
        %vm2928 = vcmp.ge.f32.partialorder %v2895, 0.0
        %vm2929 = vcmp.ge.f32.partialorder %v2896, 0.0
        %vm2930 = vcmp.ge.f32.partialorder %v2897, 0.0
        %vm2931 = vcmp.ge.f32.partialorder %v2898, 0.0
        %vm2932 = vcmp.ge.f32.partialorder %v2899, 0.0
        %vm2933 = vcmp.ge.f32.partialorder %v2900, 0.0
        %vm2934 = vcmp.ge.f32.partialorder %v2901, 0.0
        %vm2935 = vcmp.ge.f32.partialorder %v2902, 0.0
        %vm2936 = vcmp.ge.f32.partialorder %v2903, 0.0
        %vm2937 = vcmp.ge.f32.partialorder %v2904, 0.0
        %v2939 = vlaneseq
        %v2940 = vshrl.u32 %v2939, 7
        %v2941 = vsub.s32 0, %v2940
        %v2942 = vrot.slane %v2905, %v2941
        %v2944 = vmul.f32 %v2873, %v2942
        %v2945 = vmul.f32 %v2874, %v2942
        %v2946 = vmul.f32 %v2875, %v2942
        %v2947 = vmul.f32 %v2876, %v2942
        %v2948 = vmul.f32 %v2877, %v2942
        %v2949 = vmul.f32 %v2878, %v2942
        %v2950 = vmul.f32 %v2879, %v2942
        %v2951 = vmul.f32 %v2880, %v2942
        %v2952 = vmul.f32 %v2881, %v2942
        %v2953 = vmul.f32 %v2882, %v2942
        %v2954 = vmul.f32 %v2883, %v2942
        %v2955 = vmul.f32 %v2884, %v2942
        %v2956 = vmul.f32 %v2885, %v2942
        %v2957 = vmul.f32 %v2886, %v2942
        %v2958 = vmul.f32 %v2887, %v2942
        %v2959 = vmul.f32 %v2888, %v2942
        %v2960 = vmul.f32 %v2889, %v2942
        %v2961 = vmul.f32 %v2890, %v2942
        %v2962 = vmul.f32 %v2891, %v2942
        %v2963 = vmul.f32 %v2892, %v2942
        %v2964 = vmul.f32 %v2893, %v2942
        %v2965 = vmul.f32 %v2894, %v2942
        %v2966 = vmul.f32 %v2895, %v2942
        %v2967 = vmul.f32 %v2896, %v2942
        %v2968 = vmul.f32 %v2897, %v2942
        %v2969 = vmul.f32 %v2898, %v2942
        %v2970 = vmul.f32 %v2899, %v2942
        %v2971 = vmul.f32 %v2900, %v2942
        %v2972 = vmul.f32 %v2901, %v2942
        %v2973 = vmul.f32 %v2902, %v2942
        %v2974 = vmul.f32 %v2903, %v2942
        %v2975 = vmul.f32 %v2904, %v2942
        %v2976 = vsel %vm2906, %v2873, %v2944
        %v2977 = vsel %vm2907, %v2874, %v2945
        %v2978 = vsel %vm2908, %v2875, %v2946
        %v2979 = vsel %vm2909, %v2876, %v2947
        %v2980 = vsel %vm2910, %v2877, %v2948
        %v2981 = vsel %vm2911, %v2878, %v2949
        %v2982 = vsel %vm2912, %v2879, %v2950
        %v2983 = vsel %vm2913, %v2880, %v2951
        %v2984 = vsel %vm2914, %v2881, %v2952
        %v2985 = vsel %vm2915, %v2882, %v2953
        %v2986 = vsel %vm2916, %v2883, %v2954
        %v2987 = vsel %vm2917, %v2884, %v2955
        %v2988 = vsel %vm2918, %v2885, %v2956
        %v2989 = vsel %vm2919, %v2886, %v2957
        %v2990 = vsel %vm2920, %v2887, %v2958
        %v2991 = vsel %vm2921, %v2888, %v2959
        %v2992 = vsel %vm2922, %v2889, %v2960
        %v2993 = vsel %vm2923, %v2890, %v2961
        %v2994 = vsel %vm2924, %v2891, %v2962
        %v2995 = vsel %vm2925, %v2892, %v2963
        %v2996 = vsel %vm2926, %v2893, %v2964
        %v2997 = vsel %vm2927, %v2894, %v2965
        %v2998 = vsel %vm2928, %v2895, %v2966
        %v2999 = vsel %vm2929, %v2896, %v2967
        %v3000 = vsel %vm2930, %v2897, %v2968
        %v3001 = vsel %vm2931, %v2898, %v2969
        %v3002 = vsel %vm2932, %v2899, %v2970
        %v3003 = vsel %vm2933, %v2900, %v2971
        %v3004 = vsel %vm2934, %v2901, %v2972
        %v3005 = vsel %vm2935, %v2902, %v2973
        %v3006 = vsel %vm2936, %v2903, %v2974
        %v3007 = vsel %vm2937, %v2904, %v2975
        %v3008 = vpack.c.bf16 %v2977, %v2976
        %v3009 = vpack.c.bf16 %v2979, %v2978
        %v3010 = vpack.c.bf16 %v2981, %v2980
        %v3011 = vpack.c.bf16 %v2983, %v2982
        %v3012 = vpack.c.bf16 %v2985, %v2984
        %v3013 = vpack.c.bf16 %v2987, %v2986
        %v3014 = vpack.c.bf16 %v2989, %v2988
        %v3015 = vpack.c.bf16 %v2991, %v2990
        %v3016 = vpack.c.bf16 %v2993, %v2992
        %v3017 = vpack.c.bf16 %v2995, %v2994
        %v3018 = vpack.c.bf16 %v2997, %v2996
        %v3019 = vpack.c.bf16 %v2999, %v2998
        %v3020 = vpack.c.bf16 %v3001, %v3000
        %v3021 = vpack.c.bf16 %v3003, %v3002
        %v3022 = vpack.c.bf16 %v3005, %v3004
        %v3023 = vpack.c.bf16 %v3007, %v3006
        %v3040 = vunpack.c.l.b16 %v3008
        %v3041 = vunpack.c.h.b16 %v3008
        %v3042 = vunpack.c.l.b16 %v3009
        %v3043 = vunpack.c.h.b16 %v3009
        %v3044 = vunpack.c.l.b16 %v3010
        %v3045 = vunpack.c.h.b16 %v3010
        %v3046 = vunpack.c.l.b16 %v3011
        %v3047 = vunpack.c.h.b16 %v3011
        %v3048 = vunpack.c.l.b16 %v3012
        %v3049 = vunpack.c.h.b16 %v3012
        %v3050 = vunpack.c.l.b16 %v3013
        %v3051 = vunpack.c.h.b16 %v3013
        %v3052 = vunpack.c.l.b16 %v3014
        %v3053 = vunpack.c.h.b16 %v3014
        %v3054 = vunpack.c.l.b16 %v3015
        %v3055 = vunpack.c.h.b16 %v3015
        %v3056 = vunpack.c.l.b16 %v3016
        %v3057 = vunpack.c.h.b16 %v3016
        %v3058 = vunpack.c.l.b16 %v3017
        %v3059 = vunpack.c.h.b16 %v3017
        %v3060 = vunpack.c.l.b16 %v3018
        %v3061 = vunpack.c.h.b16 %v3018
        %v3062 = vunpack.c.l.b16 %v3019
        %v3063 = vunpack.c.h.b16 %v3019
        %v3064 = vunpack.c.l.b16 %v3020
        %v3065 = vunpack.c.h.b16 %v3020
        %v3066 = vunpack.c.l.b16 %v3021
        %v3067 = vunpack.c.h.b16 %v3021
        %v3068 = vunpack.c.l.b16 %v3022
        %v3069 = vunpack.c.h.b16 %v3022
        %v3070 = vunpack.c.l.b16 %v3023
        %v3071 = vunpack.c.h.b16 %v3023
        %v3072 = vpack.c.b16 %v3040, %v3040
        %v3073 = vpack.c.b16 %v3041, %v3041
        %v3074 = vpack.c.b16 %v3042, %v3042
        %v3075 = vpack.c.b16 %v3043, %v3043
        %v3076 = vpack.c.b16 %v3044, %v3044
        %v3077 = vpack.c.b16 %v3045, %v3045
        %v3078 = vpack.c.b16 %v3046, %v3046
        %v3079 = vpack.c.b16 %v3047, %v3047
        %v3080 = vpack.c.b16 %v3048, %v3048
        %v3081 = vpack.c.b16 %v3049, %v3049
        %v3082 = vpack.c.b16 %v3050, %v3050
        %v3083 = vpack.c.b16 %v3051, %v3051
        %v3084 = vpack.c.b16 %v3052, %v3052
        %v3085 = vpack.c.b16 %v3053, %v3053
        %v3086 = vpack.c.b16 %v3054, %v3054
        %v3087 = vpack.c.b16 %v3055, %v3055
        %v3088 = vpack.c.b16 %v3056, %v3056
        %v3089 = vpack.c.b16 %v3057, %v3057
        %v3090 = vpack.c.b16 %v3058, %v3058
        %v3091 = vpack.c.b16 %v3059, %v3059
        %v3092 = vpack.c.b16 %v3060, %v3060
        %v3093 = vpack.c.b16 %v3061, %v3061
        %v3094 = vpack.c.b16 %v3062, %v3062
        %v3095 = vpack.c.b16 %v3063, %v3063
        %v3096 = vpack.c.b16 %v3064, %v3064
        %v3097 = vpack.c.b16 %v3065, %v3065
        %v3098 = vpack.c.b16 %v3066, %v3066
        %v3099 = vpack.c.b16 %v3067, %v3067
        %v3100 = vpack.c.b16 %v3068, %v3068
        %v3101 = vpack.c.b16 %v3069, %v3069
        %v3102 = vpack.c.b16 %v3070, %v3070
        %v3103 = vpack.c.b16 %v3071, %v3071
        %3136 = vst [vmem:[%s376] sm:$0xf] %v3072
        %3137 = vst [vmem:[%s376 + $0x4] sm:$0xf] %v3073
        %3138 = vst [vmem:[%s376 + $0x8] sm:$0xf] %v3074
        %3139 = vst [vmem:[%s376 + $0xc] sm:$0xf] %v3075
        %3140 = vst [vmem:[%s376 + $0x10] sm:$0xf] %v3076
        %3141 = vst [vmem:[%s376 + $0x14] sm:$0xf] %v3077
        %3142 = vst [vmem:[%s376 + $0x18] sm:$0xf] %v3078
        %3143 = vst [vmem:[%s376 + $0x1c] sm:$0xf] %v3079
        %3144 = vst [vmem:[%s376 + $0x20] sm:$0xf] %v3080
        %3145 = vst [vmem:[%s376 + $0x24] sm:$0xf] %v3081
        %3146 = vst [vmem:[%s376 + $0x28] sm:$0xf] %v3082
        %3147 = vst [vmem:[%s376 + $0x2c] sm:$0xf] %v3083
        %3148 = vst [vmem:[%s376 + $0x30] sm:$0xf] %v3084
        %3149 = vst [vmem:[%s376 + $0x34] sm:$0xf] %v3085
        %3150 = vst [vmem:[%s376 + $0x38] sm:$0xf] %v3086
        %3151 = vst [vmem:[%s376 + $0x3c] sm:$0xf] %v3087
        %3152 = vst [vmem:[%s376 + $0x40] sm:$0xf] %v3088
        %3153 = vst [vmem:[%s376 + $0x44] sm:$0xf] %v3089
        %3154 = vst [vmem:[%s376 + $0x48] sm:$0xf] %v3090
        %3155 = vst [vmem:[%s376 + $0x4c] sm:$0xf] %v3091
        %3156 = vst [vmem:[%s376 + $0x50] sm:$0xf] %v3092
        %3157 = vst [vmem:[%s376 + $0x54] sm:$0xf] %v3093
        %3158 = vst [vmem:[%s376 + $0x58] sm:$0xf] %v3094
        %3159 = vst [vmem:[%s376 + $0x5c] sm:$0xf] %v3095
        %3160 = vst [vmem:[%s376 + $0x60] sm:$0xf] %v3096
        %3161 = vst [vmem:[%s376 + $0x64] sm:$0xf] %v3097
        %3162 = vst [vmem:[%s376 + $0x68] sm:$0xf] %v3098
        %3163 = vst [vmem:[%s376 + $0x6c] sm:$0xf] %v3099
        %3164 = vst [vmem:[%s376 + $0x70] sm:$0xf] %v3100
        %3165 = vst [vmem:[%s376 + $0x74] sm:$0xf] %v3101
        %3166 = vst [vmem:[%s376 + $0x78] sm:$0xf] %v3102
        %3167 = vst [vmem:[%s376 + $0x7c] sm:$0xf] %v3103
      $region52: #{double_conv_forward.2} parent=43 // pred_fallthru
        _
      %p3168 = scmp.lt.s32.totalorder %s22, 1
      %s3169 = scalar_select %p3168, %s22, 1
      %p3170 = scmp.lt.s32.totalorder %s23, 0
      %s3171 = scalar_select %p3170, %s23, 0
      %s3172 = smul.addr %s3169, 32
      %s3173 = sadd.s32 %s3171, %s3172
      %s3174 = smul.addr %s3173, 4
      %s3175 = scalar_lea.vmem %s6, %s3174
      // Predicated region
      $region53: #{double_conv_forward.2} parent=43 // pred_check
        %p3176 = pneg %p216
      $region54: #{double_conv_forward.2} parent=43 // pred_check_branch
        %3178 = sbr.rel (%p3176) target = $region56
      $region55: #{double_conv_forward.2} parent=43 // pred_region
        _
      $region56: #{double_conv_forward.2} parent=43 // pred_fallthru
        _
    $region44: #{double_conv_forward.2} parent=5 // pred_fallthru
      _
    %p3179 = scmp.le.s32.totalorder 2, %s12
    // Predicated region
    $region57: #{double_conv_forward.2} parent=5 // pred_check
      %p3180 = pneg %p3179
    $region58: #{double_conv_forward.2} parent=5 // pred_check_branch
      %3182 = sbr.rel (%p3180) target = $region60
    $region59: #{double_conv_forward.2} parent=5 // pred_region
      %s3183 = ssub.s32 %s12, 2
      // Predicated region
      $region61: #{double_conv_forward.2} parent=59 // pred_check
        %p3184 = pneg %p222
      $region62: #{double_conv_forward.2} parent=59 // pred_check_branch
        %3186 = sbr.rel (%p3184) target = $region64
      $region63: #{double_conv_forward.2} parent=59 // pred_region
        %p3187 = scmp.lt.s32.totalorder %s25, 1
        %s3188 = scalar_select %p3187, %s25, 1
        %p3189 = scmp.lt.s32.totalorder %s26, 0
        %s3190 = scalar_select %p3189, %s26, 0
        %s3191 = smul.addr %s3188, 32
        %s3192 = sadd.s32 %s3190, %s3191
        %s3193 = smul.addr %s3192, 4
        %s3194 = scalar_lea.vmem %s6, %s3193
      $region64: #{double_conv_forward.2} parent=59 // pred_fallthru
        _
    $region60: #{double_conv_forward.2} parent=5 // pred_fallthru
      _
  $region6: #{double_conv_forward.2} parent=0 // loop_footer
    %s16 = sadd.s32 1, %s12
  $region7: #{double_conv_forward.2} parent=0 // loop_footer_branch
    %11 = sbr.rel target = $region3
  $region8: #{double_conv_forward.2} parent=0 // loop_exit
    _

</llo_original>
